<compile_context>
chip_gen: v6e
topology: v6e:2x2x1
jax: 0.10.0
libtpu: 0.0.40
codegen_flags: <defaults>
</compile_context>

<pallas_src>
import functools

import jax
import jax.numpy as jnp
from jax.experimental import pallas as pl
from jax.experimental.pallas import tpu as pltpu


# ------------------------------ fused kernel --------------------------------


def _basic_block_kernel(x_ref, w1_ref, w2_ref, ws_ref, bs_ref, pool_ref,
                        o_ref, pad_ref, *, H, W, cin, cout):
    Hp, Wp = H + 2, W + 2
    HW = H * W

    def inorm_lrelu(v):
        # InstanceNorm2d(affine=False, eps=1e-5) + LeakyReLU(0.2).
        # rows = spatial positions, lanes = channels -> per-channel stats are
        # a single-pass sublane reduction (mean and E[x^2] together).
        mean = jnp.mean(v, axis=0, keepdims=True)
        ex2 = jnp.mean(v * v, axis=0, keepdims=True)
        var = ex2 - mean * mean
        y = (v - mean) * jax.lax.rsqrt(var + 1e-5)
        return jnp.where(y >= 0.0, y, 0.2 * y)

    def reflect_pad_to_scratch(v):
        # v: (H*W, cin) slab -> pad_ref (H+2, W+2, cin) with reflection pad 1.
        pad_ref[1:H + 1, 1:W + 1, :] = v.reshape(H, W, cin)
        # left / right columns (reflect within each interior row)
        pad_ref[1:H + 1, 0:1, :] = pad_ref[1:H + 1, 2:3, :]
        pad_ref[1:H + 1, Wp - 1:Wp, :] = pad_ref[1:H + 1, Wp - 3:Wp - 2, :]
        # top / bottom rows across the full (already side-padded) width;
        # corners come out as torch ReflectionPad2d corners.
        pad_ref[0:1, :, :] = pad_ref[2:3, :, :]
        pad_ref[Hp - 1:Hp, :, :] = pad_ref[Hp - 3:Hp - 2, :, :]

    def conv3x3_from_pad(w_ref):
        # 9-tap accumulate: each tap is a shifted window of the VMEM-resident
        # padded activation times a (cin, n_out) weight slice on the MXU.
        acc = None
        for t in range(9):
            ki, kj = divmod(t, 3)
            xt = pad_ref[ki:ki + H, kj:kj + W, :].reshape(HW, cin)
            d = jnp.dot(xt, w_ref[t], preferred_element_type=jnp.float32)
            acc = d if acc is None else acc + d
        return acc

    x2 = x_ref[...]                                            # (H*W, cin)

    # ------------------------------ conv path -------------------------------
    h = inorm_lrelu(x2)
    reflect_pad_to_scratch(h)
    h = conv3x3_from_pad(w1_ref)                               # (H*W, cin)
    h = inorm_lrelu(h)
    reflect_pad_to_scratch(h)
    h = conv3x3_from_pad(w2_ref)                               # (H*W, cout)

    pool = pool_ref[...]                                       # (Ho*Wo, H*W)
    h = jnp.dot(pool, h, preferred_element_type=jnp.float32)   # AvgPool2d(2,2)

    # ------------------------------ shortcut --------------------------------
    s = jnp.dot(pool, x2, preferred_element_type=jnp.float32)  # AvgPool2d(2,2)
    s = jnp.dot(s, ws_ref[...], preferred_element_type=jnp.float32) + bs_ref[...]

    o_ref[...] = (h + s).astype(o_ref.dtype)


# ------------------------------- wrapper -------------------------------------


def basic_block_forward(x_nchw, params):
    """Fused Pallas BasicBlock forward.  x_nchw: (N, Cin, H, W) float32."""
    N, cin, H, W = x_nchw.shape
    cout = params["w2"].shape[0]
    assert H % 8 == 0 and W % 8 == 0, "spatial dims must be multiples of 8"
    Ho, Wo = H // 2, W // 2
    HW, HWo = H * W, Ho * Wo

    # Boundary layout conversion (only place XLA touches activations):
    # NCHW -> (N, H*W, C) slabs with channels on the lane axis.
    x_rows = jnp.transpose(x_nchw, (0, 2, 3, 1)).reshape(N, HW, cin)

    # Weight preprocessing: torch (Cout, Cin, kh, kw) -> (9, Cin, Cout) taps.
    w1_t = jnp.transpose(params["w1"], (2, 3, 1, 0)).reshape(9, cin, cin)
    w2_t = jnp.transpose(params["w2"], (2, 3, 1, 0)).reshape(9, cin, cout)
    ws_t = jnp.transpose(params["ws"][:, :, 0, 0], (1, 0))      # (Cin, Cout)
    bs_t = params["bs"].reshape(1, cout)

    # Constant 2x2 average-pool matrix: pooled_slab = P @ slab.
    r = jnp.arange(HW)
    cell = (r // W // 2) * Wo + (r % W) // 2
    pool = 0.25 * (jnp.arange(HWo)[:, None] == cell[None, :]).astype(jnp.float32)

    kernel = functools.partial(_basic_block_kernel, H=H, W=W, cin=cin, cout=cout)

    out_rows = pl.pallas_call(
        kernel,
        out_shape=jax.ShapeDtypeStruct((N, HWo, cout), jnp.float32),
        grid=(N,),
        in_specs=[
            pl.BlockSpec((None, HW, cin), lambda n: (n, 0, 0)),   # x (per image)
            pl.BlockSpec((9, cin, cin), lambda n: (0, 0, 0)),     # conv1 taps
            pl.BlockSpec((9, cin, cout), lambda n: (0, 0, 0)),    # conv2 taps
            pl.BlockSpec((cin, cout), lambda n: (0, 0)),          # shortcut 1x1
            pl.BlockSpec((1, cout), lambda n: (0, 0)),            # shortcut bias
            pl.BlockSpec((HWo, HW), lambda n: (0, 0)),            # pool matrix
        ],
        out_specs=pl.BlockSpec((None, HWo, cout), lambda n: (n, 0, 0)),
        scratch_shapes=[pltpu.VMEM((H + 2, W + 2, cin), jnp.float32)],
        compiler_params=pltpu.CompilerParams(
            dimension_semantics=("parallel",)),
    )(x_rows, w1_t, w2_t, ws_t, bs_t, pool)

    # Boundary conversion back to NCHW (PyTorch convention).
    return jnp.transpose(out_rows.reshape(N, Ho, Wo, cout), (0, 3, 1, 2))


# ----------------------------- pure-JAX reference ----------------------------


def basic_block_reference(x, params):
    def inorm(v):
        mean = v.mean(axis=(2, 3), keepdims=True)
        var = ((v - mean) ** 2).mean(axis=(2, 3), keepdims=True)
        return (v - mean) * jax.lax.rsqrt(var + 1e-5)

    def lrelu(v):
        return jnp.where(v >= 0, v, 0.2 * v)

    def conv(v, w, b=None, pad=0):
        if pad:
            v = jnp.pad(v, ((0, 0), (0, 0), (pad, pad), (pad, pad)),
                        mode="reflect")
        o = jax.lax.conv_general_dilated(
            v, w, window_strides=(1, 1), padding="VALID",
            dimension_numbers=("NCHW", "OIHW", "NCHW"))
        if b is not None:
            o = o + b[None, :, None, None]
        return o

    def avgpool2(v):
        n, c, h, w = v.shape
        return v.reshape(n, c, h // 2, 2, w // 2, 2).mean(axis=(3, 5))

    h = lrelu(inorm(x))
    h = conv(h, params["w1"], pad=1)
    h = lrelu(inorm(h))
    h = conv(h, params["w2"], pad=1)
    h = avgpool2(h)
    s = avgpool2(x)
    s = conv(s, params["ws"], params["bs"])
    return h + s


# ---------------------------------- main --------------------------------------

if __name__ == "__main__":
    # Small but realistic BasicBlock sizes: inplanes=64 -> outplanes=128,
    # 16x16 spatial, batch 2 (Cout=128 keeps output stores lane-dense).
    B, CIN, COUT, H, W = 2, 64, 128, 16, 16

    root = jax.random.PRNGKey(0)
    kx, k1, k2, k3, k4 = jax.random.split(root, 5)
    x = jax.random.normal(kx, (B, CIN, H, W), dtype=jnp.float32)
    params = {
        "w1": 0.05 * jax.random.normal(k1, (CIN, CIN, 3, 3), dtype=jnp.float32),
        "w2": 0.05 * jax.random.normal(k2, (COUT, CIN, 3, 3), dtype=jnp.float32),
        "ws": 0.05 * jax.random.normal(k3, (COUT, CIN, 1, 1), dtype=jnp.float32),
        "bs": 0.05 * jax.random.normal(k4, (COUT,), dtype=jnp.float32),
    }

    fwd = jax.jit(basic_block_forward)
    out = jax.block_until_ready(fwd(x, params))

    assert out.shape == (B, COUT, H // 2, W // 2), out.shape
    assert bool(jnp.all(jnp.isfinite(out)))

    # Structural correctness check against a pure-JAX reference.  Tolerance is
    # loose because default-precision f32 matmuls on the MXU use bf16 passes.
    ref = jax.jit(basic_block_reference)(x, params)
    err = float(jnp.max(jnp.abs(out - ref)))
    assert err < 5e-2, f"max abs err vs reference: {err}"

    print("KERNEL_OK")
</pallas_src>

<mosaic_0001>
module attributes {stable_mosaic.version = 11 : i64} {
  func.func @_basic_block_kernel(%arg0: i32, %arg1: memref<1x256x64xf32, #tpu.memory_space<vmem>>, %arg2: memref<9x64x64xf32, #tpu.memory_space<vmem>>, %arg3: memref<9x64x128xf32, #tpu.memory_space<vmem>>, %arg4: memref<64x128xf32, #tpu.memory_space<vmem>>, %arg5: memref<1x128xf32, #tpu.memory_space<vmem>>, %arg6: memref<64x256xf32, #tpu.memory_space<vmem>>, %arg7: memref<1x64x128xf32, #tpu.memory_space<vmem>>, %arg8: memref<18x18x64xf32, #tpu.memory_space<vmem>>) attributes {dimension_semantics = [#tpu.dimension_semantics<parallel>], iteration_bounds = array<i64: 2>, scalar_prefetch = 0 : i64, scratch_operands = 1 : i64, tpu.core_type = #tpu.core_type<tc>, window_params = [{transform_indices = @transform_0, window_bounds = array<i64: 1, 256, 64>}, {pipeline_mode = #tpu.pipeline_mode<synchronous>, transform_indices = @transform_1, window_bounds = array<i64: 9, 64, 64>}, {pipeline_mode = #tpu.pipeline_mode<synchronous>, transform_indices = @transform_2, window_bounds = array<i64: 9, 64, 128>}, {pipeline_mode = #tpu.pipeline_mode<synchronous>, transform_indices = @transform_3, window_bounds = array<i64: 64, 128>}, {pipeline_mode = #tpu.pipeline_mode<synchronous>, transform_indices = @transform_4, window_bounds = array<i64: 1, 128>}, {pipeline_mode = #tpu.pipeline_mode<synchronous>, transform_indices = @transform_5, window_bounds = array<i64: 64, 256>}, {transform_indices = @transform_6, window_bounds = array<i64: 1, 64, 128>}]} {
    %c0 = arith.constant 0 : index
    %c0_0 = arith.constant 0 : index
    %c0_1 = arith.constant 0 : index
    %0 = vector.load %arg1[%c0, %c0_0, %c0_1] : memref<1x256x64xf32, #tpu.memory_space<vmem>>, vector<1x256x64xf32>
    %1 = vector.shape_cast %0 : vector<1x256x64xf32> to vector<256x64xf32>
    %cst = arith.constant dense<0.000000e+00> : vector<64xf32>
    %2 = vector.multi_reduction <add>, %1, %cst [0] : vector<256x64xf32> to vector<64xf32>
    %3 = vector.shape_cast %2 : vector<64xf32> to vector<1x64xf32>
    %cst_2 = arith.constant 2.560000e+02 : f32
    %4 = vector.broadcast %cst_2 : f32 to vector<1x64xf32>
    %5 = arith.divf %3, %4 : vector<1x64xf32>
    %6 = arith.mulf %1, %1 : vector<256x64xf32>
    %cst_3 = arith.constant dense<0.000000e+00> : vector<64xf32>
    %7 = vector.multi_reduction <add>, %6, %cst_3 [0] : vector<256x64xf32> to vector<64xf32>
    %8 = vector.shape_cast %7 : vector<64xf32> to vector<1x64xf32>
    %cst_4 = arith.constant 2.560000e+02 : f32
    %9 = vector.broadcast %cst_4 : f32 to vector<1x64xf32>
    %10 = arith.divf %8, %9 : vector<1x64xf32>
    %11 = arith.mulf %5, %5 : vector<1x64xf32>
    %12 = arith.subf %10, %11 : vector<1x64xf32>
    %13 = vector.broadcast %5 : vector<1x64xf32> to vector<256x64xf32>
    %14 = arith.subf %1, %13 : vector<256x64xf32>
    %cst_5 = arith.constant 9.99999974E-6 : f32
    %15 = vector.broadcast %cst_5 : f32 to vector<1x64xf32>
    %16 = arith.addf %12, %15 : vector<1x64xf32>
    %17 = math.rsqrt %16 : vector<1x64xf32>
    %18 = vector.broadcast %17 : vector<1x64xf32> to vector<256x64xf32>
    %19 = arith.mulf %14, %18 : vector<256x64xf32>
    %cst_6 = arith.constant 0.000000e+00 : f32
    %20 = vector.broadcast %cst_6 : f32 to vector<256x64xf32>
    %21 = arith.cmpf oge, %19, %20 : vector<256x64xf32>
    %cst_7 = arith.constant 2.000000e-01 : f32
    %22 = vector.broadcast %cst_7 : f32 to vector<256x64xf32>
    %23 = arith.mulf %22, %19 : vector<256x64xf32>
    %24 = arith.select %21, %19, %23 : vector<256x64xi1>, vector<256x64xf32>
    %25 = vector.shape_cast %24 : vector<256x64xf32> to vector<16x16x64xf32>
    %c1 = arith.constant 1 : index
    %c1_8 = arith.constant 1 : index
    %c0_9 = arith.constant 0 : index
    %26 = vector.load %arg8[%c1, %c1_8, %c0_9] : memref<18x18x64xf32, #tpu.memory_space<vmem>>, vector<16x16x64xf32>
    tpu.vector_store %arg8[%c1, %c1_8, %c0_9], %25 {strides = array<i32>} : memref<18x18x64xf32, #tpu.memory_space<vmem>>, vector<16x16x64xf32>,
    %c1_10 = arith.constant 1 : index
    %c2 = arith.constant 2 : index
    %c0_11 = arith.constant 0 : index
    %27 = vector.load %arg8[%c1_10, %c2, %c0_11] : memref<18x18x64xf32, #tpu.memory_space<vmem>>, vector<16x1x64xf32>
    %c1_12 = arith.constant 1 : index
    %c0_13 = arith.constant 0 : index
    %c0_14 = arith.constant 0 : index
    %28 = vector.load %arg8[%c1_12, %c0_13, %c0_14] : memref<18x18x64xf32, #tpu.memory_space<vmem>>, vector<16x1x64xf32>
    tpu.vector_store %arg8[%c1_12, %c0_13, %c0_14], %27 {strides = array<i32>} : memref<18x18x64xf32, #tpu.memory_space<vmem>>, vector<16x1x64xf32>,
    %c1_15 = arith.constant 1 : index
    %c15 = arith.constant 15 : index
    %c0_16 = arith.constant 0 : index
    %29 = vector.load %arg8[%c1_15, %c15, %c0_16] : memref<18x18x64xf32, #tpu.memory_space<vmem>>, vector<16x1x64xf32>
    %c1_17 = arith.constant 1 : index
    %c17 = arith.constant 17 : index
    %c0_18 = arith.constant 0 : index
    %30 = vector.load %arg8[%c1_17, %c17, %c0_18] : memref<18x18x64xf32, #tpu.memory_space<vmem>>, vector<16x1x64xf32>
    tpu.vector_store %arg8[%c1_17, %c17, %c0_18], %29 {strides = array<i32>} : memref<18x18x64xf32, #tpu.memory_space<vmem>>, vector<16x1x64xf32>,
    %c2_19 = arith.constant 2 : index
    %c0_20 = arith.constant 0 : index
    %c0_21 = arith.constant 0 : index
    %31 = vector.load %arg8[%c2_19, %c0_20, %c0_21] : memref<18x18x64xf32, #tpu.memory_space<vmem>>, vector<1x18x64xf32>
    %c0_22 = arith.constant 0 : index
    %c0_23 = arith.constant 0 : index
    %c0_24 = arith.constant 0 : index
    %32 = vector.load %arg8[%c0_22, %c0_23, %c0_24] : memref<18x18x64xf32, #tpu.memory_space<vmem>>, vector<1x18x64xf32>
    tpu.vector_store %arg8[%c0_22, %c0_23, %c0_24], %31 {strides = array<i32>} : memref<18x18x64xf32, #tpu.memory_space<vmem>>, vector<1x18x64xf32>,
    %c15_25 = arith.constant 15 : index
    %c0_26 = arith.constant 0 : index
    %c0_27 = arith.constant 0 : index
    %33 = vector.load %arg8[%c15_25, %c0_26, %c0_27] : memref<18x18x64xf32, #tpu.memory_space<vmem>>, vector<1x18x64xf32>
    %c17_28 = arith.constant 17 : index
    %c0_29 = arith.constant 0 : index
    %c0_30 = arith.constant 0 : index
    %34 = vector.load %arg8[%c17_28, %c0_29, %c0_30] : memref<18x18x64xf32, #tpu.memory_space<vmem>>, vector<1x18x64xf32>
    tpu.vector_store %arg8[%c17_28, %c0_29, %c0_30], %33 {strides = array<i32>} : memref<18x18x64xf32, #tpu.memory_space<vmem>>, vector<1x18x64xf32>,
    %c0_31 = arith.constant 0 : index
    %c0_32 = arith.constant 0 : index
    %c0_33 = arith.constant 0 : index
    %35 = vector.load %arg8[%c0_31, %c0_32, %c0_33] : memref<18x18x64xf32, #tpu.memory_space<vmem>>, vector<16x16x64xf32>
    %36 = vector.shape_cast %35 : vector<16x16x64xf32> to vector<256x64xf32>
    %c0_34 = arith.constant 0 : index
    %c0_35 = arith.constant 0 : index
    %c0_36 = arith.constant 0 : index
    %37 = vector.load %arg2[%c0_34, %c0_35, %c0_36] : memref<9x64x64xf32, #tpu.memory_space<vmem>>, vector<1x64x64xf32>
    %38 = vector.shape_cast %37 : vector<1x64x64xf32> to vector<64x64xf32>
    %cst_37 = arith.constant dense<0.000000e+00> : vector<256x64xf32>
    %39 = tpu.matmul %36, %38, %cst_37 {dimension_numbers = #tpu.dot_dimension_numbers<[1], [0], [0], [1], [0, 0, 1, 1], [], []>} : vector<256x64xf32>, vector<64x64xf32>, vector<256x64xf32> -> vector<256x64xf32>
    %c0_38 = arith.constant 0 : index
    %c1_39 = arith.constant 1 : index
    %c0_40 = arith.constant 0 : index
    %40 = vector.load %arg8[%c0_38, %c1_39, %c0_40] : memref<18x18x64xf32, #tpu.memory_space<vmem>>, vector<16x16x64xf32>
    %41 = vector.shape_cast %40 : vector<16x16x64xf32> to vector<256x64xf32>
    %c1_41 = arith.constant 1 : index
    %c0_42 = arith.constant 0 : index
    %c0_43 = arith.constant 0 : index
    %42 = vector.load %arg2[%c1_41, %c0_42, %c0_43] : memref<9x64x64xf32, #tpu.memory_space<vmem>>, vector<1x64x64xf32>
    %43 = vector.shape_cast %42 : vector<1x64x64xf32> to vector<64x64xf32>
    %cst_44 = arith.constant dense<0.000000e+00> : vector<256x64xf32>
    %44 = tpu.matmul %41, %43, %cst_44 {dimension_numbers = #tpu.dot_dimension_numbers<[1], [0], [0], [1], [0, 0, 1, 1], [], []>} : vector<256x64xf32>, vector<64x64xf32>, vector<256x64xf32> -> vector<256x64xf32>
    %45 = arith.addf %39, %44 : vector<256x64xf32>
    %c0_45 = arith.constant 0 : index
    %c2_46 = arith.constant 2 : index
    %c0_47 = arith.constant 0 : index
    %46 = vector.load %arg8[%c0_45, %c2_46, %c0_47] : memref<18x18x64xf32, #tpu.memory_space<vmem>>, vector<16x16x64xf32>
    %47 = vector.shape_cast %46 : vector<16x16x64xf32> to vector<256x64xf32>
    %c2_48 = arith.constant 2 : index
    %c0_49 = arith.constant 0 : index
    %c0_50 = arith.constant 0 : index
    %48 = vector.load %arg2[%c2_48, %c0_49, %c0_50] : memref<9x64x64xf32, #tpu.memory_space<vmem>>, vector<1x64x64xf32>
    %49 = vector.shape_cast %48 : vector<1x64x64xf32> to vector<64x64xf32>
    %cst_51 = arith.constant dense<0.000000e+00> : vector<256x64xf32>
    %50 = tpu.matmul %47, %49, %cst_51 {dimension_numbers = #tpu.dot_dimension_numbers<[1], [0], [0], [1], [0, 0, 1, 1], [], []>} : vector<256x64xf32>, vector<64x64xf32>, vector<256x64xf32> -> vector<256x64xf32>
    %51 = arith.addf %45, %50 : vector<256x64xf32>
    %c1_52 = arith.constant 1 : index
    %c0_53 = arith.constant 0 : index
    %c0_54 = arith.constant 0 : index
    %52 = vector.load %arg8[%c1_52, %c0_53, %c0_54] : memref<18x18x64xf32, #tpu.memory_space<vmem>>, vector<16x16x64xf32>
    %53 = vector.shape_cast %52 : vector<16x16x64xf32> to vector<256x64xf32>
    %c3 = arith.constant 3 : index
    %c0_55 = arith.constant 0 : index
    %c0_56 = arith.constant 0 : index
    %54 = vector.load %arg2[%c3, %c0_55, %c0_56] : memref<9x64x64xf32, #tpu.memory_space<vmem>>, vector<1x64x64xf32>
    %55 = vector.shape_cast %54 : vector<1x64x64xf32> to vector<64x64xf32>
    %cst_57 = arith.constant dense<0.000000e+00> : vector<256x64xf32>
    %56 = tpu.matmul %53, %55, %cst_57 {dimension_numbers = #tpu.dot_dimension_numbers<[1], [0], [0], [1], [0, 0, 1, 1], [], []>} : vector<256x64xf32>, vector<64x64xf32>, vector<256x64xf32> -> vector<256x64xf32>
    %57 = arith.addf %51, %56 : vector<256x64xf32>
    %c1_58 = arith.constant 1 : index
    %c1_59 = arith.constant 1 : index
    %c0_60 = arith.constant 0 : index
    %58 = vector.load %arg8[%c1_58, %c1_59, %c0_60] : memref<18x18x64xf32, #tpu.memory_space<vmem>>, vector<16x16x64xf32>
    %59 = vector.shape_cast %58 : vector<16x16x64xf32> to vector<256x64xf32>
    %c4 = arith.constant 4 : index
    %c0_61 = arith.constant 0 : index
    %c0_62 = arith.constant 0 : index
    %60 = vector.load %arg2[%c4, %c0_61, %c0_62] : memref<9x64x64xf32, #tpu.memory_space<vmem>>, vector<1x64x64xf32>
    %61 = vector.shape_cast %60 : vector<1x64x64xf32> to vector<64x64xf32>
    %cst_63 = arith.constant dense<0.000000e+00> : vector<256x64xf32>
    %62 = tpu.matmul %59, %61, %cst_63 {dimension_numbers = #tpu.dot_dimension_numbers<[1], [0], [0], [1], [0, 0, 1, 1], [], []>} : vector<256x64xf32>, vector<64x64xf32>, vector<256x64xf32> -> vector<256x64xf32>
    %63 = arith.addf %57, %62 : vector<256x64xf32>
    %c1_64 = arith.constant 1 : index
    %c2_65 = arith.constant 2 : index
    %c0_66 = arith.constant 0 : index
    %64 = vector.load %arg8[%c1_64, %c2_65, %c0_66] : memref<18x18x64xf32, #tpu.memory_space<vmem>>, vector<16x16x64xf32>
    %65 = vector.shape_cast %64 : vector<16x16x64xf32> to vector<256x64xf32>
    %c5 = arith.constant 5 : index
    %c0_67 = arith.constant 0 : index
    %c0_68 = arith.constant 0 : index
    %66 = vector.load %arg2[%c5, %c0_67, %c0_68] : memref<9x64x64xf32, #tpu.memory_space<vmem>>, vector<1x64x64xf32>
    %67 = vector.shape_cast %66 : vector<1x64x64xf32> to vector<64x64xf32>
    %cst_69 = arith.constant dense<0.000000e+00> : vector<256x64xf32>
    %68 = tpu.matmul %65, %67, %cst_69 {dimension_numbers = #tpu.dot_dimension_numbers<[1], [0], [0], [1], [0, 0, 1, 1], [], []>} : vector<256x64xf32>, vector<64x64xf32>, vector<256x64xf32> -> vector<256x64xf32>
    %69 = arith.addf %63, %68 : vector<256x64xf32>
    %c2_70 = arith.constant 2 : index
    %c0_71 = arith.constant 0 : index
    %c0_72 = arith.constant 0 : index
    %70 = vector.load %arg8[%c2_70, %c0_71, %c0_72] : memref<18x18x64xf32, #tpu.memory_space<vmem>>, vector<16x16x64xf32>
    %71 = vector.shape_cast %70 : vector<16x16x64xf32> to vector<256x64xf32>
    %c6 = arith.constant 6 : index
    %c0_73 = arith.constant 0 : index
    %c0_74 = arith.constant 0 : index
    %72 = vector.load %arg2[%c6, %c0_73, %c0_74] : memref<9x64x64xf32, #tpu.memory_space<vmem>>, vector<1x64x64xf32>
    %73 = vector.shape_cast %72 : vector<1x64x64xf32> to vector<64x64xf32>
    %cst_75 = arith.constant dense<0.000000e+00> : vector<256x64xf32>
    %74 = tpu.matmul %71, %73, %cst_75 {dimension_numbers = #tpu.dot_dimension_numbers<[1], [0], [0], [1], [0, 0, 1, 1], [], []>} : vector<256x64xf32>, vector<64x64xf32>, vector<256x64xf32> -> vector<256x64xf32>
    %75 = arith.addf %69, %74 : vector<256x64xf32>
    %c2_76 = arith.constant 2 : index
    %c1_77 = arith.constant 1 : index
    %c0_78 = arith.constant 0 : index
    %76 = vector.load %arg8[%c2_76, %c1_77, %c0_78] : memref<18x18x64xf32, #tpu.memory_space<vmem>>, vector<16x16x64xf32>
    %77 = vector.shape_cast %76 : vector<16x16x64xf32> to vector<256x64xf32>
    %c7 = arith.constant 7 : index
    %c0_79 = arith.constant 0 : index
    %c0_80 = arith.constant 0 : index
    %78 = vector.load %arg2[%c7, %c0_79, %c0_80] : memref<9x64x64xf32, #tpu.memory_space<vmem>>, vector<1x64x64xf32>
    %79 = vector.shape_cast %78 : vector<1x64x64xf32> to vector<64x64xf32>
    %cst_81 = arith.constant dense<0.000000e+00> : vector<256x64xf32>
    %80 = tpu.matmul %77, %79, %cst_81 {dimension_numbers = #tpu.dot_dimension_numbers<[1], [0], [0], [1], [0, 0, 1, 1], [], []>} : vector<256x64xf32>, vector<64x64xf32>, vector<256x64xf32> -> vector<256x64xf32>
    %81 = arith.addf %75, %80 : vector<256x64xf32>
    %c2_82 = arith.constant 2 : index
    %c2_83 = arith.constant 2 : index
    %c0_84 = arith.constant 0 : index
    %82 = vector.load %arg8[%c2_82, %c2_83, %c0_84] : memref<18x18x64xf32, #tpu.memory_space<vmem>>, vector<16x16x64xf32>
    %83 = vector.shape_cast %82 : vector<16x16x64xf32> to vector<256x64xf32>
    %c8 = arith.constant 8 : index
    %c0_85 = arith.constant 0 : index
    %c0_86 = arith.constant 0 : index
    %84 = vector.load %arg2[%c8, %c0_85, %c0_86] : memref<9x64x64xf32, #tpu.memory_space<vmem>>, vector<1x64x64xf32>
    %85 = vector.shape_cast %84 : vector<1x64x64xf32> to vector<64x64xf32>
    %cst_87 = arith.constant dense<0.000000e+00> : vector<256x64xf32>
    %86 = tpu.matmul %83, %85, %cst_87 {dimension_numbers = #tpu.dot_dimension_numbers<[1], [0], [0], [1], [0, 0, 1, 1], [], []>} : vector<256x64xf32>, vector<64x64xf32>, vector<256x64xf32> -> vector<256x64xf32>
    %87 = arith.addf %81, %86 : vector<256x64xf32>
    %cst_88 = arith.constant dense<0.000000e+00> : vector<64xf32>
    %88 = vector.multi_reduction <add>, %87, %cst_88 [0] : vector<256x64xf32> to vector<64xf32>
    %89 = vector.shape_cast %88 : vector<64xf32> to vector<1x64xf32>
    %cst_89 = arith.constant 2.560000e+02 : f32
    %90 = vector.broadcast %cst_89 : f32 to vector<1x64xf32>
    %91 = arith.divf %89, %90 : vector<1x64xf32>
    %92 = arith.mulf %87, %87 : vector<256x64xf32>
    %cst_90 = arith.constant dense<0.000000e+00> : vector<64xf32>
    %93 = vector.multi_reduction <add>, %92, %cst_90 [0] : vector<256x64xf32> to vector<64xf32>
    %94 = vector.shape_cast %93 : vector<64xf32> to vector<1x64xf32>
    %cst_91 = arith.constant 2.560000e+02 : f32
    %95 = vector.broadcast %cst_91 : f32 to vector<1x64xf32>
    %96 = arith.divf %94, %95 : vector<1x64xf32>
    %97 = arith.mulf %91, %91 : vector<1x64xf32>
    %98 = arith.subf %96, %97 : vector<1x64xf32>
    %99 = vector.broadcast %91 : vector<1x64xf32> to vector<256x64xf32>
    %100 = arith.subf %87, %99 : vector<256x64xf32>
    %cst_92 = arith.constant 9.99999974E-6 : f32
    %101 = vector.broadcast %cst_92 : f32 to vector<1x64xf32>
    %102 = arith.addf %98, %101 : vector<1x64xf32>
    %103 = math.rsqrt %102 : vector<1x64xf32>
    %104 = vector.broadcast %103 : vector<1x64xf32> to vector<256x64xf32>
    %105 = arith.mulf %100, %104 : vector<256x64xf32>
    %cst_93 = arith.constant 0.000000e+00 : f32
    %106 = vector.broadcast %cst_93 : f32 to vector<256x64xf32>
    %107 = arith.cmpf oge, %105, %106 : vector<256x64xf32>
    %cst_94 = arith.constant 2.000000e-01 : f32
    %108 = vector.broadcast %cst_94 : f32 to vector<256x64xf32>
    %109 = arith.mulf %108, %105 : vector<256x64xf32>
    %110 = arith.select %107, %105, %109 : vector<256x64xi1>, vector<256x64xf32>
    %111 = vector.shape_cast %110 : vector<256x64xf32> to vector<16x16x64xf32>
    %c1_95 = arith.constant 1 : index
    %c1_96 = arith.constant 1 : index
    %c0_97 = arith.constant 0 : index
    %112 = vector.load %arg8[%c1_95, %c1_96, %c0_97] : memref<18x18x64xf32, #tpu.memory_space<vmem>>, vector<16x16x64xf32>
    tpu.vector_store %arg8[%c1_95, %c1_96, %c0_97], %111 {strides = array<i32>} : memref<18x18x64xf32, #tpu.memory_space<vmem>>, vector<16x16x64xf32>,
    %c1_98 = arith.constant 1 : index
    %c2_99 = arith.constant 2 : index
    %c0_100 = arith.constant 0 : index
    %113 = vector.load %arg8[%c1_98, %c2_99, %c0_100] : memref<18x18x64xf32, #tpu.memory_space<vmem>>, vector<16x1x64xf32>
    %c1_101 = arith.constant 1 : index
    %c0_102 = arith.constant 0 : index
    %c0_103 = arith.constant 0 : index
    %114 = vector.load %arg8[%c1_101, %c0_102, %c0_103] : memref<18x18x64xf32, #tpu.memory_space<vmem>>, vector<16x1x64xf32>
    tpu.vector_store %arg8[%c1_101, %c0_102, %c0_103], %113 {strides = array<i32>} : memref<18x18x64xf32, #tpu.memory_space<vmem>>, vector<16x1x64xf32>,
    %c1_104 = arith.constant 1 : index
    %c15_105 = arith.constant 15 : index
    %c0_106 = arith.constant 0 : index
    %115 = vector.load %arg8[%c1_104, %c15_105, %c0_106] : memref<18x18x64xf32, #tpu.memory_space<vmem>>, vector<16x1x64xf32>
    %c1_107 = arith.constant 1 : index
    %c17_108 = arith.constant 17 : index
    %c0_109 = arith.constant 0 : index
    %116 = vector.load %arg8[%c1_107, %c17_108, %c0_109] : memref<18x18x64xf32, #tpu.memory_space<vmem>>, vector<16x1x64xf32>
    tpu.vector_store %arg8[%c1_107, %c17_108, %c0_109], %115 {strides = array<i32>} : memref<18x18x64xf32, #tpu.memory_space<vmem>>, vector<16x1x64xf32>,
    %c2_110 = arith.constant 2 : index
    %c0_111 = arith.constant 0 : index
    %c0_112 = arith.constant 0 : index
    %117 = vector.load %arg8[%c2_110, %c0_111, %c0_112] : memref<18x18x64xf32, #tpu.memory_space<vmem>>, vector<1x18x64xf32>
    %c0_113 = arith.constant 0 : index
    %c0_114 = arith.constant 0 : index
    %c0_115 = arith.constant 0 : index
    %118 = vector.load %arg8[%c0_113, %c0_114, %c0_115] : memref<18x18x64xf32, #tpu.memory_space<vmem>>, vector<1x18x64xf32>
    tpu.vector_store %arg8[%c0_113, %c0_114, %c0_115], %117 {strides = array<i32>} : memref<18x18x64xf32, #tpu.memory_space<vmem>>, vector<1x18x64xf32>,
    %c15_116 = arith.constant 15 : index
    %c0_117 = arith.constant 0 : index
    %c0_118 = arith.constant 0 : index
    %119 = vector.load %arg8[%c15_116, %c0_117, %c0_118] : memref<18x18x64xf32, #tpu.memory_space<vmem>>, vector<1x18x64xf32>
    %c17_119 = arith.constant 17 : index
    %c0_120 = arith.constant 0 : index
    %c0_121 = arith.constant 0 : index
    %120 = vector.load %arg8[%c17_119, %c0_120, %c0_121] : memref<18x18x64xf32, #tpu.memory_space<vmem>>, vector<1x18x64xf32>
    tpu.vector_store %arg8[%c17_119, %c0_120, %c0_121], %119 {strides = array<i32>} : memref<18x18x64xf32, #tpu.memory_space<vmem>>, vector<1x18x64xf32>,
    %c0_122 = arith.constant 0 : index
    %c0_123 = arith.constant 0 : index
    %c0_124 = arith.constant 0 : index
    %121 = vector.load %arg8[%c0_122, %c0_123, %c0_124] : memref<18x18x64xf32, #tpu.memory_space<vmem>>, vector<16x16x64xf32>
    %122 = vector.shape_cast %121 : vector<16x16x64xf32> to vector<256x64xf32>
    %c0_125 = arith.constant 0 : index
    %c0_126 = arith.constant 0 : index
    %c0_127 = arith.constant 0 : index
    %123 = vector.load %arg3[%c0_125, %c0_126, %c0_127] : memref<9x64x128xf32, #tpu.memory_space<vmem>>, vector<1x64x128xf32>
    %124 = vector.shape_cast %123 : vector<1x64x128xf32> to vector<64x128xf32>
    %cst_128 = arith.constant dense<0.000000e+00> : vector<256x128xf32>
    %125 = tpu.matmul %122, %124, %cst_128 {dimension_numbers = #tpu.dot_dimension_numbers<[1], [0], [0], [1], [0, 0, 1, 1], [], []>} : vector<256x64xf32>, vector<64x128xf32>, vector<256x128xf32> -> vector<256x128xf32>
    %c0_129 = arith.constant 0 : index
    %c1_130 = arith.constant 1 : index
    %c0_131 = arith.constant 0 : index
    %126 = vector.load %arg8[%c0_129, %c1_130, %c0_131] : memref<18x18x64xf32, #tpu.memory_space<vmem>>, vector<16x16x64xf32>
    %127 = vector.shape_cast %126 : vector<16x16x64xf32> to vector<256x64xf32>
    %c1_132 = arith.constant 1 : index
    %c0_133 = arith.constant 0 : index
    %c0_134 = arith.constant 0 : index
    %128 = vector.load %arg3[%c1_132, %c0_133, %c0_134] : memref<9x64x128xf32, #tpu.memory_space<vmem>>, vector<1x64x128xf32>
    %129 = vector.shape_cast %128 : vector<1x64x128xf32> to vector<64x128xf32>
    %cst_135 = arith.constant dense<0.000000e+00> : vector<256x128xf32>
    %130 = tpu.matmul %127, %129, %cst_135 {dimension_numbers = #tpu.dot_dimension_numbers<[1], [0], [0], [1], [0, 0, 1, 1], [], []>} : vector<256x64xf32>, vector<64x128xf32>, vector<256x128xf32> -> vector<256x128xf32>
    %131 = arith.addf %125, %130 : vector<256x128xf32>
    %c0_136 = arith.constant 0 : index
    %c2_137 = arith.constant 2 : index
    %c0_138 = arith.constant 0 : index
    %132 = vector.load %arg8[%c0_136, %c2_137, %c0_138] : memref<18x18x64xf32, #tpu.memory_space<vmem>>, vector<16x16x64xf32>
    %133 = vector.shape_cast %132 : vector<16x16x64xf32> to vector<256x64xf32>
    %c2_139 = arith.constant 2 : index
    %c0_140 = arith.constant 0 : index
    %c0_141 = arith.constant 0 : index
    %134 = vector.load %arg3[%c2_139, %c0_140, %c0_141] : memref<9x64x128xf32, #tpu.memory_space<vmem>>, vector<1x64x128xf32>
    %135 = vector.shape_cast %134 : vector<1x64x128xf32> to vector<64x128xf32>
    %cst_142 = arith.constant dense<0.000000e+00> : vector<256x128xf32>
    %136 = tpu.matmul %133, %135, %cst_142 {dimension_numbers = #tpu.dot_dimension_numbers<[1], [0], [0], [1], [0, 0, 1, 1], [], []>} : vector<256x64xf32>, vector<64x128xf32>, vector<256x128xf32> -> vector<256x128xf32>
    %137 = arith.addf %131, %136 : vector<256x128xf32>
    %c1_143 = arith.constant 1 : index
    %c0_144 = arith.constant 0 : index
    %c0_145 = arith.constant 0 : index
    %138 = vector.load %arg8[%c1_143, %c0_144, %c0_145] : memref<18x18x64xf32, #tpu.memory_space<vmem>>, vector<16x16x64xf32>
    %139 = vector.shape_cast %138 : vector<16x16x64xf32> to vector<256x64xf32>
    %c3_146 = arith.constant 3 : index
    %c0_147 = arith.constant 0 : index
    %c0_148 = arith.constant 0 : index
    %140 = vector.load %arg3[%c3_146, %c0_147, %c0_148] : memref<9x64x128xf32, #tpu.memory_space<vmem>>, vector<1x64x128xf32>
    %141 = vector.shape_cast %140 : vector<1x64x128xf32> to vector<64x128xf32>
    %cst_149 = arith.constant dense<0.000000e+00> : vector<256x128xf32>
    %142 = tpu.matmul %139, %141, %cst_149 {dimension_numbers = #tpu.dot_dimension_numbers<[1], [0], [0], [1], [0, 0, 1, 1], [], []>} : vector<256x64xf32>, vector<64x128xf32>, vector<256x128xf32> -> vector<256x128xf32>
    %143 = arith.addf %137, %142 : vector<256x128xf32>
    %c1_150 = arith.constant 1 : index
    %c1_151 = arith.constant 1 : index
    %c0_152 = arith.constant 0 : index
    %144 = vector.load %arg8[%c1_150, %c1_151, %c0_152] : memref<18x18x64xf32, #tpu.memory_space<vmem>>, vector<16x16x64xf32>
    %145 = vector.shape_cast %144 : vector<16x16x64xf32> to vector<256x64xf32>
    %c4_153 = arith.constant 4 : index
    %c0_154 = arith.constant 0 : index
    %c0_155 = arith.constant 0 : index
    %146 = vector.load %arg3[%c4_153, %c0_154, %c0_155] : memref<9x64x128xf32, #tpu.memory_space<vmem>>, vector<1x64x128xf32>
    %147 = vector.shape_cast %146 : vector<1x64x128xf32> to vector<64x128xf32>
    %cst_156 = arith.constant dense<0.000000e+00> : vector<256x128xf32>
    %148 = tpu.matmul %145, %147, %cst_156 {dimension_numbers = #tpu.dot_dimension_numbers<[1], [0], [0], [1], [0, 0, 1, 1], [], []>} : vector<256x64xf32>, vector<64x128xf32>, vector<256x128xf32> -> vector<256x128xf32>
    %149 = arith.addf %143, %148 : vector<256x128xf32>
    %c1_157 = arith.constant 1 : index
    %c2_158 = arith.constant 2 : index
    %c0_159 = arith.constant 0 : index
    %150 = vector.load %arg8[%c1_157, %c2_158, %c0_159] : memref<18x18x64xf32, #tpu.memory_space<vmem>>, vector<16x16x64xf32>
    %151 = vector.shape_cast %150 : vector<16x16x64xf32> to vector<256x64xf32>
    %c5_160 = arith.constant 5 : index
    %c0_161 = arith.constant 0 : index
    %c0_162 = arith.constant 0 : index
    %152 = vector.load %arg3[%c5_160, %c0_161, %c0_162] : memref<9x64x128xf32, #tpu.memory_space<vmem>>, vector<1x64x128xf32>
    %153 = vector.shape_cast %152 : vector<1x64x128xf32> to vector<64x128xf32>
    %cst_163 = arith.constant dense<0.000000e+00> : vector<256x128xf32>
    %154 = tpu.matmul %151, %153, %cst_163 {dimension_numbers = #tpu.dot_dimension_numbers<[1], [0], [0], [1], [0, 0, 1, 1], [], []>} : vector<256x64xf32>, vector<64x128xf32>, vector<256x128xf32> -> vector<256x128xf32>
    %155 = arith.addf %149, %154 : vector<256x128xf32>
    %c2_164 = arith.constant 2 : index
    %c0_165 = arith.constant 0 : index
    %c0_166 = arith.constant 0 : index
    %156 = vector.load %arg8[%c2_164, %c0_165, %c0_166] : memref<18x18x64xf32, #tpu.memory_space<vmem>>, vector<16x16x64xf32>
    %157 = vector.shape_cast %156 : vector<16x16x64xf32> to vector<256x64xf32>
    %c6_167 = arith.constant 6 : index
    %c0_168 = arith.constant 0 : index
    %c0_169 = arith.constant 0 : index
    %158 = vector.load %arg3[%c6_167, %c0_168, %c0_169] : memref<9x64x128xf32, #tpu.memory_space<vmem>>, vector<1x64x128xf32>
    %159 = vector.shape_cast %158 : vector<1x64x128xf32> to vector<64x128xf32>
    %cst_170 = arith.constant dense<0.000000e+00> : vector<256x128xf32>
    %160 = tpu.matmul %157, %159, %cst_170 {dimension_numbers = #tpu.dot_dimension_numbers<[1], [0], [0], [1], [0, 0, 1, 1], [], []>} : vector<256x64xf32>, vector<64x128xf32>, vector<256x128xf32> -> vector<256x128xf32>
    %161 = arith.addf %155, %160 : vector<256x128xf32>
    %c2_171 = arith.constant 2 : index
    %c1_172 = arith.constant 1 : index
    %c0_173 = arith.constant 0 : index
    %162 = vector.load %arg8[%c2_171, %c1_172, %c0_173] : memref<18x18x64xf32, #tpu.memory_space<vmem>>, vector<16x16x64xf32>
    %163 = vector.shape_cast %162 : vector<16x16x64xf32> to vector<256x64xf32>
    %c7_174 = arith.constant 7 : index
    %c0_175 = arith.constant 0 : index
    %c0_176 = arith.constant 0 : index
    %164 = vector.load %arg3[%c7_174, %c0_175, %c0_176] : memref<9x64x128xf32, #tpu.memory_space<vmem>>, vector<1x64x128xf32>
    %165 = vector.shape_cast %164 : vector<1x64x128xf32> to vector<64x128xf32>
    %cst_177 = arith.constant dense<0.000000e+00> : vector<256x128xf32>
    %166 = tpu.matmul %163, %165, %cst_177 {dimension_numbers = #tpu.dot_dimension_numbers<[1], [0], [0], [1], [0, 0, 1, 1], [], []>} : vector<256x64xf32>, vector<64x128xf32>, vector<256x128xf32> -> vector<256x128xf32>
    %167 = arith.addf %161, %166 : vector<256x128xf32>
    %c2_178 = arith.constant 2 : index
    %c2_179 = arith.constant 2 : index
    %c0_180 = arith.constant 0 : index
    %168 = vector.load %arg8[%c2_178, %c2_179, %c0_180] : memref<18x18x64xf32, #tpu.memory_space<vmem>>, vector<16x16x64xf32>
    %169 = vector.shape_cast %168 : vector<16x16x64xf32> to vector<256x64xf32>
    %c8_181 = arith.constant 8 : index
    %c0_182 = arith.constant 0 : index
    %c0_183 = arith.constant 0 : index
    %170 = vector.load %arg3[%c8_181, %c0_182, %c0_183] : memref<9x64x128xf32, #tpu.memory_space<vmem>>, vector<1x64x128xf32>
    %171 = vector.shape_cast %170 : vector<1x64x128xf32> to vector<64x128xf32>
    %cst_184 = arith.constant dense<0.000000e+00> : vector<256x128xf32>
    %172 = tpu.matmul %169, %171, %cst_184 {dimension_numbers = #tpu.dot_dimension_numbers<[1], [0], [0], [1], [0, 0, 1, 1], [], []>} : vector<256x64xf32>, vector<64x128xf32>, vector<256x128xf32> -> vector<256x128xf32>
    %173 = arith.addf %167, %172 : vector<256x128xf32>
    %c0_185 = arith.constant 0 : index
    %c0_186 = arith.constant 0 : index
    %174 = vector.load %arg6[%c0_185, %c0_186] : memref<64x256xf32, #tpu.memory_space<vmem>>, vector<64x256xf32>
    %cst_187 = arith.constant dense<0.000000e+00> : vector<64x128xf32>
    %175 = tpu.matmul %174, %173, %cst_187 {dimension_numbers = #tpu.dot_dimension_numbers<[1], [0], [0], [1], [0, 0, 1, 1], [], []>} : vector<64x256xf32>, vector<256x128xf32>, vector<64x128xf32> -> vector<64x128xf32>
    %cst_188 = arith.constant dense<0.000000e+00> : vector<64x64xf32>
    %176 = tpu.matmul %174, %1, %cst_188 {dimension_numbers = #tpu.dot_dimension_numbers<[1], [0], [0], [1], [0, 0, 1, 1], [], []>} : vector<64x256xf32>, vector<256x64xf32>, vector<64x64xf32> -> vector<64x64xf32>
    %c0_189 = arith.constant 0 : index
    %c0_190 = arith.constant 0 : index
    %177 = vector.load %arg4[%c0_189, %c0_190] : memref<64x128xf32, #tpu.memory_space<vmem>>, vector<64x128xf32>
    %cst_191 = arith.constant dense<0.000000e+00> : vector<64x128xf32>
    %178 = tpu.matmul %176, %177, %cst_191 {dimension_numbers = #tpu.dot_dimension_numbers<[1], [0], [0], [1], [0, 0, 1, 1], [], []>} : vector<64x64xf32>, vector<64x128xf32>, vector<64x128xf32> -> vector<64x128xf32>
    %c0_192 = arith.constant 0 : index
    %c0_193 = arith.constant 0 : index
    %179 = vector.load %arg5[%c0_192, %c0_193] : memref<1x128xf32, #tpu.memory_space<vmem>>, vector<1x128xf32>
    %180 = vector.broadcast %179 : vector<1x128xf32> to vector<64x128xf32>
    %181 = arith.addf %178, %180 : vector<64x128xf32>
    %182 = arith.addf %175, %181 : vector<64x128xf32>
    %c0_194 = arith.constant 0 : index
    %c0_195 = arith.constant 0 : index
    %c0_196 = arith.constant 0 : index
    %183 = vector.load %arg7[%c0_194, %c0_195, %c0_196] : memref<1x64x128xf32, #tpu.memory_space<vmem>>, vector<1x64x128xf32>
    %184 = vector.shape_cast %183 : vector<1x64x128xf32> to vector<64x128xf32>
    %185 = vector.shape_cast %182 : vector<64x128xf32> to vector<1x64x128xf32>
    tpu.vector_store %arg7[%c0_194, %c0_195, %c0_196], %185 {strides = array<i32>} : memref<1x64x128xf32, #tpu.memory_space<vmem>>, vector<1x64x128xf32>,
    return
  }
  func.func @transform_0(%arg0: i32) -> (i32, i32, i32) {
    %c0_i32 = arith.constant 0 : i32
    %c0_i32_0 = arith.constant 0 : i32
    %c0_i32_1 = arith.constant 0 : i32
    return %arg0, %c0_i32, %c0_i32_0 : i32, i32, i32
  }
  func.func @transform_1(%arg0: i32) -> (i32, i32, i32) {
    %c0_i32 = arith.constant 0 : i32
    %c0_i32_0 = arith.constant 0 : i32
    %c0_i32_1 = arith.constant 0 : i32
    %c0_i32_2 = arith.constant 0 : i32
    return %c0_i32, %c0_i32_0, %c0_i32_1 : i32, i32, i32
  }
  func.func @transform_2(%arg0: i32) -> (i32, i32, i32) {
    %c0_i32 = arith.constant 0 : i32
    %c0_i32_0 = arith.constant 0 : i32
    %c0_i32_1 = arith.constant 0 : i32
    %c0_i32_2 = arith.constant 0 : i32
    return %c0_i32, %c0_i32_0, %c0_i32_1 : i32, i32, i32
  }
  func.func @transform_3(%arg0: i32) -> (i32, i32) {
    %c0_i32 = arith.constant 0 : i32
    %c0_i32_0 = arith.constant 0 : i32
    %c0_i32_1 = arith.constant 0 : i32
    return %c0_i32, %c0_i32_0 : i32, i32
  }
  func.func @transform_4(%arg0: i32) -> (i32, i32) {
    %c0_i32 = arith.constant 0 : i32
    %c0_i32_0 = arith.constant 0 : i32
    %c0_i32_1 = arith.constant 0 : i32
    return %c0_i32, %c0_i32_0 : i32, i32
  }
  func.func @transform_5(%arg0: i32) -> (i32, i32) {
    %c0_i32 = arith.constant 0 : i32
    %c0_i32_0 = arith.constant 0 : i32
    %c0_i32_1 = arith.constant 0 : i32
    return %c0_i32, %c0_i32_0 : i32, i32
  }
  func.func @transform_6(%arg0: i32) -> (i32, i32, i32) {
    %c0_i32 = arith.constant 0 : i32
    %c0_i32_0 = arith.constant 0 : i32
    %c0_i32_1 = arith.constant 0 : i32
    return %arg0, %c0_i32, %c0_i32_0 : i32, i32, i32
  }
}

</mosaic_0001>

<llo_original>
// kernel: basic_block_forward.1
$region0: #{basic_block_forward.1}
  #allocation0 [shape = 'u32[]', space=smem, size = 0x4, offset = 0x4, fixed_abs, tag = 'smem constant byte address 0x4 - core index']
  #allocation1 [shape = 'u32[144,128]{1,0:T(1,128)}', space=vmem, size = 0x12000, scoped, tag = 'internal scratch']
  #allocation2 [shape = 'f32[18,18,64]{2,1,0:T(8,128)}', space=vmem, size = 0x36000, scoped, tag = 'scratch operand']
  %s0 = inlined_call_operand.vmem [shape: f32[2,256,64], index: 0, kind: input, shape index: {}]
  %s1 = inlined_call_operand.vmem [shape: f32[9,64,64], index: 1, kind: input, shape index: {}]
  %s2 = inlined_call_operand.vmem [shape: f32[9,64,128], index: 2, kind: input, shape index: {}]
  %s3 = inlined_call_operand.vmem [shape: f32[64,128], index: 3, kind: input, shape index: {}]
  %s4 = inlined_call_operand.vmem [shape: f32[1,128], index: 4, kind: input, shape index: {}]
  %s5 = inlined_call_operand.vmem [shape: f32[64,256], index: 5, kind: input, shape index: {}]
  %s6 = inlined_call_operand.hbm [shape: f32[2,64,128], index: 6, kind: output, shape index: {}]
  %s7 = sld [smem:[#allocation0]]
  $region57: #{basic_block_forward.1} parent=0
    _
  %s9 = ssub.s32 1, %s7
  %s10 = scalar_select 0, %s9, %s7
  $region1: #{basic_block_forward.1} parent=0
    #allocation3 [shape = 'u8[65536]{0}', space=vmem, size = 0x10000, scoped, tag = 'output window, operand 0']
    #allocation4 [shape = 's32[2]{0}', space=sflag, size = 0x8, scoped, tag = 'scoped memory for basic_block_forward.1']
    %11 = vsyncpa [#allocation4], 0
    %s12 = scalar_lea.sflag [#allocation4], 1
    %13 = vsyncpa %s12, 0
    loop: start=0, step=1, limit=4
    $region2: #{basic_block_forward.1} parent=1 // loop_pre_header
      _
    $region3: #{basic_block_forward.1} parent=1 // loop_header
      %s15 = sphi 0, %s19
      %p16 = scmp.ge.s32.totalorder %s15, 4
      %s25 = sphi 0, %s27
      %s28 = sphi 0, %s25
      %s29 = sphi 0, %s28
      %s45 = sphi 0, %s29
      %s49 = sphi 0, %s49
      %s51 = sphi 0, %s49
      %s52 = sphi 0, %s51
      %s66 = sphi 0, %s52
      %s70 = sphi 0, %s70
      %s72 = sphi 0, %s70
      %s73 = sphi 0, %s72
      %s87 = sphi 0, %s73
      %s91 = sphi 0, %s91
      %s93 = sphi 0, %s91
      %s94 = sphi 0, %s93
      %s108 = sphi 0, %s94
      %s112 = sphi 0, %s112
      %s114 = sphi 0, %s112
      %s115 = sphi 0, %s114
      %s129 = sphi 0, %s115
      %s133 = sphi 0, %s133
      %s135 = sphi 0, %s133
      %s136 = sphi 0, %s135
      %s150 = sphi 0, %s136
      %s156 = sphi 0, %s158
      %s159 = sphi 0, %s156
      %s160 = sphi 0, %s159
      %s176 = sphi 0, %s160
    $region4: #{basic_block_forward.1} parent=1 // loop_header_branch
      %18 = sbr.rel (%p16) target = $region8
    $region5: #{basic_block_forward.1} parent=1 // loop_body
      %s20 = ssub.s32 %s15, 1
      %s21 = ssub.s32 %s15, 2
      %s22 = sadd.s32 %s15, 1
      %s23 = ssub.s32 %s15, %s22
      %p24 = scmp.eq.s32.totalorder %s23, 0
      %s26 = sadd.s32 %s25, 1
      %s27 = scalar_select %p24, %s25, %s26
      %p30 = pneg %p24
      %p31 = scmp.eq.s32.totalorder %s15, 1
      %p32 = por %p30, %p31
      %p33 = scmp.ne.s32.totalorder %s25, %s28
      %p34 = scmp.eq.s32.totalorder %s15, 0
      %p35 = por %p33, %p34
      %p36 = scmp.ne.s32.totalorder %s25, %s28
      %p37 = scmp.eq.s32.totalorder %s20, 1
      %p38 = por %p36, %p37
      %p39 = scmp.ne.s32.totalorder %s28, %s29
      %p40 = scmp.eq.s32.totalorder %s20, 0
      %p41 = por %p39, %p40
      %p42 = scmp.ne.s32.totalorder %s28, %s29
      %p43 = scmp.eq.s32.totalorder %s21, 1
      %p44 = por %p42, %p43
      %p46 = scmp.ne.s32.totalorder %s29, %s45
      %p47 = scmp.eq.s32.totalorder %s21, 0
      %p48 = por %p46, %p47
      %s50 = sadd.s32 %s49, 1
      %p53 = scmp.eq.s32.totalorder %s15, 1
      %p54 = scmp.ne.s32.totalorder %s49, %s51
      %p55 = scmp.eq.s32.totalorder %s15, 0
      %p56 = por %p54, %p55
      %p57 = scmp.ne.s32.totalorder %s49, %s51
      %p58 = scmp.eq.s32.totalorder %s20, 1
      %p59 = por %p57, %p58
      %p60 = scmp.ne.s32.totalorder %s51, %s52
      %p61 = scmp.eq.s32.totalorder %s20, 0
      %p62 = por %p60, %p61
      %p63 = scmp.ne.s32.totalorder %s51, %s52
      %p64 = scmp.eq.s32.totalorder %s21, 1
      %p65 = por %p63, %p64
      %p67 = scmp.ne.s32.totalorder %s52, %s66
      %p68 = scmp.eq.s32.totalorder %s21, 0
      %p69 = por %p67, %p68
      %s71 = sadd.s32 %s70, 1
      %p74 = scmp.eq.s32.totalorder %s15, 1
      %p75 = scmp.ne.s32.totalorder %s70, %s72
      %p76 = scmp.eq.s32.totalorder %s15, 0
      %p77 = por %p75, %p76
      %p78 = scmp.ne.s32.totalorder %s70, %s72
      %p79 = scmp.eq.s32.totalorder %s20, 1
      %p80 = por %p78, %p79
      %p81 = scmp.ne.s32.totalorder %s72, %s73
      %p82 = scmp.eq.s32.totalorder %s20, 0
      %p83 = por %p81, %p82
      %p84 = scmp.ne.s32.totalorder %s72, %s73
      %p85 = scmp.eq.s32.totalorder %s21, 1
      %p86 = por %p84, %p85
      %p88 = scmp.ne.s32.totalorder %s73, %s87
      %p89 = scmp.eq.s32.totalorder %s21, 0
      %p90 = por %p88, %p89
      %s92 = sadd.s32 %s91, 1
      %p95 = scmp.eq.s32.totalorder %s15, 1
      %p96 = scmp.ne.s32.totalorder %s91, %s93
      %p97 = scmp.eq.s32.totalorder %s15, 0
      %p98 = por %p96, %p97
      %p99 = scmp.ne.s32.totalorder %s91, %s93
      %p100 = scmp.eq.s32.totalorder %s20, 1
      %p101 = por %p99, %p100
      %p102 = scmp.ne.s32.totalorder %s93, %s94
      %p103 = scmp.eq.s32.totalorder %s20, 0
      %p104 = por %p102, %p103
      %p105 = scmp.ne.s32.totalorder %s93, %s94
      %p106 = scmp.eq.s32.totalorder %s21, 1
      %p107 = por %p105, %p106
      %p109 = scmp.ne.s32.totalorder %s94, %s108
      %p110 = scmp.eq.s32.totalorder %s21, 0
      %p111 = por %p109, %p110
      %s113 = sadd.s32 %s112, 1
      %p116 = scmp.eq.s32.totalorder %s15, 1
      %p117 = scmp.ne.s32.totalorder %s112, %s114
      %p118 = scmp.eq.s32.totalorder %s15, 0
      %p119 = por %p117, %p118
      %p120 = scmp.ne.s32.totalorder %s112, %s114
      %p121 = scmp.eq.s32.totalorder %s20, 1
      %p122 = por %p120, %p121
      %p123 = scmp.ne.s32.totalorder %s114, %s115
      %p124 = scmp.eq.s32.totalorder %s20, 0
      %p125 = por %p123, %p124
      %p126 = scmp.ne.s32.totalorder %s114, %s115
      %p127 = scmp.eq.s32.totalorder %s21, 1
      %p128 = por %p126, %p127
      %p130 = scmp.ne.s32.totalorder %s115, %s129
      %p131 = scmp.eq.s32.totalorder %s21, 0
      %p132 = por %p130, %p131
      %s134 = sadd.s32 %s133, 1
      %p137 = scmp.eq.s32.totalorder %s15, 1
      %p138 = scmp.ne.s32.totalorder %s133, %s135
      %p139 = scmp.eq.s32.totalorder %s15, 0
      %p140 = por %p138, %p139
      %p141 = scmp.ne.s32.totalorder %s133, %s135
      %p142 = scmp.eq.s32.totalorder %s20, 1
      %p143 = por %p141, %p142
      %p144 = scmp.ne.s32.totalorder %s135, %s136
      %p145 = scmp.eq.s32.totalorder %s20, 0
      %p146 = por %p144, %p145
      %p147 = scmp.ne.s32.totalorder %s135, %s136
      %p148 = scmp.eq.s32.totalorder %s21, 1
      %p149 = por %p147, %p148
      %p151 = scmp.ne.s32.totalorder %s136, %s150
      %p152 = scmp.eq.s32.totalorder %s21, 0
      %p153 = por %p151, %p152
      %s154 = ssub.s32 %s15, %s22
      %p155 = scmp.eq.s32.totalorder %s154, 0
      %s157 = sadd.s32 %s156, 1
      %s158 = scalar_select %p155, %s156, %s157
      %p161 = pneg %p155
      %p162 = scmp.eq.s32.totalorder %s15, 1
      %p163 = por %p161, %p162
      %p164 = scmp.ne.s32.totalorder %s156, %s159
      %p165 = scmp.eq.s32.totalorder %s15, 0
      %p166 = por %p164, %p165
      %p167 = scmp.ne.s32.totalorder %s156, %s159
      %p168 = scmp.eq.s32.totalorder %s20, 1
      %p169 = por %p167, %p168
      %p170 = scmp.ne.s32.totalorder %s159, %s160
      %p171 = scmp.eq.s32.totalorder %s20, 0
      %p172 = por %p170, %p171
      %p173 = scmp.ne.s32.totalorder %s159, %s160
      %p174 = scmp.eq.s32.totalorder %s21, 1
      %p175 = por %p173, %p174
      %p177 = scmp.ne.s32.totalorder %s160, %s176
      %p178 = scmp.eq.s32.totalorder %s21, 0
      %p179 = por %p177, %p178
      %p180 = scmp.le.s32.totalorder 1, %s15
      %p181 = scmp.lt.s32.totalorder %s15, 3
      %p182 = pnand %p180, %p181
      %p183 = pneg %p182
      // Predicated region
      $region9: #{basic_block_forward.1} parent=5 // pred_check
        _
      $region10: #{basic_block_forward.1} parent=5 // pred_check_branch
        %185 = sbr.rel (%p182) target = $region12
      $region11: #{basic_block_forward.1} parent=5 // pred_region
        %s186 = ssub.s32 %s15, 1
        // Predicated region
        $region13: #{basic_block_forward.1} parent=11 // pred_check
          %p187 = pneg %p62
        $region14: #{basic_block_forward.1} parent=11 // pred_check_branch
          %189 = sbr.rel (%p187) target = $region16
        $region15: #{basic_block_forward.1} parent=11 // pred_region
          _
        $region16: #{basic_block_forward.1} parent=11 // pred_fallthru
          _
        // Predicated region
        $region17: #{basic_block_forward.1} parent=11 // pred_check
          %p190 = pneg %p83
        $region18: #{basic_block_forward.1} parent=11 // pred_check_branch
          %192 = sbr.rel (%p190) target = $region20
        $region19: #{basic_block_forward.1} parent=11 // pred_region
          _
        $region20: #{basic_block_forward.1} parent=11 // pred_fallthru
          _
        // Predicated region
        $region21: #{basic_block_forward.1} parent=11 // pred_check
          %p193 = pneg %p104
        $region22: #{basic_block_forward.1} parent=11 // pred_check_branch
          %195 = sbr.rel (%p193) target = $region24
        $region23: #{basic_block_forward.1} parent=11 // pred_region
          _
        $region24: #{basic_block_forward.1} parent=11 // pred_fallthru
          _
        // Predicated region
        $region25: #{basic_block_forward.1} parent=11 // pred_check
          %p196 = pneg %p125
        $region26: #{basic_block_forward.1} parent=11 // pred_check_branch
          %198 = sbr.rel (%p196) target = $region28
        $region27: #{basic_block_forward.1} parent=11 // pred_region
          _
        $region28: #{basic_block_forward.1} parent=11 // pred_fallthru
          _
        // Predicated region
        $region29: #{basic_block_forward.1} parent=11 // pred_check
          %p199 = pneg %p146
        $region30: #{basic_block_forward.1} parent=11 // pred_check_branch
          %201 = sbr.rel (%p199) target = $region32
        $region31: #{basic_block_forward.1} parent=11 // pred_region
          _
        $region32: #{basic_block_forward.1} parent=11 // pred_fallthru
          _
      $region12: #{basic_block_forward.1} parent=5 // pred_fallthru
        _
      %p202 = scmp.lt.s32.totalorder %s15, 2
      // Predicated region
      $region33: #{basic_block_forward.1} parent=5 // pred_check
        %p203 = pneg %p202
      $region34: #{basic_block_forward.1} parent=5 // pred_check_branch
        %205 = sbr.rel (%p203) target = $region36
      $region35: #{basic_block_forward.1} parent=5 // pred_region
        // Predicated region
        $region37: #{basic_block_forward.1} parent=35 // pred_check
          %p206 = pneg %p35
        $region38: #{basic_block_forward.1} parent=35 // pred_check_branch
          %208 = sbr.rel (%p206) target = $region40
        $region39: #{basic_block_forward.1} parent=35 // pred_region
          %p209 = scmp.lt.s32.totalorder %s15, 1
          %s210 = scalar_select %p209, %s15, 1
          %s211 = smul.addr %s210, 32
          %s212 = smul.addr %s211, 8
          %s213 = scalar_lea.vmem %s0, %s212
        $region40: #{basic_block_forward.1} parent=35 // pred_fallthru
          _
      $region36: #{basic_block_forward.1} parent=5 // pred_fallthru
        _
      %p214 = scmp.le.s32.totalorder 1, %s15
      %p215 = scmp.lt.s32.totalorder %s15, 3
      %p216 = pnand %p214, %p215
      %p217 = pneg %p216
      // Predicated region
      $region41: #{basic_block_forward.1} parent=5 // pred_check
        _
      $region42: #{basic_block_forward.1} parent=5 // pred_check_branch
        %219 = sbr.rel (%p216) target = $region44
      $region43: #{basic_block_forward.1} parent=5 // pred_region
        %s220 = ssub.s32 %s15, 1
        %p221 = scmp.lt.s32.totalorder %s20, 1
        %s222 = scalar_select %p221, %s20, 1
        %s223 = smul.addr %s222, 32
        %s224 = smul.addr %s223, 8
        %s225 = scalar_lea.vmem %s0, %s224
        %p226 = pneg %p41
        %p227 = pneg %p38
        %p228 = pneg %p62
        %p229 = pneg %p59
        %p230 = pneg %p83
        %p231 = pneg %p80
        %p232 = pneg %p104
        %p233 = pneg %p101
        %p234 = pneg %p125
        %p235 = pneg %p122
        %p236 = pneg %p146
        %p237 = pneg %p143
        %p238 = pneg %p172
        %p239 = pneg %p169
        %s240 = sand.u32 %s159, 1
        %s241 = scalar_lea.sflag [#allocation4], %s240
        %s242 = sand.u32 %s159, 1
        %s243 = smul.addr %s242, 64
        %s244 = scalar_lea.vmem [#allocation3], %s243
        %p245 = scmp.lt.s32.totalorder %s20, 1
        %s246 = scalar_select %p245, %s20, 1
        %s247 = smul.addr %s246, 32
        %s248 = smul.addr %s247, 8
        %s249 = scalar_lea.vmem %s0, %s248
        %v250 = vld [vmem:[%s249] sm:$0xff]
        %v251 = vld [vmem:[%s249 + $0x8] sm:$0xff]
        %v252 = vld [vmem:[%s249 + $0x10] sm:$0xff]
        %v253 = vld [vmem:[%s249 + $0x18] sm:$0xff]
        %v254 = vld [vmem:[%s249 + $0x20] sm:$0xff]
        %v255 = vld [vmem:[%s249 + $0x28] sm:$0xff]
        %v256 = vld [vmem:[%s249 + $0x30] sm:$0xff]
        %v257 = vld [vmem:[%s249 + $0x38] sm:$0xff]
        %v258 = vld [vmem:[%s249 + $0x40] sm:$0xff]
        %v259 = vld [vmem:[%s249 + $0x48] sm:$0xff]
        %v260 = vld [vmem:[%s249 + $0x50] sm:$0xff]
        %v261 = vld [vmem:[%s249 + $0x58] sm:$0xff]
        %v262 = vld [vmem:[%s249 + $0x60] sm:$0xff]
        %v263 = vld [vmem:[%s249 + $0x68] sm:$0xff]
        %v264 = vld [vmem:[%s249 + $0x70] sm:$0xff]
        %v265 = vld [vmem:[%s249 + $0x78] sm:$0xff]
        %v266 = vld [vmem:[%s249 + $0x80] sm:$0xff]
        %v267 = vld [vmem:[%s249 + $0x88] sm:$0xff]
        %v268 = vld [vmem:[%s249 + $0x90] sm:$0xff]
        %v269 = vld [vmem:[%s249 + $0x98] sm:$0xff]
        %v270 = vld [vmem:[%s249 + $0xa0] sm:$0xff]
        %v271 = vld [vmem:[%s249 + $0xa8] sm:$0xff]
        %v272 = vld [vmem:[%s249 + $0xb0] sm:$0xff]
        %v273 = vld [vmem:[%s249 + $0xb8] sm:$0xff]
        %v274 = vld [vmem:[%s249 + $0xc0] sm:$0xff]
        %v275 = vld [vmem:[%s249 + $0xc8] sm:$0xff]
        %v276 = vld [vmem:[%s249 + $0xd0] sm:$0xff]
        %v277 = vld [vmem:[%s249 + $0xd8] sm:$0xff]
        %v278 = vld [vmem:[%s249 + $0xe0] sm:$0xff]
        %v279 = vld [vmem:[%s249 + $0xe8] sm:$0xff]
        %v280 = vld [vmem:[%s249 + $0xf0] sm:$0xff]
        %v281 = vld [vmem:[%s249 + $0xf8] sm:$0xff]
        %vm282 = vcmask 523264
        %v283 = vsel %vm282, %v250, 0.0
        %v284 = vsel %vm282, %v251, 0.0
        %v285 = vadd.f32 %v283, %v284
        %v286 = vsel %vm282, %v252, 0.0
        %v287 = vadd.f32 %v285, %v286
        %v288 = vsel %vm282, %v253, 0.0
        %v289 = vadd.f32 %v287, %v288
        %v290 = vsel %vm282, %v254, 0.0
        %v291 = vadd.f32 %v289, %v290
        %v292 = vsel %vm282, %v255, 0.0
        %v293 = vadd.f32 %v291, %v292
        %v294 = vsel %vm282, %v256, 0.0
        %v295 = vadd.f32 %v293, %v294
        %v296 = vsel %vm282, %v257, 0.0
        %v297 = vadd.f32 %v295, %v296
        %v298 = vsel %vm282, %v258, 0.0
        %v299 = vadd.f32 %v297, %v298
        %v300 = vsel %vm282, %v259, 0.0
        %v301 = vadd.f32 %v299, %v300
        %v302 = vsel %vm282, %v260, 0.0
        %v303 = vadd.f32 %v301, %v302
        %v304 = vsel %vm282, %v261, 0.0
        %v305 = vadd.f32 %v303, %v304
        %v306 = vsel %vm282, %v262, 0.0
        %v307 = vadd.f32 %v305, %v306
        %v308 = vsel %vm282, %v263, 0.0
        %v309 = vadd.f32 %v307, %v308
        %v310 = vsel %vm282, %v264, 0.0
        %v311 = vadd.f32 %v309, %v310
        %v312 = vsel %vm282, %v265, 0.0
        %v313 = vadd.f32 %v311, %v312
        %v314 = vsel %vm282, %v266, 0.0
        %v315 = vadd.f32 %v313, %v314
        %v316 = vsel %vm282, %v267, 0.0
        %v317 = vadd.f32 %v315, %v316
        %v318 = vsel %vm282, %v268, 0.0
        %v319 = vadd.f32 %v317, %v318
        %v320 = vsel %vm282, %v269, 0.0
        %v321 = vadd.f32 %v319, %v320
        %v322 = vsel %vm282, %v270, 0.0
        %v323 = vadd.f32 %v321, %v322
        %v324 = vsel %vm282, %v271, 0.0
        %v325 = vadd.f32 %v323, %v324
        %v326 = vsel %vm282, %v272, 0.0
        %v327 = vadd.f32 %v325, %v326
        %v328 = vsel %vm282, %v273, 0.0
        %v329 = vadd.f32 %v327, %v328
        %v330 = vsel %vm282, %v274, 0.0
        %v331 = vadd.f32 %v329, %v330
        %v332 = vsel %vm282, %v275, 0.0
        %v333 = vadd.f32 %v331, %v332
        %v334 = vsel %vm282, %v276, 0.0
        %v335 = vadd.f32 %v333, %v334
        %v336 = vsel %vm282, %v277, 0.0
        %v337 = vadd.f32 %v335, %v336
        %v338 = vsel %vm282, %v278, 0.0
        %v339 = vadd.f32 %v337, %v338
        %v340 = vsel %vm282, %v279, 0.0
        %v341 = vadd.f32 %v339, %v340
        %v342 = vsel %vm282, %v280, 0.0
        %v343 = vadd.f32 %v341, %v342
        %v344 = vsel %vm282, %v281, 0.0
        %v345 = vadd.f32 %v343, %v344
        %v346 = vrot.slane %v345, 4
        %v347 = vadd.f32 %v345, %v346
        %v348 = vrot.slane %v347, 2
        %v349 = vadd.f32 %v347, %v348
        %v350 = vrot.slane %v349, 1
        %v351 = vadd.f32 %v349, %v350
        %v352 = vrcp.pop 256.0
        %v353 = vmul.f32 %v351, %v352
        %v354 = vmul.f32 %v250, %v250
        %v355 = vmul.f32 %v251, %v251
        %v356 = vmul.f32 %v252, %v252
        %v357 = vmul.f32 %v253, %v253
        %v358 = vmul.f32 %v254, %v254
        %v359 = vmul.f32 %v255, %v255
        %v360 = vmul.f32 %v256, %v256
        %v361 = vmul.f32 %v257, %v257
        %v362 = vmul.f32 %v258, %v258
        %v363 = vmul.f32 %v259, %v259
        %v364 = vmul.f32 %v260, %v260
        %v365 = vmul.f32 %v261, %v261
        %v366 = vmul.f32 %v262, %v262
        %v367 = vmul.f32 %v263, %v263
        %v368 = vmul.f32 %v264, %v264
        %v369 = vmul.f32 %v265, %v265
        %v370 = vmul.f32 %v266, %v266
        %v371 = vmul.f32 %v267, %v267
        %v372 = vmul.f32 %v268, %v268
        %v373 = vmul.f32 %v269, %v269
        %v374 = vmul.f32 %v270, %v270
        %v375 = vmul.f32 %v271, %v271
        %v376 = vmul.f32 %v272, %v272
        %v377 = vmul.f32 %v273, %v273
        %v378 = vmul.f32 %v274, %v274
        %v379 = vmul.f32 %v275, %v275
        %v380 = vmul.f32 %v276, %v276
        %v381 = vmul.f32 %v277, %v277
        %v382 = vmul.f32 %v278, %v278
        %v383 = vmul.f32 %v279, %v279
        %v384 = vmul.f32 %v280, %v280
        %v385 = vmul.f32 %v281, %v281
        %v386 = vsel %vm282, %v354, 0.0
        %v387 = vsel %vm282, %v355, 0.0
        %v388 = vadd.f32 %v386, %v387
        %v389 = vsel %vm282, %v356, 0.0
        %v390 = vadd.f32 %v388, %v389
        %v391 = vsel %vm282, %v357, 0.0
        %v392 = vadd.f32 %v390, %v391
        %v393 = vsel %vm282, %v358, 0.0
        %v394 = vadd.f32 %v392, %v393
        %v395 = vsel %vm282, %v359, 0.0
        %v396 = vadd.f32 %v394, %v395
        %v397 = vsel %vm282, %v360, 0.0
        %v398 = vadd.f32 %v396, %v397
        %v399 = vsel %vm282, %v361, 0.0
        %v400 = vadd.f32 %v398, %v399
        %v401 = vsel %vm282, %v362, 0.0
        %v402 = vadd.f32 %v400, %v401
        %v403 = vsel %vm282, %v363, 0.0
        %v404 = vadd.f32 %v402, %v403
        %v405 = vsel %vm282, %v364, 0.0
        %v406 = vadd.f32 %v404, %v405
        %v407 = vsel %vm282, %v365, 0.0
        %v408 = vadd.f32 %v406, %v407
        %v409 = vsel %vm282, %v366, 0.0
        %v410 = vadd.f32 %v408, %v409
        %v411 = vsel %vm282, %v367, 0.0
        %v412 = vadd.f32 %v410, %v411
        %v413 = vsel %vm282, %v368, 0.0
        %v414 = vadd.f32 %v412, %v413
        %v415 = vsel %vm282, %v369, 0.0
        %v416 = vadd.f32 %v414, %v415
        %v417 = vsel %vm282, %v370, 0.0
        %v418 = vadd.f32 %v416, %v417
        %v419 = vsel %vm282, %v371, 0.0
        %v420 = vadd.f32 %v418, %v419
        %v421 = vsel %vm282, %v372, 0.0
        %v422 = vadd.f32 %v420, %v421
        %v423 = vsel %vm282, %v373, 0.0
        %v424 = vadd.f32 %v422, %v423
        %v425 = vsel %vm282, %v374, 0.0
        %v426 = vadd.f32 %v424, %v425
        %v427 = vsel %vm282, %v375, 0.0
        %v428 = vadd.f32 %v426, %v427
        %v429 = vsel %vm282, %v376, 0.0
        %v430 = vadd.f32 %v428, %v429
        %v431 = vsel %vm282, %v377, 0.0
        %v432 = vadd.f32 %v430, %v431
        %v433 = vsel %vm282, %v378, 0.0
        %v434 = vadd.f32 %v432, %v433
        %v435 = vsel %vm282, %v379, 0.0
        %v436 = vadd.f32 %v434, %v435
        %v437 = vsel %vm282, %v380, 0.0
        %v438 = vadd.f32 %v436, %v437
        %v439 = vsel %vm282, %v381, 0.0
        %v440 = vadd.f32 %v438, %v439
        %v441 = vsel %vm282, %v382, 0.0
        %v442 = vadd.f32 %v440, %v441
        %v443 = vsel %vm282, %v383, 0.0
        %v444 = vadd.f32 %v442, %v443
        %v445 = vsel %vm282, %v384, 0.0
        %v446 = vadd.f32 %v444, %v445
        %v447 = vsel %vm282, %v385, 0.0
        %v448 = vadd.f32 %v446, %v447
        %v449 = vrot.slane %v448, 4
        %v450 = vadd.f32 %v448, %v449
        %v451 = vrot.slane %v450, 2
        %v452 = vadd.f32 %v450, %v451
        %v453 = vrot.slane %v452, 1
        %v454 = vadd.f32 %v452, %v453
        %v455 = vmul.f32 %v454, %v352
        %v456 = vmul.f32 %v353, %v353
        %v457 = vsub.f32 %v455, %v456
        %v458 = vsub.f32 %v250, %v353
        %v459 = vsub.f32 %v251, %v353
        %v460 = vsub.f32 %v252, %v353
        %v461 = vsub.f32 %v253, %v353
        %v462 = vsub.f32 %v254, %v353
        %v463 = vsub.f32 %v255, %v353
        %v464 = vsub.f32 %v256, %v353
        %v465 = vsub.f32 %v257, %v353
        %v466 = vsub.f32 %v258, %v353
        %v467 = vsub.f32 %v259, %v353
        %v468 = vsub.f32 %v260, %v353
        %v469 = vsub.f32 %v261, %v353
        %v470 = vsub.f32 %v262, %v353
        %v471 = vsub.f32 %v263, %v353
        %v472 = vsub.f32 %v264, %v353
        %v473 = vsub.f32 %v265, %v353
        %v474 = vsub.f32 %v266, %v353
        %v475 = vsub.f32 %v267, %v353
        %v476 = vsub.f32 %v268, %v353
        %v477 = vsub.f32 %v269, %v353
        %v478 = vsub.f32 %v270, %v353
        %v479 = vsub.f32 %v271, %v353
        %v480 = vsub.f32 %v272, %v353
        %v481 = vsub.f32 %v273, %v353
        %v482 = vsub.f32 %v274, %v353
        %v483 = vsub.f32 %v275, %v353
        %v484 = vsub.f32 %v276, %v353
        %v485 = vsub.f32 %v277, %v353
        %v486 = vsub.f32 %v278, %v353
        %v487 = vsub.f32 %v279, %v353
        %v488 = vsub.f32 %v280, %v353
        %v489 = vsub.f32 %v281, %v353
        %v490 = vadd.f32 %v457, 1e-05
        %v491 = vrsqrt.pop %v490
        %v492 = vmul.f32 %v458, %v491
        %v493 = vmul.f32 %v459, %v491
        %v494 = vmul.f32 %v460, %v491
        %v495 = vmul.f32 %v461, %v491
        %v496 = vmul.f32 %v462, %v491
        %v497 = vmul.f32 %v463, %v491
        %v498 = vmul.f32 %v464, %v491
        %v499 = vmul.f32 %v465, %v491
        %v500 = vmul.f32 %v466, %v491
        %v501 = vmul.f32 %v467, %v491
        %v502 = vmul.f32 %v468, %v491
        %v503 = vmul.f32 %v469, %v491
        %v504 = vmul.f32 %v470, %v491
        %v505 = vmul.f32 %v471, %v491
        %v506 = vmul.f32 %v472, %v491
        %v507 = vmul.f32 %v473, %v491
        %v508 = vmul.f32 %v474, %v491
        %v509 = vmul.f32 %v475, %v491
        %v510 = vmul.f32 %v476, %v491
        %v511 = vmul.f32 %v477, %v491
        %v512 = vmul.f32 %v478, %v491
        %v513 = vmul.f32 %v479, %v491
        %v514 = vmul.f32 %v480, %v491
        %v515 = vmul.f32 %v481, %v491
        %v516 = vmul.f32 %v482, %v491
        %v517 = vmul.f32 %v483, %v491
        %v518 = vmul.f32 %v484, %v491
        %v519 = vmul.f32 %v485, %v491
        %v520 = vmul.f32 %v486, %v491
        %v521 = vmul.f32 %v487, %v491
        %v522 = vmul.f32 %v488, %v491
        %v523 = vmul.f32 %v489, %v491
        %vm524 = vcmp.ge.f32.partialorder %v492, 0.0
        %vm525 = vcmp.ge.f32.partialorder %v493, 0.0
        %vm526 = vcmp.ge.f32.partialorder %v494, 0.0
        %vm527 = vcmp.ge.f32.partialorder %v495, 0.0
        %vm528 = vcmp.ge.f32.partialorder %v496, 0.0
        %vm529 = vcmp.ge.f32.partialorder %v497, 0.0
        %vm530 = vcmp.ge.f32.partialorder %v498, 0.0
        %vm531 = vcmp.ge.f32.partialorder %v499, 0.0
        %vm532 = vcmp.ge.f32.partialorder %v500, 0.0
        %vm533 = vcmp.ge.f32.partialorder %v501, 0.0
        %vm534 = vcmp.ge.f32.partialorder %v502, 0.0
        %vm535 = vcmp.ge.f32.partialorder %v503, 0.0
        %vm536 = vcmp.ge.f32.partialorder %v504, 0.0
        %vm537 = vcmp.ge.f32.partialorder %v505, 0.0
        %vm538 = vcmp.ge.f32.partialorder %v506, 0.0
        %vm539 = vcmp.ge.f32.partialorder %v507, 0.0
        %vm540 = vcmp.ge.f32.partialorder %v508, 0.0
        %vm541 = vcmp.ge.f32.partialorder %v509, 0.0
        %vm542 = vcmp.ge.f32.partialorder %v510, 0.0
        %vm543 = vcmp.ge.f32.partialorder %v511, 0.0
        %vm544 = vcmp.ge.f32.partialorder %v512, 0.0
        %vm545 = vcmp.ge.f32.partialorder %v513, 0.0
        %vm546 = vcmp.ge.f32.partialorder %v514, 0.0
        %vm547 = vcmp.ge.f32.partialorder %v515, 0.0
        %vm548 = vcmp.ge.f32.partialorder %v516, 0.0
        %vm549 = vcmp.ge.f32.partialorder %v517, 0.0
        %vm550 = vcmp.ge.f32.partialorder %v518, 0.0
        %vm551 = vcmp.ge.f32.partialorder %v519, 0.0
        %vm552 = vcmp.ge.f32.partialorder %v520, 0.0
        %vm553 = vcmp.ge.f32.partialorder %v521, 0.0
        %vm554 = vcmp.ge.f32.partialorder %v522, 0.0
        %vm555 = vcmp.ge.f32.partialorder %v523, 0.0
        %v556 = vmul.f32 %v492, 0.2
        %v557 = vmul.f32 %v493, 0.2
        %v558 = vmul.f32 %v494, 0.2
        %v559 = vmul.f32 %v495, 0.2
        %v560 = vmul.f32 %v496, 0.2
        %v561 = vmul.f32 %v497, 0.2
        %v562 = vmul.f32 %v498, 0.2
        %v563 = vmul.f32 %v499, 0.2
        %v564 = vmul.f32 %v500, 0.2
        %v565 = vmul.f32 %v501, 0.2
        %v566 = vmul.f32 %v502, 0.2
        %v567 = vmul.f32 %v503, 0.2
        %v568 = vmul.f32 %v504, 0.2
        %v569 = vmul.f32 %v505, 0.2
        %v570 = vmul.f32 %v506, 0.2
        %v571 = vmul.f32 %v507, 0.2
        %v572 = vmul.f32 %v508, 0.2
        %v573 = vmul.f32 %v509, 0.2
        %v574 = vmul.f32 %v510, 0.2
        %v575 = vmul.f32 %v511, 0.2
        %v576 = vmul.f32 %v512, 0.2
        %v577 = vmul.f32 %v513, 0.2
        %v578 = vmul.f32 %v514, 0.2
        %v579 = vmul.f32 %v515, 0.2
        %v580 = vmul.f32 %v516, 0.2
        %v581 = vmul.f32 %v517, 0.2
        %v582 = vmul.f32 %v518, 0.2
        %v583 = vmul.f32 %v519, 0.2
        %v584 = vmul.f32 %v520, 0.2
        %v585 = vmul.f32 %v521, 0.2
        %v586 = vmul.f32 %v522, 0.2
        %v587 = vmul.f32 %v523, 0.2
        %v588 = vsel %vm524, %v492, %v556
        %v589 = vsel %vm525, %v493, %v557
        %v590 = vsel %vm526, %v494, %v558
        %v591 = vsel %vm527, %v495, %v559
        %v592 = vsel %vm528, %v496, %v560
        %v593 = vsel %vm529, %v497, %v561
        %v594 = vsel %vm530, %v498, %v562
        %v595 = vsel %vm531, %v499, %v563
        %v596 = vsel %vm532, %v500, %v564
        %v597 = vsel %vm533, %v501, %v565
        %v598 = vsel %vm534, %v502, %v566
        %v599 = vsel %vm535, %v503, %v567
        %v600 = vsel %vm536, %v504, %v568
        %v601 = vsel %vm537, %v505, %v569
        %v602 = vsel %vm538, %v506, %v570
        %v603 = vsel %vm539, %v507, %v571
        %v604 = vsel %vm540, %v508, %v572
        %v605 = vsel %vm541, %v509, %v573
        %v606 = vsel %vm542, %v510, %v574
        %v607 = vsel %vm543, %v511, %v575
        %v608 = vsel %vm544, %v512, %v576
        %v609 = vsel %vm545, %v513, %v577
        %v610 = vsel %vm546, %v514, %v578
        %v611 = vsel %vm547, %v515, %v579
        %v612 = vsel %vm548, %v516, %v580
        %v613 = vsel %vm549, %v517, %v581
        %v614 = vsel %vm550, %v518, %v582
        %v615 = vsel %vm551, %v519, %v583
        %v616 = vsel %vm552, %v520, %v584
        %v617 = vsel %vm553, %v521, %v585
        %v618 = vsel %vm554, %v522, %v586
        %v619 = vsel %vm555, %v523, %v587
        %s620 = scalar_lea.vmem [#allocation2], 24
        %621 = vst.msk [vmem:[%s620 + $0x1] sm:$0xff] %vm282, %v588
        %622 = vst.msk [vmem:[%s620 + $0x9] sm:$0xff] %vm282, %v589
        %623 = vst.msk [vmem:[%s620 + $0x19] sm:$0xff] %vm282, %v590
        %624 = vst.msk [vmem:[%s620 + $0x21] sm:$0xff] %vm282, %v591
        %625 = vst.msk [vmem:[%s620 + $0x31] sm:$0xff] %vm282, %v592
        %626 = vst.msk [vmem:[%s620 + $0x39] sm:$0xff] %vm282, %v593
        %627 = vst.msk [vmem:[%s620 + $0x49] sm:$0xff] %vm282, %v594
        %628 = vst.msk [vmem:[%s620 + $0x51] sm:$0xff] %vm282, %v595
        %629 = vst.msk [vmem:[%s620 + $0x61] sm:$0xff] %vm282, %v596
        %630 = vst.msk [vmem:[%s620 + $0x69] sm:$0xff] %vm282, %v597
        %631 = vst.msk [vmem:[%s620 + $0x79] sm:$0xff] %vm282, %v598
        %632 = vst.msk [vmem:[%s620 + $0x81] sm:$0xff] %vm282, %v599
        %633 = vst.msk [vmem:[%s620 + $0x91] sm:$0xff] %vm282, %v600
        %634 = vst.msk [vmem:[%s620 + $0x99] sm:$0xff] %vm282, %v601
        %635 = vst.msk [vmem:[%s620 + $0xa9] sm:$0xff] %vm282, %v602
        %636 = vst.msk [vmem:[%s620 + $0xb1] sm:$0xff] %vm282, %v603
        %637 = vst.msk [vmem:[%s620 + $0xc1] sm:$0xff] %vm282, %v604
        %638 = vst.msk [vmem:[%s620 + $0xc9] sm:$0xff] %vm282, %v605
        %639 = vst.msk [vmem:[%s620 + $0xd9] sm:$0xff] %vm282, %v606
        %640 = vst.msk [vmem:[%s620 + $0xe1] sm:$0xff] %vm282, %v607
        %641 = vst.msk [vmem:[%s620 + $0xf1] sm:$0xff] %vm282, %v608
        %642 = vst.msk [vmem:[%s620 + $0xf9] sm:$0xff] %vm282, %v609
        %643 = vst.msk [vmem:[%s620 + $0x109] sm:$0xff] %vm282, %v610
        %644 = vst.msk [vmem:[%s620 + $0x111] sm:$0xff] %vm282, %v611
        %645 = vst.msk [vmem:[%s620 + $0x121] sm:$0xff] %vm282, %v612
        %646 = vst.msk [vmem:[%s620 + $0x129] sm:$0xff] %vm282, %v613
        %647 = vst.msk [vmem:[%s620 + $0x139] sm:$0xff] %vm282, %v614
        %648 = vst.msk [vmem:[%s620 + $0x141] sm:$0xff] %vm282, %v615
        %649 = vst.msk [vmem:[%s620 + $0x151] sm:$0xff] %vm282, %v616
        %650 = vst.msk [vmem:[%s620 + $0x159] sm:$0xff] %vm282, %v617
        %651 = vst.msk [vmem:[%s620 + $0x169] sm:$0xff] %vm282, %v618
        %652 = vst.msk [vmem:[%s620 + $0x171] sm:$0xff] %vm282, %v619
        %v653 = vld [vmem:[%s620 + $0x2] sm:$0x1]
        %v654 = vld [vmem:[%s620 + $0x1a] sm:$0x1]
        %v655 = vld [vmem:[%s620 + $0x32] sm:$0x1]
        %v656 = vld [vmem:[%s620 + $0x4a] sm:$0x1]
        %v657 = vld [vmem:[%s620 + $0x62] sm:$0x1]
        %v658 = vld [vmem:[%s620 + $0x7a] sm:$0x1]
        %v659 = vld [vmem:[%s620 + $0x92] sm:$0x1]
        %v660 = vld [vmem:[%s620 + $0xaa] sm:$0x1]
        %v661 = vld [vmem:[%s620 + $0xc2] sm:$0x1]
        %v662 = vld [vmem:[%s620 + $0xda] sm:$0x1]
        %v663 = vld [vmem:[%s620 + $0xf2] sm:$0x1]
        %v664 = vld [vmem:[%s620 + $0x10a] sm:$0x1]
        %v665 = vld [vmem:[%s620 + $0x122] sm:$0x1]
        %v666 = vld [vmem:[%s620 + $0x13a] sm:$0x1]
        %v667 = vld [vmem:[%s620 + $0x152] sm:$0x1]
        %v668 = vld [vmem:[%s620 + $0x16a] sm:$0x1]
        %vm669 = vcmask 516096
        %670 = vst.msk [vmem:[%s620] sm:$0x1] %vm669, %v653
        %671 = vst.msk [vmem:[%s620 + $0x18] sm:$0x1] %vm669, %v654
        %672 = vst.msk [vmem:[%s620 + $0x30] sm:$0x1] %vm669, %v655
        %673 = vst.msk [vmem:[%s620 + $0x48] sm:$0x1] %vm669, %v656
        %674 = vst.msk [vmem:[%s620 + $0x60] sm:$0x1] %vm669, %v657
        %675 = vst.msk [vmem:[%s620 + $0x78] sm:$0x1] %vm669, %v658
        %676 = vst.msk [vmem:[%s620 + $0x90] sm:$0x1] %vm669, %v659
        %677 = vst.msk [vmem:[%s620 + $0xa8] sm:$0x1] %vm669, %v660
        %678 = vst.msk [vmem:[%s620 + $0xc0] sm:$0x1] %vm669, %v661
        %679 = vst.msk [vmem:[%s620 + $0xd8] sm:$0x1] %vm669, %v662
        %680 = vst.msk [vmem:[%s620 + $0xf0] sm:$0x1] %vm669, %v663
        %681 = vst.msk [vmem:[%s620 + $0x108] sm:$0x1] %vm669, %v664
        %682 = vst.msk [vmem:[%s620 + $0x120] sm:$0x1] %vm669, %v665
        %683 = vst.msk [vmem:[%s620 + $0x138] sm:$0x1] %vm669, %v666
        %684 = vst.msk [vmem:[%s620 + $0x150] sm:$0x1] %vm669, %v667
        %685 = vst.msk [vmem:[%s620 + $0x168] sm:$0x1] %vm669, %v668
        %v686 = vld [vmem:[%s620 + $0xf] sm:$0x1]
        %v687 = vld [vmem:[%s620 + $0x27] sm:$0x1]
        %v688 = vld [vmem:[%s620 + $0x3f] sm:$0x1]
        %v689 = vld [vmem:[%s620 + $0x57] sm:$0x1]
        %v690 = vld [vmem:[%s620 + $0x6f] sm:$0x1]
        %v691 = vld [vmem:[%s620 + $0x87] sm:$0x1]
        %v692 = vld [vmem:[%s620 + $0x9f] sm:$0x1]
        %v693 = vld [vmem:[%s620 + $0xb7] sm:$0x1]
        %v694 = vld [vmem:[%s620 + $0xcf] sm:$0x1]
        %v695 = vld [vmem:[%s620 + $0xe7] sm:$0x1]
        %v696 = vld [vmem:[%s620 + $0xff] sm:$0x1]
        %v697 = vld [vmem:[%s620 + $0x117] sm:$0x1]
        %v698 = vld [vmem:[%s620 + $0x12f] sm:$0x1]
        %v699 = vld [vmem:[%s620 + $0x147] sm:$0x1]
        %v700 = vld [vmem:[%s620 + $0x15f] sm:$0x1]
        %v701 = vld [vmem:[%s620 + $0x177] sm:$0x1]
        %702 = vst.msk [vmem:[%s620 + $0x11] sm:$0x1] %vm669, %v686
        %703 = vst.msk [vmem:[%s620 + $0x29] sm:$0x1] %vm669, %v687
        %704 = vst.msk [vmem:[%s620 + $0x41] sm:$0x1] %vm669, %v688
        %705 = vst.msk [vmem:[%s620 + $0x59] sm:$0x1] %vm669, %v689
        %706 = vst.msk [vmem:[%s620 + $0x71] sm:$0x1] %vm669, %v690
        %707 = vst.msk [vmem:[%s620 + $0x89] sm:$0x1] %vm669, %v691
        %708 = vst.msk [vmem:[%s620 + $0xa1] sm:$0x1] %vm669, %v692
        %709 = vst.msk [vmem:[%s620 + $0xb9] sm:$0x1] %vm669, %v693
        %710 = vst.msk [vmem:[%s620 + $0xd1] sm:$0x1] %vm669, %v694
        %711 = vst.msk [vmem:[%s620 + $0xe9] sm:$0x1] %vm669, %v695
        %712 = vst.msk [vmem:[%s620 + $0x101] sm:$0x1] %vm669, %v696
        %713 = vst.msk [vmem:[%s620 + $0x119] sm:$0x1] %vm669, %v697
        %714 = vst.msk [vmem:[%s620 + $0x131] sm:$0x1] %vm669, %v698
        %715 = vst.msk [vmem:[%s620 + $0x149] sm:$0x1] %vm669, %v699
        %716 = vst.msk [vmem:[%s620 + $0x161] sm:$0x1] %vm669, %v700
        %717 = vst.msk [vmem:[%s620 + $0x179] sm:$0x1] %vm669, %v701
        %s718 = scalar_lea.vmem [#allocation2], 48
        %v719 = vld [vmem:[%s718] sm:$0xff]
        %v720 = vld [vmem:[%s718 + $0x8] sm:$0xff]
        %v721 = vld [vmem:[%s718 + $0x10] sm:$0x3]
        %722 = vst.msk [vmem:[#allocation2] sm:$0xff] %vm282, %v719
        %723 = vst.msk [vmem:[#allocation2 + $0x8] sm:$0xff] %vm282, %v720
        %vm724 = vcmask 517120
        %725 = vst.msk [vmem:[#allocation2 + $0x10] sm:$0x3] %vm724, %v721
        %s726 = scalar_lea.vmem [#allocation2], 360
        %v727 = vld [vmem:[%s726] sm:$0xff]
        %v728 = vld [vmem:[%s726 + $0x8] sm:$0xff]
        %v729 = vld [vmem:[%s726 + $0x10] sm:$0x3]
        %s730 = scalar_lea.vmem [#allocation2], 408
        %731 = vst.msk [vmem:[%s730] sm:$0xff] %vm282, %v727
        %732 = vst.msk [vmem:[%s730 + $0x8] sm:$0xff] %vm282, %v728
        %733 = vst.msk [vmem:[%s730 + $0x10] sm:$0x3] %vm724, %v729
        %v734 = vld [vmem:[#allocation2] sm:$0xff]
        %v735 = vld [vmem:[#allocation2 + $0x8] sm:$0xff]
        %v736 = vld [vmem:[#allocation2 + $0x18] sm:$0xff]
        %v737 = vld [vmem:[#allocation2 + $0x20] sm:$0xff]
        %v738 = vld [vmem:[#allocation2 + $0x30] sm:$0xff]
        %v739 = vld [vmem:[#allocation2 + $0x38] sm:$0xff]
        %v740 = vld [vmem:[#allocation2 + $0x48] sm:$0xff]
        %v741 = vld [vmem:[#allocation2 + $0x50] sm:$0xff]
        %v742 = vld [vmem:[#allocation2 + $0x60] sm:$0xff]
        %v743 = vld [vmem:[#allocation2 + $0x68] sm:$0xff]
        %v744 = vld [vmem:[#allocation2 + $0x78] sm:$0xff]
        %v745 = vld [vmem:[#allocation2 + $0x80] sm:$0xff]
        %v746 = vld [vmem:[#allocation2 + $0x90] sm:$0xff]
        %v747 = vld [vmem:[#allocation2 + $0x98] sm:$0xff]
        %v748 = vld [vmem:[#allocation2 + $0xa8] sm:$0xff]
        %v749 = vld [vmem:[#allocation2 + $0xb0] sm:$0xff]
        %v750 = vld [vmem:[#allocation2 + $0xc0] sm:$0xff]
        %v751 = vld [vmem:[#allocation2 + $0xc8] sm:$0xff]
        %v752 = vld [vmem:[#allocation2 + $0xd8] sm:$0xff]
        %v753 = vld [vmem:[#allocation2 + $0xe0] sm:$0xff]
        %v754 = vld [vmem:[#allocation2 + $0xf0] sm:$0xff]
        %v755 = vld [vmem:[#allocation2 + $0xf8] sm:$0xff]
        %v756 = vld [vmem:[#allocation2 + $0x108] sm:$0xff]
        %v757 = vld [vmem:[#allocation2 + $0x110] sm:$0xff]
        %v758 = vld [vmem:[#allocation2 + $0x120] sm:$0xff]
        %v759 = vld [vmem:[#allocation2 + $0x128] sm:$0xff]
        %v760 = vld [vmem:[#allocation2 + $0x138] sm:$0xff]
        %v761 = vld [vmem:[#allocation2 + $0x140] sm:$0xff]
        %v762 = vld [vmem:[#allocation2 + $0x150] sm:$0xff]
        %v763 = vld [vmem:[#allocation2 + $0x158] sm:$0xff]
        %v764 = vld [vmem:[#allocation2 + $0x168] sm:$0xff]
        %v765 = vld [vmem:[#allocation2 + $0x170] sm:$0xff]
        %v766 = vld [vmem:[%s1] sm:$0xff]
        %v767 = vld [vmem:[%s1 + $0x8] sm:$0xff]
        %v768 = vld [vmem:[%s1 + $0x10] sm:$0xff]
        %v769 = vld [vmem:[%s1 + $0x18] sm:$0xff]
        %v770 = vld [vmem:[%s1 + $0x20] sm:$0xff]
        %v771 = vld [vmem:[%s1 + $0x28] sm:$0xff]
        %v772 = vld [vmem:[%s1 + $0x30] sm:$0xff]
        %v773 = vld [vmem:[%s1 + $0x38] sm:$0xff]
        %v774 = vld [vmem:[#allocation2 + $0x1] sm:$0xff]
        %v775 = vld [vmem:[#allocation2 + $0x9] sm:$0xff]
        %v776 = vld [vmem:[#allocation2 + $0x19] sm:$0xff]
        %v777 = vld [vmem:[#allocation2 + $0x21] sm:$0xff]
        %v778 = vld [vmem:[#allocation2 + $0x31] sm:$0xff]
        %v779 = vld [vmem:[#allocation2 + $0x39] sm:$0xff]
        %v780 = vld [vmem:[#allocation2 + $0x49] sm:$0xff]
        %v781 = vld [vmem:[#allocation2 + $0x51] sm:$0xff]
        %v782 = vld [vmem:[#allocation2 + $0x61] sm:$0xff]
        %v783 = vld [vmem:[#allocation2 + $0x69] sm:$0xff]
        %v784 = vld [vmem:[#allocation2 + $0x79] sm:$0xff]
        %v785 = vld [vmem:[#allocation2 + $0x81] sm:$0xff]
        %v786 = vld [vmem:[#allocation2 + $0x91] sm:$0xff]
        %v787 = vld [vmem:[#allocation2 + $0x99] sm:$0xff]
        %v788 = vld [vmem:[#allocation2 + $0xa9] sm:$0xff]
        %v789 = vld [vmem:[#allocation2 + $0xb1] sm:$0xff]
        %v790 = vld [vmem:[#allocation2 + $0xc1] sm:$0xff]
        %v791 = vld [vmem:[#allocation2 + $0xc9] sm:$0xff]
        %v792 = vld [vmem:[#allocation2 + $0xd9] sm:$0xff]
        %v793 = vld [vmem:[#allocation2 + $0xe1] sm:$0xff]
        %v794 = vld [vmem:[#allocation2 + $0xf1] sm:$0xff]
        %v795 = vld [vmem:[#allocation2 + $0xf9] sm:$0xff]
        %v796 = vld [vmem:[#allocation2 + $0x109] sm:$0xff]
        %v797 = vld [vmem:[#allocation2 + $0x111] sm:$0xff]
        %v798 = vld [vmem:[#allocation2 + $0x121] sm:$0xff]
        %v799 = vld [vmem:[#allocation2 + $0x129] sm:$0xff]
        %v800 = vld [vmem:[#allocation2 + $0x139] sm:$0xff]
        %v801 = vld [vmem:[#allocation2 + $0x141] sm:$0xff]
        %v802 = vld [vmem:[#allocation2 + $0x151] sm:$0xff]
        %v803 = vld [vmem:[#allocation2 + $0x159] sm:$0xff]
        %v804 = vld [vmem:[#allocation2 + $0x169] sm:$0xff]
        %v805 = vld [vmem:[#allocation2 + $0x171] sm:$0xff]
        %s806 = scalar_lea.vmem %s1, 64
        %v807 = vld [vmem:[%s806] sm:$0xff]
        %v808 = vld [vmem:[%s806 + $0x8] sm:$0xff]
        %v809 = vld [vmem:[%s806 + $0x10] sm:$0xff]
        %v810 = vld [vmem:[%s806 + $0x18] sm:$0xff]
        %v811 = vld [vmem:[%s806 + $0x20] sm:$0xff]
        %v812 = vld [vmem:[%s806 + $0x28] sm:$0xff]
        %v813 = vld [vmem:[%s806 + $0x30] sm:$0xff]
        %v814 = vld [vmem:[%s806 + $0x38] sm:$0xff]
        %v816 = vsel %vm282, %v774, 0
        %v819 = vsel %vm282, %v775, 0
        %v822 = vsel %vm282, %v776, 0
        %v825 = vsel %vm282, %v777, 0
        %v828 = vsel %vm282, %v778, 0
        %v831 = vsel %vm282, %v779, 0
        %v834 = vsel %vm282, %v780, 0
        %v837 = vsel %vm282, %v781, 0
        %v840 = vsel %vm282, %v782, 0
        %v843 = vsel %vm282, %v783, 0
        %v846 = vsel %vm282, %v784, 0
        %v849 = vsel %vm282, %v785, 0
        %v852 = vsel %vm282, %v786, 0
        %v855 = vsel %vm282, %v787, 0
        %v858 = vsel %vm282, %v788, 0
        %v861 = vsel %vm282, %v789, 0
        %v864 = vsel %vm282, %v790, 0
        %v867 = vsel %vm282, %v791, 0
        %v870 = vsel %vm282, %v792, 0
        %v873 = vsel %vm282, %v793, 0
        %v876 = vsel %vm282, %v794, 0
        %v879 = vsel %vm282, %v795, 0
        %v882 = vsel %vm282, %v796, 0
        %v885 = vsel %vm282, %v797, 0
        %v888 = vsel %vm282, %v798, 0
        %v891 = vsel %vm282, %v799, 0
        %v894 = vsel %vm282, %v800, 0
        %v897 = vsel %vm282, %v801, 0
        %v900 = vsel %vm282, %v802, 0
        %v903 = vsel %vm282, %v803, 0
        %v906 = vsel %vm282, %v804, 0
        %v909 = vsel %vm282, %v805, 0
        %911 = vmatprep.subr.mxu0 0.0
        %912 = vmatpush1.msra.mxu0 0.0
        %913 = vmatprep.subr.mxu0 0.0
        %914 = vmatpush1.msra.mxu0 0.0
        %915 = vmatprep.subr.mxu0 0.0
        %916 = vmatpush1.msra.mxu0 0.0
        %917 = vmatprep.subr.mxu0 0.0
        %918 = vmatpush1.msra.mxu0 0.0
        %919 = vmatprep.subr.mxu0 0.0
        %920 = vmatpush1.msra.mxu0 0.0
        %921 = vmatprep.subr.mxu0 0.0
        %922 = vmatpush1.msra.mxu0 0.0
        %923 = vmatprep.subr.mxu0 0.0
        %924 = vmatpush1.msra.mxu0 0.0
        %925 = vmatprep.subr.mxu0 0.0
        %926 = vmatpush1.msra.mxu0 0.0
        %927 = vmatprep.subr.mxu0 0.0
        %928 = vmatpush1.msra.mxu0 %v814
        %929 = vmatprep.subr.mxu0 0.0
        %930 = vmatpush1.msra.mxu0 %v813
        %931 = vmatprep.subr.mxu0 0.0
        %932 = vmatpush1.msra.mxu0 %v812
        %933 = vmatprep.subr.mxu0 0.0
        %934 = vmatpush1.msra.mxu0 %v811
        %935 = vmatprep.subr.mxu0 0.0
        %936 = vmatpush1.msra.mxu0 %v810
        %937 = vmatprep.subr.mxu0 0.0
        %938 = vmatpush1.msra.mxu0 %v809
        %939 = vmatprep.subr.mxu0 0.0
        %940 = vmatpush1.msra.mxu0 %v808
        %941 = vmatprep.subr.mxu0 0.0
        %942 = vmatpush1.msra.mxu0 %v807
        %943 = vmatprep.subr.mxu0 0.0
        %944 = vmatpush2.msra.mxu0 0.0
        %945 = vmatprep.subr.mxu0 0.0
        %946 = vmatpush2.msra.mxu0 0.0
        %947 = vmatprep.subr.mxu0 0.0
        %948 = vmatpush2.msra.mxu0 0.0
        %949 = vmatprep.subr.mxu0 0.0
        %950 = vmatpush2.msra.mxu0 0.0
        %951 = vmatprep.subr.mxu0 0.0
        %952 = vmatpush2.msra.mxu0 0.0
        %953 = vmatprep.subr.mxu0 0.0
        %954 = vmatpush2.msra.mxu0 0.0
        %955 = vmatprep.subr.mxu0 0.0
        %956 = vmatpush2.msra.mxu0 0.0
        %957 = vmatprep.subr.mxu0 0.0
        %958 = vmatpush2.msra.mxu0 0.0
        %959 = vmatprep.subr.mxu0 0.0
        %960 = vmatpush2.msra.mxu0 0.0
        %961 = vmatprep.subr.mxu0 0.0
        %962 = vmatpush2.msra.mxu0 0.0
        %963 = vmatprep.subr.mxu0 0.0
        %964 = vmatpush2.msra.mxu0 0.0
        %965 = vmatprep.subr.mxu0 0.0
        %966 = vmatpush2.msra.mxu0 0.0
        %967 = vmatprep.subr.mxu0 0.0
        %968 = vmatpush2.msra.mxu0 0.0
        %969 = vmatprep.subr.mxu0 0.0
        %970 = vmatpush2.msra.mxu0 0.0
        %971 = vmatprep.subr.mxu0 0.0
        %972 = vmatpush2.msra.mxu0 0.0
        %973 = vmatprep.subr.mxu0 0.0
        %974 = vmatpush2.msra.mxu0 0.0
        %975 = vmatprep.mubr.f32.mxu0 0.0
        %976 = vmatmul.mubr.f32.gmra.mxu0 %v816
        %v977 = vpop.f32.mrf.mxu0
        %v978 = vadd.f32 0.0, %v977
        %v979 = vpop.f32.mrf.mxu0
        %980 = vmatprep.mubr.f32.mxu0 0.0
        %981 = vmatmul.mubr.f32.gmra.mxu0 %v819
        %v982 = vpop.f32.mrf.mxu0
        %v983 = vadd.f32 0.0, %v982
        %v984 = vpop.f32.mrf.mxu0
        %985 = vmatprep.mubr.f32.mxu0 0.0
        %986 = vmatmul.mubr.f32.gmra.mxu0 %v822
        %v987 = vpop.f32.mrf.mxu0
        %v988 = vadd.f32 0.0, %v987
        %v989 = vpop.f32.mrf.mxu0
        %990 = vmatprep.mubr.f32.mxu0 0.0
        %991 = vmatmul.mubr.f32.gmra.mxu0 %v825
        %v992 = vpop.f32.mrf.mxu0
        %v993 = vadd.f32 0.0, %v992
        %v994 = vpop.f32.mrf.mxu0
        %995 = vmatprep.mubr.f32.mxu0 0.0
        %996 = vmatmul.mubr.f32.gmra.mxu0 %v828
        %v997 = vpop.f32.mrf.mxu0
        %v998 = vadd.f32 0.0, %v997
        %v999 = vpop.f32.mrf.mxu0
        %1000 = vmatprep.mubr.f32.mxu0 0.0
        %1001 = vmatmul.mubr.f32.gmra.mxu0 %v831
        %v1002 = vpop.f32.mrf.mxu0
        %v1003 = vadd.f32 0.0, %v1002
        %v1004 = vpop.f32.mrf.mxu0
        %1005 = vmatprep.mubr.f32.mxu0 0.0
        %1006 = vmatmul.mubr.f32.gmra.mxu0 %v834
        %v1007 = vpop.f32.mrf.mxu0
        %v1008 = vadd.f32 0.0, %v1007
        %v1009 = vpop.f32.mrf.mxu0
        %1010 = vmatprep.mubr.f32.mxu0 0.0
        %1011 = vmatmul.mubr.f32.gmra.mxu0 %v837
        %v1012 = vpop.f32.mrf.mxu0
        %v1013 = vadd.f32 0.0, %v1012
        %v1014 = vpop.f32.mrf.mxu0
        %1015 = vmatprep.mubr.f32.mxu0 0.0
        %1016 = vmatmul.mubr.f32.gmra.mxu0 %v840
        %v1017 = vpop.f32.mrf.mxu0
        %v1018 = vadd.f32 0.0, %v1017
        %v1019 = vpop.f32.mrf.mxu0
        %1020 = vmatprep.mubr.f32.mxu0 0.0
        %1021 = vmatmul.mubr.f32.gmra.mxu0 %v843
        %v1022 = vpop.f32.mrf.mxu0
        %v1023 = vadd.f32 0.0, %v1022
        %v1024 = vpop.f32.mrf.mxu0
        %1025 = vmatprep.mubr.f32.mxu0 0.0
        %1026 = vmatmul.mubr.f32.gmra.mxu0 %v846
        %v1027 = vpop.f32.mrf.mxu0
        %v1028 = vadd.f32 0.0, %v1027
        %v1029 = vpop.f32.mrf.mxu0
        %1030 = vmatprep.mubr.f32.mxu0 0.0
        %1031 = vmatmul.mubr.f32.gmra.mxu0 %v849
        %v1032 = vpop.f32.mrf.mxu0
        %v1033 = vadd.f32 0.0, %v1032
        %v1034 = vpop.f32.mrf.mxu0
        %1035 = vmatprep.mubr.f32.mxu0 0.0
        %1036 = vmatmul.mubr.f32.gmra.mxu0 %v852
        %v1037 = vpop.f32.mrf.mxu0
        %v1038 = vadd.f32 0.0, %v1037
        %v1039 = vpop.f32.mrf.mxu0
        %1040 = vmatprep.mubr.f32.mxu0 0.0
        %1041 = vmatmul.mubr.f32.gmra.mxu0 %v855
        %v1042 = vpop.f32.mrf.mxu0
        %v1043 = vadd.f32 0.0, %v1042
        %v1044 = vpop.f32.mrf.mxu0
        %1045 = vmatprep.mubr.f32.mxu0 0.0
        %1046 = vmatmul.mubr.f32.gmra.mxu0 %v858
        %v1047 = vpop.f32.mrf.mxu0
        %v1048 = vadd.f32 0.0, %v1047
        %v1049 = vpop.f32.mrf.mxu0
        %1050 = vmatprep.mubr.f32.mxu0 0.0
        %1051 = vmatmul.mubr.f32.gmra.mxu0 %v861
        %v1052 = vpop.f32.mrf.mxu0
        %v1053 = vadd.f32 0.0, %v1052
        %v1054 = vpop.f32.mrf.mxu0
        %1055 = vmatprep.mubr.f32.mxu0 0.0
        %1056 = vmatmul.mubr.f32.gmra.mxu0 %v864
        %v1057 = vpop.f32.mrf.mxu0
        %v1058 = vadd.f32 0.0, %v1057
        %v1059 = vpop.f32.mrf.mxu0
        %1060 = vmatprep.mubr.f32.mxu0 0.0
        %1061 = vmatmul.mubr.f32.gmra.mxu0 %v867
        %v1062 = vpop.f32.mrf.mxu0
        %v1063 = vadd.f32 0.0, %v1062
        %v1064 = vpop.f32.mrf.mxu0
        %1065 = vmatprep.mubr.f32.mxu0 0.0
        %1066 = vmatmul.mubr.f32.gmra.mxu0 %v870
        %v1067 = vpop.f32.mrf.mxu0
        %v1068 = vadd.f32 0.0, %v1067
        %v1069 = vpop.f32.mrf.mxu0
        %1070 = vmatprep.mubr.f32.mxu0 0.0
        %1071 = vmatmul.mubr.f32.gmra.mxu0 %v873
        %v1072 = vpop.f32.mrf.mxu0
        %v1073 = vadd.f32 0.0, %v1072
        %v1074 = vpop.f32.mrf.mxu0
        %1075 = vmatprep.mubr.f32.mxu0 0.0
        %1076 = vmatmul.mubr.f32.gmra.mxu0 %v876
        %v1077 = vpop.f32.mrf.mxu0
        %v1078 = vadd.f32 0.0, %v1077
        %v1079 = vpop.f32.mrf.mxu0
        %1080 = vmatprep.mubr.f32.mxu0 0.0
        %1081 = vmatmul.mubr.f32.gmra.mxu0 %v879
        %v1082 = vpop.f32.mrf.mxu0
        %v1083 = vadd.f32 0.0, %v1082
        %v1084 = vpop.f32.mrf.mxu0
        %1085 = vmatprep.mubr.f32.mxu0 0.0
        %1086 = vmatmul.mubr.f32.gmra.mxu0 %v882
        %v1087 = vpop.f32.mrf.mxu0
        %v1088 = vadd.f32 0.0, %v1087
        %v1089 = vpop.f32.mrf.mxu0
        %1090 = vmatprep.mubr.f32.mxu0 0.0
        %1091 = vmatmul.mubr.f32.gmra.mxu0 %v885
        %v1092 = vpop.f32.mrf.mxu0
        %v1093 = vadd.f32 0.0, %v1092
        %v1094 = vpop.f32.mrf.mxu0
        %1095 = vmatprep.mubr.f32.mxu0 0.0
        %1096 = vmatmul.mubr.f32.gmra.mxu0 %v888
        %v1097 = vpop.f32.mrf.mxu0
        %v1098 = vadd.f32 0.0, %v1097
        %v1099 = vpop.f32.mrf.mxu0
        %1100 = vmatprep.mubr.f32.mxu0 0.0
        %1101 = vmatmul.mubr.f32.gmra.mxu0 %v891
        %v1102 = vpop.f32.mrf.mxu0
        %v1103 = vadd.f32 0.0, %v1102
        %v1104 = vpop.f32.mrf.mxu0
        %1105 = vmatprep.mubr.f32.mxu0 0.0
        %1106 = vmatmul.mubr.f32.gmra.mxu0 %v894
        %v1107 = vpop.f32.mrf.mxu0
        %v1108 = vadd.f32 0.0, %v1107
        %v1109 = vpop.f32.mrf.mxu0
        %1110 = vmatprep.mubr.f32.mxu0 0.0
        %1111 = vmatmul.mubr.f32.gmra.mxu0 %v897
        %v1112 = vpop.f32.mrf.mxu0
        %v1113 = vadd.f32 0.0, %v1112
        %v1114 = vpop.f32.mrf.mxu0
        %1115 = vmatprep.mubr.f32.mxu0 0.0
        %1116 = vmatmul.mubr.f32.gmra.mxu0 %v900
        %v1117 = vpop.f32.mrf.mxu0
        %v1118 = vadd.f32 0.0, %v1117
        %v1119 = vpop.f32.mrf.mxu0
        %1120 = vmatprep.mubr.f32.mxu0 0.0
        %1121 = vmatmul.mubr.f32.gmra.mxu0 %v903
        %v1122 = vpop.f32.mrf.mxu0
        %v1123 = vadd.f32 0.0, %v1122
        %v1124 = vpop.f32.mrf.mxu0
        %1125 = vmatprep.mubr.f32.mxu0 0.0
        %1126 = vmatmul.mubr.f32.gmra.mxu0 %v906
        %v1127 = vpop.f32.mrf.mxu0
        %v1128 = vadd.f32 0.0, %v1127
        %v1129 = vpop.f32.mrf.mxu0
        %1130 = vmatprep.mubr.f32.mxu0 0.0
        %1131 = vmatmul.mubr.f32.gmra.mxu0 %v909
        %v1132 = vpop.f32.mrf.mxu0
        %v1133 = vadd.f32 0.0, %v1132
        %v1134 = vpop.f32.mrf.mxu0
        %1135 = vdwg.mxu0
        %v1137 = vsel %vm282, %v734, 0
        %v1140 = vsel %vm282, %v735, 0
        %v1143 = vsel %vm282, %v736, 0
        %v1146 = vsel %vm282, %v737, 0
        %v1149 = vsel %vm282, %v738, 0
        %v1152 = vsel %vm282, %v739, 0
        %v1155 = vsel %vm282, %v740, 0
        %v1158 = vsel %vm282, %v741, 0
        %v1161 = vsel %vm282, %v742, 0
        %v1164 = vsel %vm282, %v743, 0
        %v1167 = vsel %vm282, %v744, 0
        %v1170 = vsel %vm282, %v745, 0
        %v1173 = vsel %vm282, %v746, 0
        %v1176 = vsel %vm282, %v747, 0
        %v1179 = vsel %vm282, %v748, 0
        %v1182 = vsel %vm282, %v749, 0
        %v1185 = vsel %vm282, %v750, 0
        %v1188 = vsel %vm282, %v751, 0
        %v1191 = vsel %vm282, %v752, 0
        %v1194 = vsel %vm282, %v753, 0
        %v1197 = vsel %vm282, %v754, 0
        %v1200 = vsel %vm282, %v755, 0
        %v1203 = vsel %vm282, %v756, 0
        %v1206 = vsel %vm282, %v757, 0
        %v1209 = vsel %vm282, %v758, 0
        %v1212 = vsel %vm282, %v759, 0
        %v1215 = vsel %vm282, %v760, 0
        %v1218 = vsel %vm282, %v761, 0
        %v1221 = vsel %vm282, %v762, 0
        %v1224 = vsel %vm282, %v763, 0
        %v1227 = vsel %vm282, %v764, 0
        %v1230 = vsel %vm282, %v765, 0
        %1232 = vmatprep.subr.mxu0 0.0
        %1233 = vmatpush1.msra.mxu0 0.0
        %1234 = vmatprep.subr.mxu0 0.0
        %1235 = vmatpush1.msra.mxu0 0.0
        %1236 = vmatprep.subr.mxu0 0.0
        %1237 = vmatpush1.msra.mxu0 0.0
        %1238 = vmatprep.subr.mxu0 0.0
        %1239 = vmatpush1.msra.mxu0 0.0
        %1240 = vmatprep.subr.mxu0 0.0
        %1241 = vmatpush1.msra.mxu0 0.0
        %1242 = vmatprep.subr.mxu0 0.0
        %1243 = vmatpush1.msra.mxu0 0.0
        %1244 = vmatprep.subr.mxu0 0.0
        %1245 = vmatpush1.msra.mxu0 0.0
        %1246 = vmatprep.subr.mxu0 0.0
        %1247 = vmatpush1.msra.mxu0 0.0
        %1248 = vmatprep.subr.mxu0 0.0
        %1249 = vmatpush1.msra.mxu0 %v773
        %1250 = vmatprep.subr.mxu0 0.0
        %1251 = vmatpush1.msra.mxu0 %v772
        %1252 = vmatprep.subr.mxu0 0.0
        %1253 = vmatpush1.msra.mxu0 %v771
        %1254 = vmatprep.subr.mxu0 0.0
        %1255 = vmatpush1.msra.mxu0 %v770
        %1256 = vmatprep.subr.mxu0 0.0
        %1257 = vmatpush1.msra.mxu0 %v769
        %1258 = vmatprep.subr.mxu0 0.0
        %1259 = vmatpush1.msra.mxu0 %v768
        %1260 = vmatprep.subr.mxu0 0.0
        %1261 = vmatpush1.msra.mxu0 %v767
        %1262 = vmatprep.subr.mxu0 0.0
        %1263 = vmatpush1.msra.mxu0 %v766
        %1264 = vmatprep.subr.mxu0 0.0
        %1265 = vmatpush2.msra.mxu0 0.0
        %1266 = vmatprep.subr.mxu0 0.0
        %1267 = vmatpush2.msra.mxu0 0.0
        %1268 = vmatprep.subr.mxu0 0.0
        %1269 = vmatpush2.msra.mxu0 0.0
        %1270 = vmatprep.subr.mxu0 0.0
        %1271 = vmatpush2.msra.mxu0 0.0
        %1272 = vmatprep.subr.mxu0 0.0
        %1273 = vmatpush2.msra.mxu0 0.0
        %1274 = vmatprep.subr.mxu0 0.0
        %1275 = vmatpush2.msra.mxu0 0.0
        %1276 = vmatprep.subr.mxu0 0.0
        %1277 = vmatpush2.msra.mxu0 0.0
        %1278 = vmatprep.subr.mxu0 0.0
        %1279 = vmatpush2.msra.mxu0 0.0
        %1280 = vmatprep.subr.mxu0 0.0
        %1281 = vmatpush2.msra.mxu0 0.0
        %1282 = vmatprep.subr.mxu0 0.0
        %1283 = vmatpush2.msra.mxu0 0.0
        %1284 = vmatprep.subr.mxu0 0.0
        %1285 = vmatpush2.msra.mxu0 0.0
        %1286 = vmatprep.subr.mxu0 0.0
        %1287 = vmatpush2.msra.mxu0 0.0
        %1288 = vmatprep.subr.mxu0 0.0
        %1289 = vmatpush2.msra.mxu0 0.0
        %1290 = vmatprep.subr.mxu0 0.0
        %1291 = vmatpush2.msra.mxu0 0.0
        %1292 = vmatprep.subr.mxu0 0.0
        %1293 = vmatpush2.msra.mxu0 0.0
        %1294 = vmatprep.subr.mxu0 0.0
        %1295 = vmatpush2.msra.mxu0 0.0
        %1296 = vmatprep.mubr.f32.mxu0 0.0
        %1297 = vmatmul.mubr.f32.gmra.mxu0 %v1137
        %v1298 = vpop.f32.mrf.mxu0
        %v1299 = vadd.f32 %v978, %v1298
        %v1300 = vpop.f32.mrf.mxu0
        %1301 = vmatprep.mubr.f32.mxu0 0.0
        %1302 = vmatmul.mubr.f32.gmra.mxu0 %v1140
        %v1303 = vpop.f32.mrf.mxu0
        %v1304 = vadd.f32 %v983, %v1303
        %v1305 = vpop.f32.mrf.mxu0
        %1306 = vmatprep.mubr.f32.mxu0 0.0
        %1307 = vmatmul.mubr.f32.gmra.mxu0 %v1143
        %v1308 = vpop.f32.mrf.mxu0
        %v1309 = vadd.f32 %v988, %v1308
        %v1310 = vpop.f32.mrf.mxu0
        %1311 = vmatprep.mubr.f32.mxu0 0.0
        %1312 = vmatmul.mubr.f32.gmra.mxu0 %v1146
        %v1313 = vpop.f32.mrf.mxu0
        %v1314 = vadd.f32 %v993, %v1313
        %v1315 = vpop.f32.mrf.mxu0
        %1316 = vmatprep.mubr.f32.mxu0 0.0
        %1317 = vmatmul.mubr.f32.gmra.mxu0 %v1149
        %v1318 = vpop.f32.mrf.mxu0
        %v1319 = vadd.f32 %v998, %v1318
        %v1320 = vpop.f32.mrf.mxu0
        %1321 = vmatprep.mubr.f32.mxu0 0.0
        %1322 = vmatmul.mubr.f32.gmra.mxu0 %v1152
        %v1323 = vpop.f32.mrf.mxu0
        %v1324 = vadd.f32 %v1003, %v1323
        %v1325 = vpop.f32.mrf.mxu0
        %1326 = vmatprep.mubr.f32.mxu0 0.0
        %1327 = vmatmul.mubr.f32.gmra.mxu0 %v1155
        %v1328 = vpop.f32.mrf.mxu0
        %v1329 = vadd.f32 %v1008, %v1328
        %v1330 = vpop.f32.mrf.mxu0
        %1331 = vmatprep.mubr.f32.mxu0 0.0
        %1332 = vmatmul.mubr.f32.gmra.mxu0 %v1158
        %v1333 = vpop.f32.mrf.mxu0
        %v1334 = vadd.f32 %v1013, %v1333
        %v1335 = vpop.f32.mrf.mxu0
        %1336 = vmatprep.mubr.f32.mxu0 0.0
        %1337 = vmatmul.mubr.f32.gmra.mxu0 %v1161
        %v1338 = vpop.f32.mrf.mxu0
        %v1339 = vadd.f32 %v1018, %v1338
        %v1340 = vpop.f32.mrf.mxu0
        %1341 = vmatprep.mubr.f32.mxu0 0.0
        %1342 = vmatmul.mubr.f32.gmra.mxu0 %v1164
        %v1343 = vpop.f32.mrf.mxu0
        %v1344 = vadd.f32 %v1023, %v1343
        %v1345 = vpop.f32.mrf.mxu0
        %1346 = vmatprep.mubr.f32.mxu0 0.0
        %1347 = vmatmul.mubr.f32.gmra.mxu0 %v1167
        %v1348 = vpop.f32.mrf.mxu0
        %v1349 = vadd.f32 %v1028, %v1348
        %v1350 = vpop.f32.mrf.mxu0
        %1351 = vmatprep.mubr.f32.mxu0 0.0
        %1352 = vmatmul.mubr.f32.gmra.mxu0 %v1170
        %v1353 = vpop.f32.mrf.mxu0
        %v1354 = vadd.f32 %v1033, %v1353
        %v1355 = vpop.f32.mrf.mxu0
        %1356 = vmatprep.mubr.f32.mxu0 0.0
        %1357 = vmatmul.mubr.f32.gmra.mxu0 %v1173
        %v1358 = vpop.f32.mrf.mxu0
        %v1359 = vadd.f32 %v1038, %v1358
        %v1360 = vpop.f32.mrf.mxu0
        %1361 = vmatprep.mubr.f32.mxu0 0.0
        %1362 = vmatmul.mubr.f32.gmra.mxu0 %v1176
        %v1363 = vpop.f32.mrf.mxu0
        %v1364 = vadd.f32 %v1043, %v1363
        %v1365 = vpop.f32.mrf.mxu0
        %1366 = vmatprep.mubr.f32.mxu0 0.0
        %1367 = vmatmul.mubr.f32.gmra.mxu0 %v1179
        %v1368 = vpop.f32.mrf.mxu0
        %v1369 = vadd.f32 %v1048, %v1368
        %v1370 = vpop.f32.mrf.mxu0
        %1371 = vmatprep.mubr.f32.mxu0 0.0
        %1372 = vmatmul.mubr.f32.gmra.mxu0 %v1182
        %v1373 = vpop.f32.mrf.mxu0
        %v1374 = vadd.f32 %v1053, %v1373
        %v1375 = vpop.f32.mrf.mxu0
        %1376 = vmatprep.mubr.f32.mxu0 0.0
        %1377 = vmatmul.mubr.f32.gmra.mxu0 %v1185
        %v1378 = vpop.f32.mrf.mxu0
        %v1379 = vadd.f32 %v1058, %v1378
        %v1380 = vpop.f32.mrf.mxu0
        %1381 = vmatprep.mubr.f32.mxu0 0.0
        %1382 = vmatmul.mubr.f32.gmra.mxu0 %v1188
        %v1383 = vpop.f32.mrf.mxu0
        %v1384 = vadd.f32 %v1063, %v1383
        %v1385 = vpop.f32.mrf.mxu0
        %1386 = vmatprep.mubr.f32.mxu0 0.0
        %1387 = vmatmul.mubr.f32.gmra.mxu0 %v1191
        %v1388 = vpop.f32.mrf.mxu0
        %v1389 = vadd.f32 %v1068, %v1388
        %v1390 = vpop.f32.mrf.mxu0
        %1391 = vmatprep.mubr.f32.mxu0 0.0
        %1392 = vmatmul.mubr.f32.gmra.mxu0 %v1194
        %v1393 = vpop.f32.mrf.mxu0
        %v1394 = vadd.f32 %v1073, %v1393
        %v1395 = vpop.f32.mrf.mxu0
        %1396 = vmatprep.mubr.f32.mxu0 0.0
        %1397 = vmatmul.mubr.f32.gmra.mxu0 %v1197
        %v1398 = vpop.f32.mrf.mxu0
        %v1399 = vadd.f32 %v1078, %v1398
        %v1400 = vpop.f32.mrf.mxu0
        %1401 = vmatprep.mubr.f32.mxu0 0.0
        %1402 = vmatmul.mubr.f32.gmra.mxu0 %v1200
        %v1403 = vpop.f32.mrf.mxu0
        %v1404 = vadd.f32 %v1083, %v1403
        %v1405 = vpop.f32.mrf.mxu0
        %1406 = vmatprep.mubr.f32.mxu0 0.0
        %1407 = vmatmul.mubr.f32.gmra.mxu0 %v1203
        %v1408 = vpop.f32.mrf.mxu0
        %v1409 = vadd.f32 %v1088, %v1408
        %v1410 = vpop.f32.mrf.mxu0
        %1411 = vmatprep.mubr.f32.mxu0 0.0
        %1412 = vmatmul.mubr.f32.gmra.mxu0 %v1206
        %v1413 = vpop.f32.mrf.mxu0
        %v1414 = vadd.f32 %v1093, %v1413
        %v1415 = vpop.f32.mrf.mxu0
        %1416 = vmatprep.mubr.f32.mxu0 0.0
        %1417 = vmatmul.mubr.f32.gmra.mxu0 %v1209
        %v1418 = vpop.f32.mrf.mxu0
        %v1419 = vadd.f32 %v1098, %v1418
        %v1420 = vpop.f32.mrf.mxu0
        %1421 = vmatprep.mubr.f32.mxu0 0.0
        %1422 = vmatmul.mubr.f32.gmra.mxu0 %v1212
        %v1423 = vpop.f32.mrf.mxu0
        %v1424 = vadd.f32 %v1103, %v1423
        %v1425 = vpop.f32.mrf.mxu0
        %1426 = vmatprep.mubr.f32.mxu0 0.0
        %1427 = vmatmul.mubr.f32.gmra.mxu0 %v1215
        %v1428 = vpop.f32.mrf.mxu0
        %v1429 = vadd.f32 %v1108, %v1428
        %v1430 = vpop.f32.mrf.mxu0
        %1431 = vmatprep.mubr.f32.mxu0 0.0
        %1432 = vmatmul.mubr.f32.gmra.mxu0 %v1218
        %v1433 = vpop.f32.mrf.mxu0
        %v1434 = vadd.f32 %v1113, %v1433
        %v1435 = vpop.f32.mrf.mxu0
        %1436 = vmatprep.mubr.f32.mxu0 0.0
        %1437 = vmatmul.mubr.f32.gmra.mxu0 %v1221
        %v1438 = vpop.f32.mrf.mxu0
        %v1439 = vadd.f32 %v1118, %v1438
        %v1440 = vpop.f32.mrf.mxu0
        %1441 = vmatprep.mubr.f32.mxu0 0.0
        %1442 = vmatmul.mubr.f32.gmra.mxu0 %v1224
        %v1443 = vpop.f32.mrf.mxu0
        %v1444 = vadd.f32 %v1123, %v1443
        %v1445 = vpop.f32.mrf.mxu0
        %1446 = vmatprep.mubr.f32.mxu0 0.0
        %1447 = vmatmul.mubr.f32.gmra.mxu0 %v1227
        %v1448 = vpop.f32.mrf.mxu0
        %v1449 = vadd.f32 %v1128, %v1448
        %v1450 = vpop.f32.mrf.mxu0
        %1451 = vmatprep.mubr.f32.mxu0 0.0
        %1452 = vmatmul.mubr.f32.gmra.mxu0 %v1230
        %v1453 = vpop.f32.mrf.mxu0
        %v1454 = vadd.f32 %v1133, %v1453
        %v1455 = vpop.f32.mrf.mxu0
        %1456 = vdwg.mxu0
        %v1457 = vld [vmem:[#allocation2 + $0x2] sm:$0xff]
        %v1458 = vld [vmem:[#allocation2 + $0xa] sm:$0xff]
        %v1459 = vld [vmem:[#allocation2 + $0x1a] sm:$0xff]
        %v1460 = vld [vmem:[#allocation2 + $0x22] sm:$0xff]
        %v1461 = vld [vmem:[#allocation2 + $0x32] sm:$0xff]
        %v1462 = vld [vmem:[#allocation2 + $0x3a] sm:$0xff]
        %v1463 = vld [vmem:[#allocation2 + $0x4a] sm:$0xff]
        %v1464 = vld [vmem:[#allocation2 + $0x52] sm:$0xff]
        %v1465 = vld [vmem:[#allocation2 + $0x62] sm:$0xff]
        %v1466 = vld [vmem:[#allocation2 + $0x6a] sm:$0xff]
        %v1467 = vld [vmem:[#allocation2 + $0x7a] sm:$0xff]
        %v1468 = vld [vmem:[#allocation2 + $0x82] sm:$0xff]
        %v1469 = vld [vmem:[#allocation2 + $0x92] sm:$0xff]
        %v1470 = vld [vmem:[#allocation2 + $0x9a] sm:$0xff]
        %v1471 = vld [vmem:[#allocation2 + $0xaa] sm:$0xff]
        %v1472 = vld [vmem:[#allocation2 + $0xb2] sm:$0xff]
        %v1473 = vld [vmem:[#allocation2 + $0xc2] sm:$0xff]
        %v1474 = vld [vmem:[#allocation2 + $0xca] sm:$0xff]
        %v1475 = vld [vmem:[#allocation2 + $0xda] sm:$0xff]
        %v1476 = vld [vmem:[#allocation2 + $0xe2] sm:$0xff]
        %v1477 = vld [vmem:[#allocation2 + $0xf2] sm:$0xff]
        %v1478 = vld [vmem:[#allocation2 + $0xfa] sm:$0xff]
        %v1479 = vld [vmem:[#allocation2 + $0x10a] sm:$0xff]
        %v1480 = vld [vmem:[#allocation2 + $0x112] sm:$0xff]
        %v1481 = vld [vmem:[#allocation2 + $0x122] sm:$0xff]
        %v1482 = vld [vmem:[#allocation2 + $0x12a] sm:$0xff]
        %v1483 = vld [vmem:[#allocation2 + $0x13a] sm:$0xff]
        %v1484 = vld [vmem:[#allocation2 + $0x142] sm:$0xff]
        %v1485 = vld [vmem:[#allocation2 + $0x152] sm:$0xff]
        %v1486 = vld [vmem:[#allocation2 + $0x15a] sm:$0xff]
        %v1487 = vld [vmem:[#allocation2 + $0x16a] sm:$0xff]
        %v1488 = vld [vmem:[#allocation2 + $0x172] sm:$0xff]
        %s1489 = scalar_lea.vmem %s1, 128
        %v1490 = vld [vmem:[%s1489] sm:$0xff]
        %v1491 = vld [vmem:[%s1489 + $0x8] sm:$0xff]
        %v1492 = vld [vmem:[%s1489 + $0x10] sm:$0xff]
        %v1493 = vld [vmem:[%s1489 + $0x18] sm:$0xff]
        %v1494 = vld [vmem:[%s1489 + $0x20] sm:$0xff]
        %v1495 = vld [vmem:[%s1489 + $0x28] sm:$0xff]
        %v1496 = vld [vmem:[%s1489 + $0x30] sm:$0xff]
        %v1497 = vld [vmem:[%s1489 + $0x38] sm:$0xff]
        %v1499 = vsel %vm282, %v1457, 0
        %v1502 = vsel %vm282, %v1458, 0
        %v1505 = vsel %vm282, %v1459, 0
        %v1508 = vsel %vm282, %v1460, 0
        %v1511 = vsel %vm282, %v1461, 0
        %v1514 = vsel %vm282, %v1462, 0
        %v1517 = vsel %vm282, %v1463, 0
        %v1520 = vsel %vm282, %v1464, 0
        %v1523 = vsel %vm282, %v1465, 0
        %v1526 = vsel %vm282, %v1466, 0
        %v1529 = vsel %vm282, %v1467, 0
        %v1532 = vsel %vm282, %v1468, 0
        %v1535 = vsel %vm282, %v1469, 0
        %v1538 = vsel %vm282, %v1470, 0
        %v1541 = vsel %vm282, %v1471, 0
        %v1544 = vsel %vm282, %v1472, 0
        %v1547 = vsel %vm282, %v1473, 0
        %v1550 = vsel %vm282, %v1474, 0
        %v1553 = vsel %vm282, %v1475, 0
        %v1556 = vsel %vm282, %v1476, 0
        %v1559 = vsel %vm282, %v1477, 0
        %v1562 = vsel %vm282, %v1478, 0
        %v1565 = vsel %vm282, %v1479, 0
        %v1568 = vsel %vm282, %v1480, 0
        %v1571 = vsel %vm282, %v1481, 0
        %v1574 = vsel %vm282, %v1482, 0
        %v1577 = vsel %vm282, %v1483, 0
        %v1580 = vsel %vm282, %v1484, 0
        %v1583 = vsel %vm282, %v1485, 0
        %v1586 = vsel %vm282, %v1486, 0
        %v1589 = vsel %vm282, %v1487, 0
        %v1592 = vsel %vm282, %v1488, 0
        %1594 = vmatprep.subr.mxu0 0.0
        %1595 = vmatpush1.msra.mxu0 0.0
        %1596 = vmatprep.subr.mxu0 0.0
        %1597 = vmatpush1.msra.mxu0 0.0
        %1598 = vmatprep.subr.mxu0 0.0
        %1599 = vmatpush1.msra.mxu0 0.0
        %1600 = vmatprep.subr.mxu0 0.0
        %1601 = vmatpush1.msra.mxu0 0.0
        %1602 = vmatprep.subr.mxu0 0.0
        %1603 = vmatpush1.msra.mxu0 0.0
        %1604 = vmatprep.subr.mxu0 0.0
        %1605 = vmatpush1.msra.mxu0 0.0
        %1606 = vmatprep.subr.mxu0 0.0
        %1607 = vmatpush1.msra.mxu0 0.0
        %1608 = vmatprep.subr.mxu0 0.0
        %1609 = vmatpush1.msra.mxu0 0.0
        %1610 = vmatprep.subr.mxu0 0.0
        %1611 = vmatpush1.msra.mxu0 %v1497
        %1612 = vmatprep.subr.mxu0 0.0
        %1613 = vmatpush1.msra.mxu0 %v1496
        %1614 = vmatprep.subr.mxu0 0.0
        %1615 = vmatpush1.msra.mxu0 %v1495
        %1616 = vmatprep.subr.mxu0 0.0
        %1617 = vmatpush1.msra.mxu0 %v1494
        %1618 = vmatprep.subr.mxu0 0.0
        %1619 = vmatpush1.msra.mxu0 %v1493
        %1620 = vmatprep.subr.mxu0 0.0
        %1621 = vmatpush1.msra.mxu0 %v1492
        %1622 = vmatprep.subr.mxu0 0.0
        %1623 = vmatpush1.msra.mxu0 %v1491
        %1624 = vmatprep.subr.mxu0 0.0
        %1625 = vmatpush1.msra.mxu0 %v1490
        %1626 = vmatprep.subr.mxu0 0.0
        %1627 = vmatpush2.msra.mxu0 0.0
        %1628 = vmatprep.subr.mxu0 0.0
        %1629 = vmatpush2.msra.mxu0 0.0
        %1630 = vmatprep.subr.mxu0 0.0
        %1631 = vmatpush2.msra.mxu0 0.0
        %1632 = vmatprep.subr.mxu0 0.0
        %1633 = vmatpush2.msra.mxu0 0.0
        %1634 = vmatprep.subr.mxu0 0.0
        %1635 = vmatpush2.msra.mxu0 0.0
        %1636 = vmatprep.subr.mxu0 0.0
        %1637 = vmatpush2.msra.mxu0 0.0
        %1638 = vmatprep.subr.mxu0 0.0
        %1639 = vmatpush2.msra.mxu0 0.0
        %1640 = vmatprep.subr.mxu0 0.0
        %1641 = vmatpush2.msra.mxu0 0.0
        %1642 = vmatprep.subr.mxu0 0.0
        %1643 = vmatpush2.msra.mxu0 0.0
        %1644 = vmatprep.subr.mxu0 0.0
        %1645 = vmatpush2.msra.mxu0 0.0
        %1646 = vmatprep.subr.mxu0 0.0
        %1647 = vmatpush2.msra.mxu0 0.0
        %1648 = vmatprep.subr.mxu0 0.0
        %1649 = vmatpush2.msra.mxu0 0.0
        %1650 = vmatprep.subr.mxu0 0.0
        %1651 = vmatpush2.msra.mxu0 0.0
        %1652 = vmatprep.subr.mxu0 0.0
        %1653 = vmatpush2.msra.mxu0 0.0
        %1654 = vmatprep.subr.mxu0 0.0
        %1655 = vmatpush2.msra.mxu0 0.0
        %1656 = vmatprep.subr.mxu0 0.0
        %1657 = vmatpush2.msra.mxu0 0.0
        %1658 = vmatprep.mubr.f32.mxu0 0.0
        %1659 = vmatmul.mubr.f32.gmra.mxu0 %v1499
        %v1660 = vpop.f32.mrf.mxu0
        %v1661 = vadd.f32 0.0, %v1660
        %v1662 = vpop.f32.mrf.mxu0
        %1663 = vmatprep.mubr.f32.mxu0 0.0
        %1664 = vmatmul.mubr.f32.gmra.mxu0 %v1502
        %v1665 = vpop.f32.mrf.mxu0
        %v1666 = vadd.f32 0.0, %v1665
        %v1667 = vpop.f32.mrf.mxu0
        %1668 = vmatprep.mubr.f32.mxu0 0.0
        %1669 = vmatmul.mubr.f32.gmra.mxu0 %v1505
        %v1670 = vpop.f32.mrf.mxu0
        %v1671 = vadd.f32 0.0, %v1670
        %v1672 = vpop.f32.mrf.mxu0
        %1673 = vmatprep.mubr.f32.mxu0 0.0
        %1674 = vmatmul.mubr.f32.gmra.mxu0 %v1508
        %v1675 = vpop.f32.mrf.mxu0
        %v1676 = vadd.f32 0.0, %v1675
        %v1677 = vpop.f32.mrf.mxu0
        %1678 = vmatprep.mubr.f32.mxu0 0.0
        %1679 = vmatmul.mubr.f32.gmra.mxu0 %v1511
        %v1680 = vpop.f32.mrf.mxu0
        %v1681 = vadd.f32 0.0, %v1680
        %v1682 = vpop.f32.mrf.mxu0
        %1683 = vmatprep.mubr.f32.mxu0 0.0
        %1684 = vmatmul.mubr.f32.gmra.mxu0 %v1514
        %v1685 = vpop.f32.mrf.mxu0
        %v1686 = vadd.f32 0.0, %v1685
        %v1687 = vpop.f32.mrf.mxu0
        %1688 = vmatprep.mubr.f32.mxu0 0.0
        %1689 = vmatmul.mubr.f32.gmra.mxu0 %v1517
        %v1690 = vpop.f32.mrf.mxu0
        %v1691 = vadd.f32 0.0, %v1690
        %v1692 = vpop.f32.mrf.mxu0
        %1693 = vmatprep.mubr.f32.mxu0 0.0
        %1694 = vmatmul.mubr.f32.gmra.mxu0 %v1520
        %v1695 = vpop.f32.mrf.mxu0
        %v1696 = vadd.f32 0.0, %v1695
        %v1697 = vpop.f32.mrf.mxu0
        %1698 = vmatprep.mubr.f32.mxu0 0.0
        %1699 = vmatmul.mubr.f32.gmra.mxu0 %v1523
        %v1700 = vpop.f32.mrf.mxu0
        %v1701 = vadd.f32 0.0, %v1700
        %v1702 = vpop.f32.mrf.mxu0
        %1703 = vmatprep.mubr.f32.mxu0 0.0
        %1704 = vmatmul.mubr.f32.gmra.mxu0 %v1526
        %v1705 = vpop.f32.mrf.mxu0
        %v1706 = vadd.f32 0.0, %v1705
        %v1707 = vpop.f32.mrf.mxu0
        %1708 = vmatprep.mubr.f32.mxu0 0.0
        %1709 = vmatmul.mubr.f32.gmra.mxu0 %v1529
        %v1710 = vpop.f32.mrf.mxu0
        %v1711 = vadd.f32 0.0, %v1710
        %v1712 = vpop.f32.mrf.mxu0
        %1713 = vmatprep.mubr.f32.mxu0 0.0
        %1714 = vmatmul.mubr.f32.gmra.mxu0 %v1532
        %v1715 = vpop.f32.mrf.mxu0
        %v1716 = vadd.f32 0.0, %v1715
        %v1717 = vpop.f32.mrf.mxu0
        %1718 = vmatprep.mubr.f32.mxu0 0.0
        %1719 = vmatmul.mubr.f32.gmra.mxu0 %v1535
        %v1720 = vpop.f32.mrf.mxu0
        %v1721 = vadd.f32 0.0, %v1720
        %v1722 = vpop.f32.mrf.mxu0
        %1723 = vmatprep.mubr.f32.mxu0 0.0
        %1724 = vmatmul.mubr.f32.gmra.mxu0 %v1538
        %v1725 = vpop.f32.mrf.mxu0
        %v1726 = vadd.f32 0.0, %v1725
        %v1727 = vpop.f32.mrf.mxu0
        %1728 = vmatprep.mubr.f32.mxu0 0.0
        %1729 = vmatmul.mubr.f32.gmra.mxu0 %v1541
        %v1730 = vpop.f32.mrf.mxu0
        %v1731 = vadd.f32 0.0, %v1730
        %v1732 = vpop.f32.mrf.mxu0
        %1733 = vmatprep.mubr.f32.mxu0 0.0
        %1734 = vmatmul.mubr.f32.gmra.mxu0 %v1544
        %v1735 = vpop.f32.mrf.mxu0
        %v1736 = vadd.f32 0.0, %v1735
        %v1737 = vpop.f32.mrf.mxu0
        %1738 = vmatprep.mubr.f32.mxu0 0.0
        %1739 = vmatmul.mubr.f32.gmra.mxu0 %v1547
        %v1740 = vpop.f32.mrf.mxu0
        %v1741 = vadd.f32 0.0, %v1740
        %v1742 = vpop.f32.mrf.mxu0
        %1743 = vmatprep.mubr.f32.mxu0 0.0
        %1744 = vmatmul.mubr.f32.gmra.mxu0 %v1550
        %v1745 = vpop.f32.mrf.mxu0
        %v1746 = vadd.f32 0.0, %v1745
        %v1747 = vpop.f32.mrf.mxu0
        %1748 = vmatprep.mubr.f32.mxu0 0.0
        %1749 = vmatmul.mubr.f32.gmra.mxu0 %v1553
        %v1750 = vpop.f32.mrf.mxu0
        %v1751 = vadd.f32 0.0, %v1750
        %v1752 = vpop.f32.mrf.mxu0
        %1753 = vmatprep.mubr.f32.mxu0 0.0
        %1754 = vmatmul.mubr.f32.gmra.mxu0 %v1556
        %v1755 = vpop.f32.mrf.mxu0
        %v1756 = vadd.f32 0.0, %v1755
        %v1757 = vpop.f32.mrf.mxu0
        %1758 = vmatprep.mubr.f32.mxu0 0.0
        %1759 = vmatmul.mubr.f32.gmra.mxu0 %v1559
        %v1760 = vpop.f32.mrf.mxu0
        %v1761 = vadd.f32 0.0, %v1760
        %v1762 = vpop.f32.mrf.mxu0
        %1763 = vmatprep.mubr.f32.mxu0 0.0
        %1764 = vmatmul.mubr.f32.gmra.mxu0 %v1562
        %v1765 = vpop.f32.mrf.mxu0
        %v1766 = vadd.f32 0.0, %v1765
        %v1767 = vpop.f32.mrf.mxu0
        %1768 = vmatprep.mubr.f32.mxu0 0.0
        %1769 = vmatmul.mubr.f32.gmra.mxu0 %v1565
        %v1770 = vpop.f32.mrf.mxu0
        %v1771 = vadd.f32 0.0, %v1770
        %v1772 = vpop.f32.mrf.mxu0
        %1773 = vmatprep.mubr.f32.mxu0 0.0
        %1774 = vmatmul.mubr.f32.gmra.mxu0 %v1568
        %v1775 = vpop.f32.mrf.mxu0
        %v1776 = vadd.f32 0.0, %v1775
        %v1777 = vpop.f32.mrf.mxu0
        %1778 = vmatprep.mubr.f32.mxu0 0.0
        %1779 = vmatmul.mubr.f32.gmra.mxu0 %v1571
        %v1780 = vpop.f32.mrf.mxu0
        %v1781 = vadd.f32 0.0, %v1780
        %v1782 = vpop.f32.mrf.mxu0
        %1783 = vmatprep.mubr.f32.mxu0 0.0
        %1784 = vmatmul.mubr.f32.gmra.mxu0 %v1574
        %v1785 = vpop.f32.mrf.mxu0
        %v1786 = vadd.f32 0.0, %v1785
        %v1787 = vpop.f32.mrf.mxu0
        %1788 = vmatprep.mubr.f32.mxu0 0.0
        %1789 = vmatmul.mubr.f32.gmra.mxu0 %v1577
        %v1790 = vpop.f32.mrf.mxu0
        %v1791 = vadd.f32 0.0, %v1790
        %v1792 = vpop.f32.mrf.mxu0
        %1793 = vmatprep.mubr.f32.mxu0 0.0
        %1794 = vmatmul.mubr.f32.gmra.mxu0 %v1580
        %v1795 = vpop.f32.mrf.mxu0
        %v1796 = vadd.f32 0.0, %v1795
        %v1797 = vpop.f32.mrf.mxu0
        %1798 = vmatprep.mubr.f32.mxu0 0.0
        %1799 = vmatmul.mubr.f32.gmra.mxu0 %v1583
        %v1800 = vpop.f32.mrf.mxu0
        %v1801 = vadd.f32 0.0, %v1800
        %v1802 = vpop.f32.mrf.mxu0
        %1803 = vmatprep.mubr.f32.mxu0 0.0
        %1804 = vmatmul.mubr.f32.gmra.mxu0 %v1586
        %v1805 = vpop.f32.mrf.mxu0
        %v1806 = vadd.f32 0.0, %v1805
        %v1807 = vpop.f32.mrf.mxu0
        %1808 = vmatprep.mubr.f32.mxu0 0.0
        %1809 = vmatmul.mubr.f32.gmra.mxu0 %v1589
        %v1810 = vpop.f32.mrf.mxu0
        %v1811 = vadd.f32 0.0, %v1810
        %v1812 = vpop.f32.mrf.mxu0
        %1813 = vmatprep.mubr.f32.mxu0 0.0
        %1814 = vmatmul.mubr.f32.gmra.mxu0 %v1592
        %v1815 = vpop.f32.mrf.mxu0
        %v1816 = vadd.f32 0.0, %v1815
        %v1817 = vpop.f32.mrf.mxu0
        %1818 = vdwg.mxu0
        %v1819 = vadd.f32 %v1299, %v1661
        %v1820 = vadd.f32 %v1304, %v1666
        %v1821 = vadd.f32 %v1309, %v1671
        %v1822 = vadd.f32 %v1314, %v1676
        %v1823 = vadd.f32 %v1319, %v1681
        %v1824 = vadd.f32 %v1324, %v1686
        %v1825 = vadd.f32 %v1329, %v1691
        %v1826 = vadd.f32 %v1334, %v1696
        %v1827 = vadd.f32 %v1339, %v1701
        %v1828 = vadd.f32 %v1344, %v1706
        %v1829 = vadd.f32 %v1349, %v1711
        %v1830 = vadd.f32 %v1354, %v1716
        %v1831 = vadd.f32 %v1359, %v1721
        %v1832 = vadd.f32 %v1364, %v1726
        %v1833 = vadd.f32 %v1369, %v1731
        %v1834 = vadd.f32 %v1374, %v1736
        %v1835 = vadd.f32 %v1379, %v1741
        %v1836 = vadd.f32 %v1384, %v1746
        %v1837 = vadd.f32 %v1389, %v1751
        %v1838 = vadd.f32 %v1394, %v1756
        %v1839 = vadd.f32 %v1399, %v1761
        %v1840 = vadd.f32 %v1404, %v1766
        %v1841 = vadd.f32 %v1409, %v1771
        %v1842 = vadd.f32 %v1414, %v1776
        %v1843 = vadd.f32 %v1419, %v1781
        %v1844 = vadd.f32 %v1424, %v1786
        %v1845 = vadd.f32 %v1429, %v1791
        %v1846 = vadd.f32 %v1434, %v1796
        %v1847 = vadd.f32 %v1439, %v1801
        %v1848 = vadd.f32 %v1444, %v1806
        %v1849 = vadd.f32 %v1449, %v1811
        %v1850 = vadd.f32 %v1454, %v1816
        %v1851 = vld [vmem:[%s620] sm:$0xff]
        %v1852 = vld [vmem:[%s620 + $0x8] sm:$0xff]
        %v1853 = vld [vmem:[%s620 + $0x18] sm:$0xff]
        %v1854 = vld [vmem:[%s620 + $0x20] sm:$0xff]
        %v1855 = vld [vmem:[%s620 + $0x30] sm:$0xff]
        %v1856 = vld [vmem:[%s620 + $0x38] sm:$0xff]
        %v1857 = vld [vmem:[%s620 + $0x48] sm:$0xff]
        %v1858 = vld [vmem:[%s620 + $0x50] sm:$0xff]
        %v1859 = vld [vmem:[%s620 + $0x60] sm:$0xff]
        %v1860 = vld [vmem:[%s620 + $0x68] sm:$0xff]
        %v1861 = vld [vmem:[%s620 + $0x78] sm:$0xff]
        %v1862 = vld [vmem:[%s620 + $0x80] sm:$0xff]
        %v1863 = vld [vmem:[%s620 + $0x90] sm:$0xff]
        %v1864 = vld [vmem:[%s620 + $0x98] sm:$0xff]
        %v1865 = vld [vmem:[%s620 + $0xa8] sm:$0xff]
        %v1866 = vld [vmem:[%s620 + $0xb0] sm:$0xff]
        %v1867 = vld [vmem:[%s620 + $0xc0] sm:$0xff]
        %v1868 = vld [vmem:[%s620 + $0xc8] sm:$0xff]
        %v1869 = vld [vmem:[%s620 + $0xd8] sm:$0xff]
        %v1870 = vld [vmem:[%s620 + $0xe0] sm:$0xff]
        %v1871 = vld [vmem:[%s620 + $0xf0] sm:$0xff]
        %v1872 = vld [vmem:[%s620 + $0xf8] sm:$0xff]
        %v1873 = vld [vmem:[%s620 + $0x108] sm:$0xff]
        %v1874 = vld [vmem:[%s620 + $0x110] sm:$0xff]
        %v1875 = vld [vmem:[%s620 + $0x120] sm:$0xff]
        %v1876 = vld [vmem:[%s620 + $0x128] sm:$0xff]
        %v1877 = vld [vmem:[%s620 + $0x138] sm:$0xff]
        %v1878 = vld [vmem:[%s620 + $0x140] sm:$0xff]
        %v1879 = vld [vmem:[%s620 + $0x150] sm:$0xff]
        %v1880 = vld [vmem:[%s620 + $0x158] sm:$0xff]
        %v1881 = vld [vmem:[%s620 + $0x168] sm:$0xff]
        %v1882 = vld [vmem:[%s620 + $0x170] sm:$0xff]
        %s1883 = scalar_lea.vmem %s1, 192
        %v1884 = vld [vmem:[%s1883] sm:$0xff]
        %v1885 = vld [vmem:[%s1883 + $0x8] sm:$0xff]
        %v1886 = vld [vmem:[%s1883 + $0x10] sm:$0xff]
        %v1887 = vld [vmem:[%s1883 + $0x18] sm:$0xff]
        %v1888 = vld [vmem:[%s1883 + $0x20] sm:$0xff]
        %v1889 = vld [vmem:[%s1883 + $0x28] sm:$0xff]
        %v1890 = vld [vmem:[%s1883 + $0x30] sm:$0xff]
        %v1891 = vld [vmem:[%s1883 + $0x38] sm:$0xff]
        %v1893 = vsel %vm282, %v1851, 0
        %v1896 = vsel %vm282, %v1852, 0
        %v1899 = vsel %vm282, %v1853, 0
        %v1902 = vsel %vm282, %v1854, 0
        %v1905 = vsel %vm282, %v1855, 0
        %v1908 = vsel %vm282, %v1856, 0
        %v1911 = vsel %vm282, %v1857, 0
        %v1914 = vsel %vm282, %v1858, 0
        %v1917 = vsel %vm282, %v1859, 0
        %v1920 = vsel %vm282, %v1860, 0
        %v1923 = vsel %vm282, %v1861, 0
        %v1926 = vsel %vm282, %v1862, 0
        %v1929 = vsel %vm282, %v1863, 0
        %v1932 = vsel %vm282, %v1864, 0
        %v1935 = vsel %vm282, %v1865, 0
        %v1938 = vsel %vm282, %v1866, 0
        %v1941 = vsel %vm282, %v1867, 0
        %v1944 = vsel %vm282, %v1868, 0
        %v1947 = vsel %vm282, %v1869, 0
        %v1950 = vsel %vm282, %v1870, 0
        %v1953 = vsel %vm282, %v1871, 0
        %v1956 = vsel %vm282, %v1872, 0
        %v1959 = vsel %vm282, %v1873, 0
        %v1962 = vsel %vm282, %v1874, 0
        %v1965 = vsel %vm282, %v1875, 0
        %v1968 = vsel %vm282, %v1876, 0
        %v1971 = vsel %vm282, %v1877, 0
        %v1974 = vsel %vm282, %v1878, 0
        %v1977 = vsel %vm282, %v1879, 0
        %v1980 = vsel %vm282, %v1880, 0
        %v1983 = vsel %vm282, %v1881, 0
        %v1986 = vsel %vm282, %v1882, 0
        %1988 = vmatprep.subr.mxu0 0.0
        %1989 = vmatpush1.msra.mxu0 0.0
        %1990 = vmatprep.subr.mxu0 0.0
        %1991 = vmatpush1.msra.mxu0 0.0
        %1992 = vmatprep.subr.mxu0 0.0
        %1993 = vmatpush1.msra.mxu0 0.0
        %1994 = vmatprep.subr.mxu0 0.0
        %1995 = vmatpush1.msra.mxu0 0.0
        %1996 = vmatprep.subr.mxu0 0.0
        %1997 = vmatpush1.msra.mxu0 0.0
        %1998 = vmatprep.subr.mxu0 0.0
        %1999 = vmatpush1.msra.mxu0 0.0
        %2000 = vmatprep.subr.mxu0 0.0
        %2001 = vmatpush1.msra.mxu0 0.0
        %2002 = vmatprep.subr.mxu0 0.0
        %2003 = vmatpush1.msra.mxu0 0.0
        %2004 = vmatprep.subr.mxu0 0.0
        %2005 = vmatpush1.msra.mxu0 %v1891
        %2006 = vmatprep.subr.mxu0 0.0
        %2007 = vmatpush1.msra.mxu0 %v1890
        %2008 = vmatprep.subr.mxu0 0.0
        %2009 = vmatpush1.msra.mxu0 %v1889
        %2010 = vmatprep.subr.mxu0 0.0
        %2011 = vmatpush1.msra.mxu0 %v1888
        %2012 = vmatprep.subr.mxu0 0.0
        %2013 = vmatpush1.msra.mxu0 %v1887
        %2014 = vmatprep.subr.mxu0 0.0
        %2015 = vmatpush1.msra.mxu0 %v1886
        %2016 = vmatprep.subr.mxu0 0.0
        %2017 = vmatpush1.msra.mxu0 %v1885
        %2018 = vmatprep.subr.mxu0 0.0
        %2019 = vmatpush1.msra.mxu0 %v1884
        %2020 = vmatprep.subr.mxu0 0.0
        %2021 = vmatpush2.msra.mxu0 0.0
        %2022 = vmatprep.subr.mxu0 0.0
        %2023 = vmatpush2.msra.mxu0 0.0
        %2024 = vmatprep.subr.mxu0 0.0
        %2025 = vmatpush2.msra.mxu0 0.0
        %2026 = vmatprep.subr.mxu0 0.0
        %2027 = vmatpush2.msra.mxu0 0.0
        %2028 = vmatprep.subr.mxu0 0.0
        %2029 = vmatpush2.msra.mxu0 0.0
        %2030 = vmatprep.subr.mxu0 0.0
        %2031 = vmatpush2.msra.mxu0 0.0
        %2032 = vmatprep.subr.mxu0 0.0
        %2033 = vmatpush2.msra.mxu0 0.0
        %2034 = vmatprep.subr.mxu0 0.0
        %2035 = vmatpush2.msra.mxu0 0.0
        %2036 = vmatprep.subr.mxu0 0.0
        %2037 = vmatpush2.msra.mxu0 0.0
        %2038 = vmatprep.subr.mxu0 0.0
        %2039 = vmatpush2.msra.mxu0 0.0
        %2040 = vmatprep.subr.mxu0 0.0
        %2041 = vmatpush2.msra.mxu0 0.0
        %2042 = vmatprep.subr.mxu0 0.0
        %2043 = vmatpush2.msra.mxu0 0.0
        %2044 = vmatprep.subr.mxu0 0.0
        %2045 = vmatpush2.msra.mxu0 0.0
        %2046 = vmatprep.subr.mxu0 0.0
        %2047 = vmatpush2.msra.mxu0 0.0
        %2048 = vmatprep.subr.mxu0 0.0
        %2049 = vmatpush2.msra.mxu0 0.0
        %2050 = vmatprep.subr.mxu0 0.0
        %2051 = vmatpush2.msra.mxu0 0.0
        %2052 = vmatprep.mubr.f32.mxu0 0.0
        %2053 = vmatmul.mubr.f32.gmra.mxu0 %v1893
        %v2054 = vpop.f32.mrf.mxu0
        %v2055 = vadd.f32 0.0, %v2054
        %v2056 = vpop.f32.mrf.mxu0
        %2057 = vmatprep.mubr.f32.mxu0 0.0
        %2058 = vmatmul.mubr.f32.gmra.mxu0 %v1896
        %v2059 = vpop.f32.mrf.mxu0
        %v2060 = vadd.f32 0.0, %v2059
        %v2061 = vpop.f32.mrf.mxu0
        %2062 = vmatprep.mubr.f32.mxu0 0.0
        %2063 = vmatmul.mubr.f32.gmra.mxu0 %v1899
        %v2064 = vpop.f32.mrf.mxu0
        %v2065 = vadd.f32 0.0, %v2064
        %v2066 = vpop.f32.mrf.mxu0
        %2067 = vmatprep.mubr.f32.mxu0 0.0
        %2068 = vmatmul.mubr.f32.gmra.mxu0 %v1902
        %v2069 = vpop.f32.mrf.mxu0
        %v2070 = vadd.f32 0.0, %v2069
        %v2071 = vpop.f32.mrf.mxu0
        %2072 = vmatprep.mubr.f32.mxu0 0.0
        %2073 = vmatmul.mubr.f32.gmra.mxu0 %v1905
        %v2074 = vpop.f32.mrf.mxu0
        %v2075 = vadd.f32 0.0, %v2074
        %v2076 = vpop.f32.mrf.mxu0
        %2077 = vmatprep.mubr.f32.mxu0 0.0
        %2078 = vmatmul.mubr.f32.gmra.mxu0 %v1908
        %v2079 = vpop.f32.mrf.mxu0
        %v2080 = vadd.f32 0.0, %v2079
        %v2081 = vpop.f32.mrf.mxu0
        %2082 = vmatprep.mubr.f32.mxu0 0.0
        %2083 = vmatmul.mubr.f32.gmra.mxu0 %v1911
        %v2084 = vpop.f32.mrf.mxu0
        %v2085 = vadd.f32 0.0, %v2084
        %v2086 = vpop.f32.mrf.mxu0
        %2087 = vmatprep.mubr.f32.mxu0 0.0
        %2088 = vmatmul.mubr.f32.gmra.mxu0 %v1914
        %v2089 = vpop.f32.mrf.mxu0
        %v2090 = vadd.f32 0.0, %v2089
        %v2091 = vpop.f32.mrf.mxu0
        %2092 = vmatprep.mubr.f32.mxu0 0.0
        %2093 = vmatmul.mubr.f32.gmra.mxu0 %v1917
        %v2094 = vpop.f32.mrf.mxu0
        %v2095 = vadd.f32 0.0, %v2094
        %v2096 = vpop.f32.mrf.mxu0
        %2097 = vmatprep.mubr.f32.mxu0 0.0
        %2098 = vmatmul.mubr.f32.gmra.mxu0 %v1920
        %v2099 = vpop.f32.mrf.mxu0
        %v2100 = vadd.f32 0.0, %v2099
        %v2101 = vpop.f32.mrf.mxu0
        %2102 = vmatprep.mubr.f32.mxu0 0.0
        %2103 = vmatmul.mubr.f32.gmra.mxu0 %v1923
        %v2104 = vpop.f32.mrf.mxu0
        %v2105 = vadd.f32 0.0, %v2104
        %v2106 = vpop.f32.mrf.mxu0
        %2107 = vmatprep.mubr.f32.mxu0 0.0
        %2108 = vmatmul.mubr.f32.gmra.mxu0 %v1926
        %v2109 = vpop.f32.mrf.mxu0
        %v2110 = vadd.f32 0.0, %v2109
        %v2111 = vpop.f32.mrf.mxu0
        %2112 = vmatprep.mubr.f32.mxu0 0.0
        %2113 = vmatmul.mubr.f32.gmra.mxu0 %v1929
        %v2114 = vpop.f32.mrf.mxu0
        %v2115 = vadd.f32 0.0, %v2114
        %v2116 = vpop.f32.mrf.mxu0
        %2117 = vmatprep.mubr.f32.mxu0 0.0
        %2118 = vmatmul.mubr.f32.gmra.mxu0 %v1932
        %v2119 = vpop.f32.mrf.mxu0
        %v2120 = vadd.f32 0.0, %v2119
        %v2121 = vpop.f32.mrf.mxu0
        %2122 = vmatprep.mubr.f32.mxu0 0.0
        %2123 = vmatmul.mubr.f32.gmra.mxu0 %v1935
        %v2124 = vpop.f32.mrf.mxu0
        %v2125 = vadd.f32 0.0, %v2124
        %v2126 = vpop.f32.mrf.mxu0
        %2127 = vmatprep.mubr.f32.mxu0 0.0
        %2128 = vmatmul.mubr.f32.gmra.mxu0 %v1938
        %v2129 = vpop.f32.mrf.mxu0
        %v2130 = vadd.f32 0.0, %v2129
        %v2131 = vpop.f32.mrf.mxu0
        %2132 = vmatprep.mubr.f32.mxu0 0.0
        %2133 = vmatmul.mubr.f32.gmra.mxu0 %v1941
        %v2134 = vpop.f32.mrf.mxu0
        %v2135 = vadd.f32 0.0, %v2134
        %v2136 = vpop.f32.mrf.mxu0
        %2137 = vmatprep.mubr.f32.mxu0 0.0
        %2138 = vmatmul.mubr.f32.gmra.mxu0 %v1944
        %v2139 = vpop.f32.mrf.mxu0
        %v2140 = vadd.f32 0.0, %v2139
        %v2141 = vpop.f32.mrf.mxu0
        %2142 = vmatprep.mubr.f32.mxu0 0.0
        %2143 = vmatmul.mubr.f32.gmra.mxu0 %v1947
        %v2144 = vpop.f32.mrf.mxu0
        %v2145 = vadd.f32 0.0, %v2144
        %v2146 = vpop.f32.mrf.mxu0
        %2147 = vmatprep.mubr.f32.mxu0 0.0
        %2148 = vmatmul.mubr.f32.gmra.mxu0 %v1950
        %v2149 = vpop.f32.mrf.mxu0
        %v2150 = vadd.f32 0.0, %v2149
        %v2151 = vpop.f32.mrf.mxu0
        %2152 = vmatprep.mubr.f32.mxu0 0.0
        %2153 = vmatmul.mubr.f32.gmra.mxu0 %v1953
        %v2154 = vpop.f32.mrf.mxu0
        %v2155 = vadd.f32 0.0, %v2154
        %v2156 = vpop.f32.mrf.mxu0
        %2157 = vmatprep.mubr.f32.mxu0 0.0
        %2158 = vmatmul.mubr.f32.gmra.mxu0 %v1956
        %v2159 = vpop.f32.mrf.mxu0
        %v2160 = vadd.f32 0.0, %v2159
        %v2161 = vpop.f32.mrf.mxu0
        %2162 = vmatprep.mubr.f32.mxu0 0.0
        %2163 = vmatmul.mubr.f32.gmra.mxu0 %v1959
        %v2164 = vpop.f32.mrf.mxu0
        %v2165 = vadd.f32 0.0, %v2164
        %v2166 = vpop.f32.mrf.mxu0
        %2167 = vmatprep.mubr.f32.mxu0 0.0
        %2168 = vmatmul.mubr.f32.gmra.mxu0 %v1962
        %v2169 = vpop.f32.mrf.mxu0
        %v2170 = vadd.f32 0.0, %v2169
        %v2171 = vpop.f32.mrf.mxu0
        %2172 = vmatprep.mubr.f32.mxu0 0.0
        %2173 = vmatmul.mubr.f32.gmra.mxu0 %v1965
        %v2174 = vpop.f32.mrf.mxu0
        %v2175 = vadd.f32 0.0, %v2174
        %v2176 = vpop.f32.mrf.mxu0
        %2177 = vmatprep.mubr.f32.mxu0 0.0
        %2178 = vmatmul.mubr.f32.gmra.mxu0 %v1968
        %v2179 = vpop.f32.mrf.mxu0
        %v2180 = vadd.f32 0.0, %v2179
        %v2181 = vpop.f32.mrf.mxu0
        %2182 = vmatprep.mubr.f32.mxu0 0.0
        %2183 = vmatmul.mubr.f32.gmra.mxu0 %v1971
        %v2184 = vpop.f32.mrf.mxu0
        %v2185 = vadd.f32 0.0, %v2184
        %v2186 = vpop.f32.mrf.mxu0
        %2187 = vmatprep.mubr.f32.mxu0 0.0
        %2188 = vmatmul.mubr.f32.gmra.mxu0 %v1974
        %v2189 = vpop.f32.mrf.mxu0
        %v2190 = vadd.f32 0.0, %v2189
        %v2191 = vpop.f32.mrf.mxu0
        %2192 = vmatprep.mubr.f32.mxu0 0.0
        %2193 = vmatmul.mubr.f32.gmra.mxu0 %v1977
        %v2194 = vpop.f32.mrf.mxu0
        %v2195 = vadd.f32 0.0, %v2194
        %v2196 = vpop.f32.mrf.mxu0
        %2197 = vmatprep.mubr.f32.mxu0 0.0
        %2198 = vmatmul.mubr.f32.gmra.mxu0 %v1980
        %v2199 = vpop.f32.mrf.mxu0
        %v2200 = vadd.f32 0.0, %v2199
        %v2201 = vpop.f32.mrf.mxu0
        %2202 = vmatprep.mubr.f32.mxu0 0.0
        %2203 = vmatmul.mubr.f32.gmra.mxu0 %v1983
        %v2204 = vpop.f32.mrf.mxu0
        %v2205 = vadd.f32 0.0, %v2204
        %v2206 = vpop.f32.mrf.mxu0
        %2207 = vmatprep.mubr.f32.mxu0 0.0
        %2208 = vmatmul.mubr.f32.gmra.mxu0 %v1986
        %v2209 = vpop.f32.mrf.mxu0
        %v2210 = vadd.f32 0.0, %v2209
        %v2211 = vpop.f32.mrf.mxu0
        %2212 = vdwg.mxu0
        %v2213 = vadd.f32 %v1819, %v2055
        %v2214 = vadd.f32 %v1820, %v2060
        %v2215 = vadd.f32 %v1821, %v2065
        %v2216 = vadd.f32 %v1822, %v2070
        %v2217 = vadd.f32 %v1823, %v2075
        %v2218 = vadd.f32 %v1824, %v2080
        %v2219 = vadd.f32 %v1825, %v2085
        %v2220 = vadd.f32 %v1826, %v2090
        %v2221 = vadd.f32 %v1827, %v2095
        %v2222 = vadd.f32 %v1828, %v2100
        %v2223 = vadd.f32 %v1829, %v2105
        %v2224 = vadd.f32 %v1830, %v2110
        %v2225 = vadd.f32 %v1831, %v2115
        %v2226 = vadd.f32 %v1832, %v2120
        %v2227 = vadd.f32 %v1833, %v2125
        %v2228 = vadd.f32 %v1834, %v2130
        %v2229 = vadd.f32 %v1835, %v2135
        %v2230 = vadd.f32 %v1836, %v2140
        %v2231 = vadd.f32 %v1837, %v2145
        %v2232 = vadd.f32 %v1838, %v2150
        %v2233 = vadd.f32 %v1839, %v2155
        %v2234 = vadd.f32 %v1840, %v2160
        %v2235 = vadd.f32 %v1841, %v2165
        %v2236 = vadd.f32 %v1842, %v2170
        %v2237 = vadd.f32 %v1843, %v2175
        %v2238 = vadd.f32 %v1844, %v2180
        %v2239 = vadd.f32 %v1845, %v2185
        %v2240 = vadd.f32 %v1846, %v2190
        %v2241 = vadd.f32 %v1847, %v2195
        %v2242 = vadd.f32 %v1848, %v2200
        %v2243 = vadd.f32 %v1849, %v2205
        %v2244 = vadd.f32 %v1850, %v2210
        %v2245 = vld [vmem:[%s620 + $0x1] sm:$0xff]
        %v2246 = vld [vmem:[%s620 + $0x9] sm:$0xff]
        %v2247 = vld [vmem:[%s620 + $0x19] sm:$0xff]
        %v2248 = vld [vmem:[%s620 + $0x21] sm:$0xff]
        %v2249 = vld [vmem:[%s620 + $0x31] sm:$0xff]
        %v2250 = vld [vmem:[%s620 + $0x39] sm:$0xff]
        %v2251 = vld [vmem:[%s620 + $0x49] sm:$0xff]
        %v2252 = vld [vmem:[%s620 + $0x51] sm:$0xff]
        %v2253 = vld [vmem:[%s620 + $0x61] sm:$0xff]
        %v2254 = vld [vmem:[%s620 + $0x69] sm:$0xff]
        %v2255 = vld [vmem:[%s620 + $0x79] sm:$0xff]
        %v2256 = vld [vmem:[%s620 + $0x81] sm:$0xff]
        %v2257 = vld [vmem:[%s620 + $0x91] sm:$0xff]
        %v2258 = vld [vmem:[%s620 + $0x99] sm:$0xff]
        %v2259 = vld [vmem:[%s620 + $0xa9] sm:$0xff]
        %v2260 = vld [vmem:[%s620 + $0xb1] sm:$0xff]
        %v2261 = vld [vmem:[%s620 + $0xc1] sm:$0xff]
        %v2262 = vld [vmem:[%s620 + $0xc9] sm:$0xff]
        %v2263 = vld [vmem:[%s620 + $0xd9] sm:$0xff]
        %v2264 = vld [vmem:[%s620 + $0xe1] sm:$0xff]
        %v2265 = vld [vmem:[%s620 + $0xf1] sm:$0xff]
        %v2266 = vld [vmem:[%s620 + $0xf9] sm:$0xff]
        %v2267 = vld [vmem:[%s620 + $0x109] sm:$0xff]
        %v2268 = vld [vmem:[%s620 + $0x111] sm:$0xff]
        %v2269 = vld [vmem:[%s620 + $0x121] sm:$0xff]
        %v2270 = vld [vmem:[%s620 + $0x129] sm:$0xff]
        %v2271 = vld [vmem:[%s620 + $0x139] sm:$0xff]
        %v2272 = vld [vmem:[%s620 + $0x141] sm:$0xff]
        %v2273 = vld [vmem:[%s620 + $0x151] sm:$0xff]
        %v2274 = vld [vmem:[%s620 + $0x159] sm:$0xff]
        %v2275 = vld [vmem:[%s620 + $0x169] sm:$0xff]
        %v2276 = vld [vmem:[%s620 + $0x171] sm:$0xff]
        %s2277 = scalar_lea.vmem %s1, 256
        %v2278 = vld [vmem:[%s2277] sm:$0xff]
        %v2279 = vld [vmem:[%s2277 + $0x8] sm:$0xff]
        %v2280 = vld [vmem:[%s2277 + $0x10] sm:$0xff]
        %v2281 = vld [vmem:[%s2277 + $0x18] sm:$0xff]
        %v2282 = vld [vmem:[%s2277 + $0x20] sm:$0xff]
        %v2283 = vld [vmem:[%s2277 + $0x28] sm:$0xff]
        %v2284 = vld [vmem:[%s2277 + $0x30] sm:$0xff]
        %v2285 = vld [vmem:[%s2277 + $0x38] sm:$0xff]
        %v2287 = vsel %vm282, %v2245, 0
        %v2290 = vsel %vm282, %v2246, 0
        %v2293 = vsel %vm282, %v2247, 0
        %v2296 = vsel %vm282, %v2248, 0
        %v2299 = vsel %vm282, %v2249, 0
        %v2302 = vsel %vm282, %v2250, 0
        %v2305 = vsel %vm282, %v2251, 0
        %v2308 = vsel %vm282, %v2252, 0
        %v2311 = vsel %vm282, %v2253, 0
        %v2314 = vsel %vm282, %v2254, 0
        %v2317 = vsel %vm282, %v2255, 0
        %v2320 = vsel %vm282, %v2256, 0
        %v2323 = vsel %vm282, %v2257, 0
        %v2326 = vsel %vm282, %v2258, 0
        %v2329 = vsel %vm282, %v2259, 0
        %v2332 = vsel %vm282, %v2260, 0
        %v2335 = vsel %vm282, %v2261, 0
        %v2338 = vsel %vm282, %v2262, 0
        %v2341 = vsel %vm282, %v2263, 0
        %v2344 = vsel %vm282, %v2264, 0
        %v2347 = vsel %vm282, %v2265, 0
        %v2350 = vsel %vm282, %v2266, 0
        %v2353 = vsel %vm282, %v2267, 0
        %v2356 = vsel %vm282, %v2268, 0
        %v2359 = vsel %vm282, %v2269, 0
        %v2362 = vsel %vm282, %v2270, 0
        %v2365 = vsel %vm282, %v2271, 0
        %v2368 = vsel %vm282, %v2272, 0
        %v2371 = vsel %vm282, %v2273, 0
        %v2374 = vsel %vm282, %v2274, 0
        %v2377 = vsel %vm282, %v2275, 0
        %v2380 = vsel %vm282, %v2276, 0
        %2382 = vmatprep.subr.mxu0 0.0
        %2383 = vmatpush1.msra.mxu0 0.0
        %2384 = vmatprep.subr.mxu0 0.0
        %2385 = vmatpush1.msra.mxu0 0.0
        %2386 = vmatprep.subr.mxu0 0.0
        %2387 = vmatpush1.msra.mxu0 0.0
        %2388 = vmatprep.subr.mxu0 0.0
        %2389 = vmatpush1.msra.mxu0 0.0
        %2390 = vmatprep.subr.mxu0 0.0
        %2391 = vmatpush1.msra.mxu0 0.0
        %2392 = vmatprep.subr.mxu0 0.0
        %2393 = vmatpush1.msra.mxu0 0.0
        %2394 = vmatprep.subr.mxu0 0.0
        %2395 = vmatpush1.msra.mxu0 0.0
        %2396 = vmatprep.subr.mxu0 0.0
        %2397 = vmatpush1.msra.mxu0 0.0
        %2398 = vmatprep.subr.mxu0 0.0
        %2399 = vmatpush1.msra.mxu0 %v2285
        %2400 = vmatprep.subr.mxu0 0.0
        %2401 = vmatpush1.msra.mxu0 %v2284
        %2402 = vmatprep.subr.mxu0 0.0
        %2403 = vmatpush1.msra.mxu0 %v2283
        %2404 = vmatprep.subr.mxu0 0.0
        %2405 = vmatpush1.msra.mxu0 %v2282
        %2406 = vmatprep.subr.mxu0 0.0
        %2407 = vmatpush1.msra.mxu0 %v2281
        %2408 = vmatprep.subr.mxu0 0.0
        %2409 = vmatpush1.msra.mxu0 %v2280
        %2410 = vmatprep.subr.mxu0 0.0
        %2411 = vmatpush1.msra.mxu0 %v2279
        %2412 = vmatprep.subr.mxu0 0.0
        %2413 = vmatpush1.msra.mxu0 %v2278
        %2414 = vmatprep.subr.mxu0 0.0
        %2415 = vmatpush2.msra.mxu0 0.0
        %2416 = vmatprep.subr.mxu0 0.0
        %2417 = vmatpush2.msra.mxu0 0.0
        %2418 = vmatprep.subr.mxu0 0.0
        %2419 = vmatpush2.msra.mxu0 0.0
        %2420 = vmatprep.subr.mxu0 0.0
        %2421 = vmatpush2.msra.mxu0 0.0
        %2422 = vmatprep.subr.mxu0 0.0
        %2423 = vmatpush2.msra.mxu0 0.0
        %2424 = vmatprep.subr.mxu0 0.0
        %2425 = vmatpush2.msra.mxu0 0.0
        %2426 = vmatprep.subr.mxu0 0.0
        %2427 = vmatpush2.msra.mxu0 0.0
        %2428 = vmatprep.subr.mxu0 0.0
        %2429 = vmatpush2.msra.mxu0 0.0
        %2430 = vmatprep.subr.mxu0 0.0
        %2431 = vmatpush2.msra.mxu0 0.0
        %2432 = vmatprep.subr.mxu0 0.0
        %2433 = vmatpush2.msra.mxu0 0.0
        %2434 = vmatprep.subr.mxu0 0.0
        %2435 = vmatpush2.msra.mxu0 0.0
        %2436 = vmatprep.subr.mxu0 0.0
        %2437 = vmatpush2.msra.mxu0 0.0
        %2438 = vmatprep.subr.mxu0 0.0
        %2439 = vmatpush2.msra.mxu0 0.0
        %2440 = vmatprep.subr.mxu0 0.0
        %2441 = vmatpush2.msra.mxu0 0.0
        %2442 = vmatprep.subr.mxu0 0.0
        %2443 = vmatpush2.msra.mxu0 0.0
        %2444 = vmatprep.subr.mxu0 0.0
        %2445 = vmatpush2.msra.mxu0 0.0
        %2446 = vmatprep.mubr.f32.mxu0 0.0
        %2447 = vmatmul.mubr.f32.gmra.mxu0 %v2287
        %v2448 = vpop.f32.mrf.mxu0
        %v2449 = vadd.f32 0.0, %v2448
        %v2450 = vpop.f32.mrf.mxu0
        %2451 = vmatprep.mubr.f32.mxu0 0.0
        %2452 = vmatmul.mubr.f32.gmra.mxu0 %v2290
        %v2453 = vpop.f32.mrf.mxu0
        %v2454 = vadd.f32 0.0, %v2453
        %v2455 = vpop.f32.mrf.mxu0
        %2456 = vmatprep.mubr.f32.mxu0 0.0
        %2457 = vmatmul.mubr.f32.gmra.mxu0 %v2293
        %v2458 = vpop.f32.mrf.mxu0
        %v2459 = vadd.f32 0.0, %v2458
        %v2460 = vpop.f32.mrf.mxu0
        %2461 = vmatprep.mubr.f32.mxu0 0.0
        %2462 = vmatmul.mubr.f32.gmra.mxu0 %v2296
        %v2463 = vpop.f32.mrf.mxu0
        %v2464 = vadd.f32 0.0, %v2463
        %v2465 = vpop.f32.mrf.mxu0
        %2466 = vmatprep.mubr.f32.mxu0 0.0
        %2467 = vmatmul.mubr.f32.gmra.mxu0 %v2299
        %v2468 = vpop.f32.mrf.mxu0
        %v2469 = vadd.f32 0.0, %v2468
        %v2470 = vpop.f32.mrf.mxu0
        %2471 = vmatprep.mubr.f32.mxu0 0.0
        %2472 = vmatmul.mubr.f32.gmra.mxu0 %v2302
        %v2473 = vpop.f32.mrf.mxu0
        %v2474 = vadd.f32 0.0, %v2473
        %v2475 = vpop.f32.mrf.mxu0
        %2476 = vmatprep.mubr.f32.mxu0 0.0
        %2477 = vmatmul.mubr.f32.gmra.mxu0 %v2305
        %v2478 = vpop.f32.mrf.mxu0
        %v2479 = vadd.f32 0.0, %v2478
        %v2480 = vpop.f32.mrf.mxu0
        %2481 = vmatprep.mubr.f32.mxu0 0.0
        %2482 = vmatmul.mubr.f32.gmra.mxu0 %v2308
        %v2483 = vpop.f32.mrf.mxu0
        %v2484 = vadd.f32 0.0, %v2483
        %v2485 = vpop.f32.mrf.mxu0
        %2486 = vmatprep.mubr.f32.mxu0 0.0
        %2487 = vmatmul.mubr.f32.gmra.mxu0 %v2311
        %v2488 = vpop.f32.mrf.mxu0
        %v2489 = vadd.f32 0.0, %v2488
        %v2490 = vpop.f32.mrf.mxu0
        %2491 = vmatprep.mubr.f32.mxu0 0.0
        %2492 = vmatmul.mubr.f32.gmra.mxu0 %v2314
        %v2493 = vpop.f32.mrf.mxu0
        %v2494 = vadd.f32 0.0, %v2493
        %v2495 = vpop.f32.mrf.mxu0
        %2496 = vmatprep.mubr.f32.mxu0 0.0
        %2497 = vmatmul.mubr.f32.gmra.mxu0 %v2317
        %v2498 = vpop.f32.mrf.mxu0
        %v2499 = vadd.f32 0.0, %v2498
        %v2500 = vpop.f32.mrf.mxu0
        %2501 = vmatprep.mubr.f32.mxu0 0.0
        %2502 = vmatmul.mubr.f32.gmra.mxu0 %v2320
        %v2503 = vpop.f32.mrf.mxu0
        %v2504 = vadd.f32 0.0, %v2503
        %v2505 = vpop.f32.mrf.mxu0
        %2506 = vmatprep.mubr.f32.mxu0 0.0
        %2507 = vmatmul.mubr.f32.gmra.mxu0 %v2323
        %v2508 = vpop.f32.mrf.mxu0
        %v2509 = vadd.f32 0.0, %v2508
        %v2510 = vpop.f32.mrf.mxu0
        %2511 = vmatprep.mubr.f32.mxu0 0.0
        %2512 = vmatmul.mubr.f32.gmra.mxu0 %v2326
        %v2513 = vpop.f32.mrf.mxu0
        %v2514 = vadd.f32 0.0, %v2513
        %v2515 = vpop.f32.mrf.mxu0
        %2516 = vmatprep.mubr.f32.mxu0 0.0
        %2517 = vmatmul.mubr.f32.gmra.mxu0 %v2329
        %v2518 = vpop.f32.mrf.mxu0
        %v2519 = vadd.f32 0.0, %v2518
        %v2520 = vpop.f32.mrf.mxu0
        %2521 = vmatprep.mubr.f32.mxu0 0.0
        %2522 = vmatmul.mubr.f32.gmra.mxu0 %v2332
        %v2523 = vpop.f32.mrf.mxu0
        %v2524 = vadd.f32 0.0, %v2523
        %v2525 = vpop.f32.mrf.mxu0
        %2526 = vmatprep.mubr.f32.mxu0 0.0
        %2527 = vmatmul.mubr.f32.gmra.mxu0 %v2335
        %v2528 = vpop.f32.mrf.mxu0
        %v2529 = vadd.f32 0.0, %v2528
        %v2530 = vpop.f32.mrf.mxu0
        %2531 = vmatprep.mubr.f32.mxu0 0.0
        %2532 = vmatmul.mubr.f32.gmra.mxu0 %v2338
        %v2533 = vpop.f32.mrf.mxu0
        %v2534 = vadd.f32 0.0, %v2533
        %v2535 = vpop.f32.mrf.mxu0
        %2536 = vmatprep.mubr.f32.mxu0 0.0
        %2537 = vmatmul.mubr.f32.gmra.mxu0 %v2341
        %v2538 = vpop.f32.mrf.mxu0
        %v2539 = vadd.f32 0.0, %v2538
        %v2540 = vpop.f32.mrf.mxu0
        %2541 = vmatprep.mubr.f32.mxu0 0.0
        %2542 = vmatmul.mubr.f32.gmra.mxu0 %v2344
        %v2543 = vpop.f32.mrf.mxu0
        %v2544 = vadd.f32 0.0, %v2543
        %v2545 = vpop.f32.mrf.mxu0
        %2546 = vmatprep.mubr.f32.mxu0 0.0
        %2547 = vmatmul.mubr.f32.gmra.mxu0 %v2347
        %v2548 = vpop.f32.mrf.mxu0
        %v2549 = vadd.f32 0.0, %v2548
        %v2550 = vpop.f32.mrf.mxu0
        %2551 = vmatprep.mubr.f32.mxu0 0.0
        %2552 = vmatmul.mubr.f32.gmra.mxu0 %v2350
        %v2553 = vpop.f32.mrf.mxu0
        %v2554 = vadd.f32 0.0, %v2553
        %v2555 = vpop.f32.mrf.mxu0
        %2556 = vmatprep.mubr.f32.mxu0 0.0
        %2557 = vmatmul.mubr.f32.gmra.mxu0 %v2353
        %v2558 = vpop.f32.mrf.mxu0
        %v2559 = vadd.f32 0.0, %v2558
        %v2560 = vpop.f32.mrf.mxu0
        %2561 = vmatprep.mubr.f32.mxu0 0.0
        %2562 = vmatmul.mubr.f32.gmra.mxu0 %v2356
        %v2563 = vpop.f32.mrf.mxu0
        %v2564 = vadd.f32 0.0, %v2563
        %v2565 = vpop.f32.mrf.mxu0
        %2566 = vmatprep.mubr.f32.mxu0 0.0
        %2567 = vmatmul.mubr.f32.gmra.mxu0 %v2359
        %v2568 = vpop.f32.mrf.mxu0
        %v2569 = vadd.f32 0.0, %v2568
        %v2570 = vpop.f32.mrf.mxu0
        %2571 = vmatprep.mubr.f32.mxu0 0.0
        %2572 = vmatmul.mubr.f32.gmra.mxu0 %v2362
        %v2573 = vpop.f32.mrf.mxu0
        %v2574 = vadd.f32 0.0, %v2573
        %v2575 = vpop.f32.mrf.mxu0
        %2576 = vmatprep.mubr.f32.mxu0 0.0
        %2577 = vmatmul.mubr.f32.gmra.mxu0 %v2365
        %v2578 = vpop.f32.mrf.mxu0
        %v2579 = vadd.f32 0.0, %v2578
        %v2580 = vpop.f32.mrf.mxu0
        %2581 = vmatprep.mubr.f32.mxu0 0.0
        %2582 = vmatmul.mubr.f32.gmra.mxu0 %v2368
        %v2583 = vpop.f32.mrf.mxu0
        %v2584 = vadd.f32 0.0, %v2583
        %v2585 = vpop.f32.mrf.mxu0
        %2586 = vmatprep.mubr.f32.mxu0 0.0
        %2587 = vmatmul.mubr.f32.gmra.mxu0 %v2371
        %v2588 = vpop.f32.mrf.mxu0
        %v2589 = vadd.f32 0.0, %v2588
        %v2590 = vpop.f32.mrf.mxu0
        %2591 = vmatprep.mubr.f32.mxu0 0.0
        %2592 = vmatmul.mubr.f32.gmra.mxu0 %v2374
        %v2593 = vpop.f32.mrf.mxu0
        %v2594 = vadd.f32 0.0, %v2593
        %v2595 = vpop.f32.mrf.mxu0
        %2596 = vmatprep.mubr.f32.mxu0 0.0
        %2597 = vmatmul.mubr.f32.gmra.mxu0 %v2377
        %v2598 = vpop.f32.mrf.mxu0
        %v2599 = vadd.f32 0.0, %v2598
        %v2600 = vpop.f32.mrf.mxu0
        %2601 = vmatprep.mubr.f32.mxu0 0.0
        %2602 = vmatmul.mubr.f32.gmra.mxu0 %v2380
        %v2603 = vpop.f32.mrf.mxu0
        %v2604 = vadd.f32 0.0, %v2603
        %v2605 = vpop.f32.mrf.mxu0
        %2606 = vdwg.mxu0
        %v2607 = vadd.f32 %v2213, %v2449
        %v2608 = vadd.f32 %v2214, %v2454
        %v2609 = vadd.f32 %v2215, %v2459
        %v2610 = vadd.f32 %v2216, %v2464
        %v2611 = vadd.f32 %v2217, %v2469
        %v2612 = vadd.f32 %v2218, %v2474
        %v2613 = vadd.f32 %v2219, %v2479
        %v2614 = vadd.f32 %v2220, %v2484
        %v2615 = vadd.f32 %v2221, %v2489
        %v2616 = vadd.f32 %v2222, %v2494
        %v2617 = vadd.f32 %v2223, %v2499
        %v2618 = vadd.f32 %v2224, %v2504
        %v2619 = vadd.f32 %v2225, %v2509
        %v2620 = vadd.f32 %v2226, %v2514
        %v2621 = vadd.f32 %v2227, %v2519
        %v2622 = vadd.f32 %v2228, %v2524
        %v2623 = vadd.f32 %v2229, %v2529
        %v2624 = vadd.f32 %v2230, %v2534
        %v2625 = vadd.f32 %v2231, %v2539
        %v2626 = vadd.f32 %v2232, %v2544
        %v2627 = vadd.f32 %v2233, %v2549
        %v2628 = vadd.f32 %v2234, %v2554
        %v2629 = vadd.f32 %v2235, %v2559
        %v2630 = vadd.f32 %v2236, %v2564
        %v2631 = vadd.f32 %v2237, %v2569
        %v2632 = vadd.f32 %v2238, %v2574
        %v2633 = vadd.f32 %v2239, %v2579
        %v2634 = vadd.f32 %v2240, %v2584
        %v2635 = vadd.f32 %v2241, %v2589
        %v2636 = vadd.f32 %v2242, %v2594
        %v2637 = vadd.f32 %v2243, %v2599
        %v2638 = vadd.f32 %v2244, %v2604
        %v2639 = vld [vmem:[%s620 + $0x2] sm:$0xff]
        %v2640 = vld [vmem:[%s620 + $0xa] sm:$0xff]
        %v2641 = vld [vmem:[%s620 + $0x1a] sm:$0xff]
        %v2642 = vld [vmem:[%s620 + $0x22] sm:$0xff]
        %v2643 = vld [vmem:[%s620 + $0x32] sm:$0xff]
        %v2644 = vld [vmem:[%s620 + $0x3a] sm:$0xff]
        %v2645 = vld [vmem:[%s620 + $0x4a] sm:$0xff]
        %v2646 = vld [vmem:[%s620 + $0x52] sm:$0xff]
        %v2647 = vld [vmem:[%s620 + $0x62] sm:$0xff]
        %v2648 = vld [vmem:[%s620 + $0x6a] sm:$0xff]
        %v2649 = vld [vmem:[%s620 + $0x7a] sm:$0xff]
        %v2650 = vld [vmem:[%s620 + $0x82] sm:$0xff]
        %v2651 = vld [vmem:[%s620 + $0x92] sm:$0xff]
        %v2652 = vld [vmem:[%s620 + $0x9a] sm:$0xff]
        %v2653 = vld [vmem:[%s620 + $0xaa] sm:$0xff]
        %v2654 = vld [vmem:[%s620 + $0xb2] sm:$0xff]
        %v2655 = vld [vmem:[%s620 + $0xc2] sm:$0xff]
        %v2656 = vld [vmem:[%s620 + $0xca] sm:$0xff]
        %v2657 = vld [vmem:[%s620 + $0xda] sm:$0xff]
        %v2658 = vld [vmem:[%s620 + $0xe2] sm:$0xff]
        %v2659 = vld [vmem:[%s620 + $0xf2] sm:$0xff]
        %v2660 = vld [vmem:[%s620 + $0xfa] sm:$0xff]
        %v2661 = vld [vmem:[%s620 + $0x10a] sm:$0xff]
        %v2662 = vld [vmem:[%s620 + $0x112] sm:$0xff]
        %v2663 = vld [vmem:[%s620 + $0x122] sm:$0xff]
        %v2664 = vld [vmem:[%s620 + $0x12a] sm:$0xff]
        %v2665 = vld [vmem:[%s620 + $0x13a] sm:$0xff]
        %v2666 = vld [vmem:[%s620 + $0x142] sm:$0xff]
        %v2667 = vld [vmem:[%s620 + $0x152] sm:$0xff]
        %v2668 = vld [vmem:[%s620 + $0x15a] sm:$0xff]
        %v2669 = vld [vmem:[%s620 + $0x16a] sm:$0xff]
        %v2670 = vld [vmem:[%s620 + $0x172] sm:$0xff]
        %s2671 = scalar_lea.vmem %s1, 320
        %v2672 = vld [vmem:[%s2671] sm:$0xff]
        %v2673 = vld [vmem:[%s2671 + $0x8] sm:$0xff]
        %v2674 = vld [vmem:[%s2671 + $0x10] sm:$0xff]
        %v2675 = vld [vmem:[%s2671 + $0x18] sm:$0xff]
        %v2676 = vld [vmem:[%s2671 + $0x20] sm:$0xff]
        %v2677 = vld [vmem:[%s2671 + $0x28] sm:$0xff]
        %v2678 = vld [vmem:[%s2671 + $0x30] sm:$0xff]
        %v2679 = vld [vmem:[%s2671 + $0x38] sm:$0xff]
        %v2681 = vsel %vm282, %v2639, 0
        %v2684 = vsel %vm282, %v2640, 0
        %v2687 = vsel %vm282, %v2641, 0
        %v2690 = vsel %vm282, %v2642, 0
        %v2693 = vsel %vm282, %v2643, 0
        %v2696 = vsel %vm282, %v2644, 0
        %v2699 = vsel %vm282, %v2645, 0
        %v2702 = vsel %vm282, %v2646, 0
        %v2705 = vsel %vm282, %v2647, 0
        %v2708 = vsel %vm282, %v2648, 0
        %v2711 = vsel %vm282, %v2649, 0
        %v2714 = vsel %vm282, %v2650, 0
        %v2717 = vsel %vm282, %v2651, 0
        %v2720 = vsel %vm282, %v2652, 0
        %v2723 = vsel %vm282, %v2653, 0
        %v2726 = vsel %vm282, %v2654, 0
        %v2729 = vsel %vm282, %v2655, 0
        %v2732 = vsel %vm282, %v2656, 0
        %v2735 = vsel %vm282, %v2657, 0
        %v2738 = vsel %vm282, %v2658, 0
        %v2741 = vsel %vm282, %v2659, 0
        %v2744 = vsel %vm282, %v2660, 0
        %v2747 = vsel %vm282, %v2661, 0
        %v2750 = vsel %vm282, %v2662, 0
        %v2753 = vsel %vm282, %v2663, 0
        %v2756 = vsel %vm282, %v2664, 0
        %v2759 = vsel %vm282, %v2665, 0
        %v2762 = vsel %vm282, %v2666, 0
        %v2765 = vsel %vm282, %v2667, 0
        %v2768 = vsel %vm282, %v2668, 0
        %v2771 = vsel %vm282, %v2669, 0
        %v2774 = vsel %vm282, %v2670, 0
        %2776 = vmatprep.subr.mxu0 0.0
        %2777 = vmatpush1.msra.mxu0 0.0
        %2778 = vmatprep.subr.mxu0 0.0
        %2779 = vmatpush1.msra.mxu0 0.0
        %2780 = vmatprep.subr.mxu0 0.0
        %2781 = vmatpush1.msra.mxu0 0.0
        %2782 = vmatprep.subr.mxu0 0.0
        %2783 = vmatpush1.msra.mxu0 0.0
        %2784 = vmatprep.subr.mxu0 0.0
        %2785 = vmatpush1.msra.mxu0 0.0
        %2786 = vmatprep.subr.mxu0 0.0
        %2787 = vmatpush1.msra.mxu0 0.0
        %2788 = vmatprep.subr.mxu0 0.0
        %2789 = vmatpush1.msra.mxu0 0.0
        %2790 = vmatprep.subr.mxu0 0.0
        %2791 = vmatpush1.msra.mxu0 0.0
        %2792 = vmatprep.subr.mxu0 0.0
        %2793 = vmatpush1.msra.mxu0 %v2679
        %2794 = vmatprep.subr.mxu0 0.0
        %2795 = vmatpush1.msra.mxu0 %v2678
        %2796 = vmatprep.subr.mxu0 0.0
        %2797 = vmatpush1.msra.mxu0 %v2677
        %2798 = vmatprep.subr.mxu0 0.0
        %2799 = vmatpush1.msra.mxu0 %v2676
        %2800 = vmatprep.subr.mxu0 0.0
        %2801 = vmatpush1.msra.mxu0 %v2675
        %2802 = vmatprep.subr.mxu0 0.0
        %2803 = vmatpush1.msra.mxu0 %v2674
        %2804 = vmatprep.subr.mxu0 0.0
        %2805 = vmatpush1.msra.mxu0 %v2673
        %2806 = vmatprep.subr.mxu0 0.0
        %2807 = vmatpush1.msra.mxu0 %v2672
        %2808 = vmatprep.subr.mxu0 0.0
        %2809 = vmatpush2.msra.mxu0 0.0
        %2810 = vmatprep.subr.mxu0 0.0
        %2811 = vmatpush2.msra.mxu0 0.0
        %2812 = vmatprep.subr.mxu0 0.0
        %2813 = vmatpush2.msra.mxu0 0.0
        %2814 = vmatprep.subr.mxu0 0.0
        %2815 = vmatpush2.msra.mxu0 0.0
        %2816 = vmatprep.subr.mxu0 0.0
        %2817 = vmatpush2.msra.mxu0 0.0
        %2818 = vmatprep.subr.mxu0 0.0
        %2819 = vmatpush2.msra.mxu0 0.0
        %2820 = vmatprep.subr.mxu0 0.0
        %2821 = vmatpush2.msra.mxu0 0.0
        %2822 = vmatprep.subr.mxu0 0.0
        %2823 = vmatpush2.msra.mxu0 0.0
        %2824 = vmatprep.subr.mxu0 0.0
        %2825 = vmatpush2.msra.mxu0 0.0
        %2826 = vmatprep.subr.mxu0 0.0
        %2827 = vmatpush2.msra.mxu0 0.0
        %2828 = vmatprep.subr.mxu0 0.0
        %2829 = vmatpush2.msra.mxu0 0.0
        %2830 = vmatprep.subr.mxu0 0.0
        %2831 = vmatpush2.msra.mxu0 0.0
        %2832 = vmatprep.subr.mxu0 0.0
        %2833 = vmatpush2.msra.mxu0 0.0
        %2834 = vmatprep.subr.mxu0 0.0
        %2835 = vmatpush2.msra.mxu0 0.0
        %2836 = vmatprep.subr.mxu0 0.0
        %2837 = vmatpush2.msra.mxu0 0.0
        %2838 = vmatprep.subr.mxu0 0.0
        %2839 = vmatpush2.msra.mxu0 0.0
        %2840 = vmatprep.mubr.f32.mxu0 0.0
        %2841 = vmatmul.mubr.f32.gmra.mxu0 %v2681
        %v2842 = vpop.f32.mrf.mxu0
        %v2843 = vadd.f32 0.0, %v2842
        %v2844 = vpop.f32.mrf.mxu0
        %2845 = vmatprep.mubr.f32.mxu0 0.0
        %2846 = vmatmul.mubr.f32.gmra.mxu0 %v2684
        %v2847 = vpop.f32.mrf.mxu0
        %v2848 = vadd.f32 0.0, %v2847
        %v2849 = vpop.f32.mrf.mxu0
        %2850 = vmatprep.mubr.f32.mxu0 0.0
        %2851 = vmatmul.mubr.f32.gmra.mxu0 %v2687
        %v2852 = vpop.f32.mrf.mxu0
        %v2853 = vadd.f32 0.0, %v2852
        %v2854 = vpop.f32.mrf.mxu0
        %2855 = vmatprep.mubr.f32.mxu0 0.0
        %2856 = vmatmul.mubr.f32.gmra.mxu0 %v2690
        %v2857 = vpop.f32.mrf.mxu0
        %v2858 = vadd.f32 0.0, %v2857
        %v2859 = vpop.f32.mrf.mxu0
        %2860 = vmatprep.mubr.f32.mxu0 0.0
        %2861 = vmatmul.mubr.f32.gmra.mxu0 %v2693
        %v2862 = vpop.f32.mrf.mxu0
        %v2863 = vadd.f32 0.0, %v2862
        %v2864 = vpop.f32.mrf.mxu0
        %2865 = vmatprep.mubr.f32.mxu0 0.0
        %2866 = vmatmul.mubr.f32.gmra.mxu0 %v2696
        %v2867 = vpop.f32.mrf.mxu0
        %v2868 = vadd.f32 0.0, %v2867
        %v2869 = vpop.f32.mrf.mxu0
        %2870 = vmatprep.mubr.f32.mxu0 0.0
        %2871 = vmatmul.mubr.f32.gmra.mxu0 %v2699
        %v2872 = vpop.f32.mrf.mxu0
        %v2873 = vadd.f32 0.0, %v2872
        %v2874 = vpop.f32.mrf.mxu0
        %2875 = vmatprep.mubr.f32.mxu0 0.0
        %2876 = vmatmul.mubr.f32.gmra.mxu0 %v2702
        %v2877 = vpop.f32.mrf.mxu0
        %v2878 = vadd.f32 0.0, %v2877
        %v2879 = vpop.f32.mrf.mxu0
        %2880 = vmatprep.mubr.f32.mxu0 0.0
        %2881 = vmatmul.mubr.f32.gmra.mxu0 %v2705
        %v2882 = vpop.f32.mrf.mxu0
        %v2883 = vadd.f32 0.0, %v2882
        %v2884 = vpop.f32.mrf.mxu0
        %2885 = vmatprep.mubr.f32.mxu0 0.0
        %2886 = vmatmul.mubr.f32.gmra.mxu0 %v2708
        %v2887 = vpop.f32.mrf.mxu0
        %v2888 = vadd.f32 0.0, %v2887
        %v2889 = vpop.f32.mrf.mxu0
        %2890 = vmatprep.mubr.f32.mxu0 0.0
        %2891 = vmatmul.mubr.f32.gmra.mxu0 %v2711
        %v2892 = vpop.f32.mrf.mxu0
        %v2893 = vadd.f32 0.0, %v2892
        %v2894 = vpop.f32.mrf.mxu0
        %2895 = vmatprep.mubr.f32.mxu0 0.0
        %2896 = vmatmul.mubr.f32.gmra.mxu0 %v2714
        %v2897 = vpop.f32.mrf.mxu0
        %v2898 = vadd.f32 0.0, %v2897
        %v2899 = vpop.f32.mrf.mxu0
        %2900 = vmatprep.mubr.f32.mxu0 0.0
        %2901 = vmatmul.mubr.f32.gmra.mxu0 %v2717
        %v2902 = vpop.f32.mrf.mxu0
        %v2903 = vadd.f32 0.0, %v2902
        %v2904 = vpop.f32.mrf.mxu0
        %2905 = vmatprep.mubr.f32.mxu0 0.0
        %2906 = vmatmul.mubr.f32.gmra.mxu0 %v2720
        %v2907 = vpop.f32.mrf.mxu0
        %v2908 = vadd.f32 0.0, %v2907
        %v2909 = vpop.f32.mrf.mxu0
        %2910 = vmatprep.mubr.f32.mxu0 0.0
        %2911 = vmatmul.mubr.f32.gmra.mxu0 %v2723
        %v2912 = vpop.f32.mrf.mxu0
        %v2913 = vadd.f32 0.0, %v2912
        %v2914 = vpop.f32.mrf.mxu0
        %2915 = vmatprep.mubr.f32.mxu0 0.0
        %2916 = vmatmul.mubr.f32.gmra.mxu0 %v2726
        %v2917 = vpop.f32.mrf.mxu0
        %v2918 = vadd.f32 0.0, %v2917
        %v2919 = vpop.f32.mrf.mxu0
        %2920 = vmatprep.mubr.f32.mxu0 0.0
        %2921 = vmatmul.mubr.f32.gmra.mxu0 %v2729
        %v2922 = vpop.f32.mrf.mxu0
        %v2923 = vadd.f32 0.0, %v2922
        %v2924 = vpop.f32.mrf.mxu0
        %2925 = vmatprep.mubr.f32.mxu0 0.0
        %2926 = vmatmul.mubr.f32.gmra.mxu0 %v2732
        %v2927 = vpop.f32.mrf.mxu0
        %v2928 = vadd.f32 0.0, %v2927
        %v2929 = vpop.f32.mrf.mxu0
        %2930 = vmatprep.mubr.f32.mxu0 0.0
        %2931 = vmatmul.mubr.f32.gmra.mxu0 %v2735
        %v2932 = vpop.f32.mrf.mxu0
        %v2933 = vadd.f32 0.0, %v2932
        %v2934 = vpop.f32.mrf.mxu0
        %2935 = vmatprep.mubr.f32.mxu0 0.0
        %2936 = vmatmul.mubr.f32.gmra.mxu0 %v2738
        %v2937 = vpop.f32.mrf.mxu0
        %v2938 = vadd.f32 0.0, %v2937
        %v2939 = vpop.f32.mrf.mxu0
        %2940 = vmatprep.mubr.f32.mxu0 0.0
        %2941 = vmatmul.mubr.f32.gmra.mxu0 %v2741
        %v2942 = vpop.f32.mrf.mxu0
        %v2943 = vadd.f32 0.0, %v2942
        %v2944 = vpop.f32.mrf.mxu0
        %2945 = vmatprep.mubr.f32.mxu0 0.0
        %2946 = vmatmul.mubr.f32.gmra.mxu0 %v2744
        %v2947 = vpop.f32.mrf.mxu0
        %v2948 = vadd.f32 0.0, %v2947
        %v2949 = vpop.f32.mrf.mxu0
        %2950 = vmatprep.mubr.f32.mxu0 0.0
        %2951 = vmatmul.mubr.f32.gmra.mxu0 %v2747
        %v2952 = vpop.f32.mrf.mxu0
        %v2953 = vadd.f32 0.0, %v2952
        %v2954 = vpop.f32.mrf.mxu0
        %2955 = vmatprep.mubr.f32.mxu0 0.0
        %2956 = vmatmul.mubr.f32.gmra.mxu0 %v2750
        %v2957 = vpop.f32.mrf.mxu0
        %v2958 = vadd.f32 0.0, %v2957
        %v2959 = vpop.f32.mrf.mxu0
        %2960 = vmatprep.mubr.f32.mxu0 0.0
        %2961 = vmatmul.mubr.f32.gmra.mxu0 %v2753
        %v2962 = vpop.f32.mrf.mxu0
        %v2963 = vadd.f32 0.0, %v2962
        %v2964 = vpop.f32.mrf.mxu0
        %2965 = vmatprep.mubr.f32.mxu0 0.0
        %2966 = vmatmul.mubr.f32.gmra.mxu0 %v2756
        %v2967 = vpop.f32.mrf.mxu0
        %v2968 = vadd.f32 0.0, %v2967
        %v2969 = vpop.f32.mrf.mxu0
        %2970 = vmatprep.mubr.f32.mxu0 0.0
        %2971 = vmatmul.mubr.f32.gmra.mxu0 %v2759
        %v2972 = vpop.f32.mrf.mxu0
        %v2973 = vadd.f32 0.0, %v2972
        %v2974 = vpop.f32.mrf.mxu0
        %2975 = vmatprep.mubr.f32.mxu0 0.0
        %2976 = vmatmul.mubr.f32.gmra.mxu0 %v2762
        %v2977 = vpop.f32.mrf.mxu0
        %v2978 = vadd.f32 0.0, %v2977
        %v2979 = vpop.f32.mrf.mxu0
        %2980 = vmatprep.mubr.f32.mxu0 0.0
        %2981 = vmatmul.mubr.f32.gmra.mxu0 %v2765
        %v2982 = vpop.f32.mrf.mxu0
        %v2983 = vadd.f32 0.0, %v2982
        %v2984 = vpop.f32.mrf.mxu0
        %2985 = vmatprep.mubr.f32.mxu0 0.0
        %2986 = vmatmul.mubr.f32.gmra.mxu0 %v2768
        %v2987 = vpop.f32.mrf.mxu0
        %v2988 = vadd.f32 0.0, %v2987
        %v2989 = vpop.f32.mrf.mxu0
        %2990 = vmatprep.mubr.f32.mxu0 0.0
        %2991 = vmatmul.mubr.f32.gmra.mxu0 %v2771
        %v2992 = vpop.f32.mrf.mxu0
        %v2993 = vadd.f32 0.0, %v2992
        %v2994 = vpop.f32.mrf.mxu0
        %2995 = vmatprep.mubr.f32.mxu0 0.0
        %2996 = vmatmul.mubr.f32.gmra.mxu0 %v2774
        %v2997 = vpop.f32.mrf.mxu0
        %v2998 = vadd.f32 0.0, %v2997
        %v2999 = vpop.f32.mrf.mxu0
        %3000 = vdwg.mxu0
        %v3001 = vadd.f32 %v2607, %v2843
        %v3002 = vadd.f32 %v2608, %v2848
        %v3003 = vadd.f32 %v2609, %v2853
        %v3004 = vadd.f32 %v2610, %v2858
        %v3005 = vadd.f32 %v2611, %v2863
        %v3006 = vadd.f32 %v2612, %v2868
        %v3007 = vadd.f32 %v2613, %v2873
        %v3008 = vadd.f32 %v2614, %v2878
        %v3009 = vadd.f32 %v2615, %v2883
        %v3010 = vadd.f32 %v2616, %v2888
        %v3011 = vadd.f32 %v2617, %v2893
        %v3012 = vadd.f32 %v2618, %v2898
        %v3013 = vadd.f32 %v2619, %v2903
        %v3014 = vadd.f32 %v2620, %v2908
        %v3015 = vadd.f32 %v2621, %v2913
        %v3016 = vadd.f32 %v2622, %v2918
        %v3017 = vadd.f32 %v2623, %v2923
        %v3018 = vadd.f32 %v2624, %v2928
        %v3019 = vadd.f32 %v2625, %v2933
        %v3020 = vadd.f32 %v2626, %v2938
        %v3021 = vadd.f32 %v2627, %v2943
        %v3022 = vadd.f32 %v2628, %v2948
        %v3023 = vadd.f32 %v2629, %v2953
        %v3024 = vadd.f32 %v2630, %v2958
        %v3025 = vadd.f32 %v2631, %v2963
        %v3026 = vadd.f32 %v2632, %v2968
        %v3027 = vadd.f32 %v2633, %v2973
        %v3028 = vadd.f32 %v2634, %v2978
        %v3029 = vadd.f32 %v2635, %v2983
        %v3030 = vadd.f32 %v2636, %v2988
        %v3031 = vadd.f32 %v2637, %v2993
        %v3032 = vadd.f32 %v2638, %v2998
        %v3033 = vld [vmem:[%s718] sm:$0xff]
        %v3034 = vld [vmem:[%s718 + $0x8] sm:$0xff]
        %v3035 = vld [vmem:[%s718 + $0x18] sm:$0xff]
        %v3036 = vld [vmem:[%s718 + $0x20] sm:$0xff]
        %v3037 = vld [vmem:[%s718 + $0x30] sm:$0xff]
        %v3038 = vld [vmem:[%s718 + $0x38] sm:$0xff]
        %v3039 = vld [vmem:[%s718 + $0x48] sm:$0xff]
        %v3040 = vld [vmem:[%s718 + $0x50] sm:$0xff]
        %v3041 = vld [vmem:[%s718 + $0x60] sm:$0xff]
        %v3042 = vld [vmem:[%s718 + $0x68] sm:$0xff]
        %v3043 = vld [vmem:[%s718 + $0x78] sm:$0xff]
        %v3044 = vld [vmem:[%s718 + $0x80] sm:$0xff]
        %v3045 = vld [vmem:[%s718 + $0x90] sm:$0xff]
        %v3046 = vld [vmem:[%s718 + $0x98] sm:$0xff]
        %v3047 = vld [vmem:[%s718 + $0xa8] sm:$0xff]
        %v3048 = vld [vmem:[%s718 + $0xb0] sm:$0xff]
        %v3049 = vld [vmem:[%s718 + $0xc0] sm:$0xff]
        %v3050 = vld [vmem:[%s718 + $0xc8] sm:$0xff]
        %v3051 = vld [vmem:[%s718 + $0xd8] sm:$0xff]
        %v3052 = vld [vmem:[%s718 + $0xe0] sm:$0xff]
        %v3053 = vld [vmem:[%s718 + $0xf0] sm:$0xff]
        %v3054 = vld [vmem:[%s718 + $0xf8] sm:$0xff]
        %v3055 = vld [vmem:[%s718 + $0x108] sm:$0xff]
        %v3056 = vld [vmem:[%s718 + $0x110] sm:$0xff]
        %v3057 = vld [vmem:[%s718 + $0x120] sm:$0xff]
        %v3058 = vld [vmem:[%s718 + $0x128] sm:$0xff]
        %v3059 = vld [vmem:[%s718 + $0x138] sm:$0xff]
        %v3060 = vld [vmem:[%s718 + $0x140] sm:$0xff]
        %v3061 = vld [vmem:[%s718 + $0x150] sm:$0xff]
        %v3062 = vld [vmem:[%s718 + $0x158] sm:$0xff]
        %v3063 = vld [vmem:[%s718 + $0x168] sm:$0xff]
        %v3064 = vld [vmem:[%s718 + $0x170] sm:$0xff]
        %s3065 = scalar_lea.vmem %s1, 384
        %v3066 = vld [vmem:[%s3065] sm:$0xff]
        %v3067 = vld [vmem:[%s3065 + $0x8] sm:$0xff]
        %v3068 = vld [vmem:[%s3065 + $0x10] sm:$0xff]
        %v3069 = vld [vmem:[%s3065 + $0x18] sm:$0xff]
        %v3070 = vld [vmem:[%s3065 + $0x20] sm:$0xff]
        %v3071 = vld [vmem:[%s3065 + $0x28] sm:$0xff]
        %v3072 = vld [vmem:[%s3065 + $0x30] sm:$0xff]
        %v3073 = vld [vmem:[%s3065 + $0x38] sm:$0xff]
        %v3075 = vsel %vm282, %v3033, 0
        %v3078 = vsel %vm282, %v3034, 0
        %v3081 = vsel %vm282, %v3035, 0
        %v3084 = vsel %vm282, %v3036, 0
        %v3087 = vsel %vm282, %v3037, 0
        %v3090 = vsel %vm282, %v3038, 0
        %v3093 = vsel %vm282, %v3039, 0
        %v3096 = vsel %vm282, %v3040, 0
        %v3099 = vsel %vm282, %v3041, 0
        %v3102 = vsel %vm282, %v3042, 0
        %v3105 = vsel %vm282, %v3043, 0
        %v3108 = vsel %vm282, %v3044, 0
        %v3111 = vsel %vm282, %v3045, 0
        %v3114 = vsel %vm282, %v3046, 0
        %v3117 = vsel %vm282, %v3047, 0
        %v3120 = vsel %vm282, %v3048, 0
        %v3123 = vsel %vm282, %v3049, 0
        %v3126 = vsel %vm282, %v3050, 0
        %v3129 = vsel %vm282, %v3051, 0
        %v3132 = vsel %vm282, %v3052, 0
        %v3135 = vsel %vm282, %v3053, 0
        %v3138 = vsel %vm282, %v3054, 0
        %v3141 = vsel %vm282, %v3055, 0
        %v3144 = vsel %vm282, %v3056, 0
        %v3147 = vsel %vm282, %v3057, 0
        %v3150 = vsel %vm282, %v3058, 0
        %v3153 = vsel %vm282, %v3059, 0
        %v3156 = vsel %vm282, %v3060, 0
        %v3159 = vsel %vm282, %v3061, 0
        %v3162 = vsel %vm282, %v3062, 0
        %v3165 = vsel %vm282, %v3063, 0
        %v3168 = vsel %vm282, %v3064, 0
        %3170 = vmatprep.subr.mxu0 0.0
        %3171 = vmatpush1.msra.mxu0 0.0
        %3172 = vmatprep.subr.mxu0 0.0
        %3173 = vmatpush1.msra.mxu0 0.0
        %3174 = vmatprep.subr.mxu0 0.0
        %3175 = vmatpush1.msra.mxu0 0.0
        %3176 = vmatprep.subr.mxu0 0.0
        %3177 = vmatpush1.msra.mxu0 0.0
        %3178 = vmatprep.subr.mxu0 0.0
        %3179 = vmatpush1.msra.mxu0 0.0
        %3180 = vmatprep.subr.mxu0 0.0
        %3181 = vmatpush1.msra.mxu0 0.0
        %3182 = vmatprep.subr.mxu0 0.0
        %3183 = vmatpush1.msra.mxu0 0.0
        %3184 = vmatprep.subr.mxu0 0.0
        %3185 = vmatpush1.msra.mxu0 0.0
        %3186 = vmatprep.subr.mxu0 0.0
        %3187 = vmatpush1.msra.mxu0 %v3073
        %3188 = vmatprep.subr.mxu0 0.0
        %3189 = vmatpush1.msra.mxu0 %v3072
        %3190 = vmatprep.subr.mxu0 0.0
        %3191 = vmatpush1.msra.mxu0 %v3071
        %3192 = vmatprep.subr.mxu0 0.0
        %3193 = vmatpush1.msra.mxu0 %v3070
        %3194 = vmatprep.subr.mxu0 0.0
        %3195 = vmatpush1.msra.mxu0 %v3069
        %3196 = vmatprep.subr.mxu0 0.0
        %3197 = vmatpush1.msra.mxu0 %v3068
        %3198 = vmatprep.subr.mxu0 0.0
        %3199 = vmatpush1.msra.mxu0 %v3067
        %3200 = vmatprep.subr.mxu0 0.0
        %3201 = vmatpush1.msra.mxu0 %v3066
        %3202 = vmatprep.subr.mxu0 0.0
        %3203 = vmatpush2.msra.mxu0 0.0
        %3204 = vmatprep.subr.mxu0 0.0
        %3205 = vmatpush2.msra.mxu0 0.0
        %3206 = vmatprep.subr.mxu0 0.0
        %3207 = vmatpush2.msra.mxu0 0.0
        %3208 = vmatprep.subr.mxu0 0.0
        %3209 = vmatpush2.msra.mxu0 0.0
        %3210 = vmatprep.subr.mxu0 0.0
        %3211 = vmatpush2.msra.mxu0 0.0
        %3212 = vmatprep.subr.mxu0 0.0
        %3213 = vmatpush2.msra.mxu0 0.0
        %3214 = vmatprep.subr.mxu0 0.0
        %3215 = vmatpush2.msra.mxu0 0.0
        %3216 = vmatprep.subr.mxu0 0.0
        %3217 = vmatpush2.msra.mxu0 0.0
        %3218 = vmatprep.subr.mxu0 0.0
        %3219 = vmatpush2.msra.mxu0 0.0
        %3220 = vmatprep.subr.mxu0 0.0
        %3221 = vmatpush2.msra.mxu0 0.0
        %3222 = vmatprep.subr.mxu0 0.0
        %3223 = vmatpush2.msra.mxu0 0.0
        %3224 = vmatprep.subr.mxu0 0.0
        %3225 = vmatpush2.msra.mxu0 0.0
        %3226 = vmatprep.subr.mxu0 0.0
        %3227 = vmatpush2.msra.mxu0 0.0
        %3228 = vmatprep.subr.mxu0 0.0
        %3229 = vmatpush2.msra.mxu0 0.0
        %3230 = vmatprep.subr.mxu0 0.0
        %3231 = vmatpush2.msra.mxu0 0.0
        %3232 = vmatprep.subr.mxu0 0.0
        %3233 = vmatpush2.msra.mxu0 0.0
        %3234 = vmatprep.mubr.f32.mxu0 0.0
        %3235 = vmatmul.mubr.f32.gmra.mxu0 %v3075
        %v3236 = vpop.f32.mrf.mxu0
        %v3237 = vadd.f32 0.0, %v3236
        %v3238 = vpop.f32.mrf.mxu0
        %3239 = vmatprep.mubr.f32.mxu0 0.0
        %3240 = vmatmul.mubr.f32.gmra.mxu0 %v3078
        %v3241 = vpop.f32.mrf.mxu0
        %v3242 = vadd.f32 0.0, %v3241
        %v3243 = vpop.f32.mrf.mxu0
        %3244 = vmatprep.mubr.f32.mxu0 0.0
        %3245 = vmatmul.mubr.f32.gmra.mxu0 %v3081
        %v3246 = vpop.f32.mrf.mxu0
        %v3247 = vadd.f32 0.0, %v3246
        %v3248 = vpop.f32.mrf.mxu0
        %3249 = vmatprep.mubr.f32.mxu0 0.0
        %3250 = vmatmul.mubr.f32.gmra.mxu0 %v3084
        %v3251 = vpop.f32.mrf.mxu0
        %v3252 = vadd.f32 0.0, %v3251
        %v3253 = vpop.f32.mrf.mxu0
        %3254 = vmatprep.mubr.f32.mxu0 0.0
        %3255 = vmatmul.mubr.f32.gmra.mxu0 %v3087
        %v3256 = vpop.f32.mrf.mxu0
        %v3257 = vadd.f32 0.0, %v3256
        %v3258 = vpop.f32.mrf.mxu0
        %3259 = vmatprep.mubr.f32.mxu0 0.0
        %3260 = vmatmul.mubr.f32.gmra.mxu0 %v3090
        %v3261 = vpop.f32.mrf.mxu0
        %v3262 = vadd.f32 0.0, %v3261
        %v3263 = vpop.f32.mrf.mxu0
        %3264 = vmatprep.mubr.f32.mxu0 0.0
        %3265 = vmatmul.mubr.f32.gmra.mxu0 %v3093
        %v3266 = vpop.f32.mrf.mxu0
        %v3267 = vadd.f32 0.0, %v3266
        %v3268 = vpop.f32.mrf.mxu0
        %3269 = vmatprep.mubr.f32.mxu0 0.0
        %3270 = vmatmul.mubr.f32.gmra.mxu0 %v3096
        %v3271 = vpop.f32.mrf.mxu0
        %v3272 = vadd.f32 0.0, %v3271
        %v3273 = vpop.f32.mrf.mxu0
        %3274 = vmatprep.mubr.f32.mxu0 0.0
        %3275 = vmatmul.mubr.f32.gmra.mxu0 %v3099
        %v3276 = vpop.f32.mrf.mxu0
        %v3277 = vadd.f32 0.0, %v3276
        %v3278 = vpop.f32.mrf.mxu0
        %3279 = vmatprep.mubr.f32.mxu0 0.0
        %3280 = vmatmul.mubr.f32.gmra.mxu0 %v3102
        %v3281 = vpop.f32.mrf.mxu0
        %v3282 = vadd.f32 0.0, %v3281
        %v3283 = vpop.f32.mrf.mxu0
        %3284 = vmatprep.mubr.f32.mxu0 0.0
        %3285 = vmatmul.mubr.f32.gmra.mxu0 %v3105
        %v3286 = vpop.f32.mrf.mxu0
        %v3287 = vadd.f32 0.0, %v3286
        %v3288 = vpop.f32.mrf.mxu0
        %3289 = vmatprep.mubr.f32.mxu0 0.0
        %3290 = vmatmul.mubr.f32.gmra.mxu0 %v3108
        %v3291 = vpop.f32.mrf.mxu0
        %v3292 = vadd.f32 0.0, %v3291
        %v3293 = vpop.f32.mrf.mxu0
        %3294 = vmatprep.mubr.f32.mxu0 0.0
        %3295 = vmatmul.mubr.f32.gmra.mxu0 %v3111
        %v3296 = vpop.f32.mrf.mxu0
        %v3297 = vadd.f32 0.0, %v3296
        %v3298 = vpop.f32.mrf.mxu0
        %3299 = vmatprep.mubr.f32.mxu0 0.0
        %3300 = vmatmul.mubr.f32.gmra.mxu0 %v3114
        %v3301 = vpop.f32.mrf.mxu0
        %v3302 = vadd.f32 0.0, %v3301
        %v3303 = vpop.f32.mrf.mxu0
        %3304 = vmatprep.mubr.f32.mxu0 0.0
        %3305 = vmatmul.mubr.f32.gmra.mxu0 %v3117
        %v3306 = vpop.f32.mrf.mxu0
        %v3307 = vadd.f32 0.0, %v3306
        %v3308 = vpop.f32.mrf.mxu0
        %3309 = vmatprep.mubr.f32.mxu0 0.0
        %3310 = vmatmul.mubr.f32.gmra.mxu0 %v3120
        %v3311 = vpop.f32.mrf.mxu0
        %v3312 = vadd.f32 0.0, %v3311
        %v3313 = vpop.f32.mrf.mxu0
        %3314 = vmatprep.mubr.f32.mxu0 0.0
        %3315 = vmatmul.mubr.f32.gmra.mxu0 %v3123
        %v3316 = vpop.f32.mrf.mxu0
        %v3317 = vadd.f32 0.0, %v3316
        %v3318 = vpop.f32.mrf.mxu0
        %3319 = vmatprep.mubr.f32.mxu0 0.0
        %3320 = vmatmul.mubr.f32.gmra.mxu0 %v3126
        %v3321 = vpop.f32.mrf.mxu0
        %v3322 = vadd.f32 0.0, %v3321
        %v3323 = vpop.f32.mrf.mxu0
        %3324 = vmatprep.mubr.f32.mxu0 0.0
        %3325 = vmatmul.mubr.f32.gmra.mxu0 %v3129
        %v3326 = vpop.f32.mrf.mxu0
        %v3327 = vadd.f32 0.0, %v3326
        %v3328 = vpop.f32.mrf.mxu0
        %3329 = vmatprep.mubr.f32.mxu0 0.0
        %3330 = vmatmul.mubr.f32.gmra.mxu0 %v3132
        %v3331 = vpop.f32.mrf.mxu0
        %v3332 = vadd.f32 0.0, %v3331
        %v3333 = vpop.f32.mrf.mxu0
        %3334 = vmatprep.mubr.f32.mxu0 0.0
        %3335 = vmatmul.mubr.f32.gmra.mxu0 %v3135
        %v3336 = vpop.f32.mrf.mxu0
        %v3337 = vadd.f32 0.0, %v3336
        %v3338 = vpop.f32.mrf.mxu0
        %3339 = vmatprep.mubr.f32.mxu0 0.0
        %3340 = vmatmul.mubr.f32.gmra.mxu0 %v3138
        %v3341 = vpop.f32.mrf.mxu0
        %v3342 = vadd.f32 0.0, %v3341
        %v3343 = vpop.f32.mrf.mxu0
        %3344 = vmatprep.mubr.f32.mxu0 0.0
        %3345 = vmatmul.mubr.f32.gmra.mxu0 %v3141
        %v3346 = vpop.f32.mrf.mxu0
        %v3347 = vadd.f32 0.0, %v3346
        %v3348 = vpop.f32.mrf.mxu0
        %3349 = vmatprep.mubr.f32.mxu0 0.0
        %3350 = vmatmul.mubr.f32.gmra.mxu0 %v3144
        %v3351 = vpop.f32.mrf.mxu0
        %v3352 = vadd.f32 0.0, %v3351
        %v3353 = vpop.f32.mrf.mxu0
        %3354 = vmatprep.mubr.f32.mxu0 0.0
        %3355 = vmatmul.mubr.f32.gmra.mxu0 %v3147
        %v3356 = vpop.f32.mrf.mxu0
        %v3357 = vadd.f32 0.0, %v3356
        %v3358 = vpop.f32.mrf.mxu0
        %3359 = vmatprep.mubr.f32.mxu0 0.0
        %3360 = vmatmul.mubr.f32.gmra.mxu0 %v3150
        %v3361 = vpop.f32.mrf.mxu0
        %v3362 = vadd.f32 0.0, %v3361
        %v3363 = vpop.f32.mrf.mxu0
        %3364 = vmatprep.mubr.f32.mxu0 0.0
        %3365 = vmatmul.mubr.f32.gmra.mxu0 %v3153
        %v3366 = vpop.f32.mrf.mxu0
        %v3367 = vadd.f32 0.0, %v3366
        %v3368 = vpop.f32.mrf.mxu0
        %3369 = vmatprep.mubr.f32.mxu0 0.0
        %3370 = vmatmul.mubr.f32.gmra.mxu0 %v3156
        %v3371 = vpop.f32.mrf.mxu0
        %v3372 = vadd.f32 0.0, %v3371
        %v3373 = vpop.f32.mrf.mxu0
        %3374 = vmatprep.mubr.f32.mxu0 0.0
        %3375 = vmatmul.mubr.f32.gmra.mxu0 %v3159
        %v3376 = vpop.f32.mrf.mxu0
        %v3377 = vadd.f32 0.0, %v3376
        %v3378 = vpop.f32.mrf.mxu0
        %3379 = vmatprep.mubr.f32.mxu0 0.0
        %3380 = vmatmul.mubr.f32.gmra.mxu0 %v3162
        %v3381 = vpop.f32.mrf.mxu0
        %v3382 = vadd.f32 0.0, %v3381
        %v3383 = vpop.f32.mrf.mxu0
        %3384 = vmatprep.mubr.f32.mxu0 0.0
        %3385 = vmatmul.mubr.f32.gmra.mxu0 %v3165
        %v3386 = vpop.f32.mrf.mxu0
        %v3387 = vadd.f32 0.0, %v3386
        %v3388 = vpop.f32.mrf.mxu0
        %3389 = vmatprep.mubr.f32.mxu0 0.0
        %3390 = vmatmul.mubr.f32.gmra.mxu0 %v3168
        %v3391 = vpop.f32.mrf.mxu0
        %v3392 = vadd.f32 0.0, %v3391
        %v3393 = vpop.f32.mrf.mxu0
        %3394 = vdwg.mxu0
        %v3395 = vadd.f32 %v3001, %v3237
        %v3396 = vadd.f32 %v3002, %v3242
        %v3397 = vadd.f32 %v3003, %v3247
        %v3398 = vadd.f32 %v3004, %v3252
        %v3399 = vadd.f32 %v3005, %v3257
        %v3400 = vadd.f32 %v3006, %v3262
        %v3401 = vadd.f32 %v3007, %v3267
        %v3402 = vadd.f32 %v3008, %v3272
        %v3403 = vadd.f32 %v3009, %v3277
        %v3404 = vadd.f32 %v3010, %v3282
        %v3405 = vadd.f32 %v3011, %v3287
        %v3406 = vadd.f32 %v3012, %v3292
        %v3407 = vadd.f32 %v3013, %v3297
        %v3408 = vadd.f32 %v3014, %v3302
        %v3409 = vadd.f32 %v3015, %v3307
        %v3410 = vadd.f32 %v3016, %v3312
        %v3411 = vadd.f32 %v3017, %v3317
        %v3412 = vadd.f32 %v3018, %v3322
        %v3413 = vadd.f32 %v3019, %v3327
        %v3414 = vadd.f32 %v3020, %v3332
        %v3415 = vadd.f32 %v3021, %v3337
        %v3416 = vadd.f32 %v3022, %v3342
        %v3417 = vadd.f32 %v3023, %v3347
        %v3418 = vadd.f32 %v3024, %v3352
        %v3419 = vadd.f32 %v3025, %v3357
        %v3420 = vadd.f32 %v3026, %v3362
        %v3421 = vadd.f32 %v3027, %v3367
        %v3422 = vadd.f32 %v3028, %v3372
        %v3423 = vadd.f32 %v3029, %v3377
        %v3424 = vadd.f32 %v3030, %v3382
        %v3425 = vadd.f32 %v3031, %v3387
        %v3426 = vadd.f32 %v3032, %v3392
        %v3427 = vld [vmem:[%s718 + $0x1] sm:$0xff]
        %v3428 = vld [vmem:[%s718 + $0x9] sm:$0xff]
        %v3429 = vld [vmem:[%s718 + $0x19] sm:$0xff]
        %v3430 = vld [vmem:[%s718 + $0x21] sm:$0xff]
        %v3431 = vld [vmem:[%s718 + $0x31] sm:$0xff]
        %v3432 = vld [vmem:[%s718 + $0x39] sm:$0xff]
        %v3433 = vld [vmem:[%s718 + $0x49] sm:$0xff]
        %v3434 = vld [vmem:[%s718 + $0x51] sm:$0xff]
        %v3435 = vld [vmem:[%s718 + $0x61] sm:$0xff]
        %v3436 = vld [vmem:[%s718 + $0x69] sm:$0xff]
        %v3437 = vld [vmem:[%s718 + $0x79] sm:$0xff]
        %v3438 = vld [vmem:[%s718 + $0x81] sm:$0xff]
        %v3439 = vld [vmem:[%s718 + $0x91] sm:$0xff]
        %v3440 = vld [vmem:[%s718 + $0x99] sm:$0xff]
        %v3441 = vld [vmem:[%s718 + $0xa9] sm:$0xff]
        %v3442 = vld [vmem:[%s718 + $0xb1] sm:$0xff]
        %v3443 = vld [vmem:[%s718 + $0xc1] sm:$0xff]
        %v3444 = vld [vmem:[%s718 + $0xc9] sm:$0xff]
        %v3445 = vld [vmem:[%s718 + $0xd9] sm:$0xff]
        %v3446 = vld [vmem:[%s718 + $0xe1] sm:$0xff]
        %v3447 = vld [vmem:[%s718 + $0xf1] sm:$0xff]
        %v3448 = vld [vmem:[%s718 + $0xf9] sm:$0xff]
        %v3449 = vld [vmem:[%s718 + $0x109] sm:$0xff]
        %v3450 = vld [vmem:[%s718 + $0x111] sm:$0xff]
        %v3451 = vld [vmem:[%s718 + $0x121] sm:$0xff]
        %v3452 = vld [vmem:[%s718 + $0x129] sm:$0xff]
        %v3453 = vld [vmem:[%s718 + $0x139] sm:$0xff]
        %v3454 = vld [vmem:[%s718 + $0x141] sm:$0xff]
        %v3455 = vld [vmem:[%s718 + $0x151] sm:$0xff]
        %v3456 = vld [vmem:[%s718 + $0x159] sm:$0xff]
        %v3457 = vld [vmem:[%s718 + $0x169] sm:$0xff]
        %v3458 = vld [vmem:[%s718 + $0x171] sm:$0xff]
        %s3459 = scalar_lea.vmem %s1, 448
        %v3460 = vld [vmem:[%s3459] sm:$0xff]
        %v3461 = vld [vmem:[%s3459 + $0x8] sm:$0xff]
        %v3462 = vld [vmem:[%s3459 + $0x10] sm:$0xff]
        %v3463 = vld [vmem:[%s3459 + $0x18] sm:$0xff]
        %v3464 = vld [vmem:[%s3459 + $0x20] sm:$0xff]
        %v3465 = vld [vmem:[%s3459 + $0x28] sm:$0xff]
        %v3466 = vld [vmem:[%s3459 + $0x30] sm:$0xff]
        %v3467 = vld [vmem:[%s3459 + $0x38] sm:$0xff]
        %v3469 = vsel %vm282, %v3427, 0
        %v3472 = vsel %vm282, %v3428, 0
        %v3475 = vsel %vm282, %v3429, 0
        %v3478 = vsel %vm282, %v3430, 0
        %v3481 = vsel %vm282, %v3431, 0
        %v3484 = vsel %vm282, %v3432, 0
        %v3487 = vsel %vm282, %v3433, 0
        %v3490 = vsel %vm282, %v3434, 0
        %v3493 = vsel %vm282, %v3435, 0
        %v3496 = vsel %vm282, %v3436, 0
        %v3499 = vsel %vm282, %v3437, 0
        %v3502 = vsel %vm282, %v3438, 0
        %v3505 = vsel %vm282, %v3439, 0
        %v3508 = vsel %vm282, %v3440, 0
        %v3511 = vsel %vm282, %v3441, 0
        %v3514 = vsel %vm282, %v3442, 0
        %v3517 = vsel %vm282, %v3443, 0
        %v3520 = vsel %vm282, %v3444, 0
        %v3523 = vsel %vm282, %v3445, 0
        %v3526 = vsel %vm282, %v3446, 0
        %v3529 = vsel %vm282, %v3447, 0
        %v3532 = vsel %vm282, %v3448, 0
        %v3535 = vsel %vm282, %v3449, 0
        %v3538 = vsel %vm282, %v3450, 0
        %v3541 = vsel %vm282, %v3451, 0
        %v3544 = vsel %vm282, %v3452, 0
        %v3547 = vsel %vm282, %v3453, 0
        %v3550 = vsel %vm282, %v3454, 0
        %v3553 = vsel %vm282, %v3455, 0
        %v3556 = vsel %vm282, %v3456, 0
        %v3559 = vsel %vm282, %v3457, 0
        %v3562 = vsel %vm282, %v3458, 0
        %3564 = vmatprep.subr.mxu0 0.0
        %3565 = vmatpush1.msra.mxu0 0.0
        %3566 = vmatprep.subr.mxu0 0.0
        %3567 = vmatpush1.msra.mxu0 0.0
        %3568 = vmatprep.subr.mxu0 0.0
        %3569 = vmatpush1.msra.mxu0 0.0
        %3570 = vmatprep.subr.mxu0 0.0
        %3571 = vmatpush1.msra.mxu0 0.0
        %3572 = vmatprep.subr.mxu0 0.0
        %3573 = vmatpush1.msra.mxu0 0.0
        %3574 = vmatprep.subr.mxu0 0.0
        %3575 = vmatpush1.msra.mxu0 0.0
        %3576 = vmatprep.subr.mxu0 0.0
        %3577 = vmatpush1.msra.mxu0 0.0
        %3578 = vmatprep.subr.mxu0 0.0
        %3579 = vmatpush1.msra.mxu0 0.0
        %3580 = vmatprep.subr.mxu0 0.0
        %3581 = vmatpush1.msra.mxu0 %v3467
        %3582 = vmatprep.subr.mxu0 0.0
        %3583 = vmatpush1.msra.mxu0 %v3466
        %3584 = vmatprep.subr.mxu0 0.0
        %3585 = vmatpush1.msra.mxu0 %v3465
        %3586 = vmatprep.subr.mxu0 0.0
        %3587 = vmatpush1.msra.mxu0 %v3464
        %3588 = vmatprep.subr.mxu0 0.0
        %3589 = vmatpush1.msra.mxu0 %v3463
        %3590 = vmatprep.subr.mxu0 0.0
        %3591 = vmatpush1.msra.mxu0 %v3462
        %3592 = vmatprep.subr.mxu0 0.0
        %3593 = vmatpush1.msra.mxu0 %v3461
        %3594 = vmatprep.subr.mxu0 0.0
        %3595 = vmatpush1.msra.mxu0 %v3460
        %3596 = vmatprep.subr.mxu0 0.0
        %3597 = vmatpush2.msra.mxu0 0.0
        %3598 = vmatprep.subr.mxu0 0.0
        %3599 = vmatpush2.msra.mxu0 0.0
        %3600 = vmatprep.subr.mxu0 0.0
        %3601 = vmatpush2.msra.mxu0 0.0
        %3602 = vmatprep.subr.mxu0 0.0
        %3603 = vmatpush2.msra.mxu0 0.0
        %3604 = vmatprep.subr.mxu0 0.0
        %3605 = vmatpush2.msra.mxu0 0.0
        %3606 = vmatprep.subr.mxu0 0.0
        %3607 = vmatpush2.msra.mxu0 0.0
        %3608 = vmatprep.subr.mxu0 0.0
        %3609 = vmatpush2.msra.mxu0 0.0
        %3610 = vmatprep.subr.mxu0 0.0
        %3611 = vmatpush2.msra.mxu0 0.0
        %3612 = vmatprep.subr.mxu0 0.0
        %3613 = vmatpush2.msra.mxu0 0.0
        %3614 = vmatprep.subr.mxu0 0.0
        %3615 = vmatpush2.msra.mxu0 0.0
        %3616 = vmatprep.subr.mxu0 0.0
        %3617 = vmatpush2.msra.mxu0 0.0
        %3618 = vmatprep.subr.mxu0 0.0
        %3619 = vmatpush2.msra.mxu0 0.0
        %3620 = vmatprep.subr.mxu0 0.0
        %3621 = vmatpush2.msra.mxu0 0.0
        %3622 = vmatprep.subr.mxu0 0.0
        %3623 = vmatpush2.msra.mxu0 0.0
        %3624 = vmatprep.subr.mxu0 0.0
        %3625 = vmatpush2.msra.mxu0 0.0
        %3626 = vmatprep.subr.mxu0 0.0
        %3627 = vmatpush2.msra.mxu0 0.0
        %3628 = vmatprep.mubr.f32.mxu0 0.0
        %3629 = vmatmul.mubr.f32.gmra.mxu0 %v3469
        %v3630 = vpop.f32.mrf.mxu0
        %v3631 = vadd.f32 0.0, %v3630
        %v3632 = vpop.f32.mrf.mxu0
        %3633 = vmatprep.mubr.f32.mxu0 0.0
        %3634 = vmatmul.mubr.f32.gmra.mxu0 %v3472
        %v3635 = vpop.f32.mrf.mxu0
        %v3636 = vadd.f32 0.0, %v3635
        %v3637 = vpop.f32.mrf.mxu0
        %3638 = vmatprep.mubr.f32.mxu0 0.0
        %3639 = vmatmul.mubr.f32.gmra.mxu0 %v3475
        %v3640 = vpop.f32.mrf.mxu0
        %v3641 = vadd.f32 0.0, %v3640
        %v3642 = vpop.f32.mrf.mxu0
        %3643 = vmatprep.mubr.f32.mxu0 0.0
        %3644 = vmatmul.mubr.f32.gmra.mxu0 %v3478
        %v3645 = vpop.f32.mrf.mxu0
        %v3646 = vadd.f32 0.0, %v3645
        %v3647 = vpop.f32.mrf.mxu0
        %3648 = vmatprep.mubr.f32.mxu0 0.0
        %3649 = vmatmul.mubr.f32.gmra.mxu0 %v3481
        %v3650 = vpop.f32.mrf.mxu0
        %v3651 = vadd.f32 0.0, %v3650
        %v3652 = vpop.f32.mrf.mxu0
        %3653 = vmatprep.mubr.f32.mxu0 0.0
        %3654 = vmatmul.mubr.f32.gmra.mxu0 %v3484
        %v3655 = vpop.f32.mrf.mxu0
        %v3656 = vadd.f32 0.0, %v3655
        %v3657 = vpop.f32.mrf.mxu0
        %3658 = vmatprep.mubr.f32.mxu0 0.0
        %3659 = vmatmul.mubr.f32.gmra.mxu0 %v3487
        %v3660 = vpop.f32.mrf.mxu0
        %v3661 = vadd.f32 0.0, %v3660
        %v3662 = vpop.f32.mrf.mxu0
        %3663 = vmatprep.mubr.f32.mxu0 0.0
        %3664 = vmatmul.mubr.f32.gmra.mxu0 %v3490
        %v3665 = vpop.f32.mrf.mxu0
        %v3666 = vadd.f32 0.0, %v3665
        %v3667 = vpop.f32.mrf.mxu0
        %3668 = vmatprep.mubr.f32.mxu0 0.0
        %3669 = vmatmul.mubr.f32.gmra.mxu0 %v3493
        %v3670 = vpop.f32.mrf.mxu0
        %v3671 = vadd.f32 0.0, %v3670
        %v3672 = vpop.f32.mrf.mxu0
        %3673 = vmatprep.mubr.f32.mxu0 0.0
        %3674 = vmatmul.mubr.f32.gmra.mxu0 %v3496
        %v3675 = vpop.f32.mrf.mxu0
        %v3676 = vadd.f32 0.0, %v3675
        %v3677 = vpop.f32.mrf.mxu0
        %3678 = vmatprep.mubr.f32.mxu0 0.0
        %3679 = vmatmul.mubr.f32.gmra.mxu0 %v3499
        %v3680 = vpop.f32.mrf.mxu0
        %v3681 = vadd.f32 0.0, %v3680
        %v3682 = vpop.f32.mrf.mxu0
        %3683 = vmatprep.mubr.f32.mxu0 0.0
        %3684 = vmatmul.mubr.f32.gmra.mxu0 %v3502
        %v3685 = vpop.f32.mrf.mxu0
        %v3686 = vadd.f32 0.0, %v3685
        %v3687 = vpop.f32.mrf.mxu0
        %3688 = vmatprep.mubr.f32.mxu0 0.0
        %3689 = vmatmul.mubr.f32.gmra.mxu0 %v3505
        %v3690 = vpop.f32.mrf.mxu0
        %v3691 = vadd.f32 0.0, %v3690
        %v3692 = vpop.f32.mrf.mxu0
        %3693 = vmatprep.mubr.f32.mxu0 0.0
        %3694 = vmatmul.mubr.f32.gmra.mxu0 %v3508
        %v3695 = vpop.f32.mrf.mxu0
        %v3696 = vadd.f32 0.0, %v3695
        %v3697 = vpop.f32.mrf.mxu0
        %3698 = vmatprep.mubr.f32.mxu0 0.0
        %3699 = vmatmul.mubr.f32.gmra.mxu0 %v3511
        %v3700 = vpop.f32.mrf.mxu0
        %v3701 = vadd.f32 0.0, %v3700
        %v3702 = vpop.f32.mrf.mxu0
        %3703 = vmatprep.mubr.f32.mxu0 0.0
        %3704 = vmatmul.mubr.f32.gmra.mxu0 %v3514
        %v3705 = vpop.f32.mrf.mxu0
        %v3706 = vadd.f32 0.0, %v3705
        %v3707 = vpop.f32.mrf.mxu0
        %3708 = vmatprep.mubr.f32.mxu0 0.0
        %3709 = vmatmul.mubr.f32.gmra.mxu0 %v3517
        %v3710 = vpop.f32.mrf.mxu0
        %v3711 = vadd.f32 0.0, %v3710
        %v3712 = vpop.f32.mrf.mxu0
        %3713 = vmatprep.mubr.f32.mxu0 0.0
        %3714 = vmatmul.mubr.f32.gmra.mxu0 %v3520
        %v3715 = vpop.f32.mrf.mxu0
        %v3716 = vadd.f32 0.0, %v3715
        %v3717 = vpop.f32.mrf.mxu0
        %3718 = vmatprep.mubr.f32.mxu0 0.0
        %3719 = vmatmul.mubr.f32.gmra.mxu0 %v3523
        %v3720 = vpop.f32.mrf.mxu0
        %v3721 = vadd.f32 0.0, %v3720
        %v3722 = vpop.f32.mrf.mxu0
        %3723 = vmatprep.mubr.f32.mxu0 0.0
        %3724 = vmatmul.mubr.f32.gmra.mxu0 %v3526
        %v3725 = vpop.f32.mrf.mxu0
        %v3726 = vadd.f32 0.0, %v3725
        %v3727 = vpop.f32.mrf.mxu0
        %3728 = vmatprep.mubr.f32.mxu0 0.0
        %3729 = vmatmul.mubr.f32.gmra.mxu0 %v3529
        %v3730 = vpop.f32.mrf.mxu0
        %v3731 = vadd.f32 0.0, %v3730
        %v3732 = vpop.f32.mrf.mxu0
        %3733 = vmatprep.mubr.f32.mxu0 0.0
        %3734 = vmatmul.mubr.f32.gmra.mxu0 %v3532
        %v3735 = vpop.f32.mrf.mxu0
        %v3736 = vadd.f32 0.0, %v3735
        %v3737 = vpop.f32.mrf.mxu0
        %3738 = vmatprep.mubr.f32.mxu0 0.0
        %3739 = vmatmul.mubr.f32.gmra.mxu0 %v3535
        %v3740 = vpop.f32.mrf.mxu0
        %v3741 = vadd.f32 0.0, %v3740
        %v3742 = vpop.f32.mrf.mxu0
        %3743 = vmatprep.mubr.f32.mxu0 0.0
        %3744 = vmatmul.mubr.f32.gmra.mxu0 %v3538
        %v3745 = vpop.f32.mrf.mxu0
        %v3746 = vadd.f32 0.0, %v3745
        %v3747 = vpop.f32.mrf.mxu0
        %3748 = vmatprep.mubr.f32.mxu0 0.0
        %3749 = vmatmul.mubr.f32.gmra.mxu0 %v3541
        %v3750 = vpop.f32.mrf.mxu0
        %v3751 = vadd.f32 0.0, %v3750
        %v3752 = vpop.f32.mrf.mxu0
        %3753 = vmatprep.mubr.f32.mxu0 0.0
        %3754 = vmatmul.mubr.f32.gmra.mxu0 %v3544
        %v3755 = vpop.f32.mrf.mxu0
        %v3756 = vadd.f32 0.0, %v3755
        %v3757 = vpop.f32.mrf.mxu0
        %3758 = vmatprep.mubr.f32.mxu0 0.0
        %3759 = vmatmul.mubr.f32.gmra.mxu0 %v3547
        %v3760 = vpop.f32.mrf.mxu0
        %v3761 = vadd.f32 0.0, %v3760
        %v3762 = vpop.f32.mrf.mxu0
        %3763 = vmatprep.mubr.f32.mxu0 0.0
        %3764 = vmatmul.mubr.f32.gmra.mxu0 %v3550
        %v3765 = vpop.f32.mrf.mxu0
        %v3766 = vadd.f32 0.0, %v3765
        %v3767 = vpop.f32.mrf.mxu0
        %3768 = vmatprep.mubr.f32.mxu0 0.0
        %3769 = vmatmul.mubr.f32.gmra.mxu0 %v3553
        %v3770 = vpop.f32.mrf.mxu0
        %v3771 = vadd.f32 0.0, %v3770
        %v3772 = vpop.f32.mrf.mxu0
        %3773 = vmatprep.mubr.f32.mxu0 0.0
        %3774 = vmatmul.mubr.f32.gmra.mxu0 %v3556
        %v3775 = vpop.f32.mrf.mxu0
        %v3776 = vadd.f32 0.0, %v3775
        %v3777 = vpop.f32.mrf.mxu0
        %3778 = vmatprep.mubr.f32.mxu0 0.0
        %3779 = vmatmul.mubr.f32.gmra.mxu0 %v3559
        %v3780 = vpop.f32.mrf.mxu0
        %v3781 = vadd.f32 0.0, %v3780
        %v3782 = vpop.f32.mrf.mxu0
        %3783 = vmatprep.mubr.f32.mxu0 0.0
        %3784 = vmatmul.mubr.f32.gmra.mxu0 %v3562
        %v3785 = vpop.f32.mrf.mxu0
        %v3786 = vadd.f32 0.0, %v3785
        %v3787 = vpop.f32.mrf.mxu0
        %3788 = vdwg.mxu0
        %v3789 = vadd.f32 %v3395, %v3631
        %v3790 = vadd.f32 %v3396, %v3636
        %v3791 = vadd.f32 %v3397, %v3641
        %v3792 = vadd.f32 %v3398, %v3646
        %v3793 = vadd.f32 %v3399, %v3651
        %v3794 = vadd.f32 %v3400, %v3656
        %v3795 = vadd.f32 %v3401, %v3661
        %v3796 = vadd.f32 %v3402, %v3666
        %v3797 = vadd.f32 %v3403, %v3671
        %v3798 = vadd.f32 %v3404, %v3676
        %v3799 = vadd.f32 %v3405, %v3681
        %v3800 = vadd.f32 %v3406, %v3686
        %v3801 = vadd.f32 %v3407, %v3691
        %v3802 = vadd.f32 %v3408, %v3696
        %v3803 = vadd.f32 %v3409, %v3701
        %v3804 = vadd.f32 %v3410, %v3706
        %v3805 = vadd.f32 %v3411, %v3711
        %v3806 = vadd.f32 %v3412, %v3716
        %v3807 = vadd.f32 %v3413, %v3721
        %v3808 = vadd.f32 %v3414, %v3726
        %v3809 = vadd.f32 %v3415, %v3731
        %v3810 = vadd.f32 %v3416, %v3736
        %v3811 = vadd.f32 %v3417, %v3741
        %v3812 = vadd.f32 %v3418, %v3746
        %v3813 = vadd.f32 %v3419, %v3751
        %v3814 = vadd.f32 %v3420, %v3756
        %v3815 = vadd.f32 %v3421, %v3761
        %v3816 = vadd.f32 %v3422, %v3766
        %v3817 = vadd.f32 %v3423, %v3771
        %v3818 = vadd.f32 %v3424, %v3776
        %v3819 = vadd.f32 %v3425, %v3781
        %v3820 = vadd.f32 %v3426, %v3786
        %v3821 = vld [vmem:[%s718 + $0x2] sm:$0xff]
        %v3822 = vld [vmem:[%s718 + $0xa] sm:$0xff]
        %v3823 = vld [vmem:[%s718 + $0x1a] sm:$0xff]
        %v3824 = vld [vmem:[%s718 + $0x22] sm:$0xff]
        %v3825 = vld [vmem:[%s718 + $0x32] sm:$0xff]
        %v3826 = vld [vmem:[%s718 + $0x3a] sm:$0xff]
        %v3827 = vld [vmem:[%s718 + $0x4a] sm:$0xff]
        %v3828 = vld [vmem:[%s718 + $0x52] sm:$0xff]
        %v3829 = vld [vmem:[%s718 + $0x62] sm:$0xff]
        %v3830 = vld [vmem:[%s718 + $0x6a] sm:$0xff]
        %v3831 = vld [vmem:[%s718 + $0x7a] sm:$0xff]
        %v3832 = vld [vmem:[%s718 + $0x82] sm:$0xff]
        %v3833 = vld [vmem:[%s718 + $0x92] sm:$0xff]
        %v3834 = vld [vmem:[%s718 + $0x9a] sm:$0xff]
        %v3835 = vld [vmem:[%s718 + $0xaa] sm:$0xff]
        %v3836 = vld [vmem:[%s718 + $0xb2] sm:$0xff]
        %v3837 = vld [vmem:[%s718 + $0xc2] sm:$0xff]
        %v3838 = vld [vmem:[%s718 + $0xca] sm:$0xff]
        %v3839 = vld [vmem:[%s718 + $0xda] sm:$0xff]
        %v3840 = vld [vmem:[%s718 + $0xe2] sm:$0xff]
        %v3841 = vld [vmem:[%s718 + $0xf2] sm:$0xff]
        %v3842 = vld [vmem:[%s718 + $0xfa] sm:$0xff]
        %v3843 = vld [vmem:[%s718 + $0x10a] sm:$0xff]
        %v3844 = vld [vmem:[%s718 + $0x112] sm:$0xff]
        %v3845 = vld [vmem:[%s718 + $0x122] sm:$0xff]
        %v3846 = vld [vmem:[%s718 + $0x12a] sm:$0xff]
        %v3847 = vld [vmem:[%s718 + $0x13a] sm:$0xff]
        %v3848 = vld [vmem:[%s718 + $0x142] sm:$0xff]
        %v3849 = vld [vmem:[%s718 + $0x152] sm:$0xff]
        %v3850 = vld [vmem:[%s718 + $0x15a] sm:$0xff]
        %v3851 = vld [vmem:[%s718 + $0x16a] sm:$0xff]
        %v3852 = vld [vmem:[%s718 + $0x172] sm:$0xff]
        %s3853 = scalar_lea.vmem %s1, 512
        %v3854 = vld [vmem:[%s3853] sm:$0xff]
        %v3855 = vld [vmem:[%s3853 + $0x8] sm:$0xff]
        %v3856 = vld [vmem:[%s3853 + $0x10] sm:$0xff]
        %v3857 = vld [vmem:[%s3853 + $0x18] sm:$0xff]
        %v3858 = vld [vmem:[%s3853 + $0x20] sm:$0xff]
        %v3859 = vld [vmem:[%s3853 + $0x28] sm:$0xff]
        %v3860 = vld [vmem:[%s3853 + $0x30] sm:$0xff]
        %v3861 = vld [vmem:[%s3853 + $0x38] sm:$0xff]
        %v3863 = vsel %vm282, %v3821, 0
        %v3866 = vsel %vm282, %v3822, 0
        %v3869 = vsel %vm282, %v3823, 0
        %v3872 = vsel %vm282, %v3824, 0
        %v3875 = vsel %vm282, %v3825, 0
        %v3878 = vsel %vm282, %v3826, 0
        %v3881 = vsel %vm282, %v3827, 0
        %v3884 = vsel %vm282, %v3828, 0
        %v3887 = vsel %vm282, %v3829, 0
        %v3890 = vsel %vm282, %v3830, 0
        %v3893 = vsel %vm282, %v3831, 0
        %v3896 = vsel %vm282, %v3832, 0
        %v3899 = vsel %vm282, %v3833, 0
        %v3902 = vsel %vm282, %v3834, 0
        %v3905 = vsel %vm282, %v3835, 0
        %v3908 = vsel %vm282, %v3836, 0
        %v3911 = vsel %vm282, %v3837, 0
        %v3914 = vsel %vm282, %v3838, 0
        %v3917 = vsel %vm282, %v3839, 0
        %v3920 = vsel %vm282, %v3840, 0
        %v3923 = vsel %vm282, %v3841, 0
        %v3926 = vsel %vm282, %v3842, 0
        %v3929 = vsel %vm282, %v3843, 0
        %v3932 = vsel %vm282, %v3844, 0
        %v3935 = vsel %vm282, %v3845, 0
        %v3938 = vsel %vm282, %v3846, 0
        %v3941 = vsel %vm282, %v3847, 0
        %v3944 = vsel %vm282, %v3848, 0
        %v3947 = vsel %vm282, %v3849, 0
        %v3950 = vsel %vm282, %v3850, 0
        %v3953 = vsel %vm282, %v3851, 0
        %v3956 = vsel %vm282, %v3852, 0
        %3958 = vmatprep.subr.mxu0 0.0
        %3959 = vmatpush1.msra.mxu0 0.0
        %3960 = vmatprep.subr.mxu0 0.0
        %3961 = vmatpush1.msra.mxu0 0.0
        %3962 = vmatprep.subr.mxu0 0.0
        %3963 = vmatpush1.msra.mxu0 0.0
        %3964 = vmatprep.subr.mxu0 0.0
        %3965 = vmatpush1.msra.mxu0 0.0
        %3966 = vmatprep.subr.mxu0 0.0
        %3967 = vmatpush1.msra.mxu0 0.0
        %3968 = vmatprep.subr.mxu0 0.0
        %3969 = vmatpush1.msra.mxu0 0.0
        %3970 = vmatprep.subr.mxu0 0.0
        %3971 = vmatpush1.msra.mxu0 0.0
        %3972 = vmatprep.subr.mxu0 0.0
        %3973 = vmatpush1.msra.mxu0 0.0
        %3974 = vmatprep.subr.mxu0 0.0
        %3975 = vmatpush1.msra.mxu0 %v3861
        %3976 = vmatprep.subr.mxu0 0.0
        %3977 = vmatpush1.msra.mxu0 %v3860
        %3978 = vmatprep.subr.mxu0 0.0
        %3979 = vmatpush1.msra.mxu0 %v3859
        %3980 = vmatprep.subr.mxu0 0.0
        %3981 = vmatpush1.msra.mxu0 %v3858
        %3982 = vmatprep.subr.mxu0 0.0
        %3983 = vmatpush1.msra.mxu0 %v3857
        %3984 = vmatprep.subr.mxu0 0.0
        %3985 = vmatpush1.msra.mxu0 %v3856
        %3986 = vmatprep.subr.mxu0 0.0
        %3987 = vmatpush1.msra.mxu0 %v3855
        %3988 = vmatprep.subr.mxu0 0.0
        %3989 = vmatpush1.msra.mxu0 %v3854
        %3990 = vmatprep.subr.mxu0 0.0
        %3991 = vmatpush2.msra.mxu0 0.0
        %3992 = vmatprep.subr.mxu0 0.0
        %3993 = vmatpush2.msra.mxu0 0.0
        %3994 = vmatprep.subr.mxu0 0.0
        %3995 = vmatpush2.msra.mxu0 0.0
        %3996 = vmatprep.subr.mxu0 0.0
        %3997 = vmatpush2.msra.mxu0 0.0
        %3998 = vmatprep.subr.mxu0 0.0
        %3999 = vmatpush2.msra.mxu0 0.0
        %4000 = vmatprep.subr.mxu0 0.0
        %4001 = vmatpush2.msra.mxu0 0.0
        %4002 = vmatprep.subr.mxu0 0.0
        %4003 = vmatpush2.msra.mxu0 0.0
        %4004 = vmatprep.subr.mxu0 0.0
        %4005 = vmatpush2.msra.mxu0 0.0
        %4006 = vmatprep.subr.mxu0 0.0
        %4007 = vmatpush2.msra.mxu0 0.0
        %4008 = vmatprep.subr.mxu0 0.0
        %4009 = vmatpush2.msra.mxu0 0.0
        %4010 = vmatprep.subr.mxu0 0.0
        %4011 = vmatpush2.msra.mxu0 0.0
        %4012 = vmatprep.subr.mxu0 0.0
        %4013 = vmatpush2.msra.mxu0 0.0
        %4014 = vmatprep.subr.mxu0 0.0
        %4015 = vmatpush2.msra.mxu0 0.0
        %4016 = vmatprep.subr.mxu0 0.0
        %4017 = vmatpush2.msra.mxu0 0.0
        %4018 = vmatprep.subr.mxu0 0.0
        %4019 = vmatpush2.msra.mxu0 0.0
        %4020 = vmatprep.subr.mxu0 0.0
        %4021 = vmatpush2.msra.mxu0 0.0
        %4022 = vmatprep.mubr.f32.mxu0 0.0
        %4023 = vmatmul.mubr.f32.gmra.mxu0 %v3863
        %v4024 = vpop.f32.mrf.mxu0
        %v4025 = vadd.f32 0.0, %v4024
        %v4026 = vpop.f32.mrf.mxu0
        %4027 = vmatprep.mubr.f32.mxu0 0.0
        %4028 = vmatmul.mubr.f32.gmra.mxu0 %v3866
        %v4029 = vpop.f32.mrf.mxu0
        %v4030 = vadd.f32 0.0, %v4029
        %v4031 = vpop.f32.mrf.mxu0
        %4032 = vmatprep.mubr.f32.mxu0 0.0
        %4033 = vmatmul.mubr.f32.gmra.mxu0 %v3869
        %v4034 = vpop.f32.mrf.mxu0
        %v4035 = vadd.f32 0.0, %v4034
        %v4036 = vpop.f32.mrf.mxu0
        %4037 = vmatprep.mubr.f32.mxu0 0.0
        %4038 = vmatmul.mubr.f32.gmra.mxu0 %v3872
        %v4039 = vpop.f32.mrf.mxu0
        %v4040 = vadd.f32 0.0, %v4039
        %v4041 = vpop.f32.mrf.mxu0
        %4042 = vmatprep.mubr.f32.mxu0 0.0
        %4043 = vmatmul.mubr.f32.gmra.mxu0 %v3875
        %v4044 = vpop.f32.mrf.mxu0
        %v4045 = vadd.f32 0.0, %v4044
        %v4046 = vpop.f32.mrf.mxu0
        %4047 = vmatprep.mubr.f32.mxu0 0.0
        %4048 = vmatmul.mubr.f32.gmra.mxu0 %v3878
        %v4049 = vpop.f32.mrf.mxu0
        %v4050 = vadd.f32 0.0, %v4049
        %v4051 = vpop.f32.mrf.mxu0
        %4052 = vmatprep.mubr.f32.mxu0 0.0
        %4053 = vmatmul.mubr.f32.gmra.mxu0 %v3881
        %v4054 = vpop.f32.mrf.mxu0
        %v4055 = vadd.f32 0.0, %v4054
        %v4056 = vpop.f32.mrf.mxu0
        %4057 = vmatprep.mubr.f32.mxu0 0.0
        %4058 = vmatmul.mubr.f32.gmra.mxu0 %v3884
        %v4059 = vpop.f32.mrf.mxu0
        %v4060 = vadd.f32 0.0, %v4059
        %v4061 = vpop.f32.mrf.mxu0
        %4062 = vmatprep.mubr.f32.mxu0 0.0
        %4063 = vmatmul.mubr.f32.gmra.mxu0 %v3887
        %v4064 = vpop.f32.mrf.mxu0
        %v4065 = vadd.f32 0.0, %v4064
        %v4066 = vpop.f32.mrf.mxu0
        %4067 = vmatprep.mubr.f32.mxu0 0.0
        %4068 = vmatmul.mubr.f32.gmra.mxu0 %v3890
        %v4069 = vpop.f32.mrf.mxu0
        %v4070 = vadd.f32 0.0, %v4069
        %v4071 = vpop.f32.mrf.mxu0
        %4072 = vmatprep.mubr.f32.mxu0 0.0
        %4073 = vmatmul.mubr.f32.gmra.mxu0 %v3893
        %v4074 = vpop.f32.mrf.mxu0
        %v4075 = vadd.f32 0.0, %v4074
        %v4076 = vpop.f32.mrf.mxu0
        %4077 = vmatprep.mubr.f32.mxu0 0.0
        %4078 = vmatmul.mubr.f32.gmra.mxu0 %v3896
        %v4079 = vpop.f32.mrf.mxu0
        %v4080 = vadd.f32 0.0, %v4079
        %v4081 = vpop.f32.mrf.mxu0
        %4082 = vmatprep.mubr.f32.mxu0 0.0
        %4083 = vmatmul.mubr.f32.gmra.mxu0 %v3899
        %v4084 = vpop.f32.mrf.mxu0
        %v4085 = vadd.f32 0.0, %v4084
        %v4086 = vpop.f32.mrf.mxu0
        %4087 = vmatprep.mubr.f32.mxu0 0.0
        %4088 = vmatmul.mubr.f32.gmra.mxu0 %v3902
        %v4089 = vpop.f32.mrf.mxu0
        %v4090 = vadd.f32 0.0, %v4089
        %v4091 = vpop.f32.mrf.mxu0
        %4092 = vmatprep.mubr.f32.mxu0 0.0
        %4093 = vmatmul.mubr.f32.gmra.mxu0 %v3905
        %v4094 = vpop.f32.mrf.mxu0
        %v4095 = vadd.f32 0.0, %v4094
        %v4096 = vpop.f32.mrf.mxu0
        %4097 = vmatprep.mubr.f32.mxu0 0.0
        %4098 = vmatmul.mubr.f32.gmra.mxu0 %v3908
        %v4099 = vpop.f32.mrf.mxu0
        %v4100 = vadd.f32 0.0, %v4099
        %v4101 = vpop.f32.mrf.mxu0
        %4102 = vmatprep.mubr.f32.mxu0 0.0
        %4103 = vmatmul.mubr.f32.gmra.mxu0 %v3911
        %v4104 = vpop.f32.mrf.mxu0
        %v4105 = vadd.f32 0.0, %v4104
        %v4106 = vpop.f32.mrf.mxu0
        %4107 = vmatprep.mubr.f32.mxu0 0.0
        %4108 = vmatmul.mubr.f32.gmra.mxu0 %v3914
        %v4109 = vpop.f32.mrf.mxu0
        %v4110 = vadd.f32 0.0, %v4109
        %v4111 = vpop.f32.mrf.mxu0
        %4112 = vmatprep.mubr.f32.mxu0 0.0
        %4113 = vmatmul.mubr.f32.gmra.mxu0 %v3917
        %v4114 = vpop.f32.mrf.mxu0
        %v4115 = vadd.f32 0.0, %v4114
        %v4116 = vpop.f32.mrf.mxu0
        %4117 = vmatprep.mubr.f32.mxu0 0.0
        %4118 = vmatmul.mubr.f32.gmra.mxu0 %v3920
        %v4119 = vpop.f32.mrf.mxu0
        %v4120 = vadd.f32 0.0, %v4119
        %v4121 = vpop.f32.mrf.mxu0
        %4122 = vmatprep.mubr.f32.mxu0 0.0
        %4123 = vmatmul.mubr.f32.gmra.mxu0 %v3923
        %v4124 = vpop.f32.mrf.mxu0
        %v4125 = vadd.f32 0.0, %v4124
        %v4126 = vpop.f32.mrf.mxu0
        %4127 = vmatprep.mubr.f32.mxu0 0.0
        %4128 = vmatmul.mubr.f32.gmra.mxu0 %v3926
        %v4129 = vpop.f32.mrf.mxu0
        %v4130 = vadd.f32 0.0, %v4129
        %v4131 = vpop.f32.mrf.mxu0
        %4132 = vmatprep.mubr.f32.mxu0 0.0
        %4133 = vmatmul.mubr.f32.gmra.mxu0 %v3929
        %v4134 = vpop.f32.mrf.mxu0
        %v4135 = vadd.f32 0.0, %v4134
        %v4136 = vpop.f32.mrf.mxu0
        %4137 = vmatprep.mubr.f32.mxu0 0.0
        %4138 = vmatmul.mubr.f32.gmra.mxu0 %v3932
        %v4139 = vpop.f32.mrf.mxu0
        %v4140 = vadd.f32 0.0, %v4139
        %v4141 = vpop.f32.mrf.mxu0
        %4142 = vmatprep.mubr.f32.mxu0 0.0
        %4143 = vmatmul.mubr.f32.gmra.mxu0 %v3935
        %v4144 = vpop.f32.mrf.mxu0
        %v4145 = vadd.f32 0.0, %v4144
        %v4146 = vpop.f32.mrf.mxu0
        %4147 = vmatprep.mubr.f32.mxu0 0.0
        %4148 = vmatmul.mubr.f32.gmra.mxu0 %v3938
        %v4149 = vpop.f32.mrf.mxu0
        %v4150 = vadd.f32 0.0, %v4149
        %v4151 = vpop.f32.mrf.mxu0
        %4152 = vmatprep.mubr.f32.mxu0 0.0
        %4153 = vmatmul.mubr.f32.gmra.mxu0 %v3941
        %v4154 = vpop.f32.mrf.mxu0
        %v4155 = vadd.f32 0.0, %v4154
        %v4156 = vpop.f32.mrf.mxu0
        %4157 = vmatprep.mubr.f32.mxu0 0.0
        %4158 = vmatmul.mubr.f32.gmra.mxu0 %v3944
        %v4159 = vpop.f32.mrf.mxu0
        %v4160 = vadd.f32 0.0, %v4159
        %v4161 = vpop.f32.mrf.mxu0
        %4162 = vmatprep.mubr.f32.mxu0 0.0
        %4163 = vmatmul.mubr.f32.gmra.mxu0 %v3947
        %v4164 = vpop.f32.mrf.mxu0
        %v4165 = vadd.f32 0.0, %v4164
        %v4166 = vpop.f32.mrf.mxu0
        %4167 = vmatprep.mubr.f32.mxu0 0.0
        %4168 = vmatmul.mubr.f32.gmra.mxu0 %v3950
        %v4169 = vpop.f32.mrf.mxu0
        %v4170 = vadd.f32 0.0, %v4169
        %v4171 = vpop.f32.mrf.mxu0
        %4172 = vmatprep.mubr.f32.mxu0 0.0
        %4173 = vmatmul.mubr.f32.gmra.mxu0 %v3953
        %v4174 = vpop.f32.mrf.mxu0
        %v4175 = vadd.f32 0.0, %v4174
        %v4176 = vpop.f32.mrf.mxu0
        %4177 = vmatprep.mubr.f32.mxu0 0.0
        %4178 = vmatmul.mubr.f32.gmra.mxu0 %v3956
        %v4179 = vpop.f32.mrf.mxu0
        %v4180 = vadd.f32 0.0, %v4179
        %v4181 = vpop.f32.mrf.mxu0
        %4182 = vdwg.mxu0
        %v4183 = vadd.f32 %v3789, %v4025
        %v4184 = vadd.f32 %v3790, %v4030
        %v4185 = vadd.f32 %v3791, %v4035
        %v4186 = vadd.f32 %v3792, %v4040
        %v4187 = vadd.f32 %v3793, %v4045
        %v4188 = vadd.f32 %v3794, %v4050
        %v4189 = vadd.f32 %v3795, %v4055
        %v4190 = vadd.f32 %v3796, %v4060
        %v4191 = vadd.f32 %v3797, %v4065
        %v4192 = vadd.f32 %v3798, %v4070
        %v4193 = vadd.f32 %v3799, %v4075
        %v4194 = vadd.f32 %v3800, %v4080
        %v4195 = vadd.f32 %v3801, %v4085
        %v4196 = vadd.f32 %v3802, %v4090
        %v4197 = vadd.f32 %v3803, %v4095
        %v4198 = vadd.f32 %v3804, %v4100
        %v4199 = vadd.f32 %v3805, %v4105
        %v4200 = vadd.f32 %v3806, %v4110
        %v4201 = vadd.f32 %v3807, %v4115
        %v4202 = vadd.f32 %v3808, %v4120
        %v4203 = vadd.f32 %v3809, %v4125
        %v4204 = vadd.f32 %v3810, %v4130
        %v4205 = vadd.f32 %v3811, %v4135
        %v4206 = vadd.f32 %v3812, %v4140
        %v4207 = vadd.f32 %v3813, %v4145
        %v4208 = vadd.f32 %v3814, %v4150
        %v4209 = vadd.f32 %v3815, %v4155
        %v4210 = vadd.f32 %v3816, %v4160
        %v4211 = vadd.f32 %v3817, %v4165
        %v4212 = vadd.f32 %v3818, %v4170
        %v4213 = vadd.f32 %v3819, %v4175
        %v4214 = vadd.f32 %v3820, %v4180
        %v4215 = vsel %vm282, %v4183, 0.0
        %v4216 = vsel %vm282, %v4184, 0.0
        %v4217 = vadd.f32 %v4215, %v4216
        %v4218 = vsel %vm282, %v4185, 0.0
        %v4219 = vadd.f32 %v4217, %v4218
        %v4220 = vsel %vm282, %v4186, 0.0
        %v4221 = vadd.f32 %v4219, %v4220
        %v4222 = vsel %vm282, %v4187, 0.0
        %v4223 = vadd.f32 %v4221, %v4222
        %v4224 = vsel %vm282, %v4188, 0.0
        %v4225 = vadd.f32 %v4223, %v4224
        %v4226 = vsel %vm282, %v4189, 0.0
        %v4227 = vadd.f32 %v4225, %v4226
        %v4228 = vsel %vm282, %v4190, 0.0
        %v4229 = vadd.f32 %v4227, %v4228
        %v4230 = vsel %vm282, %v4191, 0.0
        %v4231 = vadd.f32 %v4229, %v4230
        %v4232 = vsel %vm282, %v4192, 0.0
        %v4233 = vadd.f32 %v4231, %v4232
        %v4234 = vsel %vm282, %v4193, 0.0
        %v4235 = vadd.f32 %v4233, %v4234
        %v4236 = vsel %vm282, %v4194, 0.0
        %v4237 = vadd.f32 %v4235, %v4236
        %v4238 = vsel %vm282, %v4195, 0.0
        %v4239 = vadd.f32 %v4237, %v4238
        %v4240 = vsel %vm282, %v4196, 0.0
        %v4241 = vadd.f32 %v4239, %v4240
        %v4242 = vsel %vm282, %v4197, 0.0
        %v4243 = vadd.f32 %v4241, %v4242
        %v4244 = vsel %vm282, %v4198, 0.0
        %v4245 = vadd.f32 %v4243, %v4244
        %v4246 = vsel %vm282, %v4199, 0.0
        %v4247 = vadd.f32 %v4245, %v4246
        %v4248 = vsel %vm282, %v4200, 0.0
        %v4249 = vadd.f32 %v4247, %v4248
        %v4250 = vsel %vm282, %v4201, 0.0
        %v4251 = vadd.f32 %v4249, %v4250
        %v4252 = vsel %vm282, %v4202, 0.0
        %v4253 = vadd.f32 %v4251, %v4252
        %v4254 = vsel %vm282, %v4203, 0.0
        %v4255 = vadd.f32 %v4253, %v4254
        %v4256 = vsel %vm282, %v4204, 0.0
        %v4257 = vadd.f32 %v4255, %v4256
        %v4258 = vsel %vm282, %v4205, 0.0
        %v4259 = vadd.f32 %v4257, %v4258
        %v4260 = vsel %vm282, %v4206, 0.0
        %v4261 = vadd.f32 %v4259, %v4260
        %v4262 = vsel %vm282, %v4207, 0.0
        %v4263 = vadd.f32 %v4261, %v4262
        %v4264 = vsel %vm282, %v4208, 0.0
        %v4265 = vadd.f32 %v4263, %v4264
        %v4266 = vsel %vm282, %v4209, 0.0
        %v4267 = vadd.f32 %v4265, %v4266
        %v4268 = vsel %vm282, %v4210, 0.0
        %v4269 = vadd.f32 %v4267, %v4268
        %v4270 = vsel %vm282, %v4211, 0.0
        %v4271 = vadd.f32 %v4269, %v4270
        %v4272 = vsel %vm282, %v4212, 0.0
        %v4273 = vadd.f32 %v4271, %v4272
        %v4274 = vsel %vm282, %v4213, 0.0
        %v4275 = vadd.f32 %v4273, %v4274
        %v4276 = vsel %vm282, %v4214, 0.0
        %v4277 = vadd.f32 %v4275, %v4276
        %v4278 = vrot.slane %v4277, 4
        %v4279 = vadd.f32 %v4277, %v4278
        %v4280 = vrot.slane %v4279, 2
        %v4281 = vadd.f32 %v4279, %v4280
        %v4282 = vrot.slane %v4281, 1
        %v4283 = vadd.f32 %v4281, %v4282
        %v4284 = vmul.f32 %v4283, %v352
        %v4285 = vmul.f32 %v4183, %v4183
        %v4286 = vmul.f32 %v4184, %v4184
        %v4287 = vmul.f32 %v4185, %v4185
        %v4288 = vmul.f32 %v4186, %v4186
        %v4289 = vmul.f32 %v4187, %v4187
        %v4290 = vmul.f32 %v4188, %v4188
        %v4291 = vmul.f32 %v4189, %v4189
        %v4292 = vmul.f32 %v4190, %v4190
        %v4293 = vmul.f32 %v4191, %v4191
        %v4294 = vmul.f32 %v4192, %v4192
        %v4295 = vmul.f32 %v4193, %v4193
        %v4296 = vmul.f32 %v4194, %v4194
        %v4297 = vmul.f32 %v4195, %v4195
        %v4298 = vmul.f32 %v4196, %v4196
        %v4299 = vmul.f32 %v4197, %v4197
        %v4300 = vmul.f32 %v4198, %v4198
        %v4301 = vmul.f32 %v4199, %v4199
        %v4302 = vmul.f32 %v4200, %v4200
        %v4303 = vmul.f32 %v4201, %v4201
        %v4304 = vmul.f32 %v4202, %v4202
        %v4305 = vmul.f32 %v4203, %v4203
        %v4306 = vmul.f32 %v4204, %v4204
        %v4307 = vmul.f32 %v4205, %v4205
        %v4308 = vmul.f32 %v4206, %v4206
        %v4309 = vmul.f32 %v4207, %v4207
        %v4310 = vmul.f32 %v4208, %v4208
        %v4311 = vmul.f32 %v4209, %v4209
        %v4312 = vmul.f32 %v4210, %v4210
        %v4313 = vmul.f32 %v4211, %v4211
        %v4314 = vmul.f32 %v4212, %v4212
        %v4315 = vmul.f32 %v4213, %v4213
        %v4316 = vmul.f32 %v4214, %v4214
        %v4317 = vsel %vm282, %v4285, 0.0
        %v4318 = vsel %vm282, %v4286, 0.0
        %v4319 = vadd.f32 %v4317, %v4318
        %v4320 = vsel %vm282, %v4287, 0.0
        %v4321 = vadd.f32 %v4319, %v4320
        %v4322 = vsel %vm282, %v4288, 0.0
        %v4323 = vadd.f32 %v4321, %v4322
        %v4324 = vsel %vm282, %v4289, 0.0
        %v4325 = vadd.f32 %v4323, %v4324
        %v4326 = vsel %vm282, %v4290, 0.0
        %v4327 = vadd.f32 %v4325, %v4326
        %v4328 = vsel %vm282, %v4291, 0.0
        %v4329 = vadd.f32 %v4327, %v4328
        %v4330 = vsel %vm282, %v4292, 0.0
        %v4331 = vadd.f32 %v4329, %v4330
        %v4332 = vsel %vm282, %v4293, 0.0
        %v4333 = vadd.f32 %v4331, %v4332
        %v4334 = vsel %vm282, %v4294, 0.0
        %v4335 = vadd.f32 %v4333, %v4334
        %v4336 = vsel %vm282, %v4295, 0.0
        %v4337 = vadd.f32 %v4335, %v4336
        %v4338 = vsel %vm282, %v4296, 0.0
        %v4339 = vadd.f32 %v4337, %v4338
        %v4340 = vsel %vm282, %v4297, 0.0
        %v4341 = vadd.f32 %v4339, %v4340
        %v4342 = vsel %vm282, %v4298, 0.0
        %v4343 = vadd.f32 %v4341, %v4342
        %v4344 = vsel %vm282, %v4299, 0.0
        %v4345 = vadd.f32 %v4343, %v4344
        %v4346 = vsel %vm282, %v4300, 0.0
        %v4347 = vadd.f32 %v4345, %v4346
        %v4348 = vsel %vm282, %v4301, 0.0
        %v4349 = vadd.f32 %v4347, %v4348
        %v4350 = vsel %vm282, %v4302, 0.0
        %v4351 = vadd.f32 %v4349, %v4350
        %v4352 = vsel %vm282, %v4303, 0.0
        %v4353 = vadd.f32 %v4351, %v4352
        %v4354 = vsel %vm282, %v4304, 0.0
        %v4355 = vadd.f32 %v4353, %v4354
        %v4356 = vsel %vm282, %v4305, 0.0
        %v4357 = vadd.f32 %v4355, %v4356
        %v4358 = vsel %vm282, %v4306, 0.0
        %v4359 = vadd.f32 %v4357, %v4358
        %v4360 = vsel %vm282, %v4307, 0.0
        %v4361 = vadd.f32 %v4359, %v4360
        %v4362 = vsel %vm282, %v4308, 0.0
        %v4363 = vadd.f32 %v4361, %v4362
        %v4364 = vsel %vm282, %v4309, 0.0
        %v4365 = vadd.f32 %v4363, %v4364
        %v4366 = vsel %vm282, %v4310, 0.0
        %v4367 = vadd.f32 %v4365, %v4366
        %v4368 = vsel %vm282, %v4311, 0.0
        %v4369 = vadd.f32 %v4367, %v4368
        %v4370 = vsel %vm282, %v4312, 0.0
        %v4371 = vadd.f32 %v4369, %v4370
        %v4372 = vsel %vm282, %v4313, 0.0
        %v4373 = vadd.f32 %v4371, %v4372
        %v4374 = vsel %vm282, %v4314, 0.0
        %v4375 = vadd.f32 %v4373, %v4374
        %v4376 = vsel %vm282, %v4315, 0.0
        %v4377 = vadd.f32 %v4375, %v4376
        %v4378 = vsel %vm282, %v4316, 0.0
        %v4379 = vadd.f32 %v4377, %v4378
        %v4380 = vrot.slane %v4379, 4
        %v4381 = vadd.f32 %v4379, %v4380
        %v4382 = vrot.slane %v4381, 2
        %v4383 = vadd.f32 %v4381, %v4382
        %v4384 = vrot.slane %v4383, 1
        %v4385 = vadd.f32 %v4383, %v4384
        %v4386 = vmul.f32 %v4385, %v352
        %v4387 = vmul.f32 %v4284, %v4284
        %v4388 = vsub.f32 %v4386, %v4387
        %v4389 = vsub.f32 %v4183, %v4284
        %v4390 = vsub.f32 %v4184, %v4284
        %v4391 = vsub.f32 %v4185, %v4284
        %v4392 = vsub.f32 %v4186, %v4284
        %v4393 = vsub.f32 %v4187, %v4284
        %v4394 = vsub.f32 %v4188, %v4284
        %v4395 = vsub.f32 %v4189, %v4284
        %v4396 = vsub.f32 %v4190, %v4284
        %v4397 = vsub.f32 %v4191, %v4284
        %v4398 = vsub.f32 %v4192, %v4284
        %v4399 = vsub.f32 %v4193, %v4284
        %v4400 = vsub.f32 %v4194, %v4284
        %v4401 = vsub.f32 %v4195, %v4284
        %v4402 = vsub.f32 %v4196, %v4284
        %v4403 = vsub.f32 %v4197, %v4284
        %v4404 = vsub.f32 %v4198, %v4284
        %v4405 = vsub.f32 %v4199, %v4284
        %v4406 = vsub.f32 %v4200, %v4284
        %v4407 = vsub.f32 %v4201, %v4284
        %v4408 = vsub.f32 %v4202, %v4284
        %v4409 = vsub.f32 %v4203, %v4284
        %v4410 = vsub.f32 %v4204, %v4284
        %v4411 = vsub.f32 %v4205, %v4284
        %v4412 = vsub.f32 %v4206, %v4284
        %v4413 = vsub.f32 %v4207, %v4284
        %v4414 = vsub.f32 %v4208, %v4284
        %v4415 = vsub.f32 %v4209, %v4284
        %v4416 = vsub.f32 %v4210, %v4284
        %v4417 = vsub.f32 %v4211, %v4284
        %v4418 = vsub.f32 %v4212, %v4284
        %v4419 = vsub.f32 %v4213, %v4284
        %v4420 = vsub.f32 %v4214, %v4284
        %v4421 = vadd.f32 %v4388, 1e-05
        %v4422 = vrsqrt.pop %v4421
        %v4423 = vmul.f32 %v4389, %v4422
        %v4424 = vmul.f32 %v4390, %v4422
        %v4425 = vmul.f32 %v4391, %v4422
        %v4426 = vmul.f32 %v4392, %v4422
        %v4427 = vmul.f32 %v4393, %v4422
        %v4428 = vmul.f32 %v4394, %v4422
        %v4429 = vmul.f32 %v4395, %v4422
        %v4430 = vmul.f32 %v4396, %v4422
        %v4431 = vmul.f32 %v4397, %v4422
        %v4432 = vmul.f32 %v4398, %v4422
        %v4433 = vmul.f32 %v4399, %v4422
        %v4434 = vmul.f32 %v4400, %v4422
        %v4435 = vmul.f32 %v4401, %v4422
        %v4436 = vmul.f32 %v4402, %v4422
        %v4437 = vmul.f32 %v4403, %v4422
        %v4438 = vmul.f32 %v4404, %v4422
        %v4439 = vmul.f32 %v4405, %v4422
        %v4440 = vmul.f32 %v4406, %v4422
        %v4441 = vmul.f32 %v4407, %v4422
        %v4442 = vmul.f32 %v4408, %v4422
        %v4443 = vmul.f32 %v4409, %v4422
        %v4444 = vmul.f32 %v4410, %v4422
        %v4445 = vmul.f32 %v4411, %v4422
        %v4446 = vmul.f32 %v4412, %v4422
        %v4447 = vmul.f32 %v4413, %v4422
        %v4448 = vmul.f32 %v4414, %v4422
        %v4449 = vmul.f32 %v4415, %v4422
        %v4450 = vmul.f32 %v4416, %v4422
        %v4451 = vmul.f32 %v4417, %v4422
        %v4452 = vmul.f32 %v4418, %v4422
        %v4453 = vmul.f32 %v4419, %v4422
        %v4454 = vmul.f32 %v4420, %v4422
        %vm4455 = vcmp.ge.f32.partialorder %v4423, 0.0
        %vm4456 = vcmp.ge.f32.partialorder %v4424, 0.0
        %vm4457 = vcmp.ge.f32.partialorder %v4425, 0.0
        %vm4458 = vcmp.ge.f32.partialorder %v4426, 0.0
        %vm4459 = vcmp.ge.f32.partialorder %v4427, 0.0
        %vm4460 = vcmp.ge.f32.partialorder %v4428, 0.0
        %vm4461 = vcmp.ge.f32.partialorder %v4429, 0.0
        %vm4462 = vcmp.ge.f32.partialorder %v4430, 0.0
        %vm4463 = vcmp.ge.f32.partialorder %v4431, 0.0
        %vm4464 = vcmp.ge.f32.partialorder %v4432, 0.0
        %vm4465 = vcmp.ge.f32.partialorder %v4433, 0.0
        %vm4466 = vcmp.ge.f32.partialorder %v4434, 0.0
        %vm4467 = vcmp.ge.f32.partialorder %v4435, 0.0
        %vm4468 = vcmp.ge.f32.partialorder %v4436, 0.0
        %vm4469 = vcmp.ge.f32.partialorder %v4437, 0.0
        %vm4470 = vcmp.ge.f32.partialorder %v4438, 0.0
        %vm4471 = vcmp.ge.f32.partialorder %v4439, 0.0
        %vm4472 = vcmp.ge.f32.partialorder %v4440, 0.0
        %vm4473 = vcmp.ge.f32.partialorder %v4441, 0.0
        %vm4474 = vcmp.ge.f32.partialorder %v4442, 0.0
        %vm4475 = vcmp.ge.f32.partialorder %v4443, 0.0
        %vm4476 = vcmp.ge.f32.partialorder %v4444, 0.0
        %vm4477 = vcmp.ge.f32.partialorder %v4445, 0.0
        %vm4478 = vcmp.ge.f32.partialorder %v4446, 0.0
        %vm4479 = vcmp.ge.f32.partialorder %v4447, 0.0
        %vm4480 = vcmp.ge.f32.partialorder %v4448, 0.0
        %vm4481 = vcmp.ge.f32.partialorder %v4449, 0.0
        %vm4482 = vcmp.ge.f32.partialorder %v4450, 0.0
        %vm4483 = vcmp.ge.f32.partialorder %v4451, 0.0
        %vm4484 = vcmp.ge.f32.partialorder %v4452, 0.0
        %vm4485 = vcmp.ge.f32.partialorder %v4453, 0.0
        %vm4486 = vcmp.ge.f32.partialorder %v4454, 0.0
        %v4487 = vmul.f32 %v4423, 0.2
        %v4488 = vmul.f32 %v4424, 0.2
        %v4489 = vmul.f32 %v4425, 0.2
        %v4490 = vmul.f32 %v4426, 0.2
        %v4491 = vmul.f32 %v4427, 0.2
        %v4492 = vmul.f32 %v4428, 0.2
        %v4493 = vmul.f32 %v4429, 0.2
        %v4494 = vmul.f32 %v4430, 0.2
        %v4495 = vmul.f32 %v4431, 0.2
        %v4496 = vmul.f32 %v4432, 0.2
        %v4497 = vmul.f32 %v4433, 0.2
        %v4498 = vmul.f32 %v4434, 0.2
        %v4499 = vmul.f32 %v4435, 0.2
        %v4500 = vmul.f32 %v4436, 0.2
        %v4501 = vmul.f32 %v4437, 0.2
        %v4502 = vmul.f32 %v4438, 0.2
        %v4503 = vmul.f32 %v4439, 0.2
        %v4504 = vmul.f32 %v4440, 0.2
        %v4505 = vmul.f32 %v4441, 0.2
        %v4506 = vmul.f32 %v4442, 0.2
        %v4507 = vmul.f32 %v4443, 0.2
        %v4508 = vmul.f32 %v4444, 0.2
        %v4509 = vmul.f32 %v4445, 0.2
        %v4510 = vmul.f32 %v4446, 0.2
        %v4511 = vmul.f32 %v4447, 0.2
        %v4512 = vmul.f32 %v4448, 0.2
        %v4513 = vmul.f32 %v4449, 0.2
        %v4514 = vmul.f32 %v4450, 0.2
        %v4515 = vmul.f32 %v4451, 0.2
        %v4516 = vmul.f32 %v4452, 0.2
        %v4517 = vmul.f32 %v4453, 0.2
        %v4518 = vmul.f32 %v4454, 0.2
        %v4519 = vsel %vm4455, %v4423, %v4487
        %v4520 = vsel %vm4456, %v4424, %v4488
        %v4521 = vsel %vm4457, %v4425, %v4489
        %v4522 = vsel %vm4458, %v4426, %v4490
        %v4523 = vsel %vm4459, %v4427, %v4491
        %v4524 = vsel %vm4460, %v4428, %v4492
        %v4525 = vsel %vm4461, %v4429, %v4493
        %v4526 = vsel %vm4462, %v4430, %v4494
        %v4527 = vsel %vm4463, %v4431, %v4495
        %v4528 = vsel %vm4464, %v4432, %v4496
        %v4529 = vsel %vm4465, %v4433, %v4497
        %v4530 = vsel %vm4466, %v4434, %v4498
        %v4531 = vsel %vm4467, %v4435, %v4499
        %v4532 = vsel %vm4468, %v4436, %v4500
        %v4533 = vsel %vm4469, %v4437, %v4501
        %v4534 = vsel %vm4470, %v4438, %v4502
        %v4535 = vsel %vm4471, %v4439, %v4503
        %v4536 = vsel %vm4472, %v4440, %v4504
        %v4537 = vsel %vm4473, %v4441, %v4505
        %v4538 = vsel %vm4474, %v4442, %v4506
        %v4539 = vsel %vm4475, %v4443, %v4507
        %v4540 = vsel %vm4476, %v4444, %v4508
        %v4541 = vsel %vm4477, %v4445, %v4509
        %v4542 = vsel %vm4478, %v4446, %v4510
        %v4543 = vsel %vm4479, %v4447, %v4511
        %v4544 = vsel %vm4480, %v4448, %v4512
        %v4545 = vsel %vm4481, %v4449, %v4513
        %v4546 = vsel %vm4482, %v4450, %v4514
        %v4547 = vsel %vm4483, %v4451, %v4515
        %v4548 = vsel %vm4484, %v4452, %v4516
        %v4549 = vsel %vm4485, %v4453, %v4517
        %v4550 = vsel %vm4486, %v4454, %v4518
        %4551 = vst.msk [vmem:[%s620 + $0x1] sm:$0xff] %vm282, %v4519
        %4552 = vst.msk [vmem:[%s620 + $0x9] sm:$0xff] %vm282, %v4520
        %4553 = vst.msk [vmem:[%s620 + $0x19] sm:$0xff] %vm282, %v4521
        %4554 = vst.msk [vmem:[%s620 + $0x21] sm:$0xff] %vm282, %v4522
        %4555 = vst.msk [vmem:[%s620 + $0x31] sm:$0xff] %vm282, %v4523
        %4556 = vst.msk [vmem:[%s620 + $0x39] sm:$0xff] %vm282, %v4524
        %4557 = vst.msk [vmem:[%s620 + $0x49] sm:$0xff] %vm282, %v4525
        %4558 = vst.msk [vmem:[%s620 + $0x51] sm:$0xff] %vm282, %v4526
        %4559 = vst.msk [vmem:[%s620 + $0x61] sm:$0xff] %vm282, %v4527
        %4560 = vst.msk [vmem:[%s620 + $0x69] sm:$0xff] %vm282, %v4528
        %4561 = vst.msk [vmem:[%s620 + $0x79] sm:$0xff] %vm282, %v4529
        %4562 = vst.msk [vmem:[%s620 + $0x81] sm:$0xff] %vm282, %v4530
        %4563 = vst.msk [vmem:[%s620 + $0x91] sm:$0xff] %vm282, %v4531
        %4564 = vst.msk [vmem:[%s620 + $0x99] sm:$0xff] %vm282, %v4532
        %4565 = vst.msk [vmem:[%s620 + $0xa9] sm:$0xff] %vm282, %v4533
        %4566 = vst.msk [vmem:[%s620 + $0xb1] sm:$0xff] %vm282, %v4534
        %4567 = vst.msk [vmem:[%s620 + $0xc1] sm:$0xff] %vm282, %v4535
        %4568 = vst.msk [vmem:[%s620 + $0xc9] sm:$0xff] %vm282, %v4536
        %4569 = vst.msk [vmem:[%s620 + $0xd9] sm:$0xff] %vm282, %v4537
        %4570 = vst.msk [vmem:[%s620 + $0xe1] sm:$0xff] %vm282, %v4538
        %4571 = vst.msk [vmem:[%s620 + $0xf1] sm:$0xff] %vm282, %v4539
        %4572 = vst.msk [vmem:[%s620 + $0xf9] sm:$0xff] %vm282, %v4540
        %4573 = vst.msk [vmem:[%s620 + $0x109] sm:$0xff] %vm282, %v4541
        %4574 = vst.msk [vmem:[%s620 + $0x111] sm:$0xff] %vm282, %v4542
        %4575 = vst.msk [vmem:[%s620 + $0x121] sm:$0xff] %vm282, %v4543
        %4576 = vst.msk [vmem:[%s620 + $0x129] sm:$0xff] %vm282, %v4544
        %4577 = vst.msk [vmem:[%s620 + $0x139] sm:$0xff] %vm282, %v4545
        %4578 = vst.msk [vmem:[%s620 + $0x141] sm:$0xff] %vm282, %v4546
        %4579 = vst.msk [vmem:[%s620 + $0x151] sm:$0xff] %vm282, %v4547
        %4580 = vst.msk [vmem:[%s620 + $0x159] sm:$0xff] %vm282, %v4548
        %4581 = vst.msk [vmem:[%s620 + $0x169] sm:$0xff] %vm282, %v4549
        %4582 = vst.msk [vmem:[%s620 + $0x171] sm:$0xff] %vm282, %v4550
        %v4583 = vld [vmem:[%s620 + $0x2] sm:$0x1]
        %v4584 = vld [vmem:[%s620 + $0x1a] sm:$0x1]
        %v4585 = vld [vmem:[%s620 + $0x32] sm:$0x1]
        %v4586 = vld [vmem:[%s620 + $0x4a] sm:$0x1]
        %v4587 = vld [vmem:[%s620 + $0x62] sm:$0x1]
        %v4588 = vld [vmem:[%s620 + $0x7a] sm:$0x1]
        %v4589 = vld [vmem:[%s620 + $0x92] sm:$0x1]
        %v4590 = vld [vmem:[%s620 + $0xaa] sm:$0x1]
        %v4591 = vld [vmem:[%s620 + $0xc2] sm:$0x1]
        %v4592 = vld [vmem:[%s620 + $0xda] sm:$0x1]
        %v4593 = vld [vmem:[%s620 + $0xf2] sm:$0x1]
        %v4594 = vld [vmem:[%s620 + $0x10a] sm:$0x1]
        %v4595 = vld [vmem:[%s620 + $0x122] sm:$0x1]
        %v4596 = vld [vmem:[%s620 + $0x13a] sm:$0x1]
        %v4597 = vld [vmem:[%s620 + $0x152] sm:$0x1]
        %v4598 = vld [vmem:[%s620 + $0x16a] sm:$0x1]
        %4599 = vst.msk [vmem:[%s620] sm:$0x1] %vm669, %v4583
        %4600 = vst.msk [vmem:[%s620 + $0x18] sm:$0x1] %vm669, %v4584
        %4601 = vst.msk [vmem:[%s620 + $0x30] sm:$0x1] %vm669, %v4585
        %4602 = vst.msk [vmem:[%s620 + $0x48] sm:$0x1] %vm669, %v4586
        %4603 = vst.msk [vmem:[%s620 + $0x60] sm:$0x1] %vm669, %v4587
        %4604 = vst.msk [vmem:[%s620 + $0x78] sm:$0x1] %vm669, %v4588
        %4605 = vst.msk [vmem:[%s620 + $0x90] sm:$0x1] %vm669, %v4589
        %4606 = vst.msk [vmem:[%s620 + $0xa8] sm:$0x1] %vm669, %v4590
        %4607 = vst.msk [vmem:[%s620 + $0xc0] sm:$0x1] %vm669, %v4591
        %4608 = vst.msk [vmem:[%s620 + $0xd8] sm:$0x1] %vm669, %v4592
        %4609 = vst.msk [vmem:[%s620 + $0xf0] sm:$0x1] %vm669, %v4593
        %4610 = vst.msk [vmem:[%s620 + $0x108] sm:$0x1] %vm669, %v4594
        %4611 = vst.msk [vmem:[%s620 + $0x120] sm:$0x1] %vm669, %v4595
        %4612 = vst.msk [vmem:[%s620 + $0x138] sm:$0x1] %vm669, %v4596
        %4613 = vst.msk [vmem:[%s620 + $0x150] sm:$0x1] %vm669, %v4597
        %4614 = vst.msk [vmem:[%s620 + $0x168] sm:$0x1] %vm669, %v4598
        %v4615 = vld [vmem:[%s620 + $0xf] sm:$0x1]
        %v4616 = vld [vmem:[%s620 + $0x27] sm:$0x1]
        %v4617 = vld [vmem:[%s620 + $0x3f] sm:$0x1]
        %v4618 = vld [vmem:[%s620 + $0x57] sm:$0x1]
        %v4619 = vld [vmem:[%s620 + $0x6f] sm:$0x1]
        %v4620 = vld [vmem:[%s620 + $0x87] sm:$0x1]
        %v4621 = vld [vmem:[%s620 + $0x9f] sm:$0x1]
        %v4622 = vld [vmem:[%s620 + $0xb7] sm:$0x1]
        %v4623 = vld [vmem:[%s620 + $0xcf] sm:$0x1]
        %v4624 = vld [vmem:[%s620 + $0xe7] sm:$0x1]
        %v4625 = vld [vmem:[%s620 + $0xff] sm:$0x1]
        %v4626 = vld [vmem:[%s620 + $0x117] sm:$0x1]
        %v4627 = vld [vmem:[%s620 + $0x12f] sm:$0x1]
        %v4628 = vld [vmem:[%s620 + $0x147] sm:$0x1]
        %v4629 = vld [vmem:[%s620 + $0x15f] sm:$0x1]
        %v4630 = vld [vmem:[%s620 + $0x177] sm:$0x1]
        %4631 = vst.msk [vmem:[%s620 + $0x11] sm:$0x1] %vm669, %v4615
        %4632 = vst.msk [vmem:[%s620 + $0x29] sm:$0x1] %vm669, %v4616
        %4633 = vst.msk [vmem:[%s620 + $0x41] sm:$0x1] %vm669, %v4617
        %4634 = vst.msk [vmem:[%s620 + $0x59] sm:$0x1] %vm669, %v4618
        %4635 = vst.msk [vmem:[%s620 + $0x71] sm:$0x1] %vm669, %v4619
        %4636 = vst.msk [vmem:[%s620 + $0x89] sm:$0x1] %vm669, %v4620
        %4637 = vst.msk [vmem:[%s620 + $0xa1] sm:$0x1] %vm669, %v4621
        %4638 = vst.msk [vmem:[%s620 + $0xb9] sm:$0x1] %vm669, %v4622
        %4639 = vst.msk [vmem:[%s620 + $0xd1] sm:$0x1] %vm669, %v4623
        %4640 = vst.msk [vmem:[%s620 + $0xe9] sm:$0x1] %vm669, %v4624
        %4641 = vst.msk [vmem:[%s620 + $0x101] sm:$0x1] %vm669, %v4625
        %4642 = vst.msk [vmem:[%s620 + $0x119] sm:$0x1] %vm669, %v4626
        %4643 = vst.msk [vmem:[%s620 + $0x131] sm:$0x1] %vm669, %v4627
        %4644 = vst.msk [vmem:[%s620 + $0x149] sm:$0x1] %vm669, %v4628
        %4645 = vst.msk [vmem:[%s620 + $0x161] sm:$0x1] %vm669, %v4629
        %4646 = vst.msk [vmem:[%s620 + $0x179] sm:$0x1] %vm669, %v4630
        %v4647 = vld [vmem:[%s718] sm:$0xff]
        %v4648 = vld [vmem:[%s718 + $0x8] sm:$0xff]
        %v4649 = vld [vmem:[%s718 + $0x10] sm:$0x3]
        %4650 = vst.msk [vmem:[#allocation2] sm:$0xff] %vm282, %v4647
        %4651 = vst.msk [vmem:[#allocation2 + $0x8] sm:$0xff] %vm282, %v4648
        %4652 = vst.msk [vmem:[#allocation2 + $0x10] sm:$0x3] %vm724, %v4649
        %v4653 = vld [vmem:[%s726] sm:$0xff]
        %v4654 = vld [vmem:[%s726 + $0x8] sm:$0xff]
        %v4655 = vld [vmem:[%s726 + $0x10] sm:$0x3]
        %4656 = vst.msk [vmem:[%s730] sm:$0xff] %vm282, %v4653
        %4657 = vst.msk [vmem:[%s730 + $0x8] sm:$0xff] %vm282, %v4654
        %4658 = vst.msk [vmem:[%s730 + $0x10] sm:$0x3] %vm724, %v4655
        %v4659 = vld [vmem:[#allocation2] sm:$0xff]
        %v4660 = vld [vmem:[#allocation2 + $0x8] sm:$0xff]
        %v4661 = vld [vmem:[#allocation2 + $0x18] sm:$0xff]
        %v4662 = vld [vmem:[#allocation2 + $0x20] sm:$0xff]
        %v4663 = vld [vmem:[#allocation2 + $0x30] sm:$0xff]
        %v4664 = vld [vmem:[#allocation2 + $0x38] sm:$0xff]
        %v4665 = vld [vmem:[#allocation2 + $0x48] sm:$0xff]
        %v4666 = vld [vmem:[#allocation2 + $0x50] sm:$0xff]
        %v4667 = vld [vmem:[#allocation2 + $0x60] sm:$0xff]
        %v4668 = vld [vmem:[#allocation2 + $0x68] sm:$0xff]
        %v4669 = vld [vmem:[#allocation2 + $0x78] sm:$0xff]
        %v4670 = vld [vmem:[#allocation2 + $0x80] sm:$0xff]
        %v4671 = vld [vmem:[#allocation2 + $0x90] sm:$0xff]
        %v4672 = vld [vmem:[#allocation2 + $0x98] sm:$0xff]
        %v4673 = vld [vmem:[#allocation2 + $0xa8] sm:$0xff]
        %v4674 = vld [vmem:[#allocation2 + $0xb0] sm:$0xff]
        %v4675 = vld [vmem:[#allocation2 + $0xc0] sm:$0xff]
        %v4676 = vld [vmem:[#allocation2 + $0xc8] sm:$0xff]
        %v4677 = vld [vmem:[#allocation2 + $0xd8] sm:$0xff]
        %v4678 = vld [vmem:[#allocation2 + $0xe0] sm:$0xff]
        %v4679 = vld [vmem:[#allocation2 + $0xf0] sm:$0xff]
        %v4680 = vld [vmem:[#allocation2 + $0xf8] sm:$0xff]
        %v4681 = vld [vmem:[#allocation2 + $0x108] sm:$0xff]
        %v4682 = vld [vmem:[#allocation2 + $0x110] sm:$0xff]
        %v4683 = vld [vmem:[#allocation2 + $0x120] sm:$0xff]
        %v4684 = vld [vmem:[#allocation2 + $0x128] sm:$0xff]
        %v4685 = vld [vmem:[#allocation2 + $0x138] sm:$0xff]
        %v4686 = vld [vmem:[#allocation2 + $0x140] sm:$0xff]
        %v4687 = vld [vmem:[#allocation2 + $0x150] sm:$0xff]
        %v4688 = vld [vmem:[#allocation2 + $0x158] sm:$0xff]
        %v4689 = vld [vmem:[#allocation2 + $0x168] sm:$0xff]
        %v4690 = vld [vmem:[#allocation2 + $0x170] sm:$0xff]
        %v4691 = vld [vmem:[%s2] sm:$0xff]
        %v4692 = vld [vmem:[%s2 + $0x8] sm:$0xff]
        %v4693 = vld [vmem:[%s2 + $0x10] sm:$0xff]
        %v4694 = vld [vmem:[%s2 + $0x18] sm:$0xff]
        %v4695 = vld [vmem:[%s2 + $0x20] sm:$0xff]
        %v4696 = vld [vmem:[%s2 + $0x28] sm:$0xff]
        %v4697 = vld [vmem:[%s2 + $0x30] sm:$0xff]
        %v4698 = vld [vmem:[%s2 + $0x38] sm:$0xff]
        %v4699 = vld [vmem:[#allocation2 + $0x1] sm:$0xff]
        %v4700 = vld [vmem:[#allocation2 + $0x9] sm:$0xff]
        %v4701 = vld [vmem:[#allocation2 + $0x19] sm:$0xff]
        %v4702 = vld [vmem:[#allocation2 + $0x21] sm:$0xff]
        %v4703 = vld [vmem:[#allocation2 + $0x31] sm:$0xff]
        %v4704 = vld [vmem:[#allocation2 + $0x39] sm:$0xff]
        %v4705 = vld [vmem:[#allocation2 + $0x49] sm:$0xff]
        %v4706 = vld [vmem:[#allocation2 + $0x51] sm:$0xff]
        %v4707 = vld [vmem:[#allocation2 + $0x61] sm:$0xff]
        %v4708 = vld [vmem:[#allocation2 + $0x69] sm:$0xff]
        %v4709 = vld [vmem:[#allocation2 + $0x79] sm:$0xff]
        %v4710 = vld [vmem:[#allocation2 + $0x81] sm:$0xff]
        %v4711 = vld [vmem:[#allocation2 + $0x91] sm:$0xff]
        %v4712 = vld [vmem:[#allocation2 + $0x99] sm:$0xff]
        %v4713 = vld [vmem:[#allocation2 + $0xa9] sm:$0xff]
        %v4714 = vld [vmem:[#allocation2 + $0xb1] sm:$0xff]
        %v4715 = vld [vmem:[#allocation2 + $0xc1] sm:$0xff]
        %v4716 = vld [vmem:[#allocation2 + $0xc9] sm:$0xff]
        %v4717 = vld [vmem:[#allocation2 + $0xd9] sm:$0xff]
        %v4718 = vld [vmem:[#allocation2 + $0xe1] sm:$0xff]
        %v4719 = vld [vmem:[#allocation2 + $0xf1] sm:$0xff]
        %v4720 = vld [vmem:[#allocation2 + $0xf9] sm:$0xff]
        %v4721 = vld [vmem:[#allocation2 + $0x109] sm:$0xff]
        %v4722 = vld [vmem:[#allocation2 + $0x111] sm:$0xff]
        %v4723 = vld [vmem:[#allocation2 + $0x121] sm:$0xff]
        %v4724 = vld [vmem:[#allocation2 + $0x129] sm:$0xff]
        %v4725 = vld [vmem:[#allocation2 + $0x139] sm:$0xff]
        %v4726 = vld [vmem:[#allocation2 + $0x141] sm:$0xff]
        %v4727 = vld [vmem:[#allocation2 + $0x151] sm:$0xff]
        %v4728 = vld [vmem:[#allocation2 + $0x159] sm:$0xff]
        %v4729 = vld [vmem:[#allocation2 + $0x169] sm:$0xff]
        %v4730 = vld [vmem:[#allocation2 + $0x171] sm:$0xff]
        %s4731 = scalar_lea.vmem %s2, 64
        %v4732 = vld [vmem:[%s4731] sm:$0xff]
        %v4733 = vld [vmem:[%s4731 + $0x8] sm:$0xff]
        %v4734 = vld [vmem:[%s4731 + $0x10] sm:$0xff]
        %v4735 = vld [vmem:[%s4731 + $0x18] sm:$0xff]
        %v4736 = vld [vmem:[%s4731 + $0x20] sm:$0xff]
        %v4737 = vld [vmem:[%s4731 + $0x28] sm:$0xff]
        %v4738 = vld [vmem:[%s4731 + $0x30] sm:$0xff]
        %v4739 = vld [vmem:[%s4731 + $0x38] sm:$0xff]
        %v4741 = vsel %vm282, %v4699, 0
        %v4744 = vsel %vm282, %v4700, 0
        %v4747 = vsel %vm282, %v4701, 0
        %v4750 = vsel %vm282, %v4702, 0
        %v4753 = vsel %vm282, %v4703, 0
        %v4756 = vsel %vm282, %v4704, 0
        %v4759 = vsel %vm282, %v4705, 0
        %v4762 = vsel %vm282, %v4706, 0
        %v4765 = vsel %vm282, %v4707, 0
        %v4768 = vsel %vm282, %v4708, 0
        %v4771 = vsel %vm282, %v4709, 0
        %v4774 = vsel %vm282, %v4710, 0
        %v4777 = vsel %vm282, %v4711, 0
        %v4780 = vsel %vm282, %v4712, 0
        %v4783 = vsel %vm282, %v4713, 0
        %v4786 = vsel %vm282, %v4714, 0
        %v4789 = vsel %vm282, %v4715, 0
        %v4792 = vsel %vm282, %v4716, 0
        %v4795 = vsel %vm282, %v4717, 0
        %v4798 = vsel %vm282, %v4718, 0
        %v4801 = vsel %vm282, %v4719, 0
        %v4804 = vsel %vm282, %v4720, 0
        %v4807 = vsel %vm282, %v4721, 0
        %v4810 = vsel %vm282, %v4722, 0
        %v4813 = vsel %vm282, %v4723, 0
        %v4816 = vsel %vm282, %v4724, 0
        %v4819 = vsel %vm282, %v4725, 0
        %v4822 = vsel %vm282, %v4726, 0
        %v4825 = vsel %vm282, %v4727, 0
        %v4828 = vsel %vm282, %v4728, 0
        %v4831 = vsel %vm282, %v4729, 0
        %v4834 = vsel %vm282, %v4730, 0
        %4836 = vmatprep.subr.mxu0 0.0
        %4837 = vmatpush1.msra.mxu0 0.0
        %4838 = vmatprep.subr.mxu0 0.0
        %4839 = vmatpush1.msra.mxu0 0.0
        %4840 = vmatprep.subr.mxu0 0.0
        %4841 = vmatpush1.msra.mxu0 0.0
        %4842 = vmatprep.subr.mxu0 0.0
        %4843 = vmatpush1.msra.mxu0 0.0
        %4844 = vmatprep.subr.mxu0 0.0
        %4845 = vmatpush1.msra.mxu0 0.0
        %4846 = vmatprep.subr.mxu0 0.0
        %4847 = vmatpush1.msra.mxu0 0.0
        %4848 = vmatprep.subr.mxu0 0.0
        %4849 = vmatpush1.msra.mxu0 0.0
        %4850 = vmatprep.subr.mxu0 0.0
        %4851 = vmatpush1.msra.mxu0 0.0
        %4852 = vmatprep.subr.mxu0 0.0
        %4853 = vmatpush1.msra.mxu0 %v4739
        %4854 = vmatprep.subr.mxu0 0.0
        %4855 = vmatpush1.msra.mxu0 %v4738
        %4856 = vmatprep.subr.mxu0 0.0
        %4857 = vmatpush1.msra.mxu0 %v4737
        %4858 = vmatprep.subr.mxu0 0.0
        %4859 = vmatpush1.msra.mxu0 %v4736
        %4860 = vmatprep.subr.mxu0 0.0
        %4861 = vmatpush1.msra.mxu0 %v4735
        %4862 = vmatprep.subr.mxu0 0.0
        %4863 = vmatpush1.msra.mxu0 %v4734
        %4864 = vmatprep.subr.mxu0 0.0
        %4865 = vmatpush1.msra.mxu0 %v4733
        %4866 = vmatprep.subr.mxu0 0.0
        %4867 = vmatpush1.msra.mxu0 %v4732
        %4868 = vmatprep.subr.mxu0 0.0
        %4869 = vmatpush2.msra.mxu0 0.0
        %4870 = vmatprep.subr.mxu0 0.0
        %4871 = vmatpush2.msra.mxu0 0.0
        %4872 = vmatprep.subr.mxu0 0.0
        %4873 = vmatpush2.msra.mxu0 0.0
        %4874 = vmatprep.subr.mxu0 0.0
        %4875 = vmatpush2.msra.mxu0 0.0
        %4876 = vmatprep.subr.mxu0 0.0
        %4877 = vmatpush2.msra.mxu0 0.0
        %4878 = vmatprep.subr.mxu0 0.0
        %4879 = vmatpush2.msra.mxu0 0.0
        %4880 = vmatprep.subr.mxu0 0.0
        %4881 = vmatpush2.msra.mxu0 0.0
        %4882 = vmatprep.subr.mxu0 0.0
        %4883 = vmatpush2.msra.mxu0 0.0
        %4884 = vmatprep.subr.mxu0 0.0
        %4885 = vmatpush2.msra.mxu0 0.0
        %4886 = vmatprep.subr.mxu0 0.0
        %4887 = vmatpush2.msra.mxu0 0.0
        %4888 = vmatprep.subr.mxu0 0.0
        %4889 = vmatpush2.msra.mxu0 0.0
        %4890 = vmatprep.subr.mxu0 0.0
        %4891 = vmatpush2.msra.mxu0 0.0
        %4892 = vmatprep.subr.mxu0 0.0
        %4893 = vmatpush2.msra.mxu0 0.0
        %4894 = vmatprep.subr.mxu0 0.0
        %4895 = vmatpush2.msra.mxu0 0.0
        %4896 = vmatprep.subr.mxu0 0.0
        %4897 = vmatpush2.msra.mxu0 0.0
        %4898 = vmatprep.subr.mxu0 0.0
        %4899 = vmatpush2.msra.mxu0 0.0
        %4900 = vmatprep.mubr.f32.mxu0 0.0
        %4901 = vmatmul.mubr.f32.gmra.mxu0 %v4741
        %v4902 = vpop.f32.mrf.mxu0
        %v4903 = vadd.f32 0.0, %v4902
        %v4904 = vpop.f32.mrf.mxu0
        %4905 = vmatprep.mubr.f32.mxu0 0.0
        %4906 = vmatmul.mubr.f32.gmra.mxu0 %v4744
        %v4907 = vpop.f32.mrf.mxu0
        %v4908 = vadd.f32 0.0, %v4907
        %v4909 = vpop.f32.mrf.mxu0
        %4910 = vmatprep.mubr.f32.mxu0 0.0
        %4911 = vmatmul.mubr.f32.gmra.mxu0 %v4747
        %v4912 = vpop.f32.mrf.mxu0
        %v4913 = vadd.f32 0.0, %v4912
        %v4914 = vpop.f32.mrf.mxu0
        %4915 = vmatprep.mubr.f32.mxu0 0.0
        %4916 = vmatmul.mubr.f32.gmra.mxu0 %v4750
        %v4917 = vpop.f32.mrf.mxu0
        %v4918 = vadd.f32 0.0, %v4917
        %v4919 = vpop.f32.mrf.mxu0
        %4920 = vmatprep.mubr.f32.mxu0 0.0
        %4921 = vmatmul.mubr.f32.gmra.mxu0 %v4753
        %v4922 = vpop.f32.mrf.mxu0
        %v4923 = vadd.f32 0.0, %v4922
        %v4924 = vpop.f32.mrf.mxu0
        %4925 = vmatprep.mubr.f32.mxu0 0.0
        %4926 = vmatmul.mubr.f32.gmra.mxu0 %v4756
        %v4927 = vpop.f32.mrf.mxu0
        %v4928 = vadd.f32 0.0, %v4927
        %v4929 = vpop.f32.mrf.mxu0
        %4930 = vmatprep.mubr.f32.mxu0 0.0
        %4931 = vmatmul.mubr.f32.gmra.mxu0 %v4759
        %v4932 = vpop.f32.mrf.mxu0
        %v4933 = vadd.f32 0.0, %v4932
        %v4934 = vpop.f32.mrf.mxu0
        %4935 = vmatprep.mubr.f32.mxu0 0.0
        %4936 = vmatmul.mubr.f32.gmra.mxu0 %v4762
        %v4937 = vpop.f32.mrf.mxu0
        %v4938 = vadd.f32 0.0, %v4937
        %v4939 = vpop.f32.mrf.mxu0
        %4940 = vmatprep.mubr.f32.mxu0 0.0
        %4941 = vmatmul.mubr.f32.gmra.mxu0 %v4765
        %v4942 = vpop.f32.mrf.mxu0
        %v4943 = vadd.f32 0.0, %v4942
        %v4944 = vpop.f32.mrf.mxu0
        %4945 = vmatprep.mubr.f32.mxu0 0.0
        %4946 = vmatmul.mubr.f32.gmra.mxu0 %v4768
        %v4947 = vpop.f32.mrf.mxu0
        %v4948 = vadd.f32 0.0, %v4947
        %v4949 = vpop.f32.mrf.mxu0
        %4950 = vmatprep.mubr.f32.mxu0 0.0
        %4951 = vmatmul.mubr.f32.gmra.mxu0 %v4771
        %v4952 = vpop.f32.mrf.mxu0
        %v4953 = vadd.f32 0.0, %v4952
        %v4954 = vpop.f32.mrf.mxu0
        %4955 = vmatprep.mubr.f32.mxu0 0.0
        %4956 = vmatmul.mubr.f32.gmra.mxu0 %v4774
        %v4957 = vpop.f32.mrf.mxu0
        %v4958 = vadd.f32 0.0, %v4957
        %v4959 = vpop.f32.mrf.mxu0
        %4960 = vmatprep.mubr.f32.mxu0 0.0
        %4961 = vmatmul.mubr.f32.gmra.mxu0 %v4777
        %v4962 = vpop.f32.mrf.mxu0
        %v4963 = vadd.f32 0.0, %v4962
        %v4964 = vpop.f32.mrf.mxu0
        %4965 = vmatprep.mubr.f32.mxu0 0.0
        %4966 = vmatmul.mubr.f32.gmra.mxu0 %v4780
        %v4967 = vpop.f32.mrf.mxu0
        %v4968 = vadd.f32 0.0, %v4967
        %v4969 = vpop.f32.mrf.mxu0
        %4970 = vmatprep.mubr.f32.mxu0 0.0
        %4971 = vmatmul.mubr.f32.gmra.mxu0 %v4783
        %v4972 = vpop.f32.mrf.mxu0
        %v4973 = vadd.f32 0.0, %v4972
        %v4974 = vpop.f32.mrf.mxu0
        %4975 = vmatprep.mubr.f32.mxu0 0.0
        %4976 = vmatmul.mubr.f32.gmra.mxu0 %v4786
        %v4977 = vpop.f32.mrf.mxu0
        %v4978 = vadd.f32 0.0, %v4977
        %v4979 = vpop.f32.mrf.mxu0
        %4980 = vmatprep.mubr.f32.mxu0 0.0
        %4981 = vmatmul.mubr.f32.gmra.mxu0 %v4789
        %v4982 = vpop.f32.mrf.mxu0
        %v4983 = vadd.f32 0.0, %v4982
        %v4984 = vpop.f32.mrf.mxu0
        %4985 = vmatprep.mubr.f32.mxu0 0.0
        %4986 = vmatmul.mubr.f32.gmra.mxu0 %v4792
        %v4987 = vpop.f32.mrf.mxu0
        %v4988 = vadd.f32 0.0, %v4987
        %v4989 = vpop.f32.mrf.mxu0
        %4990 = vmatprep.mubr.f32.mxu0 0.0
        %4991 = vmatmul.mubr.f32.gmra.mxu0 %v4795
        %v4992 = vpop.f32.mrf.mxu0
        %v4993 = vadd.f32 0.0, %v4992
        %v4994 = vpop.f32.mrf.mxu0
        %4995 = vmatprep.mubr.f32.mxu0 0.0
        %4996 = vmatmul.mubr.f32.gmra.mxu0 %v4798
        %v4997 = vpop.f32.mrf.mxu0
        %v4998 = vadd.f32 0.0, %v4997
        %v4999 = vpop.f32.mrf.mxu0
        %5000 = vmatprep.mubr.f32.mxu0 0.0
        %5001 = vmatmul.mubr.f32.gmra.mxu0 %v4801
        %v5002 = vpop.f32.mrf.mxu0
        %v5003 = vadd.f32 0.0, %v5002
        %v5004 = vpop.f32.mrf.mxu0
        %5005 = vmatprep.mubr.f32.mxu0 0.0
        %5006 = vmatmul.mubr.f32.gmra.mxu0 %v4804
        %v5007 = vpop.f32.mrf.mxu0
        %v5008 = vadd.f32 0.0, %v5007
        %v5009 = vpop.f32.mrf.mxu0
        %5010 = vmatprep.mubr.f32.mxu0 0.0
        %5011 = vmatmul.mubr.f32.gmra.mxu0 %v4807
        %v5012 = vpop.f32.mrf.mxu0
        %v5013 = vadd.f32 0.0, %v5012
        %v5014 = vpop.f32.mrf.mxu0
        %5015 = vmatprep.mubr.f32.mxu0 0.0
        %5016 = vmatmul.mubr.f32.gmra.mxu0 %v4810
        %v5017 = vpop.f32.mrf.mxu0
        %v5018 = vadd.f32 0.0, %v5017
        %v5019 = vpop.f32.mrf.mxu0
        %5020 = vmatprep.mubr.f32.mxu0 0.0
        %5021 = vmatmul.mubr.f32.gmra.mxu0 %v4813
        %v5022 = vpop.f32.mrf.mxu0
        %v5023 = vadd.f32 0.0, %v5022
        %v5024 = vpop.f32.mrf.mxu0
        %5025 = vmatprep.mubr.f32.mxu0 0.0
        %5026 = vmatmul.mubr.f32.gmra.mxu0 %v4816
        %v5027 = vpop.f32.mrf.mxu0
        %v5028 = vadd.f32 0.0, %v5027
        %v5029 = vpop.f32.mrf.mxu0
        %5030 = vmatprep.mubr.f32.mxu0 0.0
        %5031 = vmatmul.mubr.f32.gmra.mxu0 %v4819
        %v5032 = vpop.f32.mrf.mxu0
        %v5033 = vadd.f32 0.0, %v5032
        %v5034 = vpop.f32.mrf.mxu0
        %5035 = vmatprep.mubr.f32.mxu0 0.0
        %5036 = vmatmul.mubr.f32.gmra.mxu0 %v4822
        %v5037 = vpop.f32.mrf.mxu0
        %v5038 = vadd.f32 0.0, %v5037
        %v5039 = vpop.f32.mrf.mxu0
        %5040 = vmatprep.mubr.f32.mxu0 0.0
        %5041 = vmatmul.mubr.f32.gmra.mxu0 %v4825
        %v5042 = vpop.f32.mrf.mxu0
        %v5043 = vadd.f32 0.0, %v5042
        %v5044 = vpop.f32.mrf.mxu0
        %5045 = vmatprep.mubr.f32.mxu0 0.0
        %5046 = vmatmul.mubr.f32.gmra.mxu0 %v4828
        %v5047 = vpop.f32.mrf.mxu0
        %v5048 = vadd.f32 0.0, %v5047
        %v5049 = vpop.f32.mrf.mxu0
        %5050 = vmatprep.mubr.f32.mxu0 0.0
        %5051 = vmatmul.mubr.f32.gmra.mxu0 %v4831
        %v5052 = vpop.f32.mrf.mxu0
        %v5053 = vadd.f32 0.0, %v5052
        %v5054 = vpop.f32.mrf.mxu0
        %5055 = vmatprep.mubr.f32.mxu0 0.0
        %5056 = vmatmul.mubr.f32.gmra.mxu0 %v4834
        %v5057 = vpop.f32.mrf.mxu0
        %v5058 = vadd.f32 0.0, %v5057
        %v5059 = vpop.f32.mrf.mxu0
        %5060 = vdwg.mxu0
        %v5062 = vsel %vm282, %v4659, 0
        %v5065 = vsel %vm282, %v4660, 0
        %v5068 = vsel %vm282, %v4661, 0
        %v5071 = vsel %vm282, %v4662, 0
        %v5074 = vsel %vm282, %v4663, 0
        %v5077 = vsel %vm282, %v4664, 0
        %v5080 = vsel %vm282, %v4665, 0
        %v5083 = vsel %vm282, %v4666, 0
        %v5086 = vsel %vm282, %v4667, 0
        %v5089 = vsel %vm282, %v4668, 0
        %v5092 = vsel %vm282, %v4669, 0
        %v5095 = vsel %vm282, %v4670, 0
        %v5098 = vsel %vm282, %v4671, 0
        %v5101 = vsel %vm282, %v4672, 0
        %v5104 = vsel %vm282, %v4673, 0
        %v5107 = vsel %vm282, %v4674, 0
        %v5110 = vsel %vm282, %v4675, 0
        %v5113 = vsel %vm282, %v4676, 0
        %v5116 = vsel %vm282, %v4677, 0
        %v5119 = vsel %vm282, %v4678, 0
        %v5122 = vsel %vm282, %v4679, 0
        %v5125 = vsel %vm282, %v4680, 0
        %v5128 = vsel %vm282, %v4681, 0
        %v5131 = vsel %vm282, %v4682, 0
        %v5134 = vsel %vm282, %v4683, 0
        %v5137 = vsel %vm282, %v4684, 0
        %v5140 = vsel %vm282, %v4685, 0
        %v5143 = vsel %vm282, %v4686, 0
        %v5146 = vsel %vm282, %v4687, 0
        %v5149 = vsel %vm282, %v4688, 0
        %v5152 = vsel %vm282, %v4689, 0
        %v5155 = vsel %vm282, %v4690, 0
        %5157 = vmatprep.subr.mxu0 0.0
        %5158 = vmatpush1.msra.mxu0 0.0
        %5159 = vmatprep.subr.mxu0 0.0
        %5160 = vmatpush1.msra.mxu0 0.0
        %5161 = vmatprep.subr.mxu0 0.0
        %5162 = vmatpush1.msra.mxu0 0.0
        %5163 = vmatprep.subr.mxu0 0.0
        %5164 = vmatpush1.msra.mxu0 0.0
        %5165 = vmatprep.subr.mxu0 0.0
        %5166 = vmatpush1.msra.mxu0 0.0
        %5167 = vmatprep.subr.mxu0 0.0
        %5168 = vmatpush1.msra.mxu0 0.0
        %5169 = vmatprep.subr.mxu0 0.0
        %5170 = vmatpush1.msra.mxu0 0.0
        %5171 = vmatprep.subr.mxu0 0.0
        %5172 = vmatpush1.msra.mxu0 0.0
        %5173 = vmatprep.subr.mxu0 0.0
        %5174 = vmatpush1.msra.mxu0 %v4698
        %5175 = vmatprep.subr.mxu0 0.0
        %5176 = vmatpush1.msra.mxu0 %v4697
        %5177 = vmatprep.subr.mxu0 0.0
        %5178 = vmatpush1.msra.mxu0 %v4696
        %5179 = vmatprep.subr.mxu0 0.0
        %5180 = vmatpush1.msra.mxu0 %v4695
        %5181 = vmatprep.subr.mxu0 0.0
        %5182 = vmatpush1.msra.mxu0 %v4694
        %5183 = vmatprep.subr.mxu0 0.0
        %5184 = vmatpush1.msra.mxu0 %v4693
        %5185 = vmatprep.subr.mxu0 0.0
        %5186 = vmatpush1.msra.mxu0 %v4692
        %5187 = vmatprep.subr.mxu0 0.0
        %5188 = vmatpush1.msra.mxu0 %v4691
        %5189 = vmatprep.subr.mxu0 0.0
        %5190 = vmatpush2.msra.mxu0 0.0
        %5191 = vmatprep.subr.mxu0 0.0
        %5192 = vmatpush2.msra.mxu0 0.0
        %5193 = vmatprep.subr.mxu0 0.0
        %5194 = vmatpush2.msra.mxu0 0.0
        %5195 = vmatprep.subr.mxu0 0.0
        %5196 = vmatpush2.msra.mxu0 0.0
        %5197 = vmatprep.subr.mxu0 0.0
        %5198 = vmatpush2.msra.mxu0 0.0
        %5199 = vmatprep.subr.mxu0 0.0
        %5200 = vmatpush2.msra.mxu0 0.0
        %5201 = vmatprep.subr.mxu0 0.0
        %5202 = vmatpush2.msra.mxu0 0.0
        %5203 = vmatprep.subr.mxu0 0.0
        %5204 = vmatpush2.msra.mxu0 0.0
        %5205 = vmatprep.subr.mxu0 0.0
        %5206 = vmatpush2.msra.mxu0 0.0
        %5207 = vmatprep.subr.mxu0 0.0
        %5208 = vmatpush2.msra.mxu0 0.0
        %5209 = vmatprep.subr.mxu0 0.0
        %5210 = vmatpush2.msra.mxu0 0.0
        %5211 = vmatprep.subr.mxu0 0.0
        %5212 = vmatpush2.msra.mxu0 0.0
        %5213 = vmatprep.subr.mxu0 0.0
        %5214 = vmatpush2.msra.mxu0 0.0
        %5215 = vmatprep.subr.mxu0 0.0
        %5216 = vmatpush2.msra.mxu0 0.0
        %5217 = vmatprep.subr.mxu0 0.0
        %5218 = vmatpush2.msra.mxu0 0.0
        %5219 = vmatprep.subr.mxu0 0.0
        %5220 = vmatpush2.msra.mxu0 0.0
        %5221 = vmatprep.mubr.f32.mxu0 0.0
        %5222 = vmatmul.mubr.f32.gmra.mxu0 %v5062
        %v5223 = vpop.f32.mrf.mxu0
        %v5224 = vadd.f32 %v4903, %v5223
        %v5225 = vpop.f32.mrf.mxu0
        %5226 = vmatprep.mubr.f32.mxu0 0.0
        %5227 = vmatmul.mubr.f32.gmra.mxu0 %v5065
        %v5228 = vpop.f32.mrf.mxu0
        %v5229 = vadd.f32 %v4908, %v5228
        %v5230 = vpop.f32.mrf.mxu0
        %5231 = vmatprep.mubr.f32.mxu0 0.0
        %5232 = vmatmul.mubr.f32.gmra.mxu0 %v5068
        %v5233 = vpop.f32.mrf.mxu0
        %v5234 = vadd.f32 %v4913, %v5233
        %v5235 = vpop.f32.mrf.mxu0
        %5236 = vmatprep.mubr.f32.mxu0 0.0
        %5237 = vmatmul.mubr.f32.gmra.mxu0 %v5071
        %v5238 = vpop.f32.mrf.mxu0
        %v5239 = vadd.f32 %v4918, %v5238
        %v5240 = vpop.f32.mrf.mxu0
        %5241 = vmatprep.mubr.f32.mxu0 0.0
        %5242 = vmatmul.mubr.f32.gmra.mxu0 %v5074
        %v5243 = vpop.f32.mrf.mxu0
        %v5244 = vadd.f32 %v4923, %v5243
        %v5245 = vpop.f32.mrf.mxu0
        %5246 = vmatprep.mubr.f32.mxu0 0.0
        %5247 = vmatmul.mubr.f32.gmra.mxu0 %v5077
        %v5248 = vpop.f32.mrf.mxu0
        %v5249 = vadd.f32 %v4928, %v5248
        %v5250 = vpop.f32.mrf.mxu0
        %5251 = vmatprep.mubr.f32.mxu0 0.0
        %5252 = vmatmul.mubr.f32.gmra.mxu0 %v5080
        %v5253 = vpop.f32.mrf.mxu0
        %v5254 = vadd.f32 %v4933, %v5253
        %v5255 = vpop.f32.mrf.mxu0
        %5256 = vmatprep.mubr.f32.mxu0 0.0
        %5257 = vmatmul.mubr.f32.gmra.mxu0 %v5083
        %v5258 = vpop.f32.mrf.mxu0
        %v5259 = vadd.f32 %v4938, %v5258
        %v5260 = vpop.f32.mrf.mxu0
        %5261 = vmatprep.mubr.f32.mxu0 0.0
        %5262 = vmatmul.mubr.f32.gmra.mxu0 %v5086
        %v5263 = vpop.f32.mrf.mxu0
        %v5264 = vadd.f32 %v4943, %v5263
        %v5265 = vpop.f32.mrf.mxu0
        %5266 = vmatprep.mubr.f32.mxu0 0.0
        %5267 = vmatmul.mubr.f32.gmra.mxu0 %v5089
        %v5268 = vpop.f32.mrf.mxu0
        %v5269 = vadd.f32 %v4948, %v5268
        %v5270 = vpop.f32.mrf.mxu0
        %5271 = vmatprep.mubr.f32.mxu0 0.0
        %5272 = vmatmul.mubr.f32.gmra.mxu0 %v5092
        %v5273 = vpop.f32.mrf.mxu0
        %v5274 = vadd.f32 %v4953, %v5273
        %v5275 = vpop.f32.mrf.mxu0
        %5276 = vmatprep.mubr.f32.mxu0 0.0
        %5277 = vmatmul.mubr.f32.gmra.mxu0 %v5095
        %v5278 = vpop.f32.mrf.mxu0
        %v5279 = vadd.f32 %v4958, %v5278
        %v5280 = vpop.f32.mrf.mxu0
        %5281 = vmatprep.mubr.f32.mxu0 0.0
        %5282 = vmatmul.mubr.f32.gmra.mxu0 %v5098
        %v5283 = vpop.f32.mrf.mxu0
        %v5284 = vadd.f32 %v4963, %v5283
        %v5285 = vpop.f32.mrf.mxu0
        %5286 = vmatprep.mubr.f32.mxu0 0.0
        %5287 = vmatmul.mubr.f32.gmra.mxu0 %v5101
        %v5288 = vpop.f32.mrf.mxu0
        %v5289 = vadd.f32 %v4968, %v5288
        %v5290 = vpop.f32.mrf.mxu0
        %5291 = vmatprep.mubr.f32.mxu0 0.0
        %5292 = vmatmul.mubr.f32.gmra.mxu0 %v5104
        %v5293 = vpop.f32.mrf.mxu0
        %v5294 = vadd.f32 %v4973, %v5293
        %v5295 = vpop.f32.mrf.mxu0
        %5296 = vmatprep.mubr.f32.mxu0 0.0
        %5297 = vmatmul.mubr.f32.gmra.mxu0 %v5107
        %v5298 = vpop.f32.mrf.mxu0
        %v5299 = vadd.f32 %v4978, %v5298
        %v5300 = vpop.f32.mrf.mxu0
        %5301 = vmatprep.mubr.f32.mxu0 0.0
        %5302 = vmatmul.mubr.f32.gmra.mxu0 %v5110
        %v5303 = vpop.f32.mrf.mxu0
        %v5304 = vadd.f32 %v4983, %v5303
        %v5305 = vpop.f32.mrf.mxu0
        %5306 = vmatprep.mubr.f32.mxu0 0.0
        %5307 = vmatmul.mubr.f32.gmra.mxu0 %v5113
        %v5308 = vpop.f32.mrf.mxu0
        %v5309 = vadd.f32 %v4988, %v5308
        %v5310 = vpop.f32.mrf.mxu0
        %5311 = vmatprep.mubr.f32.mxu0 0.0
        %5312 = vmatmul.mubr.f32.gmra.mxu0 %v5116
        %v5313 = vpop.f32.mrf.mxu0
        %v5314 = vadd.f32 %v4993, %v5313
        %v5315 = vpop.f32.mrf.mxu0
        %5316 = vmatprep.mubr.f32.mxu0 0.0
        %5317 = vmatmul.mubr.f32.gmra.mxu0 %v5119
        %v5318 = vpop.f32.mrf.mxu0
        %v5319 = vadd.f32 %v4998, %v5318
        %v5320 = vpop.f32.mrf.mxu0
        %5321 = vmatprep.mubr.f32.mxu0 0.0
        %5322 = vmatmul.mubr.f32.gmra.mxu0 %v5122
        %v5323 = vpop.f32.mrf.mxu0
        %v5324 = vadd.f32 %v5003, %v5323
        %v5325 = vpop.f32.mrf.mxu0
        %5326 = vmatprep.mubr.f32.mxu0 0.0
        %5327 = vmatmul.mubr.f32.gmra.mxu0 %v5125
        %v5328 = vpop.f32.mrf.mxu0
        %v5329 = vadd.f32 %v5008, %v5328
        %v5330 = vpop.f32.mrf.mxu0
        %5331 = vmatprep.mubr.f32.mxu0 0.0
        %5332 = vmatmul.mubr.f32.gmra.mxu0 %v5128
        %v5333 = vpop.f32.mrf.mxu0
        %v5334 = vadd.f32 %v5013, %v5333
        %v5335 = vpop.f32.mrf.mxu0
        %5336 = vmatprep.mubr.f32.mxu0 0.0
        %5337 = vmatmul.mubr.f32.gmra.mxu0 %v5131
        %v5338 = vpop.f32.mrf.mxu0
        %v5339 = vadd.f32 %v5018, %v5338
        %v5340 = vpop.f32.mrf.mxu0
        %5341 = vmatprep.mubr.f32.mxu0 0.0
        %5342 = vmatmul.mubr.f32.gmra.mxu0 %v5134
        %v5343 = vpop.f32.mrf.mxu0
        %v5344 = vadd.f32 %v5023, %v5343
        %v5345 = vpop.f32.mrf.mxu0
        %5346 = vmatprep.mubr.f32.mxu0 0.0
        %5347 = vmatmul.mubr.f32.gmra.mxu0 %v5137
        %v5348 = vpop.f32.mrf.mxu0
        %v5349 = vadd.f32 %v5028, %v5348
        %v5350 = vpop.f32.mrf.mxu0
        %5351 = vmatprep.mubr.f32.mxu0 0.0
        %5352 = vmatmul.mubr.f32.gmra.mxu0 %v5140
        %v5353 = vpop.f32.mrf.mxu0
        %v5354 = vadd.f32 %v5033, %v5353
        %v5355 = vpop.f32.mrf.mxu0
        %5356 = vmatprep.mubr.f32.mxu0 0.0
        %5357 = vmatmul.mubr.f32.gmra.mxu0 %v5143
        %v5358 = vpop.f32.mrf.mxu0
        %v5359 = vadd.f32 %v5038, %v5358
        %v5360 = vpop.f32.mrf.mxu0
        %5361 = vmatprep.mubr.f32.mxu0 0.0
        %5362 = vmatmul.mubr.f32.gmra.mxu0 %v5146
        %v5363 = vpop.f32.mrf.mxu0
        %v5364 = vadd.f32 %v5043, %v5363
        %v5365 = vpop.f32.mrf.mxu0
        %5366 = vmatprep.mubr.f32.mxu0 0.0
        %5367 = vmatmul.mubr.f32.gmra.mxu0 %v5149
        %v5368 = vpop.f32.mrf.mxu0
        %v5369 = vadd.f32 %v5048, %v5368
        %v5370 = vpop.f32.mrf.mxu0
        %5371 = vmatprep.mubr.f32.mxu0 0.0
        %5372 = vmatmul.mubr.f32.gmra.mxu0 %v5152
        %v5373 = vpop.f32.mrf.mxu0
        %v5374 = vadd.f32 %v5053, %v5373
        %v5375 = vpop.f32.mrf.mxu0
        %5376 = vmatprep.mubr.f32.mxu0 0.0
        %5377 = vmatmul.mubr.f32.gmra.mxu0 %v5155
        %v5378 = vpop.f32.mrf.mxu0
        %v5379 = vadd.f32 %v5058, %v5378
        %v5380 = vpop.f32.mrf.mxu0
        %5381 = vdwg.mxu0
        %v5382 = vld [vmem:[#allocation2 + $0x2] sm:$0xff]
        %v5383 = vld [vmem:[#allocation2 + $0xa] sm:$0xff]
        %v5384 = vld [vmem:[#allocation2 + $0x1a] sm:$0xff]
        %v5385 = vld [vmem:[#allocation2 + $0x22] sm:$0xff]
        %v5386 = vld [vmem:[#allocation2 + $0x32] sm:$0xff]
        %v5387 = vld [vmem:[#allocation2 + $0x3a] sm:$0xff]
        %v5388 = vld [vmem:[#allocation2 + $0x4a] sm:$0xff]
        %v5389 = vld [vmem:[#allocation2 + $0x52] sm:$0xff]
        %v5390 = vld [vmem:[#allocation2 + $0x62] sm:$0xff]
        %v5391 = vld [vmem:[#allocation2 + $0x6a] sm:$0xff]
        %v5392 = vld [vmem:[#allocation2 + $0x7a] sm:$0xff]
        %v5393 = vld [vmem:[#allocation2 + $0x82] sm:$0xff]
        %v5394 = vld [vmem:[#allocation2 + $0x92] sm:$0xff]
        %v5395 = vld [vmem:[#allocation2 + $0x9a] sm:$0xff]
        %v5396 = vld [vmem:[#allocation2 + $0xaa] sm:$0xff]
        %v5397 = vld [vmem:[#allocation2 + $0xb2] sm:$0xff]
        %v5398 = vld [vmem:[#allocation2 + $0xc2] sm:$0xff]
        %v5399 = vld [vmem:[#allocation2 + $0xca] sm:$0xff]
        %v5400 = vld [vmem:[#allocation2 + $0xda] sm:$0xff]
        %v5401 = vld [vmem:[#allocation2 + $0xe2] sm:$0xff]
        %v5402 = vld [vmem:[#allocation2 + $0xf2] sm:$0xff]
        %v5403 = vld [vmem:[#allocation2 + $0xfa] sm:$0xff]
        %v5404 = vld [vmem:[#allocation2 + $0x10a] sm:$0xff]
        %v5405 = vld [vmem:[#allocation2 + $0x112] sm:$0xff]
        %v5406 = vld [vmem:[#allocation2 + $0x122] sm:$0xff]
        %v5407 = vld [vmem:[#allocation2 + $0x12a] sm:$0xff]
        %v5408 = vld [vmem:[#allocation2 + $0x13a] sm:$0xff]
        %v5409 = vld [vmem:[#allocation2 + $0x142] sm:$0xff]
        %v5410 = vld [vmem:[#allocation2 + $0x152] sm:$0xff]
        %v5411 = vld [vmem:[#allocation2 + $0x15a] sm:$0xff]
        %v5412 = vld [vmem:[#allocation2 + $0x16a] sm:$0xff]
        %v5413 = vld [vmem:[#allocation2 + $0x172] sm:$0xff]
        %s5414 = scalar_lea.vmem %s2, 128
        %v5415 = vld [vmem:[%s5414] sm:$0xff]
        %v5416 = vld [vmem:[%s5414 + $0x8] sm:$0xff]
        %v5417 = vld [vmem:[%s5414 + $0x10] sm:$0xff]
        %v5418 = vld [vmem:[%s5414 + $0x18] sm:$0xff]
        %v5419 = vld [vmem:[%s5414 + $0x20] sm:$0xff]
        %v5420 = vld [vmem:[%s5414 + $0x28] sm:$0xff]
        %v5421 = vld [vmem:[%s5414 + $0x30] sm:$0xff]
        %v5422 = vld [vmem:[%s5414 + $0x38] sm:$0xff]
        %v5424 = vsel %vm282, %v5382, 0
        %v5427 = vsel %vm282, %v5383, 0
        %v5430 = vsel %vm282, %v5384, 0
        %v5433 = vsel %vm282, %v5385, 0
        %v5436 = vsel %vm282, %v5386, 0
        %v5439 = vsel %vm282, %v5387, 0
        %v5442 = vsel %vm282, %v5388, 0
        %v5445 = vsel %vm282, %v5389, 0
        %v5448 = vsel %vm282, %v5390, 0
        %v5451 = vsel %vm282, %v5391, 0
        %v5454 = vsel %vm282, %v5392, 0
        %v5457 = vsel %vm282, %v5393, 0
        %v5460 = vsel %vm282, %v5394, 0
        %v5463 = vsel %vm282, %v5395, 0
        %v5466 = vsel %vm282, %v5396, 0
        %v5469 = vsel %vm282, %v5397, 0
        %v5472 = vsel %vm282, %v5398, 0
        %v5475 = vsel %vm282, %v5399, 0
        %v5478 = vsel %vm282, %v5400, 0
        %v5481 = vsel %vm282, %v5401, 0
        %v5484 = vsel %vm282, %v5402, 0
        %v5487 = vsel %vm282, %v5403, 0
        %v5490 = vsel %vm282, %v5404, 0
        %v5493 = vsel %vm282, %v5405, 0
        %v5496 = vsel %vm282, %v5406, 0
        %v5499 = vsel %vm282, %v5407, 0
        %v5502 = vsel %vm282, %v5408, 0
        %v5505 = vsel %vm282, %v5409, 0
        %v5508 = vsel %vm282, %v5410, 0
        %v5511 = vsel %vm282, %v5411, 0
        %v5514 = vsel %vm282, %v5412, 0
        %v5517 = vsel %vm282, %v5413, 0
        %5519 = vmatprep.subr.mxu0 0.0
        %5520 = vmatpush1.msra.mxu0 0.0
        %5521 = vmatprep.subr.mxu0 0.0
        %5522 = vmatpush1.msra.mxu0 0.0
        %5523 = vmatprep.subr.mxu0 0.0
        %5524 = vmatpush1.msra.mxu0 0.0
        %5525 = vmatprep.subr.mxu0 0.0
        %5526 = vmatpush1.msra.mxu0 0.0
        %5527 = vmatprep.subr.mxu0 0.0
        %5528 = vmatpush1.msra.mxu0 0.0
        %5529 = vmatprep.subr.mxu0 0.0
        %5530 = vmatpush1.msra.mxu0 0.0
        %5531 = vmatprep.subr.mxu0 0.0
        %5532 = vmatpush1.msra.mxu0 0.0
        %5533 = vmatprep.subr.mxu0 0.0
        %5534 = vmatpush1.msra.mxu0 0.0
        %5535 = vmatprep.subr.mxu0 0.0
        %5536 = vmatpush1.msra.mxu0 %v5422
        %5537 = vmatprep.subr.mxu0 0.0
        %5538 = vmatpush1.msra.mxu0 %v5421
        %5539 = vmatprep.subr.mxu0 0.0
        %5540 = vmatpush1.msra.mxu0 %v5420
        %5541 = vmatprep.subr.mxu0 0.0
        %5542 = vmatpush1.msra.mxu0 %v5419
        %5543 = vmatprep.subr.mxu0 0.0
        %5544 = vmatpush1.msra.mxu0 %v5418
        %5545 = vmatprep.subr.mxu0 0.0
        %5546 = vmatpush1.msra.mxu0 %v5417
        %5547 = vmatprep.subr.mxu0 0.0
        %5548 = vmatpush1.msra.mxu0 %v5416
        %5549 = vmatprep.subr.mxu0 0.0
        %5550 = vmatpush1.msra.mxu0 %v5415
        %5551 = vmatprep.subr.mxu0 0.0
        %5552 = vmatpush2.msra.mxu0 0.0
        %5553 = vmatprep.subr.mxu0 0.0
        %5554 = vmatpush2.msra.mxu0 0.0
        %5555 = vmatprep.subr.mxu0 0.0
        %5556 = vmatpush2.msra.mxu0 0.0
        %5557 = vmatprep.subr.mxu0 0.0
        %5558 = vmatpush2.msra.mxu0 0.0
        %5559 = vmatprep.subr.mxu0 0.0
        %5560 = vmatpush2.msra.mxu0 0.0
        %5561 = vmatprep.subr.mxu0 0.0
        %5562 = vmatpush2.msra.mxu0 0.0
        %5563 = vmatprep.subr.mxu0 0.0
        %5564 = vmatpush2.msra.mxu0 0.0
        %5565 = vmatprep.subr.mxu0 0.0
        %5566 = vmatpush2.msra.mxu0 0.0
        %5567 = vmatprep.subr.mxu0 0.0
        %5568 = vmatpush2.msra.mxu0 0.0
        %5569 = vmatprep.subr.mxu0 0.0
        %5570 = vmatpush2.msra.mxu0 0.0
        %5571 = vmatprep.subr.mxu0 0.0
        %5572 = vmatpush2.msra.mxu0 0.0
        %5573 = vmatprep.subr.mxu0 0.0
        %5574 = vmatpush2.msra.mxu0 0.0
        %5575 = vmatprep.subr.mxu0 0.0
        %5576 = vmatpush2.msra.mxu0 0.0
        %5577 = vmatprep.subr.mxu0 0.0
        %5578 = vmatpush2.msra.mxu0 0.0
        %5579 = vmatprep.subr.mxu0 0.0
        %5580 = vmatpush2.msra.mxu0 0.0
        %5581 = vmatprep.subr.mxu0 0.0
        %5582 = vmatpush2.msra.mxu0 0.0
        %5583 = vmatprep.mubr.f32.mxu0 0.0
        %5584 = vmatmul.mubr.f32.gmra.mxu0 %v5424
        %v5585 = vpop.f32.mrf.mxu0
        %v5586 = vadd.f32 0.0, %v5585
        %v5587 = vpop.f32.mrf.mxu0
        %5588 = vmatprep.mubr.f32.mxu0 0.0
        %5589 = vmatmul.mubr.f32.gmra.mxu0 %v5427
        %v5590 = vpop.f32.mrf.mxu0
        %v5591 = vadd.f32 0.0, %v5590
        %v5592 = vpop.f32.mrf.mxu0
        %5593 = vmatprep.mubr.f32.mxu0 0.0
        %5594 = vmatmul.mubr.f32.gmra.mxu0 %v5430
        %v5595 = vpop.f32.mrf.mxu0
        %v5596 = vadd.f32 0.0, %v5595
        %v5597 = vpop.f32.mrf.mxu0
        %5598 = vmatprep.mubr.f32.mxu0 0.0
        %5599 = vmatmul.mubr.f32.gmra.mxu0 %v5433
        %v5600 = vpop.f32.mrf.mxu0
        %v5601 = vadd.f32 0.0, %v5600
        %v5602 = vpop.f32.mrf.mxu0
        %5603 = vmatprep.mubr.f32.mxu0 0.0
        %5604 = vmatmul.mubr.f32.gmra.mxu0 %v5436
        %v5605 = vpop.f32.mrf.mxu0
        %v5606 = vadd.f32 0.0, %v5605
        %v5607 = vpop.f32.mrf.mxu0
        %5608 = vmatprep.mubr.f32.mxu0 0.0
        %5609 = vmatmul.mubr.f32.gmra.mxu0 %v5439
        %v5610 = vpop.f32.mrf.mxu0
        %v5611 = vadd.f32 0.0, %v5610
        %v5612 = vpop.f32.mrf.mxu0
        %5613 = vmatprep.mubr.f32.mxu0 0.0
        %5614 = vmatmul.mubr.f32.gmra.mxu0 %v5442
        %v5615 = vpop.f32.mrf.mxu0
        %v5616 = vadd.f32 0.0, %v5615
        %v5617 = vpop.f32.mrf.mxu0
        %5618 = vmatprep.mubr.f32.mxu0 0.0
        %5619 = vmatmul.mubr.f32.gmra.mxu0 %v5445
        %v5620 = vpop.f32.mrf.mxu0
        %v5621 = vadd.f32 0.0, %v5620
        %v5622 = vpop.f32.mrf.mxu0
        %5623 = vmatprep.mubr.f32.mxu0 0.0
        %5624 = vmatmul.mubr.f32.gmra.mxu0 %v5448
        %v5625 = vpop.f32.mrf.mxu0
        %v5626 = vadd.f32 0.0, %v5625
        %v5627 = vpop.f32.mrf.mxu0
        %5628 = vmatprep.mubr.f32.mxu0 0.0
        %5629 = vmatmul.mubr.f32.gmra.mxu0 %v5451
        %v5630 = vpop.f32.mrf.mxu0
        %v5631 = vadd.f32 0.0, %v5630
        %v5632 = vpop.f32.mrf.mxu0
        %5633 = vmatprep.mubr.f32.mxu0 0.0
        %5634 = vmatmul.mubr.f32.gmra.mxu0 %v5454
        %v5635 = vpop.f32.mrf.mxu0
        %v5636 = vadd.f32 0.0, %v5635
        %v5637 = vpop.f32.mrf.mxu0
        %5638 = vmatprep.mubr.f32.mxu0 0.0
        %5639 = vmatmul.mubr.f32.gmra.mxu0 %v5457
        %v5640 = vpop.f32.mrf.mxu0
        %v5641 = vadd.f32 0.0, %v5640
        %v5642 = vpop.f32.mrf.mxu0
        %5643 = vmatprep.mubr.f32.mxu0 0.0
        %5644 = vmatmul.mubr.f32.gmra.mxu0 %v5460
        %v5645 = vpop.f32.mrf.mxu0
        %v5646 = vadd.f32 0.0, %v5645
        %v5647 = vpop.f32.mrf.mxu0
        %5648 = vmatprep.mubr.f32.mxu0 0.0
        %5649 = vmatmul.mubr.f32.gmra.mxu0 %v5463
        %v5650 = vpop.f32.mrf.mxu0
        %v5651 = vadd.f32 0.0, %v5650
        %v5652 = vpop.f32.mrf.mxu0
        %5653 = vmatprep.mubr.f32.mxu0 0.0
        %5654 = vmatmul.mubr.f32.gmra.mxu0 %v5466
        %v5655 = vpop.f32.mrf.mxu0
        %v5656 = vadd.f32 0.0, %v5655
        %v5657 = vpop.f32.mrf.mxu0
        %5658 = vmatprep.mubr.f32.mxu0 0.0
        %5659 = vmatmul.mubr.f32.gmra.mxu0 %v5469
        %v5660 = vpop.f32.mrf.mxu0
        %v5661 = vadd.f32 0.0, %v5660
        %v5662 = vpop.f32.mrf.mxu0
        %5663 = vmatprep.mubr.f32.mxu0 0.0
        %5664 = vmatmul.mubr.f32.gmra.mxu0 %v5472
        %v5665 = vpop.f32.mrf.mxu0
        %v5666 = vadd.f32 0.0, %v5665
        %v5667 = vpop.f32.mrf.mxu0
        %5668 = vmatprep.mubr.f32.mxu0 0.0
        %5669 = vmatmul.mubr.f32.gmra.mxu0 %v5475
        %v5670 = vpop.f32.mrf.mxu0
        %v5671 = vadd.f32 0.0, %v5670
        %v5672 = vpop.f32.mrf.mxu0
        %5673 = vmatprep.mubr.f32.mxu0 0.0
        %5674 = vmatmul.mubr.f32.gmra.mxu0 %v5478
        %v5675 = vpop.f32.mrf.mxu0
        %v5676 = vadd.f32 0.0, %v5675
        %v5677 = vpop.f32.mrf.mxu0
        %5678 = vmatprep.mubr.f32.mxu0 0.0
        %5679 = vmatmul.mubr.f32.gmra.mxu0 %v5481
        %v5680 = vpop.f32.mrf.mxu0
        %v5681 = vadd.f32 0.0, %v5680
        %v5682 = vpop.f32.mrf.mxu0
        %5683 = vmatprep.mubr.f32.mxu0 0.0
        %5684 = vmatmul.mubr.f32.gmra.mxu0 %v5484
        %v5685 = vpop.f32.mrf.mxu0
        %v5686 = vadd.f32 0.0, %v5685
        %v5687 = vpop.f32.mrf.mxu0
        %5688 = vmatprep.mubr.f32.mxu0 0.0
        %5689 = vmatmul.mubr.f32.gmra.mxu0 %v5487
        %v5690 = vpop.f32.mrf.mxu0
        %v5691 = vadd.f32 0.0, %v5690
        %v5692 = vpop.f32.mrf.mxu0
        %5693 = vmatprep.mubr.f32.mxu0 0.0
        %5694 = vmatmul.mubr.f32.gmra.mxu0 %v5490
        %v5695 = vpop.f32.mrf.mxu0
        %v5696 = vadd.f32 0.0, %v5695
        %v5697 = vpop.f32.mrf.mxu0
        %5698 = vmatprep.mubr.f32.mxu0 0.0
        %5699 = vmatmul.mubr.f32.gmra.mxu0 %v5493
        %v5700 = vpop.f32.mrf.mxu0
        %v5701 = vadd.f32 0.0, %v5700
        %v5702 = vpop.f32.mrf.mxu0
        %5703 = vmatprep.mubr.f32.mxu0 0.0
        %5704 = vmatmul.mubr.f32.gmra.mxu0 %v5496
        %v5705 = vpop.f32.mrf.mxu0
        %v5706 = vadd.f32 0.0, %v5705
        %v5707 = vpop.f32.mrf.mxu0
        %5708 = vmatprep.mubr.f32.mxu0 0.0
        %5709 = vmatmul.mubr.f32.gmra.mxu0 %v5499
        %v5710 = vpop.f32.mrf.mxu0
        %v5711 = vadd.f32 0.0, %v5710
        %v5712 = vpop.f32.mrf.mxu0
        %5713 = vmatprep.mubr.f32.mxu0 0.0
        %5714 = vmatmul.mubr.f32.gmra.mxu0 %v5502
        %v5715 = vpop.f32.mrf.mxu0
        %v5716 = vadd.f32 0.0, %v5715
        %v5717 = vpop.f32.mrf.mxu0
        %5718 = vmatprep.mubr.f32.mxu0 0.0
        %5719 = vmatmul.mubr.f32.gmra.mxu0 %v5505
        %v5720 = vpop.f32.mrf.mxu0
        %v5721 = vadd.f32 0.0, %v5720
        %v5722 = vpop.f32.mrf.mxu0
        %5723 = vmatprep.mubr.f32.mxu0 0.0
        %5724 = vmatmul.mubr.f32.gmra.mxu0 %v5508
        %v5725 = vpop.f32.mrf.mxu0
        %v5726 = vadd.f32 0.0, %v5725
        %v5727 = vpop.f32.mrf.mxu0
        %5728 = vmatprep.mubr.f32.mxu0 0.0
        %5729 = vmatmul.mubr.f32.gmra.mxu0 %v5511
        %v5730 = vpop.f32.mrf.mxu0
        %v5731 = vadd.f32 0.0, %v5730
        %v5732 = vpop.f32.mrf.mxu0
        %5733 = vmatprep.mubr.f32.mxu0 0.0
        %5734 = vmatmul.mubr.f32.gmra.mxu0 %v5514
        %v5735 = vpop.f32.mrf.mxu0
        %v5736 = vadd.f32 0.0, %v5735
        %v5737 = vpop.f32.mrf.mxu0
        %5738 = vmatprep.mubr.f32.mxu0 0.0
        %5739 = vmatmul.mubr.f32.gmra.mxu0 %v5517
        %v5740 = vpop.f32.mrf.mxu0
        %v5741 = vadd.f32 0.0, %v5740
        %v5742 = vpop.f32.mrf.mxu0
        %5743 = vdwg.mxu0
        %v5744 = vadd.f32 %v5224, %v5586
        %v5745 = vadd.f32 %v5229, %v5591
        %v5746 = vadd.f32 %v5234, %v5596
        %v5747 = vadd.f32 %v5239, %v5601
        %v5748 = vadd.f32 %v5244, %v5606
        %v5749 = vadd.f32 %v5249, %v5611
        %v5750 = vadd.f32 %v5254, %v5616
        %v5751 = vadd.f32 %v5259, %v5621
        %v5752 = vadd.f32 %v5264, %v5626
        %v5753 = vadd.f32 %v5269, %v5631
        %v5754 = vadd.f32 %v5274, %v5636
        %v5755 = vadd.f32 %v5279, %v5641
        %v5756 = vadd.f32 %v5284, %v5646
        %v5757 = vadd.f32 %v5289, %v5651
        %v5758 = vadd.f32 %v5294, %v5656
        %v5759 = vadd.f32 %v5299, %v5661
        %v5760 = vadd.f32 %v5304, %v5666
        %v5761 = vadd.f32 %v5309, %v5671
        %v5762 = vadd.f32 %v5314, %v5676
        %v5763 = vadd.f32 %v5319, %v5681
        %v5764 = vadd.f32 %v5324, %v5686
        %v5765 = vadd.f32 %v5329, %v5691
        %v5766 = vadd.f32 %v5334, %v5696
        %v5767 = vadd.f32 %v5339, %v5701
        %v5768 = vadd.f32 %v5344, %v5706
        %v5769 = vadd.f32 %v5349, %v5711
        %v5770 = vadd.f32 %v5354, %v5716
        %v5771 = vadd.f32 %v5359, %v5721
        %v5772 = vadd.f32 %v5364, %v5726
        %v5773 = vadd.f32 %v5369, %v5731
        %v5774 = vadd.f32 %v5374, %v5736
        %v5775 = vadd.f32 %v5379, %v5741
        %v5776 = vld [vmem:[%s620] sm:$0xff]
        %v5777 = vld [vmem:[%s620 + $0x8] sm:$0xff]
        %v5778 = vld [vmem:[%s620 + $0x18] sm:$0xff]
        %v5779 = vld [vmem:[%s620 + $0x20] sm:$0xff]
        %v5780 = vld [vmem:[%s620 + $0x30] sm:$0xff]
        %v5781 = vld [vmem:[%s620 + $0x38] sm:$0xff]
        %v5782 = vld [vmem:[%s620 + $0x48] sm:$0xff]
        %v5783 = vld [vmem:[%s620 + $0x50] sm:$0xff]
        %v5784 = vld [vmem:[%s620 + $0x60] sm:$0xff]
        %v5785 = vld [vmem:[%s620 + $0x68] sm:$0xff]
        %v5786 = vld [vmem:[%s620 + $0x78] sm:$0xff]
        %v5787 = vld [vmem:[%s620 + $0x80] sm:$0xff]
        %v5788 = vld [vmem:[%s620 + $0x90] sm:$0xff]
        %v5789 = vld [vmem:[%s620 + $0x98] sm:$0xff]
        %v5790 = vld [vmem:[%s620 + $0xa8] sm:$0xff]
        %v5791 = vld [vmem:[%s620 + $0xb0] sm:$0xff]
        %v5792 = vld [vmem:[%s620 + $0xc0] sm:$0xff]
        %v5793 = vld [vmem:[%s620 + $0xc8] sm:$0xff]
        %v5794 = vld [vmem:[%s620 + $0xd8] sm:$0xff]
        %v5795 = vld [vmem:[%s620 + $0xe0] sm:$0xff]
        %v5796 = vld [vmem:[%s620 + $0xf0] sm:$0xff]
        %v5797 = vld [vmem:[%s620 + $0xf8] sm:$0xff]
        %v5798 = vld [vmem:[%s620 + $0x108] sm:$0xff]
        %v5799 = vld [vmem:[%s620 + $0x110] sm:$0xff]
        %v5800 = vld [vmem:[%s620 + $0x120] sm:$0xff]
        %v5801 = vld [vmem:[%s620 + $0x128] sm:$0xff]
        %v5802 = vld [vmem:[%s620 + $0x138] sm:$0xff]
        %v5803 = vld [vmem:[%s620 + $0x140] sm:$0xff]
        %v5804 = vld [vmem:[%s620 + $0x150] sm:$0xff]
        %v5805 = vld [vmem:[%s620 + $0x158] sm:$0xff]
        %v5806 = vld [vmem:[%s620 + $0x168] sm:$0xff]
        %v5807 = vld [vmem:[%s620 + $0x170] sm:$0xff]
        %s5808 = scalar_lea.vmem %s2, 192
        %v5809 = vld [vmem:[%s5808] sm:$0xff]
        %v5810 = vld [vmem:[%s5808 + $0x8] sm:$0xff]
        %v5811 = vld [vmem:[%s5808 + $0x10] sm:$0xff]
        %v5812 = vld [vmem:[%s5808 + $0x18] sm:$0xff]
        %v5813 = vld [vmem:[%s5808 + $0x20] sm:$0xff]
        %v5814 = vld [vmem:[%s5808 + $0x28] sm:$0xff]
        %v5815 = vld [vmem:[%s5808 + $0x30] sm:$0xff]
        %v5816 = vld [vmem:[%s5808 + $0x38] sm:$0xff]
        %v5818 = vsel %vm282, %v5776, 0
        %v5821 = vsel %vm282, %v5777, 0
        %v5824 = vsel %vm282, %v5778, 0
        %v5827 = vsel %vm282, %v5779, 0
        %v5830 = vsel %vm282, %v5780, 0
        %v5833 = vsel %vm282, %v5781, 0
        %v5836 = vsel %vm282, %v5782, 0
        %v5839 = vsel %vm282, %v5783, 0
        %v5842 = vsel %vm282, %v5784, 0
        %v5845 = vsel %vm282, %v5785, 0
        %v5848 = vsel %vm282, %v5786, 0
        %v5851 = vsel %vm282, %v5787, 0
        %v5854 = vsel %vm282, %v5788, 0
        %v5857 = vsel %vm282, %v5789, 0
        %v5860 = vsel %vm282, %v5790, 0
        %v5863 = vsel %vm282, %v5791, 0
        %v5866 = vsel %vm282, %v5792, 0
        %v5869 = vsel %vm282, %v5793, 0
        %v5872 = vsel %vm282, %v5794, 0
        %v5875 = vsel %vm282, %v5795, 0
        %v5878 = vsel %vm282, %v5796, 0
        %v5881 = vsel %vm282, %v5797, 0
        %v5884 = vsel %vm282, %v5798, 0
        %v5887 = vsel %vm282, %v5799, 0
        %v5890 = vsel %vm282, %v5800, 0
        %v5893 = vsel %vm282, %v5801, 0
        %v5896 = vsel %vm282, %v5802, 0
        %v5899 = vsel %vm282, %v5803, 0
        %v5902 = vsel %vm282, %v5804, 0
        %v5905 = vsel %vm282, %v5805, 0
        %v5908 = vsel %vm282, %v5806, 0
        %v5911 = vsel %vm282, %v5807, 0
        %5913 = vmatprep.subr.mxu0 0.0
        %5914 = vmatpush1.msra.mxu0 0.0
        %5915 = vmatprep.subr.mxu0 0.0
        %5916 = vmatpush1.msra.mxu0 0.0
        %5917 = vmatprep.subr.mxu0 0.0
        %5918 = vmatpush1.msra.mxu0 0.0
        %5919 = vmatprep.subr.mxu0 0.0
        %5920 = vmatpush1.msra.mxu0 0.0
        %5921 = vmatprep.subr.mxu0 0.0
        %5922 = vmatpush1.msra.mxu0 0.0
        %5923 = vmatprep.subr.mxu0 0.0
        %5924 = vmatpush1.msra.mxu0 0.0
        %5925 = vmatprep.subr.mxu0 0.0
        %5926 = vmatpush1.msra.mxu0 0.0
        %5927 = vmatprep.subr.mxu0 0.0
        %5928 = vmatpush1.msra.mxu0 0.0
        %5929 = vmatprep.subr.mxu0 0.0
        %5930 = vmatpush1.msra.mxu0 %v5816
        %5931 = vmatprep.subr.mxu0 0.0
        %5932 = vmatpush1.msra.mxu0 %v5815
        %5933 = vmatprep.subr.mxu0 0.0
        %5934 = vmatpush1.msra.mxu0 %v5814
        %5935 = vmatprep.subr.mxu0 0.0
        %5936 = vmatpush1.msra.mxu0 %v5813
        %5937 = vmatprep.subr.mxu0 0.0
        %5938 = vmatpush1.msra.mxu0 %v5812
        %5939 = vmatprep.subr.mxu0 0.0
        %5940 = vmatpush1.msra.mxu0 %v5811
        %5941 = vmatprep.subr.mxu0 0.0
        %5942 = vmatpush1.msra.mxu0 %v5810
        %5943 = vmatprep.subr.mxu0 0.0
        %5944 = vmatpush1.msra.mxu0 %v5809
        %5945 = vmatprep.subr.mxu0 0.0
        %5946 = vmatpush2.msra.mxu0 0.0
        %5947 = vmatprep.subr.mxu0 0.0
        %5948 = vmatpush2.msra.mxu0 0.0
        %5949 = vmatprep.subr.mxu0 0.0
        %5950 = vmatpush2.msra.mxu0 0.0
        %5951 = vmatprep.subr.mxu0 0.0
        %5952 = vmatpush2.msra.mxu0 0.0
        %5953 = vmatprep.subr.mxu0 0.0
        %5954 = vmatpush2.msra.mxu0 0.0
        %5955 = vmatprep.subr.mxu0 0.0
        %5956 = vmatpush2.msra.mxu0 0.0
        %5957 = vmatprep.subr.mxu0 0.0
        %5958 = vmatpush2.msra.mxu0 0.0
        %5959 = vmatprep.subr.mxu0 0.0
        %5960 = vmatpush2.msra.mxu0 0.0
        %5961 = vmatprep.subr.mxu0 0.0
        %5962 = vmatpush2.msra.mxu0 0.0
        %5963 = vmatprep.subr.mxu0 0.0
        %5964 = vmatpush2.msra.mxu0 0.0
        %5965 = vmatprep.subr.mxu0 0.0
        %5966 = vmatpush2.msra.mxu0 0.0
        %5967 = vmatprep.subr.mxu0 0.0
        %5968 = vmatpush2.msra.mxu0 0.0
        %5969 = vmatprep.subr.mxu0 0.0
        %5970 = vmatpush2.msra.mxu0 0.0
        %5971 = vmatprep.subr.mxu0 0.0
        %5972 = vmatpush2.msra.mxu0 0.0
        %5973 = vmatprep.subr.mxu0 0.0
        %5974 = vmatpush2.msra.mxu0 0.0
        %5975 = vmatprep.subr.mxu0 0.0
        %5976 = vmatpush2.msra.mxu0 0.0
        %5977 = vmatprep.mubr.f32.mxu0 0.0
        %5978 = vmatmul.mubr.f32.gmra.mxu0 %v5818
        %v5979 = vpop.f32.mrf.mxu0
        %v5980 = vadd.f32 0.0, %v5979
        %v5981 = vpop.f32.mrf.mxu0
        %5982 = vmatprep.mubr.f32.mxu0 0.0
        %5983 = vmatmul.mubr.f32.gmra.mxu0 %v5821
        %v5984 = vpop.f32.mrf.mxu0
        %v5985 = vadd.f32 0.0, %v5984
        %v5986 = vpop.f32.mrf.mxu0
        %5987 = vmatprep.mubr.f32.mxu0 0.0
        %5988 = vmatmul.mubr.f32.gmra.mxu0 %v5824
        %v5989 = vpop.f32.mrf.mxu0
        %v5990 = vadd.f32 0.0, %v5989
        %v5991 = vpop.f32.mrf.mxu0
        %5992 = vmatprep.mubr.f32.mxu0 0.0
        %5993 = vmatmul.mubr.f32.gmra.mxu0 %v5827
        %v5994 = vpop.f32.mrf.mxu0
        %v5995 = vadd.f32 0.0, %v5994
        %v5996 = vpop.f32.mrf.mxu0
        %5997 = vmatprep.mubr.f32.mxu0 0.0
        %5998 = vmatmul.mubr.f32.gmra.mxu0 %v5830
        %v5999 = vpop.f32.mrf.mxu0
        %v6000 = vadd.f32 0.0, %v5999
        %v6001 = vpop.f32.mrf.mxu0
        %6002 = vmatprep.mubr.f32.mxu0 0.0
        %6003 = vmatmul.mubr.f32.gmra.mxu0 %v5833
        %v6004 = vpop.f32.mrf.mxu0
        %v6005 = vadd.f32 0.0, %v6004
        %v6006 = vpop.f32.mrf.mxu0
        %6007 = vmatprep.mubr.f32.mxu0 0.0
        %6008 = vmatmul.mubr.f32.gmra.mxu0 %v5836
        %v6009 = vpop.f32.mrf.mxu0
        %v6010 = vadd.f32 0.0, %v6009
        %v6011 = vpop.f32.mrf.mxu0
        %6012 = vmatprep.mubr.f32.mxu0 0.0
        %6013 = vmatmul.mubr.f32.gmra.mxu0 %v5839
        %v6014 = vpop.f32.mrf.mxu0
        %v6015 = vadd.f32 0.0, %v6014
        %v6016 = vpop.f32.mrf.mxu0
        %6017 = vmatprep.mubr.f32.mxu0 0.0
        %6018 = vmatmul.mubr.f32.gmra.mxu0 %v5842
        %v6019 = vpop.f32.mrf.mxu0
        %v6020 = vadd.f32 0.0, %v6019
        %v6021 = vpop.f32.mrf.mxu0
        %6022 = vmatprep.mubr.f32.mxu0 0.0
        %6023 = vmatmul.mubr.f32.gmra.mxu0 %v5845
        %v6024 = vpop.f32.mrf.mxu0
        %v6025 = vadd.f32 0.0, %v6024
        %v6026 = vpop.f32.mrf.mxu0
        %6027 = vmatprep.mubr.f32.mxu0 0.0
        %6028 = vmatmul.mubr.f32.gmra.mxu0 %v5848
        %v6029 = vpop.f32.mrf.mxu0
        %v6030 = vadd.f32 0.0, %v6029
        %v6031 = vpop.f32.mrf.mxu0
        %6032 = vmatprep.mubr.f32.mxu0 0.0
        %6033 = vmatmul.mubr.f32.gmra.mxu0 %v5851
        %v6034 = vpop.f32.mrf.mxu0
        %v6035 = vadd.f32 0.0, %v6034
        %v6036 = vpop.f32.mrf.mxu0
        %6037 = vmatprep.mubr.f32.mxu0 0.0
        %6038 = vmatmul.mubr.f32.gmra.mxu0 %v5854
        %v6039 = vpop.f32.mrf.mxu0
        %v6040 = vadd.f32 0.0, %v6039
        %v6041 = vpop.f32.mrf.mxu0
        %6042 = vmatprep.mubr.f32.mxu0 0.0
        %6043 = vmatmul.mubr.f32.gmra.mxu0 %v5857
        %v6044 = vpop.f32.mrf.mxu0
        %v6045 = vadd.f32 0.0, %v6044
        %v6046 = vpop.f32.mrf.mxu0
        %6047 = vmatprep.mubr.f32.mxu0 0.0
        %6048 = vmatmul.mubr.f32.gmra.mxu0 %v5860
        %v6049 = vpop.f32.mrf.mxu0
        %v6050 = vadd.f32 0.0, %v6049
        %v6051 = vpop.f32.mrf.mxu0
        %6052 = vmatprep.mubr.f32.mxu0 0.0
        %6053 = vmatmul.mubr.f32.gmra.mxu0 %v5863
        %v6054 = vpop.f32.mrf.mxu0
        %v6055 = vadd.f32 0.0, %v6054
        %v6056 = vpop.f32.mrf.mxu0
        %6057 = vmatprep.mubr.f32.mxu0 0.0
        %6058 = vmatmul.mubr.f32.gmra.mxu0 %v5866
        %v6059 = vpop.f32.mrf.mxu0
        %v6060 = vadd.f32 0.0, %v6059
        %v6061 = vpop.f32.mrf.mxu0
        %6062 = vmatprep.mubr.f32.mxu0 0.0
        %6063 = vmatmul.mubr.f32.gmra.mxu0 %v5869
        %v6064 = vpop.f32.mrf.mxu0
        %v6065 = vadd.f32 0.0, %v6064
        %v6066 = vpop.f32.mrf.mxu0
        %6067 = vmatprep.mubr.f32.mxu0 0.0
        %6068 = vmatmul.mubr.f32.gmra.mxu0 %v5872
        %v6069 = vpop.f32.mrf.mxu0
        %v6070 = vadd.f32 0.0, %v6069
        %v6071 = vpop.f32.mrf.mxu0
        %6072 = vmatprep.mubr.f32.mxu0 0.0
        %6073 = vmatmul.mubr.f32.gmra.mxu0 %v5875
        %v6074 = vpop.f32.mrf.mxu0
        %v6075 = vadd.f32 0.0, %v6074
        %v6076 = vpop.f32.mrf.mxu0
        %6077 = vmatprep.mubr.f32.mxu0 0.0
        %6078 = vmatmul.mubr.f32.gmra.mxu0 %v5878
        %v6079 = vpop.f32.mrf.mxu0
        %v6080 = vadd.f32 0.0, %v6079
        %v6081 = vpop.f32.mrf.mxu0
        %6082 = vmatprep.mubr.f32.mxu0 0.0
        %6083 = vmatmul.mubr.f32.gmra.mxu0 %v5881
        %v6084 = vpop.f32.mrf.mxu0
        %v6085 = vadd.f32 0.0, %v6084
        %v6086 = vpop.f32.mrf.mxu0
        %6087 = vmatprep.mubr.f32.mxu0 0.0
        %6088 = vmatmul.mubr.f32.gmra.mxu0 %v5884
        %v6089 = vpop.f32.mrf.mxu0
        %v6090 = vadd.f32 0.0, %v6089
        %v6091 = vpop.f32.mrf.mxu0
        %6092 = vmatprep.mubr.f32.mxu0 0.0
        %6093 = vmatmul.mubr.f32.gmra.mxu0 %v5887
        %v6094 = vpop.f32.mrf.mxu0
        %v6095 = vadd.f32 0.0, %v6094
        %v6096 = vpop.f32.mrf.mxu0
        %6097 = vmatprep.mubr.f32.mxu0 0.0
        %6098 = vmatmul.mubr.f32.gmra.mxu0 %v5890
        %v6099 = vpop.f32.mrf.mxu0
        %v6100 = vadd.f32 0.0, %v6099
        %v6101 = vpop.f32.mrf.mxu0
        %6102 = vmatprep.mubr.f32.mxu0 0.0
        %6103 = vmatmul.mubr.f32.gmra.mxu0 %v5893
        %v6104 = vpop.f32.mrf.mxu0
        %v6105 = vadd.f32 0.0, %v6104
        %v6106 = vpop.f32.mrf.mxu0
        %6107 = vmatprep.mubr.f32.mxu0 0.0
        %6108 = vmatmul.mubr.f32.gmra.mxu0 %v5896
        %v6109 = vpop.f32.mrf.mxu0
        %v6110 = vadd.f32 0.0, %v6109
        %v6111 = vpop.f32.mrf.mxu0
        %6112 = vmatprep.mubr.f32.mxu0 0.0
        %6113 = vmatmul.mubr.f32.gmra.mxu0 %v5899
        %v6114 = vpop.f32.mrf.mxu0
        %v6115 = vadd.f32 0.0, %v6114
        %v6116 = vpop.f32.mrf.mxu0
        %6117 = vmatprep.mubr.f32.mxu0 0.0
        %6118 = vmatmul.mubr.f32.gmra.mxu0 %v5902
        %v6119 = vpop.f32.mrf.mxu0
        %v6120 = vadd.f32 0.0, %v6119
        %v6121 = vpop.f32.mrf.mxu0
        %6122 = vmatprep.mubr.f32.mxu0 0.0
        %6123 = vmatmul.mubr.f32.gmra.mxu0 %v5905
        %v6124 = vpop.f32.mrf.mxu0
        %v6125 = vadd.f32 0.0, %v6124
        %v6126 = vpop.f32.mrf.mxu0
        %6127 = vmatprep.mubr.f32.mxu0 0.0
        %6128 = vmatmul.mubr.f32.gmra.mxu0 %v5908
        %v6129 = vpop.f32.mrf.mxu0
        %v6130 = vadd.f32 0.0, %v6129
        %v6131 = vpop.f32.mrf.mxu0
        %6132 = vmatprep.mubr.f32.mxu0 0.0
        %6133 = vmatmul.mubr.f32.gmra.mxu0 %v5911
        %v6134 = vpop.f32.mrf.mxu0
        %v6135 = vadd.f32 0.0, %v6134
        %v6136 = vpop.f32.mrf.mxu0
        %6137 = vdwg.mxu0
        %v6138 = vadd.f32 %v5744, %v5980
        %v6139 = vadd.f32 %v5745, %v5985
        %v6140 = vadd.f32 %v5746, %v5990
        %v6141 = vadd.f32 %v5747, %v5995
        %v6142 = vadd.f32 %v5748, %v6000
        %v6143 = vadd.f32 %v5749, %v6005
        %v6144 = vadd.f32 %v5750, %v6010
        %v6145 = vadd.f32 %v5751, %v6015
        %v6146 = vadd.f32 %v5752, %v6020
        %v6147 = vadd.f32 %v5753, %v6025
        %v6148 = vadd.f32 %v5754, %v6030
        %v6149 = vadd.f32 %v5755, %v6035
        %v6150 = vadd.f32 %v5756, %v6040
        %v6151 = vadd.f32 %v5757, %v6045
        %v6152 = vadd.f32 %v5758, %v6050
        %v6153 = vadd.f32 %v5759, %v6055
        %v6154 = vadd.f32 %v5760, %v6060
        %v6155 = vadd.f32 %v5761, %v6065
        %v6156 = vadd.f32 %v5762, %v6070
        %v6157 = vadd.f32 %v5763, %v6075
        %v6158 = vadd.f32 %v5764, %v6080
        %v6159 = vadd.f32 %v5765, %v6085
        %v6160 = vadd.f32 %v5766, %v6090
        %v6161 = vadd.f32 %v5767, %v6095
        %v6162 = vadd.f32 %v5768, %v6100
        %v6163 = vadd.f32 %v5769, %v6105
        %v6164 = vadd.f32 %v5770, %v6110
        %v6165 = vadd.f32 %v5771, %v6115
        %v6166 = vadd.f32 %v5772, %v6120
        %v6167 = vadd.f32 %v5773, %v6125
        %v6168 = vadd.f32 %v5774, %v6130
        %v6169 = vadd.f32 %v5775, %v6135
        %v6170 = vld [vmem:[%s620 + $0x1] sm:$0xff]
        %v6171 = vld [vmem:[%s620 + $0x9] sm:$0xff]
        %v6172 = vld [vmem:[%s620 + $0x19] sm:$0xff]
        %v6173 = vld [vmem:[%s620 + $0x21] sm:$0xff]
        %v6174 = vld [vmem:[%s620 + $0x31] sm:$0xff]
        %v6175 = vld [vmem:[%s620 + $0x39] sm:$0xff]
        %v6176 = vld [vmem:[%s620 + $0x49] sm:$0xff]
        %v6177 = vld [vmem:[%s620 + $0x51] sm:$0xff]
        %v6178 = vld [vmem:[%s620 + $0x61] sm:$0xff]
        %v6179 = vld [vmem:[%s620 + $0x69] sm:$0xff]
        %v6180 = vld [vmem:[%s620 + $0x79] sm:$0xff]
        %v6181 = vld [vmem:[%s620 + $0x81] sm:$0xff]
        %v6182 = vld [vmem:[%s620 + $0x91] sm:$0xff]
        %v6183 = vld [vmem:[%s620 + $0x99] sm:$0xff]
        %v6184 = vld [vmem:[%s620 + $0xa9] sm:$0xff]
        %v6185 = vld [vmem:[%s620 + $0xb1] sm:$0xff]
        %v6186 = vld [vmem:[%s620 + $0xc1] sm:$0xff]
        %v6187 = vld [vmem:[%s620 + $0xc9] sm:$0xff]
        %v6188 = vld [vmem:[%s620 + $0xd9] sm:$0xff]
        %v6189 = vld [vmem:[%s620 + $0xe1] sm:$0xff]
        %v6190 = vld [vmem:[%s620 + $0xf1] sm:$0xff]
        %v6191 = vld [vmem:[%s620 + $0xf9] sm:$0xff]
        %v6192 = vld [vmem:[%s620 + $0x109] sm:$0xff]
        %v6193 = vld [vmem:[%s620 + $0x111] sm:$0xff]
        %v6194 = vld [vmem:[%s620 + $0x121] sm:$0xff]
        %v6195 = vld [vmem:[%s620 + $0x129] sm:$0xff]
        %v6196 = vld [vmem:[%s620 + $0x139] sm:$0xff]
        %v6197 = vld [vmem:[%s620 + $0x141] sm:$0xff]
        %v6198 = vld [vmem:[%s620 + $0x151] sm:$0xff]
        %v6199 = vld [vmem:[%s620 + $0x159] sm:$0xff]
        %v6200 = vld [vmem:[%s620 + $0x169] sm:$0xff]
        %v6201 = vld [vmem:[%s620 + $0x171] sm:$0xff]
        %s6202 = scalar_lea.vmem %s2, 256
        %v6203 = vld [vmem:[%s6202] sm:$0xff]
        %v6204 = vld [vmem:[%s6202 + $0x8] sm:$0xff]
        %v6205 = vld [vmem:[%s6202 + $0x10] sm:$0xff]
        %v6206 = vld [vmem:[%s6202 + $0x18] sm:$0xff]
        %v6207 = vld [vmem:[%s6202 + $0x20] sm:$0xff]
        %v6208 = vld [vmem:[%s6202 + $0x28] sm:$0xff]
        %v6209 = vld [vmem:[%s6202 + $0x30] sm:$0xff]
        %v6210 = vld [vmem:[%s6202 + $0x38] sm:$0xff]
        %v6212 = vsel %vm282, %v6170, 0
        %v6215 = vsel %vm282, %v6171, 0
        %v6218 = vsel %vm282, %v6172, 0
        %v6221 = vsel %vm282, %v6173, 0
        %v6224 = vsel %vm282, %v6174, 0
        %v6227 = vsel %vm282, %v6175, 0
        %v6230 = vsel %vm282, %v6176, 0
        %v6233 = vsel %vm282, %v6177, 0
        %v6236 = vsel %vm282, %v6178, 0
        %v6239 = vsel %vm282, %v6179, 0
        %v6242 = vsel %vm282, %v6180, 0
        %v6245 = vsel %vm282, %v6181, 0
        %v6248 = vsel %vm282, %v6182, 0
        %v6251 = vsel %vm282, %v6183, 0
        %v6254 = vsel %vm282, %v6184, 0
        %v6257 = vsel %vm282, %v6185, 0
        %v6260 = vsel %vm282, %v6186, 0
        %v6263 = vsel %vm282, %v6187, 0
        %v6266 = vsel %vm282, %v6188, 0
        %v6269 = vsel %vm282, %v6189, 0
        %v6272 = vsel %vm282, %v6190, 0
        %v6275 = vsel %vm282, %v6191, 0
        %v6278 = vsel %vm282, %v6192, 0
        %v6281 = vsel %vm282, %v6193, 0
        %v6284 = vsel %vm282, %v6194, 0
        %v6287 = vsel %vm282, %v6195, 0
        %v6290 = vsel %vm282, %v6196, 0
        %v6293 = vsel %vm282, %v6197, 0
        %v6296 = vsel %vm282, %v6198, 0
        %v6299 = vsel %vm282, %v6199, 0
        %v6302 = vsel %vm282, %v6200, 0
        %v6305 = vsel %vm282, %v6201, 0
        %6307 = vmatprep.subr.mxu0 0.0
        %6308 = vmatpush1.msra.mxu0 0.0
        %6309 = vmatprep.subr.mxu0 0.0
        %6310 = vmatpush1.msra.mxu0 0.0
        %6311 = vmatprep.subr.mxu0 0.0
        %6312 = vmatpush1.msra.mxu0 0.0
        %6313 = vmatprep.subr.mxu0 0.0
        %6314 = vmatpush1.msra.mxu0 0.0
        %6315 = vmatprep.subr.mxu0 0.0
        %6316 = vmatpush1.msra.mxu0 0.0
        %6317 = vmatprep.subr.mxu0 0.0
        %6318 = vmatpush1.msra.mxu0 0.0
        %6319 = vmatprep.subr.mxu0 0.0
        %6320 = vmatpush1.msra.mxu0 0.0
        %6321 = vmatprep.subr.mxu0 0.0
        %6322 = vmatpush1.msra.mxu0 0.0
        %6323 = vmatprep.subr.mxu0 0.0
        %6324 = vmatpush1.msra.mxu0 %v6210
        %6325 = vmatprep.subr.mxu0 0.0
        %6326 = vmatpush1.msra.mxu0 %v6209
        %6327 = vmatprep.subr.mxu0 0.0
        %6328 = vmatpush1.msra.mxu0 %v6208
        %6329 = vmatprep.subr.mxu0 0.0
        %6330 = vmatpush1.msra.mxu0 %v6207
        %6331 = vmatprep.subr.mxu0 0.0
        %6332 = vmatpush1.msra.mxu0 %v6206
        %6333 = vmatprep.subr.mxu0 0.0
        %6334 = vmatpush1.msra.mxu0 %v6205
        %6335 = vmatprep.subr.mxu0 0.0
        %6336 = vmatpush1.msra.mxu0 %v6204
        %6337 = vmatprep.subr.mxu0 0.0
        %6338 = vmatpush1.msra.mxu0 %v6203
        %6339 = vmatprep.subr.mxu0 0.0
        %6340 = vmatpush2.msra.mxu0 0.0
        %6341 = vmatprep.subr.mxu0 0.0
        %6342 = vmatpush2.msra.mxu0 0.0
        %6343 = vmatprep.subr.mxu0 0.0
        %6344 = vmatpush2.msra.mxu0 0.0
        %6345 = vmatprep.subr.mxu0 0.0
        %6346 = vmatpush2.msra.mxu0 0.0
        %6347 = vmatprep.subr.mxu0 0.0
        %6348 = vmatpush2.msra.mxu0 0.0
        %6349 = vmatprep.subr.mxu0 0.0
        %6350 = vmatpush2.msra.mxu0 0.0
        %6351 = vmatprep.subr.mxu0 0.0
        %6352 = vmatpush2.msra.mxu0 0.0
        %6353 = vmatprep.subr.mxu0 0.0
        %6354 = vmatpush2.msra.mxu0 0.0
        %6355 = vmatprep.subr.mxu0 0.0
        %6356 = vmatpush2.msra.mxu0 0.0
        %6357 = vmatprep.subr.mxu0 0.0
        %6358 = vmatpush2.msra.mxu0 0.0
        %6359 = vmatprep.subr.mxu0 0.0
        %6360 = vmatpush2.msra.mxu0 0.0
        %6361 = vmatprep.subr.mxu0 0.0
        %6362 = vmatpush2.msra.mxu0 0.0
        %6363 = vmatprep.subr.mxu0 0.0
        %6364 = vmatpush2.msra.mxu0 0.0
        %6365 = vmatprep.subr.mxu0 0.0
        %6366 = vmatpush2.msra.mxu0 0.0
        %6367 = vmatprep.subr.mxu0 0.0
        %6368 = vmatpush2.msra.mxu0 0.0
        %6369 = vmatprep.subr.mxu0 0.0
        %6370 = vmatpush2.msra.mxu0 0.0
        %6371 = vmatprep.mubr.f32.mxu0 0.0
        %6372 = vmatmul.mubr.f32.gmra.mxu0 %v6212
        %v6373 = vpop.f32.mrf.mxu0
        %v6374 = vadd.f32 0.0, %v6373
        %v6375 = vpop.f32.mrf.mxu0
        %6376 = vmatprep.mubr.f32.mxu0 0.0
        %6377 = vmatmul.mubr.f32.gmra.mxu0 %v6215
        %v6378 = vpop.f32.mrf.mxu0
        %v6379 = vadd.f32 0.0, %v6378
        %v6380 = vpop.f32.mrf.mxu0
        %6381 = vmatprep.mubr.f32.mxu0 0.0
        %6382 = vmatmul.mubr.f32.gmra.mxu0 %v6218
        %v6383 = vpop.f32.mrf.mxu0
        %v6384 = vadd.f32 0.0, %v6383
        %v6385 = vpop.f32.mrf.mxu0
        %6386 = vmatprep.mubr.f32.mxu0 0.0
        %6387 = vmatmul.mubr.f32.gmra.mxu0 %v6221
        %v6388 = vpop.f32.mrf.mxu0
        %v6389 = vadd.f32 0.0, %v6388
        %v6390 = vpop.f32.mrf.mxu0
        %6391 = vmatprep.mubr.f32.mxu0 0.0
        %6392 = vmatmul.mubr.f32.gmra.mxu0 %v6224
        %v6393 = vpop.f32.mrf.mxu0
        %v6394 = vadd.f32 0.0, %v6393
        %v6395 = vpop.f32.mrf.mxu0
        %6396 = vmatprep.mubr.f32.mxu0 0.0
        %6397 = vmatmul.mubr.f32.gmra.mxu0 %v6227
        %v6398 = vpop.f32.mrf.mxu0
        %v6399 = vadd.f32 0.0, %v6398
        %v6400 = vpop.f32.mrf.mxu0
        %6401 = vmatprep.mubr.f32.mxu0 0.0
        %6402 = vmatmul.mubr.f32.gmra.mxu0 %v6230
        %v6403 = vpop.f32.mrf.mxu0
        %v6404 = vadd.f32 0.0, %v6403
        %v6405 = vpop.f32.mrf.mxu0
        %6406 = vmatprep.mubr.f32.mxu0 0.0
        %6407 = vmatmul.mubr.f32.gmra.mxu0 %v6233
        %v6408 = vpop.f32.mrf.mxu0
        %v6409 = vadd.f32 0.0, %v6408
        %v6410 = vpop.f32.mrf.mxu0
        %6411 = vmatprep.mubr.f32.mxu0 0.0
        %6412 = vmatmul.mubr.f32.gmra.mxu0 %v6236
        %v6413 = vpop.f32.mrf.mxu0
        %v6414 = vadd.f32 0.0, %v6413
        %v6415 = vpop.f32.mrf.mxu0
        %6416 = vmatprep.mubr.f32.mxu0 0.0
        %6417 = vmatmul.mubr.f32.gmra.mxu0 %v6239
        %v6418 = vpop.f32.mrf.mxu0
        %v6419 = vadd.f32 0.0, %v6418
        %v6420 = vpop.f32.mrf.mxu0
        %6421 = vmatprep.mubr.f32.mxu0 0.0
        %6422 = vmatmul.mubr.f32.gmra.mxu0 %v6242
        %v6423 = vpop.f32.mrf.mxu0
        %v6424 = vadd.f32 0.0, %v6423
        %v6425 = vpop.f32.mrf.mxu0
        %6426 = vmatprep.mubr.f32.mxu0 0.0
        %6427 = vmatmul.mubr.f32.gmra.mxu0 %v6245
        %v6428 = vpop.f32.mrf.mxu0
        %v6429 = vadd.f32 0.0, %v6428
        %v6430 = vpop.f32.mrf.mxu0
        %6431 = vmatprep.mubr.f32.mxu0 0.0
        %6432 = vmatmul.mubr.f32.gmra.mxu0 %v6248
        %v6433 = vpop.f32.mrf.mxu0
        %v6434 = vadd.f32 0.0, %v6433
        %v6435 = vpop.f32.mrf.mxu0
        %6436 = vmatprep.mubr.f32.mxu0 0.0
        %6437 = vmatmul.mubr.f32.gmra.mxu0 %v6251
        %v6438 = vpop.f32.mrf.mxu0
        %v6439 = vadd.f32 0.0, %v6438
        %v6440 = vpop.f32.mrf.mxu0
        %6441 = vmatprep.mubr.f32.mxu0 0.0
        %6442 = vmatmul.mubr.f32.gmra.mxu0 %v6254
        %v6443 = vpop.f32.mrf.mxu0
        %v6444 = vadd.f32 0.0, %v6443
        %v6445 = vpop.f32.mrf.mxu0
        %6446 = vmatprep.mubr.f32.mxu0 0.0
        %6447 = vmatmul.mubr.f32.gmra.mxu0 %v6257
        %v6448 = vpop.f32.mrf.mxu0
        %v6449 = vadd.f32 0.0, %v6448
        %v6450 = vpop.f32.mrf.mxu0
        %6451 = vmatprep.mubr.f32.mxu0 0.0
        %6452 = vmatmul.mubr.f32.gmra.mxu0 %v6260
        %v6453 = vpop.f32.mrf.mxu0
        %v6454 = vadd.f32 0.0, %v6453
        %v6455 = vpop.f32.mrf.mxu0
        %6456 = vmatprep.mubr.f32.mxu0 0.0
        %6457 = vmatmul.mubr.f32.gmra.mxu0 %v6263
        %v6458 = vpop.f32.mrf.mxu0
        %v6459 = vadd.f32 0.0, %v6458
        %v6460 = vpop.f32.mrf.mxu0
        %6461 = vmatprep.mubr.f32.mxu0 0.0
        %6462 = vmatmul.mubr.f32.gmra.mxu0 %v6266
        %v6463 = vpop.f32.mrf.mxu0
        %v6464 = vadd.f32 0.0, %v6463
        %v6465 = vpop.f32.mrf.mxu0
        %6466 = vmatprep.mubr.f32.mxu0 0.0
        %6467 = vmatmul.mubr.f32.gmra.mxu0 %v6269
        %v6468 = vpop.f32.mrf.mxu0
        %v6469 = vadd.f32 0.0, %v6468
        %v6470 = vpop.f32.mrf.mxu0
        %6471 = vmatprep.mubr.f32.mxu0 0.0
        %6472 = vmatmul.mubr.f32.gmra.mxu0 %v6272
        %v6473 = vpop.f32.mrf.mxu0
        %v6474 = vadd.f32 0.0, %v6473
        %v6475 = vpop.f32.mrf.mxu0
        %6476 = vmatprep.mubr.f32.mxu0 0.0
        %6477 = vmatmul.mubr.f32.gmra.mxu0 %v6275
        %v6478 = vpop.f32.mrf.mxu0
        %v6479 = vadd.f32 0.0, %v6478
        %v6480 = vpop.f32.mrf.mxu0
        %6481 = vmatprep.mubr.f32.mxu0 0.0
        %6482 = vmatmul.mubr.f32.gmra.mxu0 %v6278
        %v6483 = vpop.f32.mrf.mxu0
        %v6484 = vadd.f32 0.0, %v6483
        %v6485 = vpop.f32.mrf.mxu0
        %6486 = vmatprep.mubr.f32.mxu0 0.0
        %6487 = vmatmul.mubr.f32.gmra.mxu0 %v6281
        %v6488 = vpop.f32.mrf.mxu0
        %v6489 = vadd.f32 0.0, %v6488
        %v6490 = vpop.f32.mrf.mxu0
        %6491 = vmatprep.mubr.f32.mxu0 0.0
        %6492 = vmatmul.mubr.f32.gmra.mxu0 %v6284
        %v6493 = vpop.f32.mrf.mxu0
        %v6494 = vadd.f32 0.0, %v6493
        %v6495 = vpop.f32.mrf.mxu0
        %6496 = vmatprep.mubr.f32.mxu0 0.0
        %6497 = vmatmul.mubr.f32.gmra.mxu0 %v6287
        %v6498 = vpop.f32.mrf.mxu0
        %v6499 = vadd.f32 0.0, %v6498
        %v6500 = vpop.f32.mrf.mxu0
        %6501 = vmatprep.mubr.f32.mxu0 0.0
        %6502 = vmatmul.mubr.f32.gmra.mxu0 %v6290
        %v6503 = vpop.f32.mrf.mxu0
        %v6504 = vadd.f32 0.0, %v6503
        %v6505 = vpop.f32.mrf.mxu0
        %6506 = vmatprep.mubr.f32.mxu0 0.0
        %6507 = vmatmul.mubr.f32.gmra.mxu0 %v6293
        %v6508 = vpop.f32.mrf.mxu0
        %v6509 = vadd.f32 0.0, %v6508
        %v6510 = vpop.f32.mrf.mxu0
        %6511 = vmatprep.mubr.f32.mxu0 0.0
        %6512 = vmatmul.mubr.f32.gmra.mxu0 %v6296
        %v6513 = vpop.f32.mrf.mxu0
        %v6514 = vadd.f32 0.0, %v6513
        %v6515 = vpop.f32.mrf.mxu0
        %6516 = vmatprep.mubr.f32.mxu0 0.0
        %6517 = vmatmul.mubr.f32.gmra.mxu0 %v6299
        %v6518 = vpop.f32.mrf.mxu0
        %v6519 = vadd.f32 0.0, %v6518
        %v6520 = vpop.f32.mrf.mxu0
        %6521 = vmatprep.mubr.f32.mxu0 0.0
        %6522 = vmatmul.mubr.f32.gmra.mxu0 %v6302
        %v6523 = vpop.f32.mrf.mxu0
        %v6524 = vadd.f32 0.0, %v6523
        %v6525 = vpop.f32.mrf.mxu0
        %6526 = vmatprep.mubr.f32.mxu0 0.0
        %6527 = vmatmul.mubr.f32.gmra.mxu0 %v6305
        %v6528 = vpop.f32.mrf.mxu0
        %v6529 = vadd.f32 0.0, %v6528
        %v6530 = vpop.f32.mrf.mxu0
        %6531 = vdwg.mxu0
        %v6532 = vadd.f32 %v6138, %v6374
        %v6533 = vadd.f32 %v6139, %v6379
        %v6534 = vadd.f32 %v6140, %v6384
        %v6535 = vadd.f32 %v6141, %v6389
        %v6536 = vadd.f32 %v6142, %v6394
        %v6537 = vadd.f32 %v6143, %v6399
        %v6538 = vadd.f32 %v6144, %v6404
        %v6539 = vadd.f32 %v6145, %v6409
        %v6540 = vadd.f32 %v6146, %v6414
        %v6541 = vadd.f32 %v6147, %v6419
        %v6542 = vadd.f32 %v6148, %v6424
        %v6543 = vadd.f32 %v6149, %v6429
        %v6544 = vadd.f32 %v6150, %v6434
        %v6545 = vadd.f32 %v6151, %v6439
        %v6546 = vadd.f32 %v6152, %v6444
        %v6547 = vadd.f32 %v6153, %v6449
        %v6548 = vadd.f32 %v6154, %v6454
        %v6549 = vadd.f32 %v6155, %v6459
        %v6550 = vadd.f32 %v6156, %v6464
        %v6551 = vadd.f32 %v6157, %v6469
        %v6552 = vadd.f32 %v6158, %v6474
        %v6553 = vadd.f32 %v6159, %v6479
        %v6554 = vadd.f32 %v6160, %v6484
        %v6555 = vadd.f32 %v6161, %v6489
        %v6556 = vadd.f32 %v6162, %v6494
        %v6557 = vadd.f32 %v6163, %v6499
        %v6558 = vadd.f32 %v6164, %v6504
        %v6559 = vadd.f32 %v6165, %v6509
        %v6560 = vadd.f32 %v6166, %v6514
        %v6561 = vadd.f32 %v6167, %v6519
        %v6562 = vadd.f32 %v6168, %v6524
        %v6563 = vadd.f32 %v6169, %v6529
        %v6564 = vld [vmem:[%s620 + $0x2] sm:$0xff]
        %v6565 = vld [vmem:[%s620 + $0xa] sm:$0xff]
        %v6566 = vld [vmem:[%s620 + $0x1a] sm:$0xff]
        %v6567 = vld [vmem:[%s620 + $0x22] sm:$0xff]
        %v6568 = vld [vmem:[%s620 + $0x32] sm:$0xff]
        %v6569 = vld [vmem:[%s620 + $0x3a] sm:$0xff]
        %v6570 = vld [vmem:[%s620 + $0x4a] sm:$0xff]
        %v6571 = vld [vmem:[%s620 + $0x52] sm:$0xff]
        %v6572 = vld [vmem:[%s620 + $0x62] sm:$0xff]
        %v6573 = vld [vmem:[%s620 + $0x6a] sm:$0xff]
        %v6574 = vld [vmem:[%s620 + $0x7a] sm:$0xff]
        %v6575 = vld [vmem:[%s620 + $0x82] sm:$0xff]
        %v6576 = vld [vmem:[%s620 + $0x92] sm:$0xff]
        %v6577 = vld [vmem:[%s620 + $0x9a] sm:$0xff]
        %v6578 = vld [vmem:[%s620 + $0xaa] sm:$0xff]
        %v6579 = vld [vmem:[%s620 + $0xb2] sm:$0xff]
        %v6580 = vld [vmem:[%s620 + $0xc2] sm:$0xff]
        %v6581 = vld [vmem:[%s620 + $0xca] sm:$0xff]
        %v6582 = vld [vmem:[%s620 + $0xda] sm:$0xff]
        %v6583 = vld [vmem:[%s620 + $0xe2] sm:$0xff]
        %v6584 = vld [vmem:[%s620 + $0xf2] sm:$0xff]
        %v6585 = vld [vmem:[%s620 + $0xfa] sm:$0xff]
        %v6586 = vld [vmem:[%s620 + $0x10a] sm:$0xff]
        %v6587 = vld [vmem:[%s620 + $0x112] sm:$0xff]
        %v6588 = vld [vmem:[%s620 + $0x122] sm:$0xff]
        %v6589 = vld [vmem:[%s620 + $0x12a] sm:$0xff]
        %v6590 = vld [vmem:[%s620 + $0x13a] sm:$0xff]
        %v6591 = vld [vmem:[%s620 + $0x142] sm:$0xff]
        %v6592 = vld [vmem:[%s620 + $0x152] sm:$0xff]
        %v6593 = vld [vmem:[%s620 + $0x15a] sm:$0xff]
        %v6594 = vld [vmem:[%s620 + $0x16a] sm:$0xff]
        %v6595 = vld [vmem:[%s620 + $0x172] sm:$0xff]
        %s6596 = scalar_lea.vmem %s2, 320
        %v6597 = vld [vmem:[%s6596] sm:$0xff]
        %v6598 = vld [vmem:[%s6596 + $0x8] sm:$0xff]
        %v6599 = vld [vmem:[%s6596 + $0x10] sm:$0xff]
        %v6600 = vld [vmem:[%s6596 + $0x18] sm:$0xff]
        %v6601 = vld [vmem:[%s6596 + $0x20] sm:$0xff]
        %v6602 = vld [vmem:[%s6596 + $0x28] sm:$0xff]
        %v6603 = vld [vmem:[%s6596 + $0x30] sm:$0xff]
        %v6604 = vld [vmem:[%s6596 + $0x38] sm:$0xff]
        %v6606 = vsel %vm282, %v6564, 0
        %v6609 = vsel %vm282, %v6565, 0
        %v6612 = vsel %vm282, %v6566, 0
        %v6615 = vsel %vm282, %v6567, 0
        %v6618 = vsel %vm282, %v6568, 0
        %v6621 = vsel %vm282, %v6569, 0
        %v6624 = vsel %vm282, %v6570, 0
        %v6627 = vsel %vm282, %v6571, 0
        %v6630 = vsel %vm282, %v6572, 0
        %v6633 = vsel %vm282, %v6573, 0
        %v6636 = vsel %vm282, %v6574, 0
        %v6639 = vsel %vm282, %v6575, 0
        %v6642 = vsel %vm282, %v6576, 0
        %v6645 = vsel %vm282, %v6577, 0
        %v6648 = vsel %vm282, %v6578, 0
        %v6651 = vsel %vm282, %v6579, 0
        %v6654 = vsel %vm282, %v6580, 0
        %v6657 = vsel %vm282, %v6581, 0
        %v6660 = vsel %vm282, %v6582, 0
        %v6663 = vsel %vm282, %v6583, 0
        %v6666 = vsel %vm282, %v6584, 0
        %v6669 = vsel %vm282, %v6585, 0
        %v6672 = vsel %vm282, %v6586, 0
        %v6675 = vsel %vm282, %v6587, 0
        %v6678 = vsel %vm282, %v6588, 0
        %v6681 = vsel %vm282, %v6589, 0
        %v6684 = vsel %vm282, %v6590, 0
        %v6687 = vsel %vm282, %v6591, 0
        %v6690 = vsel %vm282, %v6592, 0
        %v6693 = vsel %vm282, %v6593, 0
        %v6696 = vsel %vm282, %v6594, 0
        %v6699 = vsel %vm282, %v6595, 0
        %6701 = vmatprep.subr.mxu0 0.0
        %6702 = vmatpush1.msra.mxu0 0.0
        %6703 = vmatprep.subr.mxu0 0.0
        %6704 = vmatpush1.msra.mxu0 0.0
        %6705 = vmatprep.subr.mxu0 0.0
        %6706 = vmatpush1.msra.mxu0 0.0
        %6707 = vmatprep.subr.mxu0 0.0
        %6708 = vmatpush1.msra.mxu0 0.0
        %6709 = vmatprep.subr.mxu0 0.0
        %6710 = vmatpush1.msra.mxu0 0.0
        %6711 = vmatprep.subr.mxu0 0.0
        %6712 = vmatpush1.msra.mxu0 0.0
        %6713 = vmatprep.subr.mxu0 0.0
        %6714 = vmatpush1.msra.mxu0 0.0
        %6715 = vmatprep.subr.mxu0 0.0
        %6716 = vmatpush1.msra.mxu0 0.0
        %6717 = vmatprep.subr.mxu0 0.0
        %6718 = vmatpush1.msra.mxu0 %v6604
        %6719 = vmatprep.subr.mxu0 0.0
        %6720 = vmatpush1.msra.mxu0 %v6603
        %6721 = vmatprep.subr.mxu0 0.0
        %6722 = vmatpush1.msra.mxu0 %v6602
        %6723 = vmatprep.subr.mxu0 0.0
        %6724 = vmatpush1.msra.mxu0 %v6601
        %6725 = vmatprep.subr.mxu0 0.0
        %6726 = vmatpush1.msra.mxu0 %v6600
        %6727 = vmatprep.subr.mxu0 0.0
        %6728 = vmatpush1.msra.mxu0 %v6599
        %6729 = vmatprep.subr.mxu0 0.0
        %6730 = vmatpush1.msra.mxu0 %v6598
        %6731 = vmatprep.subr.mxu0 0.0
        %6732 = vmatpush1.msra.mxu0 %v6597
        %6733 = vmatprep.subr.mxu0 0.0
        %6734 = vmatpush2.msra.mxu0 0.0
        %6735 = vmatprep.subr.mxu0 0.0
        %6736 = vmatpush2.msra.mxu0 0.0
        %6737 = vmatprep.subr.mxu0 0.0
        %6738 = vmatpush2.msra.mxu0 0.0
        %6739 = vmatprep.subr.mxu0 0.0
        %6740 = vmatpush2.msra.mxu0 0.0
        %6741 = vmatprep.subr.mxu0 0.0
        %6742 = vmatpush2.msra.mxu0 0.0
        %6743 = vmatprep.subr.mxu0 0.0
        %6744 = vmatpush2.msra.mxu0 0.0
        %6745 = vmatprep.subr.mxu0 0.0
        %6746 = vmatpush2.msra.mxu0 0.0
        %6747 = vmatprep.subr.mxu0 0.0
        %6748 = vmatpush2.msra.mxu0 0.0
        %6749 = vmatprep.subr.mxu0 0.0
        %6750 = vmatpush2.msra.mxu0 0.0
        %6751 = vmatprep.subr.mxu0 0.0
        %6752 = vmatpush2.msra.mxu0 0.0
        %6753 = vmatprep.subr.mxu0 0.0
        %6754 = vmatpush2.msra.mxu0 0.0
        %6755 = vmatprep.subr.mxu0 0.0
        %6756 = vmatpush2.msra.mxu0 0.0
        %6757 = vmatprep.subr.mxu0 0.0
        %6758 = vmatpush2.msra.mxu0 0.0
        %6759 = vmatprep.subr.mxu0 0.0
        %6760 = vmatpush2.msra.mxu0 0.0
        %6761 = vmatprep.subr.mxu0 0.0
        %6762 = vmatpush2.msra.mxu0 0.0
        %6763 = vmatprep.subr.mxu0 0.0
        %6764 = vmatpush2.msra.mxu0 0.0
        %6765 = vmatprep.mubr.f32.mxu0 0.0
        %6766 = vmatmul.mubr.f32.gmra.mxu0 %v6606
        %v6767 = vpop.f32.mrf.mxu0
        %v6768 = vadd.f32 0.0, %v6767
        %v6769 = vpop.f32.mrf.mxu0
        %6770 = vmatprep.mubr.f32.mxu0 0.0
        %6771 = vmatmul.mubr.f32.gmra.mxu0 %v6609
        %v6772 = vpop.f32.mrf.mxu0
        %v6773 = vadd.f32 0.0, %v6772
        %v6774 = vpop.f32.mrf.mxu0
        %6775 = vmatprep.mubr.f32.mxu0 0.0
        %6776 = vmatmul.mubr.f32.gmra.mxu0 %v6612
        %v6777 = vpop.f32.mrf.mxu0
        %v6778 = vadd.f32 0.0, %v6777
        %v6779 = vpop.f32.mrf.mxu0
        %6780 = vmatprep.mubr.f32.mxu0 0.0
        %6781 = vmatmul.mubr.f32.gmra.mxu0 %v6615
        %v6782 = vpop.f32.mrf.mxu0
        %v6783 = vadd.f32 0.0, %v6782
        %v6784 = vpop.f32.mrf.mxu0
        %6785 = vmatprep.mubr.f32.mxu0 0.0
        %6786 = vmatmul.mubr.f32.gmra.mxu0 %v6618
        %v6787 = vpop.f32.mrf.mxu0
        %v6788 = vadd.f32 0.0, %v6787
        %v6789 = vpop.f32.mrf.mxu0
        %6790 = vmatprep.mubr.f32.mxu0 0.0
        %6791 = vmatmul.mubr.f32.gmra.mxu0 %v6621
        %v6792 = vpop.f32.mrf.mxu0
        %v6793 = vadd.f32 0.0, %v6792
        %v6794 = vpop.f32.mrf.mxu0
        %6795 = vmatprep.mubr.f32.mxu0 0.0
        %6796 = vmatmul.mubr.f32.gmra.mxu0 %v6624
        %v6797 = vpop.f32.mrf.mxu0
        %v6798 = vadd.f32 0.0, %v6797
        %v6799 = vpop.f32.mrf.mxu0
        %6800 = vmatprep.mubr.f32.mxu0 0.0
        %6801 = vmatmul.mubr.f32.gmra.mxu0 %v6627
        %v6802 = vpop.f32.mrf.mxu0
        %v6803 = vadd.f32 0.0, %v6802
        %v6804 = vpop.f32.mrf.mxu0
        %6805 = vmatprep.mubr.f32.mxu0 0.0
        %6806 = vmatmul.mubr.f32.gmra.mxu0 %v6630
        %v6807 = vpop.f32.mrf.mxu0
        %v6808 = vadd.f32 0.0, %v6807
        %v6809 = vpop.f32.mrf.mxu0
        %6810 = vmatprep.mubr.f32.mxu0 0.0
        %6811 = vmatmul.mubr.f32.gmra.mxu0 %v6633
        %v6812 = vpop.f32.mrf.mxu0
        %v6813 = vadd.f32 0.0, %v6812
        %v6814 = vpop.f32.mrf.mxu0
        %6815 = vmatprep.mubr.f32.mxu0 0.0
        %6816 = vmatmul.mubr.f32.gmra.mxu0 %v6636
        %v6817 = vpop.f32.mrf.mxu0
        %v6818 = vadd.f32 0.0, %v6817
        %v6819 = vpop.f32.mrf.mxu0
        %6820 = vmatprep.mubr.f32.mxu0 0.0
        %6821 = vmatmul.mubr.f32.gmra.mxu0 %v6639
        %v6822 = vpop.f32.mrf.mxu0
        %v6823 = vadd.f32 0.0, %v6822
        %v6824 = vpop.f32.mrf.mxu0
        %6825 = vmatprep.mubr.f32.mxu0 0.0
        %6826 = vmatmul.mubr.f32.gmra.mxu0 %v6642
        %v6827 = vpop.f32.mrf.mxu0
        %v6828 = vadd.f32 0.0, %v6827
        %v6829 = vpop.f32.mrf.mxu0
        %6830 = vmatprep.mubr.f32.mxu0 0.0
        %6831 = vmatmul.mubr.f32.gmra.mxu0 %v6645
        %v6832 = vpop.f32.mrf.mxu0
        %v6833 = vadd.f32 0.0, %v6832
        %v6834 = vpop.f32.mrf.mxu0
        %6835 = vmatprep.mubr.f32.mxu0 0.0
        %6836 = vmatmul.mubr.f32.gmra.mxu0 %v6648
        %v6837 = vpop.f32.mrf.mxu0
        %v6838 = vadd.f32 0.0, %v6837
        %v6839 = vpop.f32.mrf.mxu0
        %6840 = vmatprep.mubr.f32.mxu0 0.0
        %6841 = vmatmul.mubr.f32.gmra.mxu0 %v6651
        %v6842 = vpop.f32.mrf.mxu0
        %v6843 = vadd.f32 0.0, %v6842
        %v6844 = vpop.f32.mrf.mxu0
        %6845 = vmatprep.mubr.f32.mxu0 0.0
        %6846 = vmatmul.mubr.f32.gmra.mxu0 %v6654
        %v6847 = vpop.f32.mrf.mxu0
        %v6848 = vadd.f32 0.0, %v6847
        %v6849 = vpop.f32.mrf.mxu0
        %6850 = vmatprep.mubr.f32.mxu0 0.0
        %6851 = vmatmul.mubr.f32.gmra.mxu0 %v6657
        %v6852 = vpop.f32.mrf.mxu0
        %v6853 = vadd.f32 0.0, %v6852
        %v6854 = vpop.f32.mrf.mxu0
        %6855 = vmatprep.mubr.f32.mxu0 0.0
        %6856 = vmatmul.mubr.f32.gmra.mxu0 %v6660
        %v6857 = vpop.f32.mrf.mxu0
        %v6858 = vadd.f32 0.0, %v6857
        %v6859 = vpop.f32.mrf.mxu0
        %6860 = vmatprep.mubr.f32.mxu0 0.0
        %6861 = vmatmul.mubr.f32.gmra.mxu0 %v6663
        %v6862 = vpop.f32.mrf.mxu0
        %v6863 = vadd.f32 0.0, %v6862
        %v6864 = vpop.f32.mrf.mxu0
        %6865 = vmatprep.mubr.f32.mxu0 0.0
        %6866 = vmatmul.mubr.f32.gmra.mxu0 %v6666
        %v6867 = vpop.f32.mrf.mxu0
        %v6868 = vadd.f32 0.0, %v6867
        %v6869 = vpop.f32.mrf.mxu0
        %6870 = vmatprep.mubr.f32.mxu0 0.0
        %6871 = vmatmul.mubr.f32.gmra.mxu0 %v6669
        %v6872 = vpop.f32.mrf.mxu0
        %v6873 = vadd.f32 0.0, %v6872
        %v6874 = vpop.f32.mrf.mxu0
        %6875 = vmatprep.mubr.f32.mxu0 0.0
        %6876 = vmatmul.mubr.f32.gmra.mxu0 %v6672
        %v6877 = vpop.f32.mrf.mxu0
        %v6878 = vadd.f32 0.0, %v6877
        %v6879 = vpop.f32.mrf.mxu0
        %6880 = vmatprep.mubr.f32.mxu0 0.0
        %6881 = vmatmul.mubr.f32.gmra.mxu0 %v6675
        %v6882 = vpop.f32.mrf.mxu0
        %v6883 = vadd.f32 0.0, %v6882
        %v6884 = vpop.f32.mrf.mxu0
        %6885 = vmatprep.mubr.f32.mxu0 0.0
        %6886 = vmatmul.mubr.f32.gmra.mxu0 %v6678
        %v6887 = vpop.f32.mrf.mxu0
        %v6888 = vadd.f32 0.0, %v6887
        %v6889 = vpop.f32.mrf.mxu0
        %6890 = vmatprep.mubr.f32.mxu0 0.0
        %6891 = vmatmul.mubr.f32.gmra.mxu0 %v6681
        %v6892 = vpop.f32.mrf.mxu0
        %v6893 = vadd.f32 0.0, %v6892
        %v6894 = vpop.f32.mrf.mxu0
        %6895 = vmatprep.mubr.f32.mxu0 0.0
        %6896 = vmatmul.mubr.f32.gmra.mxu0 %v6684
        %v6897 = vpop.f32.mrf.mxu0
        %v6898 = vadd.f32 0.0, %v6897
        %v6899 = vpop.f32.mrf.mxu0
        %6900 = vmatprep.mubr.f32.mxu0 0.0
        %6901 = vmatmul.mubr.f32.gmra.mxu0 %v6687
        %v6902 = vpop.f32.mrf.mxu0
        %v6903 = vadd.f32 0.0, %v6902
        %v6904 = vpop.f32.mrf.mxu0
        %6905 = vmatprep.mubr.f32.mxu0 0.0
        %6906 = vmatmul.mubr.f32.gmra.mxu0 %v6690
        %v6907 = vpop.f32.mrf.mxu0
        %v6908 = vadd.f32 0.0, %v6907
        %v6909 = vpop.f32.mrf.mxu0
        %6910 = vmatprep.mubr.f32.mxu0 0.0
        %6911 = vmatmul.mubr.f32.gmra.mxu0 %v6693
        %v6912 = vpop.f32.mrf.mxu0
        %v6913 = vadd.f32 0.0, %v6912
        %v6914 = vpop.f32.mrf.mxu0
        %6915 = vmatprep.mubr.f32.mxu0 0.0
        %6916 = vmatmul.mubr.f32.gmra.mxu0 %v6696
        %v6917 = vpop.f32.mrf.mxu0
        %v6918 = vadd.f32 0.0, %v6917
        %v6919 = vpop.f32.mrf.mxu0
        %6920 = vmatprep.mubr.f32.mxu0 0.0
        %6921 = vmatmul.mubr.f32.gmra.mxu0 %v6699
        %v6922 = vpop.f32.mrf.mxu0
        %v6923 = vadd.f32 0.0, %v6922
        %v6924 = vpop.f32.mrf.mxu0
        %6925 = vdwg.mxu0
        %v6926 = vadd.f32 %v6532, %v6768
        %v6927 = vadd.f32 %v6533, %v6773
        %v6928 = vadd.f32 %v6534, %v6778
        %v6929 = vadd.f32 %v6535, %v6783
        %v6930 = vadd.f32 %v6536, %v6788
        %v6931 = vadd.f32 %v6537, %v6793
        %v6932 = vadd.f32 %v6538, %v6798
        %v6933 = vadd.f32 %v6539, %v6803
        %v6934 = vadd.f32 %v6540, %v6808
        %v6935 = vadd.f32 %v6541, %v6813
        %v6936 = vadd.f32 %v6542, %v6818
        %v6937 = vadd.f32 %v6543, %v6823
        %v6938 = vadd.f32 %v6544, %v6828
        %v6939 = vadd.f32 %v6545, %v6833
        %v6940 = vadd.f32 %v6546, %v6838
        %v6941 = vadd.f32 %v6547, %v6843
        %v6942 = vadd.f32 %v6548, %v6848
        %v6943 = vadd.f32 %v6549, %v6853
        %v6944 = vadd.f32 %v6550, %v6858
        %v6945 = vadd.f32 %v6551, %v6863
        %v6946 = vadd.f32 %v6552, %v6868
        %v6947 = vadd.f32 %v6553, %v6873
        %v6948 = vadd.f32 %v6554, %v6878
        %v6949 = vadd.f32 %v6555, %v6883
        %v6950 = vadd.f32 %v6556, %v6888
        %v6951 = vadd.f32 %v6557, %v6893
        %v6952 = vadd.f32 %v6558, %v6898
        %v6953 = vadd.f32 %v6559, %v6903
        %v6954 = vadd.f32 %v6560, %v6908
        %v6955 = vadd.f32 %v6561, %v6913
        %v6956 = vadd.f32 %v6562, %v6918
        %v6957 = vadd.f32 %v6563, %v6923
        %v6958 = vld [vmem:[%s718] sm:$0xff]
        %v6959 = vld [vmem:[%s718 + $0x8] sm:$0xff]
        %v6960 = vld [vmem:[%s718 + $0x18] sm:$0xff]
        %v6961 = vld [vmem:[%s718 + $0x20] sm:$0xff]
        %v6962 = vld [vmem:[%s718 + $0x30] sm:$0xff]
        %v6963 = vld [vmem:[%s718 + $0x38] sm:$0xff]
        %v6964 = vld [vmem:[%s718 + $0x48] sm:$0xff]
        %v6965 = vld [vmem:[%s718 + $0x50] sm:$0xff]
        %v6966 = vld [vmem:[%s718 + $0x60] sm:$0xff]
        %v6967 = vld [vmem:[%s718 + $0x68] sm:$0xff]
        %v6968 = vld [vmem:[%s718 + $0x78] sm:$0xff]
        %v6969 = vld [vmem:[%s718 + $0x80] sm:$0xff]
        %v6970 = vld [vmem:[%s718 + $0x90] sm:$0xff]
        %v6971 = vld [vmem:[%s718 + $0x98] sm:$0xff]
        %v6972 = vld [vmem:[%s718 + $0xa8] sm:$0xff]
        %v6973 = vld [vmem:[%s718 + $0xb0] sm:$0xff]
        %v6974 = vld [vmem:[%s718 + $0xc0] sm:$0xff]
        %v6975 = vld [vmem:[%s718 + $0xc8] sm:$0xff]
        %v6976 = vld [vmem:[%s718 + $0xd8] sm:$0xff]
        %v6977 = vld [vmem:[%s718 + $0xe0] sm:$0xff]
        %v6978 = vld [vmem:[%s718 + $0xf0] sm:$0xff]
        %v6979 = vld [vmem:[%s718 + $0xf8] sm:$0xff]
        %v6980 = vld [vmem:[%s718 + $0x108] sm:$0xff]
        %v6981 = vld [vmem:[%s718 + $0x110] sm:$0xff]
        %v6982 = vld [vmem:[%s718 + $0x120] sm:$0xff]
        %v6983 = vld [vmem:[%s718 + $0x128] sm:$0xff]
        %v6984 = vld [vmem:[%s718 + $0x138] sm:$0xff]
        %v6985 = vld [vmem:[%s718 + $0x140] sm:$0xff]
        %v6986 = vld [vmem:[%s718 + $0x150] sm:$0xff]
        %v6987 = vld [vmem:[%s718 + $0x158] sm:$0xff]
        %v6988 = vld [vmem:[%s718 + $0x168] sm:$0xff]
        %v6989 = vld [vmem:[%s718 + $0x170] sm:$0xff]
        %s6990 = scalar_lea.vmem %s2, 384
        %v6991 = vld [vmem:[%s6990] sm:$0xff]
        %v6992 = vld [vmem:[%s6990 + $0x8] sm:$0xff]
        %v6993 = vld [vmem:[%s6990 + $0x10] sm:$0xff]
        %v6994 = vld [vmem:[%s6990 + $0x18] sm:$0xff]
        %v6995 = vld [vmem:[%s6990 + $0x20] sm:$0xff]
        %v6996 = vld [vmem:[%s6990 + $0x28] sm:$0xff]
        %v6997 = vld [vmem:[%s6990 + $0x30] sm:$0xff]
        %v6998 = vld [vmem:[%s6990 + $0x38] sm:$0xff]
        %v7000 = vsel %vm282, %v6958, 0
        %v7003 = vsel %vm282, %v6959, 0
        %v7006 = vsel %vm282, %v6960, 0
        %v7009 = vsel %vm282, %v6961, 0
        %v7012 = vsel %vm282, %v6962, 0
        %v7015 = vsel %vm282, %v6963, 0
        %v7018 = vsel %vm282, %v6964, 0
        %v7021 = vsel %vm282, %v6965, 0
        %v7024 = vsel %vm282, %v6966, 0
        %v7027 = vsel %vm282, %v6967, 0
        %v7030 = vsel %vm282, %v6968, 0
        %v7033 = vsel %vm282, %v6969, 0
        %v7036 = vsel %vm282, %v6970, 0
        %v7039 = vsel %vm282, %v6971, 0
        %v7042 = vsel %vm282, %v6972, 0
        %v7045 = vsel %vm282, %v6973, 0
        %v7048 = vsel %vm282, %v6974, 0
        %v7051 = vsel %vm282, %v6975, 0
        %v7054 = vsel %vm282, %v6976, 0
        %v7057 = vsel %vm282, %v6977, 0
        %v7060 = vsel %vm282, %v6978, 0
        %v7063 = vsel %vm282, %v6979, 0
        %v7066 = vsel %vm282, %v6980, 0
        %v7069 = vsel %vm282, %v6981, 0
        %v7072 = vsel %vm282, %v6982, 0
        %v7075 = vsel %vm282, %v6983, 0
        %v7078 = vsel %vm282, %v6984, 0
        %v7081 = vsel %vm282, %v6985, 0
        %v7084 = vsel %vm282, %v6986, 0
        %v7087 = vsel %vm282, %v6987, 0
        %v7090 = vsel %vm282, %v6988, 0
        %v7093 = vsel %vm282, %v6989, 0
        %7095 = vmatprep.subr.mxu0 0.0
        %7096 = vmatpush1.msra.mxu0 0.0
        %7097 = vmatprep.subr.mxu0 0.0
        %7098 = vmatpush1.msra.mxu0 0.0
        %7099 = vmatprep.subr.mxu0 0.0
        %7100 = vmatpush1.msra.mxu0 0.0
        %7101 = vmatprep.subr.mxu0 0.0
        %7102 = vmatpush1.msra.mxu0 0.0
        %7103 = vmatprep.subr.mxu0 0.0
        %7104 = vmatpush1.msra.mxu0 0.0
        %7105 = vmatprep.subr.mxu0 0.0
        %7106 = vmatpush1.msra.mxu0 0.0
        %7107 = vmatprep.subr.mxu0 0.0
        %7108 = vmatpush1.msra.mxu0 0.0
        %7109 = vmatprep.subr.mxu0 0.0
        %7110 = vmatpush1.msra.mxu0 0.0
        %7111 = vmatprep.subr.mxu0 0.0
        %7112 = vmatpush1.msra.mxu0 %v6998
        %7113 = vmatprep.subr.mxu0 0.0
        %7114 = vmatpush1.msra.mxu0 %v6997
        %7115 = vmatprep.subr.mxu0 0.0
        %7116 = vmatpush1.msra.mxu0 %v6996
        %7117 = vmatprep.subr.mxu0 0.0
        %7118 = vmatpush1.msra.mxu0 %v6995
        %7119 = vmatprep.subr.mxu0 0.0
        %7120 = vmatpush1.msra.mxu0 %v6994
        %7121 = vmatprep.subr.mxu0 0.0
        %7122 = vmatpush1.msra.mxu0 %v6993
        %7123 = vmatprep.subr.mxu0 0.0
        %7124 = vmatpush1.msra.mxu0 %v6992
        %7125 = vmatprep.subr.mxu0 0.0
        %7126 = vmatpush1.msra.mxu0 %v6991
        %7127 = vmatprep.subr.mxu0 0.0
        %7128 = vmatpush2.msra.mxu0 0.0
        %7129 = vmatprep.subr.mxu0 0.0
        %7130 = vmatpush2.msra.mxu0 0.0
        %7131 = vmatprep.subr.mxu0 0.0
        %7132 = vmatpush2.msra.mxu0 0.0
        %7133 = vmatprep.subr.mxu0 0.0
        %7134 = vmatpush2.msra.mxu0 0.0
        %7135 = vmatprep.subr.mxu0 0.0
        %7136 = vmatpush2.msra.mxu0 0.0
        %7137 = vmatprep.subr.mxu0 0.0
        %7138 = vmatpush2.msra.mxu0 0.0
        %7139 = vmatprep.subr.mxu0 0.0
        %7140 = vmatpush2.msra.mxu0 0.0
        %7141 = vmatprep.subr.mxu0 0.0
        %7142 = vmatpush2.msra.mxu0 0.0
        %7143 = vmatprep.subr.mxu0 0.0
        %7144 = vmatpush2.msra.mxu0 0.0
        %7145 = vmatprep.subr.mxu0 0.0
        %7146 = vmatpush2.msra.mxu0 0.0
        %7147 = vmatprep.subr.mxu0 0.0
        %7148 = vmatpush2.msra.mxu0 0.0
        %7149 = vmatprep.subr.mxu0 0.0
        %7150 = vmatpush2.msra.mxu0 0.0
        %7151 = vmatprep.subr.mxu0 0.0
        %7152 = vmatpush2.msra.mxu0 0.0
        %7153 = vmatprep.subr.mxu0 0.0
        %7154 = vmatpush2.msra.mxu0 0.0
        %7155 = vmatprep.subr.mxu0 0.0
        %7156 = vmatpush2.msra.mxu0 0.0
        %7157 = vmatprep.subr.mxu0 0.0
        %7158 = vmatpush2.msra.mxu0 0.0
        %7159 = vmatprep.mubr.f32.mxu0 0.0
        %7160 = vmatmul.mubr.f32.gmra.mxu0 %v7000
        %v7161 = vpop.f32.mrf.mxu0
        %v7162 = vadd.f32 0.0, %v7161
        %v7163 = vpop.f32.mrf.mxu0
        %7164 = vmatprep.mubr.f32.mxu0 0.0
        %7165 = vmatmul.mubr.f32.gmra.mxu0 %v7003
        %v7166 = vpop.f32.mrf.mxu0
        %v7167 = vadd.f32 0.0, %v7166
        %v7168 = vpop.f32.mrf.mxu0
        %7169 = vmatprep.mubr.f32.mxu0 0.0
        %7170 = vmatmul.mubr.f32.gmra.mxu0 %v7006
        %v7171 = vpop.f32.mrf.mxu0
        %v7172 = vadd.f32 0.0, %v7171
        %v7173 = vpop.f32.mrf.mxu0
        %7174 = vmatprep.mubr.f32.mxu0 0.0
        %7175 = vmatmul.mubr.f32.gmra.mxu0 %v7009
        %v7176 = vpop.f32.mrf.mxu0
        %v7177 = vadd.f32 0.0, %v7176
        %v7178 = vpop.f32.mrf.mxu0
        %7179 = vmatprep.mubr.f32.mxu0 0.0
        %7180 = vmatmul.mubr.f32.gmra.mxu0 %v7012
        %v7181 = vpop.f32.mrf.mxu0
        %v7182 = vadd.f32 0.0, %v7181
        %v7183 = vpop.f32.mrf.mxu0
        %7184 = vmatprep.mubr.f32.mxu0 0.0
        %7185 = vmatmul.mubr.f32.gmra.mxu0 %v7015
        %v7186 = vpop.f32.mrf.mxu0
        %v7187 = vadd.f32 0.0, %v7186
        %v7188 = vpop.f32.mrf.mxu0
        %7189 = vmatprep.mubr.f32.mxu0 0.0
        %7190 = vmatmul.mubr.f32.gmra.mxu0 %v7018
        %v7191 = vpop.f32.mrf.mxu0
        %v7192 = vadd.f32 0.0, %v7191
        %v7193 = vpop.f32.mrf.mxu0
        %7194 = vmatprep.mubr.f32.mxu0 0.0
        %7195 = vmatmul.mubr.f32.gmra.mxu0 %v7021
        %v7196 = vpop.f32.mrf.mxu0
        %v7197 = vadd.f32 0.0, %v7196
        %v7198 = vpop.f32.mrf.mxu0
        %7199 = vmatprep.mubr.f32.mxu0 0.0
        %7200 = vmatmul.mubr.f32.gmra.mxu0 %v7024
        %v7201 = vpop.f32.mrf.mxu0
        %v7202 = vadd.f32 0.0, %v7201
        %v7203 = vpop.f32.mrf.mxu0
        %7204 = vmatprep.mubr.f32.mxu0 0.0
        %7205 = vmatmul.mubr.f32.gmra.mxu0 %v7027
        %v7206 = vpop.f32.mrf.mxu0
        %v7207 = vadd.f32 0.0, %v7206
        %v7208 = vpop.f32.mrf.mxu0
        %7209 = vmatprep.mubr.f32.mxu0 0.0
        %7210 = vmatmul.mubr.f32.gmra.mxu0 %v7030
        %v7211 = vpop.f32.mrf.mxu0
        %v7212 = vadd.f32 0.0, %v7211
        %v7213 = vpop.f32.mrf.mxu0
        %7214 = vmatprep.mubr.f32.mxu0 0.0
        %7215 = vmatmul.mubr.f32.gmra.mxu0 %v7033
        %v7216 = vpop.f32.mrf.mxu0
        %v7217 = vadd.f32 0.0, %v7216
        %v7218 = vpop.f32.mrf.mxu0
        %7219 = vmatprep.mubr.f32.mxu0 0.0
        %7220 = vmatmul.mubr.f32.gmra.mxu0 %v7036
        %v7221 = vpop.f32.mrf.mxu0
        %v7222 = vadd.f32 0.0, %v7221
        %v7223 = vpop.f32.mrf.mxu0
        %7224 = vmatprep.mubr.f32.mxu0 0.0
        %7225 = vmatmul.mubr.f32.gmra.mxu0 %v7039
        %v7226 = vpop.f32.mrf.mxu0
        %v7227 = vadd.f32 0.0, %v7226
        %v7228 = vpop.f32.mrf.mxu0
        %7229 = vmatprep.mubr.f32.mxu0 0.0
        %7230 = vmatmul.mubr.f32.gmra.mxu0 %v7042
        %v7231 = vpop.f32.mrf.mxu0
        %v7232 = vadd.f32 0.0, %v7231
        %v7233 = vpop.f32.mrf.mxu0
        %7234 = vmatprep.mubr.f32.mxu0 0.0
        %7235 = vmatmul.mubr.f32.gmra.mxu0 %v7045
        %v7236 = vpop.f32.mrf.mxu0
        %v7237 = vadd.f32 0.0, %v7236
        %v7238 = vpop.f32.mrf.mxu0
        %7239 = vmatprep.mubr.f32.mxu0 0.0
        %7240 = vmatmul.mubr.f32.gmra.mxu0 %v7048
        %v7241 = vpop.f32.mrf.mxu0
        %v7242 = vadd.f32 0.0, %v7241
        %v7243 = vpop.f32.mrf.mxu0
        %7244 = vmatprep.mubr.f32.mxu0 0.0
        %7245 = vmatmul.mubr.f32.gmra.mxu0 %v7051
        %v7246 = vpop.f32.mrf.mxu0
        %v7247 = vadd.f32 0.0, %v7246
        %v7248 = vpop.f32.mrf.mxu0
        %7249 = vmatprep.mubr.f32.mxu0 0.0
        %7250 = vmatmul.mubr.f32.gmra.mxu0 %v7054
        %v7251 = vpop.f32.mrf.mxu0
        %v7252 = vadd.f32 0.0, %v7251
        %v7253 = vpop.f32.mrf.mxu0
        %7254 = vmatprep.mubr.f32.mxu0 0.0
        %7255 = vmatmul.mubr.f32.gmra.mxu0 %v7057
        %v7256 = vpop.f32.mrf.mxu0
        %v7257 = vadd.f32 0.0, %v7256
        %v7258 = vpop.f32.mrf.mxu0
        %7259 = vmatprep.mubr.f32.mxu0 0.0
        %7260 = vmatmul.mubr.f32.gmra.mxu0 %v7060
        %v7261 = vpop.f32.mrf.mxu0
        %v7262 = vadd.f32 0.0, %v7261
        %v7263 = vpop.f32.mrf.mxu0
        %7264 = vmatprep.mubr.f32.mxu0 0.0
        %7265 = vmatmul.mubr.f32.gmra.mxu0 %v7063
        %v7266 = vpop.f32.mrf.mxu0
        %v7267 = vadd.f32 0.0, %v7266
        %v7268 = vpop.f32.mrf.mxu0
        %7269 = vmatprep.mubr.f32.mxu0 0.0
        %7270 = vmatmul.mubr.f32.gmra.mxu0 %v7066
        %v7271 = vpop.f32.mrf.mxu0
        %v7272 = vadd.f32 0.0, %v7271
        %v7273 = vpop.f32.mrf.mxu0
        %7274 = vmatprep.mubr.f32.mxu0 0.0
        %7275 = vmatmul.mubr.f32.gmra.mxu0 %v7069
        %v7276 = vpop.f32.mrf.mxu0
        %v7277 = vadd.f32 0.0, %v7276
        %v7278 = vpop.f32.mrf.mxu0
        %7279 = vmatprep.mubr.f32.mxu0 0.0
        %7280 = vmatmul.mubr.f32.gmra.mxu0 %v7072
        %v7281 = vpop.f32.mrf.mxu0
        %v7282 = vadd.f32 0.0, %v7281
        %v7283 = vpop.f32.mrf.mxu0
        %7284 = vmatprep.mubr.f32.mxu0 0.0
        %7285 = vmatmul.mubr.f32.gmra.mxu0 %v7075
        %v7286 = vpop.f32.mrf.mxu0
        %v7287 = vadd.f32 0.0, %v7286
        %v7288 = vpop.f32.mrf.mxu0
        %7289 = vmatprep.mubr.f32.mxu0 0.0
        %7290 = vmatmul.mubr.f32.gmra.mxu0 %v7078
        %v7291 = vpop.f32.mrf.mxu0
        %v7292 = vadd.f32 0.0, %v7291
        %v7293 = vpop.f32.mrf.mxu0
        %7294 = vmatprep.mubr.f32.mxu0 0.0
        %7295 = vmatmul.mubr.f32.gmra.mxu0 %v7081
        %v7296 = vpop.f32.mrf.mxu0
        %v7297 = vadd.f32 0.0, %v7296
        %v7298 = vpop.f32.mrf.mxu0
        %7299 = vmatprep.mubr.f32.mxu0 0.0
        %7300 = vmatmul.mubr.f32.gmra.mxu0 %v7084
        %v7301 = vpop.f32.mrf.mxu0
        %v7302 = vadd.f32 0.0, %v7301
        %v7303 = vpop.f32.mrf.mxu0
        %7304 = vmatprep.mubr.f32.mxu0 0.0
        %7305 = vmatmul.mubr.f32.gmra.mxu0 %v7087
        %v7306 = vpop.f32.mrf.mxu0
        %v7307 = vadd.f32 0.0, %v7306
        %v7308 = vpop.f32.mrf.mxu0
        %7309 = vmatprep.mubr.f32.mxu0 0.0
        %7310 = vmatmul.mubr.f32.gmra.mxu0 %v7090
        %v7311 = vpop.f32.mrf.mxu0
        %v7312 = vadd.f32 0.0, %v7311
        %v7313 = vpop.f32.mrf.mxu0
        %7314 = vmatprep.mubr.f32.mxu0 0.0
        %7315 = vmatmul.mubr.f32.gmra.mxu0 %v7093
        %v7316 = vpop.f32.mrf.mxu0
        %v7317 = vadd.f32 0.0, %v7316
        %v7318 = vpop.f32.mrf.mxu0
        %7319 = vdwg.mxu0
        %v7320 = vadd.f32 %v6926, %v7162
        %v7321 = vadd.f32 %v6927, %v7167
        %v7322 = vadd.f32 %v6928, %v7172
        %v7323 = vadd.f32 %v6929, %v7177
        %v7324 = vadd.f32 %v6930, %v7182
        %v7325 = vadd.f32 %v6931, %v7187
        %v7326 = vadd.f32 %v6932, %v7192
        %v7327 = vadd.f32 %v6933, %v7197
        %v7328 = vadd.f32 %v6934, %v7202
        %v7329 = vadd.f32 %v6935, %v7207
        %v7330 = vadd.f32 %v6936, %v7212
        %v7331 = vadd.f32 %v6937, %v7217
        %v7332 = vadd.f32 %v6938, %v7222
        %v7333 = vadd.f32 %v6939, %v7227
        %v7334 = vadd.f32 %v6940, %v7232
        %v7335 = vadd.f32 %v6941, %v7237
        %v7336 = vadd.f32 %v6942, %v7242
        %v7337 = vadd.f32 %v6943, %v7247
        %v7338 = vadd.f32 %v6944, %v7252
        %v7339 = vadd.f32 %v6945, %v7257
        %v7340 = vadd.f32 %v6946, %v7262
        %v7341 = vadd.f32 %v6947, %v7267
        %v7342 = vadd.f32 %v6948, %v7272
        %v7343 = vadd.f32 %v6949, %v7277
        %v7344 = vadd.f32 %v6950, %v7282
        %v7345 = vadd.f32 %v6951, %v7287
        %v7346 = vadd.f32 %v6952, %v7292
        %v7347 = vadd.f32 %v6953, %v7297
        %v7348 = vadd.f32 %v6954, %v7302
        %v7349 = vadd.f32 %v6955, %v7307
        %v7350 = vadd.f32 %v6956, %v7312
        %v7351 = vadd.f32 %v6957, %v7317
        %v7352 = vld [vmem:[%s718 + $0x1] sm:$0xff]
        %v7353 = vld [vmem:[%s718 + $0x9] sm:$0xff]
        %v7354 = vld [vmem:[%s718 + $0x19] sm:$0xff]
        %v7355 = vld [vmem:[%s718 + $0x21] sm:$0xff]
        %v7356 = vld [vmem:[%s718 + $0x31] sm:$0xff]
        %v7357 = vld [vmem:[%s718 + $0x39] sm:$0xff]
        %v7358 = vld [vmem:[%s718 + $0x49] sm:$0xff]
        %v7359 = vld [vmem:[%s718 + $0x51] sm:$0xff]
        %v7360 = vld [vmem:[%s718 + $0x61] sm:$0xff]
        %v7361 = vld [vmem:[%s718 + $0x69] sm:$0xff]
        %v7362 = vld [vmem:[%s718 + $0x79] sm:$0xff]
        %v7363 = vld [vmem:[%s718 + $0x81] sm:$0xff]
        %v7364 = vld [vmem:[%s718 + $0x91] sm:$0xff]
        %v7365 = vld [vmem:[%s718 + $0x99] sm:$0xff]
        %v7366 = vld [vmem:[%s718 + $0xa9] sm:$0xff]
        %v7367 = vld [vmem:[%s718 + $0xb1] sm:$0xff]
        %v7368 = vld [vmem:[%s718 + $0xc1] sm:$0xff]
        %v7369 = vld [vmem:[%s718 + $0xc9] sm:$0xff]
        %v7370 = vld [vmem:[%s718 + $0xd9] sm:$0xff]
        %v7371 = vld [vmem:[%s718 + $0xe1] sm:$0xff]
        %v7372 = vld [vmem:[%s718 + $0xf1] sm:$0xff]
        %v7373 = vld [vmem:[%s718 + $0xf9] sm:$0xff]
        %v7374 = vld [vmem:[%s718 + $0x109] sm:$0xff]
        %v7375 = vld [vmem:[%s718 + $0x111] sm:$0xff]
        %v7376 = vld [vmem:[%s718 + $0x121] sm:$0xff]
        %v7377 = vld [vmem:[%s718 + $0x129] sm:$0xff]
        %v7378 = vld [vmem:[%s718 + $0x139] sm:$0xff]
        %v7379 = vld [vmem:[%s718 + $0x141] sm:$0xff]
        %v7380 = vld [vmem:[%s718 + $0x151] sm:$0xff]
        %v7381 = vld [vmem:[%s718 + $0x159] sm:$0xff]
        %v7382 = vld [vmem:[%s718 + $0x169] sm:$0xff]
        %v7383 = vld [vmem:[%s718 + $0x171] sm:$0xff]
        %s7384 = scalar_lea.vmem %s2, 448
        %v7385 = vld [vmem:[%s7384] sm:$0xff]
        %v7386 = vld [vmem:[%s7384 + $0x8] sm:$0xff]
        %v7387 = vld [vmem:[%s7384 + $0x10] sm:$0xff]
        %v7388 = vld [vmem:[%s7384 + $0x18] sm:$0xff]
        %v7389 = vld [vmem:[%s7384 + $0x20] sm:$0xff]
        %v7390 = vld [vmem:[%s7384 + $0x28] sm:$0xff]
        %v7391 = vld [vmem:[%s7384 + $0x30] sm:$0xff]
        %v7392 = vld [vmem:[%s7384 + $0x38] sm:$0xff]
        %v7394 = vsel %vm282, %v7352, 0
        %v7397 = vsel %vm282, %v7353, 0
        %v7400 = vsel %vm282, %v7354, 0
        %v7403 = vsel %vm282, %v7355, 0
        %v7406 = vsel %vm282, %v7356, 0
        %v7409 = vsel %vm282, %v7357, 0
        %v7412 = vsel %vm282, %v7358, 0
        %v7415 = vsel %vm282, %v7359, 0
        %v7418 = vsel %vm282, %v7360, 0
        %v7421 = vsel %vm282, %v7361, 0
        %v7424 = vsel %vm282, %v7362, 0
        %v7427 = vsel %vm282, %v7363, 0
        %v7430 = vsel %vm282, %v7364, 0
        %v7433 = vsel %vm282, %v7365, 0
        %v7436 = vsel %vm282, %v7366, 0
        %v7439 = vsel %vm282, %v7367, 0
        %v7442 = vsel %vm282, %v7368, 0
        %v7445 = vsel %vm282, %v7369, 0
        %v7448 = vsel %vm282, %v7370, 0
        %v7451 = vsel %vm282, %v7371, 0
        %v7454 = vsel %vm282, %v7372, 0
        %v7457 = vsel %vm282, %v7373, 0
        %v7460 = vsel %vm282, %v7374, 0
        %v7463 = vsel %vm282, %v7375, 0
        %v7466 = vsel %vm282, %v7376, 0
        %v7469 = vsel %vm282, %v7377, 0
        %v7472 = vsel %vm282, %v7378, 0
        %v7475 = vsel %vm282, %v7379, 0
        %v7478 = vsel %vm282, %v7380, 0
        %v7481 = vsel %vm282, %v7381, 0
        %v7484 = vsel %vm282, %v7382, 0
        %v7487 = vsel %vm282, %v7383, 0
        %7489 = vmatprep.subr.mxu0 0.0
        %7490 = vmatpush1.msra.mxu0 0.0
        %7491 = vmatprep.subr.mxu0 0.0
        %7492 = vmatpush1.msra.mxu0 0.0
        %7493 = vmatprep.subr.mxu0 0.0
        %7494 = vmatpush1.msra.mxu0 0.0
        %7495 = vmatprep.subr.mxu0 0.0
        %7496 = vmatpush1.msra.mxu0 0.0
        %7497 = vmatprep.subr.mxu0 0.0
        %7498 = vmatpush1.msra.mxu0 0.0
        %7499 = vmatprep.subr.mxu0 0.0
        %7500 = vmatpush1.msra.mxu0 0.0
        %7501 = vmatprep.subr.mxu0 0.0
        %7502 = vmatpush1.msra.mxu0 0.0
        %7503 = vmatprep.subr.mxu0 0.0
        %7504 = vmatpush1.msra.mxu0 0.0
        %7505 = vmatprep.subr.mxu0 0.0
        %7506 = vmatpush1.msra.mxu0 %v7392
        %7507 = vmatprep.subr.mxu0 0.0
        %7508 = vmatpush1.msra.mxu0 %v7391
        %7509 = vmatprep.subr.mxu0 0.0
        %7510 = vmatpush1.msra.mxu0 %v7390
        %7511 = vmatprep.subr.mxu0 0.0
        %7512 = vmatpush1.msra.mxu0 %v7389
        %7513 = vmatprep.subr.mxu0 0.0
        %7514 = vmatpush1.msra.mxu0 %v7388
        %7515 = vmatprep.subr.mxu0 0.0
        %7516 = vmatpush1.msra.mxu0 %v7387
        %7517 = vmatprep.subr.mxu0 0.0
        %7518 = vmatpush1.msra.mxu0 %v7386
        %7519 = vmatprep.subr.mxu0 0.0
        %7520 = vmatpush1.msra.mxu0 %v7385
        %7521 = vmatprep.subr.mxu0 0.0
        %7522 = vmatpush2.msra.mxu0 0.0
        %7523 = vmatprep.subr.mxu0 0.0
        %7524 = vmatpush2.msra.mxu0 0.0
        %7525 = vmatprep.subr.mxu0 0.0
        %7526 = vmatpush2.msra.mxu0 0.0
        %7527 = vmatprep.subr.mxu0 0.0
        %7528 = vmatpush2.msra.mxu0 0.0
        %7529 = vmatprep.subr.mxu0 0.0
        %7530 = vmatpush2.msra.mxu0 0.0
        %7531 = vmatprep.subr.mxu0 0.0
        %7532 = vmatpush2.msra.mxu0 0.0
        %7533 = vmatprep.subr.mxu0 0.0
        %7534 = vmatpush2.msra.mxu0 0.0
        %7535 = vmatprep.subr.mxu0 0.0
        %7536 = vmatpush2.msra.mxu0 0.0
        %7537 = vmatprep.subr.mxu0 0.0
        %7538 = vmatpush2.msra.mxu0 0.0
        %7539 = vmatprep.subr.mxu0 0.0
        %7540 = vmatpush2.msra.mxu0 0.0
        %7541 = vmatprep.subr.mxu0 0.0
        %7542 = vmatpush2.msra.mxu0 0.0
        %7543 = vmatprep.subr.mxu0 0.0
        %7544 = vmatpush2.msra.mxu0 0.0
        %7545 = vmatprep.subr.mxu0 0.0
        %7546 = vmatpush2.msra.mxu0 0.0
        %7547 = vmatprep.subr.mxu0 0.0
        %7548 = vmatpush2.msra.mxu0 0.0
        %7549 = vmatprep.subr.mxu0 0.0
        %7550 = vmatpush2.msra.mxu0 0.0
        %7551 = vmatprep.subr.mxu0 0.0
        %7552 = vmatpush2.msra.mxu0 0.0
        %7553 = vmatprep.mubr.f32.mxu0 0.0
        %7554 = vmatmul.mubr.f32.gmra.mxu0 %v7394
        %v7555 = vpop.f32.mrf.mxu0
        %v7556 = vadd.f32 0.0, %v7555
        %v7557 = vpop.f32.mrf.mxu0
        %7558 = vmatprep.mubr.f32.mxu0 0.0
        %7559 = vmatmul.mubr.f32.gmra.mxu0 %v7397
        %v7560 = vpop.f32.mrf.mxu0
        %v7561 = vadd.f32 0.0, %v7560
        %v7562 = vpop.f32.mrf.mxu0
        %7563 = vmatprep.mubr.f32.mxu0 0.0
        %7564 = vmatmul.mubr.f32.gmra.mxu0 %v7400
        %v7565 = vpop.f32.mrf.mxu0
        %v7566 = vadd.f32 0.0, %v7565
        %v7567 = vpop.f32.mrf.mxu0
        %7568 = vmatprep.mubr.f32.mxu0 0.0
        %7569 = vmatmul.mubr.f32.gmra.mxu0 %v7403
        %v7570 = vpop.f32.mrf.mxu0
        %v7571 = vadd.f32 0.0, %v7570
        %v7572 = vpop.f32.mrf.mxu0
        %7573 = vmatprep.mubr.f32.mxu0 0.0
        %7574 = vmatmul.mubr.f32.gmra.mxu0 %v7406
        %v7575 = vpop.f32.mrf.mxu0
        %v7576 = vadd.f32 0.0, %v7575
        %v7577 = vpop.f32.mrf.mxu0
        %7578 = vmatprep.mubr.f32.mxu0 0.0
        %7579 = vmatmul.mubr.f32.gmra.mxu0 %v7409
        %v7580 = vpop.f32.mrf.mxu0
        %v7581 = vadd.f32 0.0, %v7580
        %v7582 = vpop.f32.mrf.mxu0
        %7583 = vmatprep.mubr.f32.mxu0 0.0
        %7584 = vmatmul.mubr.f32.gmra.mxu0 %v7412
        %v7585 = vpop.f32.mrf.mxu0
        %v7586 = vadd.f32 0.0, %v7585
        %v7587 = vpop.f32.mrf.mxu0
        %7588 = vmatprep.mubr.f32.mxu0 0.0
        %7589 = vmatmul.mubr.f32.gmra.mxu0 %v7415
        %v7590 = vpop.f32.mrf.mxu0
        %v7591 = vadd.f32 0.0, %v7590
        %v7592 = vpop.f32.mrf.mxu0
        %7593 = vmatprep.mubr.f32.mxu0 0.0
        %7594 = vmatmul.mubr.f32.gmra.mxu0 %v7418
        %v7595 = vpop.f32.mrf.mxu0
        %v7596 = vadd.f32 0.0, %v7595
        %v7597 = vpop.f32.mrf.mxu0
        %7598 = vmatprep.mubr.f32.mxu0 0.0
        %7599 = vmatmul.mubr.f32.gmra.mxu0 %v7421
        %v7600 = vpop.f32.mrf.mxu0
        %v7601 = vadd.f32 0.0, %v7600
        %v7602 = vpop.f32.mrf.mxu0
        %7603 = vmatprep.mubr.f32.mxu0 0.0
        %7604 = vmatmul.mubr.f32.gmra.mxu0 %v7424
        %v7605 = vpop.f32.mrf.mxu0
        %v7606 = vadd.f32 0.0, %v7605
        %v7607 = vpop.f32.mrf.mxu0
        %7608 = vmatprep.mubr.f32.mxu0 0.0
        %7609 = vmatmul.mubr.f32.gmra.mxu0 %v7427
        %v7610 = vpop.f32.mrf.mxu0
        %v7611 = vadd.f32 0.0, %v7610
        %v7612 = vpop.f32.mrf.mxu0
        %7613 = vmatprep.mubr.f32.mxu0 0.0
        %7614 = vmatmul.mubr.f32.gmra.mxu0 %v7430
        %v7615 = vpop.f32.mrf.mxu0
        %v7616 = vadd.f32 0.0, %v7615
        %v7617 = vpop.f32.mrf.mxu0
        %7618 = vmatprep.mubr.f32.mxu0 0.0
        %7619 = vmatmul.mubr.f32.gmra.mxu0 %v7433
        %v7620 = vpop.f32.mrf.mxu0
        %v7621 = vadd.f32 0.0, %v7620
        %v7622 = vpop.f32.mrf.mxu0
        %7623 = vmatprep.mubr.f32.mxu0 0.0
        %7624 = vmatmul.mubr.f32.gmra.mxu0 %v7436
        %v7625 = vpop.f32.mrf.mxu0
        %v7626 = vadd.f32 0.0, %v7625
        %v7627 = vpop.f32.mrf.mxu0
        %7628 = vmatprep.mubr.f32.mxu0 0.0
        %7629 = vmatmul.mubr.f32.gmra.mxu0 %v7439
        %v7630 = vpop.f32.mrf.mxu0
        %v7631 = vadd.f32 0.0, %v7630
        %v7632 = vpop.f32.mrf.mxu0
        %7633 = vmatprep.mubr.f32.mxu0 0.0
        %7634 = vmatmul.mubr.f32.gmra.mxu0 %v7442
        %v7635 = vpop.f32.mrf.mxu0
        %v7636 = vadd.f32 0.0, %v7635
        %v7637 = vpop.f32.mrf.mxu0
        %7638 = vmatprep.mubr.f32.mxu0 0.0
        %7639 = vmatmul.mubr.f32.gmra.mxu0 %v7445
        %v7640 = vpop.f32.mrf.mxu0
        %v7641 = vadd.f32 0.0, %v7640
        %v7642 = vpop.f32.mrf.mxu0
        %7643 = vmatprep.mubr.f32.mxu0 0.0
        %7644 = vmatmul.mubr.f32.gmra.mxu0 %v7448
        %v7645 = vpop.f32.mrf.mxu0
        %v7646 = vadd.f32 0.0, %v7645
        %v7647 = vpop.f32.mrf.mxu0
        %7648 = vmatprep.mubr.f32.mxu0 0.0
        %7649 = vmatmul.mubr.f32.gmra.mxu0 %v7451
        %v7650 = vpop.f32.mrf.mxu0
        %v7651 = vadd.f32 0.0, %v7650
        %v7652 = vpop.f32.mrf.mxu0
        %7653 = vmatprep.mubr.f32.mxu0 0.0
        %7654 = vmatmul.mubr.f32.gmra.mxu0 %v7454
        %v7655 = vpop.f32.mrf.mxu0
        %v7656 = vadd.f32 0.0, %v7655
        %v7657 = vpop.f32.mrf.mxu0
        %7658 = vmatprep.mubr.f32.mxu0 0.0
        %7659 = vmatmul.mubr.f32.gmra.mxu0 %v7457
        %v7660 = vpop.f32.mrf.mxu0
        %v7661 = vadd.f32 0.0, %v7660
        %v7662 = vpop.f32.mrf.mxu0
        %7663 = vmatprep.mubr.f32.mxu0 0.0
        %7664 = vmatmul.mubr.f32.gmra.mxu0 %v7460
        %v7665 = vpop.f32.mrf.mxu0
        %v7666 = vadd.f32 0.0, %v7665
        %v7667 = vpop.f32.mrf.mxu0
        %7668 = vmatprep.mubr.f32.mxu0 0.0
        %7669 = vmatmul.mubr.f32.gmra.mxu0 %v7463
        %v7670 = vpop.f32.mrf.mxu0
        %v7671 = vadd.f32 0.0, %v7670
        %v7672 = vpop.f32.mrf.mxu0
        %7673 = vmatprep.mubr.f32.mxu0 0.0
        %7674 = vmatmul.mubr.f32.gmra.mxu0 %v7466
        %v7675 = vpop.f32.mrf.mxu0
        %v7676 = vadd.f32 0.0, %v7675
        %v7677 = vpop.f32.mrf.mxu0
        %7678 = vmatprep.mubr.f32.mxu0 0.0
        %7679 = vmatmul.mubr.f32.gmra.mxu0 %v7469
        %v7680 = vpop.f32.mrf.mxu0
        %v7681 = vadd.f32 0.0, %v7680
        %v7682 = vpop.f32.mrf.mxu0
        %7683 = vmatprep.mubr.f32.mxu0 0.0
        %7684 = vmatmul.mubr.f32.gmra.mxu0 %v7472
        %v7685 = vpop.f32.mrf.mxu0
        %v7686 = vadd.f32 0.0, %v7685
        %v7687 = vpop.f32.mrf.mxu0
        %7688 = vmatprep.mubr.f32.mxu0 0.0
        %7689 = vmatmul.mubr.f32.gmra.mxu0 %v7475
        %v7690 = vpop.f32.mrf.mxu0
        %v7691 = vadd.f32 0.0, %v7690
        %v7692 = vpop.f32.mrf.mxu0
        %7693 = vmatprep.mubr.f32.mxu0 0.0
        %7694 = vmatmul.mubr.f32.gmra.mxu0 %v7478
        %v7695 = vpop.f32.mrf.mxu0
        %v7696 = vadd.f32 0.0, %v7695
        %v7697 = vpop.f32.mrf.mxu0
        %7698 = vmatprep.mubr.f32.mxu0 0.0
        %7699 = vmatmul.mubr.f32.gmra.mxu0 %v7481
        %v7700 = vpop.f32.mrf.mxu0
        %v7701 = vadd.f32 0.0, %v7700
        %v7702 = vpop.f32.mrf.mxu0
        %7703 = vmatprep.mubr.f32.mxu0 0.0
        %7704 = vmatmul.mubr.f32.gmra.mxu0 %v7484
        %v7705 = vpop.f32.mrf.mxu0
        %v7706 = vadd.f32 0.0, %v7705
        %v7707 = vpop.f32.mrf.mxu0
        %7708 = vmatprep.mubr.f32.mxu0 0.0
        %7709 = vmatmul.mubr.f32.gmra.mxu0 %v7487
        %v7710 = vpop.f32.mrf.mxu0
        %v7711 = vadd.f32 0.0, %v7710
        %v7712 = vpop.f32.mrf.mxu0
        %7713 = vdwg.mxu0
        %v7714 = vadd.f32 %v7320, %v7556
        %v7715 = vadd.f32 %v7321, %v7561
        %v7716 = vadd.f32 %v7322, %v7566
        %v7717 = vadd.f32 %v7323, %v7571
        %v7718 = vadd.f32 %v7324, %v7576
        %v7719 = vadd.f32 %v7325, %v7581
        %v7720 = vadd.f32 %v7326, %v7586
        %v7721 = vadd.f32 %v7327, %v7591
        %v7722 = vadd.f32 %v7328, %v7596
        %v7723 = vadd.f32 %v7329, %v7601
        %v7724 = vadd.f32 %v7330, %v7606
        %v7725 = vadd.f32 %v7331, %v7611
        %v7726 = vadd.f32 %v7332, %v7616
        %v7727 = vadd.f32 %v7333, %v7621
        %v7728 = vadd.f32 %v7334, %v7626
        %v7729 = vadd.f32 %v7335, %v7631
        %v7730 = vadd.f32 %v7336, %v7636
        %v7731 = vadd.f32 %v7337, %v7641
        %v7732 = vadd.f32 %v7338, %v7646
        %v7733 = vadd.f32 %v7339, %v7651
        %v7734 = vadd.f32 %v7340, %v7656
        %v7735 = vadd.f32 %v7341, %v7661
        %v7736 = vadd.f32 %v7342, %v7666
        %v7737 = vadd.f32 %v7343, %v7671
        %v7738 = vadd.f32 %v7344, %v7676
        %v7739 = vadd.f32 %v7345, %v7681
        %v7740 = vadd.f32 %v7346, %v7686
        %v7741 = vadd.f32 %v7347, %v7691
        %v7742 = vadd.f32 %v7348, %v7696
        %v7743 = vadd.f32 %v7349, %v7701
        %v7744 = vadd.f32 %v7350, %v7706
        %v7745 = vadd.f32 %v7351, %v7711
        %v7746 = vld [vmem:[%s718 + $0x2] sm:$0xff]
        %v7747 = vld [vmem:[%s718 + $0xa] sm:$0xff]
        %v7748 = vld [vmem:[%s718 + $0x1a] sm:$0xff]
        %v7749 = vld [vmem:[%s718 + $0x22] sm:$0xff]
        %v7750 = vld [vmem:[%s718 + $0x32] sm:$0xff]
        %v7751 = vld [vmem:[%s718 + $0x3a] sm:$0xff]
        %v7752 = vld [vmem:[%s718 + $0x4a] sm:$0xff]
        %v7753 = vld [vmem:[%s718 + $0x52] sm:$0xff]
        %v7754 = vld [vmem:[%s718 + $0x62] sm:$0xff]
        %v7755 = vld [vmem:[%s718 + $0x6a] sm:$0xff]
        %v7756 = vld [vmem:[%s718 + $0x7a] sm:$0xff]
        %v7757 = vld [vmem:[%s718 + $0x82] sm:$0xff]
        %v7758 = vld [vmem:[%s718 + $0x92] sm:$0xff]
        %v7759 = vld [vmem:[%s718 + $0x9a] sm:$0xff]
        %v7760 = vld [vmem:[%s718 + $0xaa] sm:$0xff]
        %v7761 = vld [vmem:[%s718 + $0xb2] sm:$0xff]
        %v7762 = vld [vmem:[%s718 + $0xc2] sm:$0xff]
        %v7763 = vld [vmem:[%s718 + $0xca] sm:$0xff]
        %v7764 = vld [vmem:[%s718 + $0xda] sm:$0xff]
        %v7765 = vld [vmem:[%s718 + $0xe2] sm:$0xff]
        %v7766 = vld [vmem:[%s718 + $0xf2] sm:$0xff]
        %v7767 = vld [vmem:[%s718 + $0xfa] sm:$0xff]
        %v7768 = vld [vmem:[%s718 + $0x10a] sm:$0xff]
        %v7769 = vld [vmem:[%s718 + $0x112] sm:$0xff]
        %v7770 = vld [vmem:[%s718 + $0x122] sm:$0xff]
        %v7771 = vld [vmem:[%s718 + $0x12a] sm:$0xff]
        %v7772 = vld [vmem:[%s718 + $0x13a] sm:$0xff]
        %v7773 = vld [vmem:[%s718 + $0x142] sm:$0xff]
        %v7774 = vld [vmem:[%s718 + $0x152] sm:$0xff]
        %v7775 = vld [vmem:[%s718 + $0x15a] sm:$0xff]
        %v7776 = vld [vmem:[%s718 + $0x16a] sm:$0xff]
        %v7777 = vld [vmem:[%s718 + $0x172] sm:$0xff]
        %s7778 = scalar_lea.vmem %s2, 512
        %v7779 = vld [vmem:[%s7778] sm:$0xff]
        %v7780 = vld [vmem:[%s7778 + $0x8] sm:$0xff]
        %v7781 = vld [vmem:[%s7778 + $0x10] sm:$0xff]
        %v7782 = vld [vmem:[%s7778 + $0x18] sm:$0xff]
        %v7783 = vld [vmem:[%s7778 + $0x20] sm:$0xff]
        %v7784 = vld [vmem:[%s7778 + $0x28] sm:$0xff]
        %v7785 = vld [vmem:[%s7778 + $0x30] sm:$0xff]
        %v7786 = vld [vmem:[%s7778 + $0x38] sm:$0xff]
        %v7788 = vsel %vm282, %v7746, 0
        %v7791 = vsel %vm282, %v7747, 0
        %v7794 = vsel %vm282, %v7748, 0
        %v7797 = vsel %vm282, %v7749, 0
        %v7800 = vsel %vm282, %v7750, 0
        %v7803 = vsel %vm282, %v7751, 0
        %v7806 = vsel %vm282, %v7752, 0
        %v7809 = vsel %vm282, %v7753, 0
        %v7812 = vsel %vm282, %v7754, 0
        %v7815 = vsel %vm282, %v7755, 0
        %v7818 = vsel %vm282, %v7756, 0
        %v7821 = vsel %vm282, %v7757, 0
        %v7824 = vsel %vm282, %v7758, 0
        %v7827 = vsel %vm282, %v7759, 0
        %v7830 = vsel %vm282, %v7760, 0
        %v7833 = vsel %vm282, %v7761, 0
        %v7836 = vsel %vm282, %v7762, 0
        %v7839 = vsel %vm282, %v7763, 0
        %v7842 = vsel %vm282, %v7764, 0
        %v7845 = vsel %vm282, %v7765, 0
        %v7848 = vsel %vm282, %v7766, 0
        %v7851 = vsel %vm282, %v7767, 0
        %v7854 = vsel %vm282, %v7768, 0
        %v7857 = vsel %vm282, %v7769, 0
        %v7860 = vsel %vm282, %v7770, 0
        %v7863 = vsel %vm282, %v7771, 0
        %v7866 = vsel %vm282, %v7772, 0
        %v7869 = vsel %vm282, %v7773, 0
        %v7872 = vsel %vm282, %v7774, 0
        %v7875 = vsel %vm282, %v7775, 0
        %v7878 = vsel %vm282, %v7776, 0
        %v7881 = vsel %vm282, %v7777, 0
        %7883 = vmatprep.subr.mxu0 0.0
        %7884 = vmatpush1.msra.mxu0 0.0
        %7885 = vmatprep.subr.mxu0 0.0
        %7886 = vmatpush1.msra.mxu0 0.0
        %7887 = vmatprep.subr.mxu0 0.0
        %7888 = vmatpush1.msra.mxu0 0.0
        %7889 = vmatprep.subr.mxu0 0.0
        %7890 = vmatpush1.msra.mxu0 0.0
        %7891 = vmatprep.subr.mxu0 0.0
        %7892 = vmatpush1.msra.mxu0 0.0
        %7893 = vmatprep.subr.mxu0 0.0
        %7894 = vmatpush1.msra.mxu0 0.0
        %7895 = vmatprep.subr.mxu0 0.0
        %7896 = vmatpush1.msra.mxu0 0.0
        %7897 = vmatprep.subr.mxu0 0.0
        %7898 = vmatpush1.msra.mxu0 0.0
        %7899 = vmatprep.subr.mxu0 0.0
        %7900 = vmatpush1.msra.mxu0 %v7786
        %7901 = vmatprep.subr.mxu0 0.0
        %7902 = vmatpush1.msra.mxu0 %v7785
        %7903 = vmatprep.subr.mxu0 0.0
        %7904 = vmatpush1.msra.mxu0 %v7784
        %7905 = vmatprep.subr.mxu0 0.0
        %7906 = vmatpush1.msra.mxu0 %v7783
        %7907 = vmatprep.subr.mxu0 0.0
        %7908 = vmatpush1.msra.mxu0 %v7782
        %7909 = vmatprep.subr.mxu0 0.0
        %7910 = vmatpush1.msra.mxu0 %v7781
        %7911 = vmatprep.subr.mxu0 0.0
        %7912 = vmatpush1.msra.mxu0 %v7780
        %7913 = vmatprep.subr.mxu0 0.0
        %7914 = vmatpush1.msra.mxu0 %v7779
        %7915 = vmatprep.subr.mxu0 0.0
        %7916 = vmatpush2.msra.mxu0 0.0
        %7917 = vmatprep.subr.mxu0 0.0
        %7918 = vmatpush2.msra.mxu0 0.0
        %7919 = vmatprep.subr.mxu0 0.0
        %7920 = vmatpush2.msra.mxu0 0.0
        %7921 = vmatprep.subr.mxu0 0.0
        %7922 = vmatpush2.msra.mxu0 0.0
        %7923 = vmatprep.subr.mxu0 0.0
        %7924 = vmatpush2.msra.mxu0 0.0
        %7925 = vmatprep.subr.mxu0 0.0
        %7926 = vmatpush2.msra.mxu0 0.0
        %7927 = vmatprep.subr.mxu0 0.0
        %7928 = vmatpush2.msra.mxu0 0.0
        %7929 = vmatprep.subr.mxu0 0.0
        %7930 = vmatpush2.msra.mxu0 0.0
        %7931 = vmatprep.subr.mxu0 0.0
        %7932 = vmatpush2.msra.mxu0 0.0
        %7933 = vmatprep.subr.mxu0 0.0
        %7934 = vmatpush2.msra.mxu0 0.0
        %7935 = vmatprep.subr.mxu0 0.0
        %7936 = vmatpush2.msra.mxu0 0.0
        %7937 = vmatprep.subr.mxu0 0.0
        %7938 = vmatpush2.msra.mxu0 0.0
        %7939 = vmatprep.subr.mxu0 0.0
        %7940 = vmatpush2.msra.mxu0 0.0
        %7941 = vmatprep.subr.mxu0 0.0
        %7942 = vmatpush2.msra.mxu0 0.0
        %7943 = vmatprep.subr.mxu0 0.0
        %7944 = vmatpush2.msra.mxu0 0.0
        %7945 = vmatprep.subr.mxu0 0.0
        %7946 = vmatpush2.msra.mxu0 0.0
        %7947 = vmatprep.mubr.f32.mxu0 0.0
        %7948 = vmatmul.mubr.f32.gmra.mxu0 %v7788
        %v7949 = vpop.f32.mrf.mxu0
        %v7950 = vadd.f32 0.0, %v7949
        %v7951 = vpop.f32.mrf.mxu0
        %7952 = vmatprep.mubr.f32.mxu0 0.0
        %7953 = vmatmul.mubr.f32.gmra.mxu0 %v7791
        %v7954 = vpop.f32.mrf.mxu0
        %v7955 = vadd.f32 0.0, %v7954
        %v7956 = vpop.f32.mrf.mxu0
        %7957 = vmatprep.mubr.f32.mxu0 0.0
        %7958 = vmatmul.mubr.f32.gmra.mxu0 %v7794
        %v7959 = vpop.f32.mrf.mxu0
        %v7960 = vadd.f32 0.0, %v7959
        %v7961 = vpop.f32.mrf.mxu0
        %7962 = vmatprep.mubr.f32.mxu0 0.0
        %7963 = vmatmul.mubr.f32.gmra.mxu0 %v7797
        %v7964 = vpop.f32.mrf.mxu0
        %v7965 = vadd.f32 0.0, %v7964
        %v7966 = vpop.f32.mrf.mxu0
        %7967 = vmatprep.mubr.f32.mxu0 0.0
        %7968 = vmatmul.mubr.f32.gmra.mxu0 %v7800
        %v7969 = vpop.f32.mrf.mxu0
        %v7970 = vadd.f32 0.0, %v7969
        %v7971 = vpop.f32.mrf.mxu0
        %7972 = vmatprep.mubr.f32.mxu0 0.0
        %7973 = vmatmul.mubr.f32.gmra.mxu0 %v7803
        %v7974 = vpop.f32.mrf.mxu0
        %v7975 = vadd.f32 0.0, %v7974
        %v7976 = vpop.f32.mrf.mxu0
        %7977 = vmatprep.mubr.f32.mxu0 0.0
        %7978 = vmatmul.mubr.f32.gmra.mxu0 %v7806
        %v7979 = vpop.f32.mrf.mxu0
        %v7980 = vadd.f32 0.0, %v7979
        %v7981 = vpop.f32.mrf.mxu0
        %7982 = vmatprep.mubr.f32.mxu0 0.0
        %7983 = vmatmul.mubr.f32.gmra.mxu0 %v7809
        %v7984 = vpop.f32.mrf.mxu0
        %v7985 = vadd.f32 0.0, %v7984
        %v7986 = vpop.f32.mrf.mxu0
        %7987 = vmatprep.mubr.f32.mxu0 0.0
        %7988 = vmatmul.mubr.f32.gmra.mxu0 %v7812
        %v7989 = vpop.f32.mrf.mxu0
        %v7990 = vadd.f32 0.0, %v7989
        %v7991 = vpop.f32.mrf.mxu0
        %7992 = vmatprep.mubr.f32.mxu0 0.0
        %7993 = vmatmul.mubr.f32.gmra.mxu0 %v7815
        %v7994 = vpop.f32.mrf.mxu0
        %v7995 = vadd.f32 0.0, %v7994
        %v7996 = vpop.f32.mrf.mxu0
        %7997 = vmatprep.mubr.f32.mxu0 0.0
        %7998 = vmatmul.mubr.f32.gmra.mxu0 %v7818
        %v7999 = vpop.f32.mrf.mxu0
        %v8000 = vadd.f32 0.0, %v7999
        %v8001 = vpop.f32.mrf.mxu0
        %8002 = vmatprep.mubr.f32.mxu0 0.0
        %8003 = vmatmul.mubr.f32.gmra.mxu0 %v7821
        %v8004 = vpop.f32.mrf.mxu0
        %v8005 = vadd.f32 0.0, %v8004
        %v8006 = vpop.f32.mrf.mxu0
        %8007 = vmatprep.mubr.f32.mxu0 0.0
        %8008 = vmatmul.mubr.f32.gmra.mxu0 %v7824
        %v8009 = vpop.f32.mrf.mxu0
        %v8010 = vadd.f32 0.0, %v8009
        %v8011 = vpop.f32.mrf.mxu0
        %8012 = vmatprep.mubr.f32.mxu0 0.0
        %8013 = vmatmul.mubr.f32.gmra.mxu0 %v7827
        %v8014 = vpop.f32.mrf.mxu0
        %v8015 = vadd.f32 0.0, %v8014
        %v8016 = vpop.f32.mrf.mxu0
        %8017 = vmatprep.mubr.f32.mxu0 0.0
        %8018 = vmatmul.mubr.f32.gmra.mxu0 %v7830
        %v8019 = vpop.f32.mrf.mxu0
        %v8020 = vadd.f32 0.0, %v8019
        %v8021 = vpop.f32.mrf.mxu0
        %8022 = vmatprep.mubr.f32.mxu0 0.0
        %8023 = vmatmul.mubr.f32.gmra.mxu0 %v7833
        %v8024 = vpop.f32.mrf.mxu0
        %v8025 = vadd.f32 0.0, %v8024
        %v8026 = vpop.f32.mrf.mxu0
        %8027 = vmatprep.mubr.f32.mxu0 0.0
        %8028 = vmatmul.mubr.f32.gmra.mxu0 %v7836
        %v8029 = vpop.f32.mrf.mxu0
        %v8030 = vadd.f32 0.0, %v8029
        %v8031 = vpop.f32.mrf.mxu0
        %8032 = vmatprep.mubr.f32.mxu0 0.0
        %8033 = vmatmul.mubr.f32.gmra.mxu0 %v7839
        %v8034 = vpop.f32.mrf.mxu0
        %v8035 = vadd.f32 0.0, %v8034
        %v8036 = vpop.f32.mrf.mxu0
        %8037 = vmatprep.mubr.f32.mxu0 0.0
        %8038 = vmatmul.mubr.f32.gmra.mxu0 %v7842
        %v8039 = vpop.f32.mrf.mxu0
        %v8040 = vadd.f32 0.0, %v8039
        %v8041 = vpop.f32.mrf.mxu0
        %8042 = vmatprep.mubr.f32.mxu0 0.0
        %8043 = vmatmul.mubr.f32.gmra.mxu0 %v7845
        %v8044 = vpop.f32.mrf.mxu0
        %v8045 = vadd.f32 0.0, %v8044
        %v8046 = vpop.f32.mrf.mxu0
        %8047 = vmatprep.mubr.f32.mxu0 0.0
        %8048 = vmatmul.mubr.f32.gmra.mxu0 %v7848
        %v8049 = vpop.f32.mrf.mxu0
        %v8050 = vadd.f32 0.0, %v8049
        %v8051 = vpop.f32.mrf.mxu0
        %8052 = vmatprep.mubr.f32.mxu0 0.0
        %8053 = vmatmul.mubr.f32.gmra.mxu0 %v7851
        %v8054 = vpop.f32.mrf.mxu0
        %v8055 = vadd.f32 0.0, %v8054
        %v8056 = vpop.f32.mrf.mxu0
        %8057 = vmatprep.mubr.f32.mxu0 0.0
        %8058 = vmatmul.mubr.f32.gmra.mxu0 %v7854
        %v8059 = vpop.f32.mrf.mxu0
        %v8060 = vadd.f32 0.0, %v8059
        %v8061 = vpop.f32.mrf.mxu0
        %8062 = vmatprep.mubr.f32.mxu0 0.0
        %8063 = vmatmul.mubr.f32.gmra.mxu0 %v7857
        %v8064 = vpop.f32.mrf.mxu0
        %v8065 = vadd.f32 0.0, %v8064
        %v8066 = vpop.f32.mrf.mxu0
        %8067 = vmatprep.mubr.f32.mxu0 0.0
        %8068 = vmatmul.mubr.f32.gmra.mxu0 %v7860
        %v8069 = vpop.f32.mrf.mxu0
        %v8070 = vadd.f32 0.0, %v8069
        %v8071 = vpop.f32.mrf.mxu0
        %8072 = vmatprep.mubr.f32.mxu0 0.0
        %8073 = vmatmul.mubr.f32.gmra.mxu0 %v7863
        %v8074 = vpop.f32.mrf.mxu0
        %v8075 = vadd.f32 0.0, %v8074
        %v8076 = vpop.f32.mrf.mxu0
        %8077 = vmatprep.mubr.f32.mxu0 0.0
        %8078 = vmatmul.mubr.f32.gmra.mxu0 %v7866
        %v8079 = vpop.f32.mrf.mxu0
        %v8080 = vadd.f32 0.0, %v8079
        %v8081 = vpop.f32.mrf.mxu0
        %8082 = vmatprep.mubr.f32.mxu0 0.0
        %8083 = vmatmul.mubr.f32.gmra.mxu0 %v7869
        %v8084 = vpop.f32.mrf.mxu0
        %v8085 = vadd.f32 0.0, %v8084
        %v8086 = vpop.f32.mrf.mxu0
        %8087 = vmatprep.mubr.f32.mxu0 0.0
        %8088 = vmatmul.mubr.f32.gmra.mxu0 %v7872
        %v8089 = vpop.f32.mrf.mxu0
        %v8090 = vadd.f32 0.0, %v8089
        %v8091 = vpop.f32.mrf.mxu0
        %8092 = vmatprep.mubr.f32.mxu0 0.0
        %8093 = vmatmul.mubr.f32.gmra.mxu0 %v7875
        %v8094 = vpop.f32.mrf.mxu0
        %v8095 = vadd.f32 0.0, %v8094
        %v8096 = vpop.f32.mrf.mxu0
        %8097 = vmatprep.mubr.f32.mxu0 0.0
        %8098 = vmatmul.mubr.f32.gmra.mxu0 %v7878
        %v8099 = vpop.f32.mrf.mxu0
        %v8100 = vadd.f32 0.0, %v8099
        %v8101 = vpop.f32.mrf.mxu0
        %8102 = vmatprep.mubr.f32.mxu0 0.0
        %8103 = vmatmul.mubr.f32.gmra.mxu0 %v7881
        %v8104 = vpop.f32.mrf.mxu0
        %v8105 = vadd.f32 0.0, %v8104
        %v8106 = vpop.f32.mrf.mxu0
        %8107 = vdwg.mxu0
        %v8108 = vadd.f32 %v7714, %v7950
        %v8109 = vadd.f32 %v7715, %v7955
        %v8110 = vadd.f32 %v7716, %v7960
        %v8111 = vadd.f32 %v7717, %v7965
        %v8112 = vadd.f32 %v7718, %v7970
        %v8113 = vadd.f32 %v7719, %v7975
        %v8114 = vadd.f32 %v7720, %v7980
        %v8115 = vadd.f32 %v7721, %v7985
        %v8116 = vadd.f32 %v7722, %v7990
        %v8117 = vadd.f32 %v7723, %v7995
        %v8118 = vadd.f32 %v7724, %v8000
        %v8119 = vadd.f32 %v7725, %v8005
        %v8120 = vadd.f32 %v7726, %v8010
        %v8121 = vadd.f32 %v7727, %v8015
        %v8122 = vadd.f32 %v7728, %v8020
        %v8123 = vadd.f32 %v7729, %v8025
        %v8124 = vadd.f32 %v7730, %v8030
        %v8125 = vadd.f32 %v7731, %v8035
        %v8126 = vadd.f32 %v7732, %v8040
        %v8127 = vadd.f32 %v7733, %v8045
        %v8128 = vadd.f32 %v7734, %v8050
        %v8129 = vadd.f32 %v7735, %v8055
        %v8130 = vadd.f32 %v7736, %v8060
        %v8131 = vadd.f32 %v7737, %v8065
        %v8132 = vadd.f32 %v7738, %v8070
        %v8133 = vadd.f32 %v7739, %v8075
        %v8134 = vadd.f32 %v7740, %v8080
        %v8135 = vadd.f32 %v7741, %v8085
        %v8136 = vadd.f32 %v7742, %v8090
        %v8137 = vadd.f32 %v7743, %v8095
        %v8138 = vadd.f32 %v7744, %v8100
        %v8139 = vadd.f32 %v7745, %v8105
        %v8140 = vld [vmem:[%s5] sm:$0xff]
        %v8141 = vld [vmem:[%s5 + $0x8] sm:$0xff]
        %v8142 = vld [vmem:[%s5 + $0x10] sm:$0xff]
        %v8143 = vld [vmem:[%s5 + $0x18] sm:$0xff]
        %v8144 = vld [vmem:[%s5 + $0x20] sm:$0xff]
        %v8145 = vld [vmem:[%s5 + $0x28] sm:$0xff]
        %v8146 = vld [vmem:[%s5 + $0x30] sm:$0xff]
        %v8147 = vld [vmem:[%s5 + $0x38] sm:$0xff]
        %v8148 = vld [vmem:[%s5 + $0x40] sm:$0xff]
        %v8149 = vld [vmem:[%s5 + $0x48] sm:$0xff]
        %v8150 = vld [vmem:[%s5 + $0x50] sm:$0xff]
        %v8151 = vld [vmem:[%s5 + $0x58] sm:$0xff]
        %v8152 = vld [vmem:[%s5 + $0x60] sm:$0xff]
        %v8153 = vld [vmem:[%s5 + $0x68] sm:$0xff]
        %v8154 = vld [vmem:[%s5 + $0x70] sm:$0xff]
        %v8155 = vld [vmem:[%s5 + $0x78] sm:$0xff]
        %8156 = vmatprep.subr.mxu0 0.0
        %8157 = vmatpush1.msra.mxu0 %v265
        %8158 = vmatprep.subr.mxu0 0.0
        %8159 = vmatpush1.msra.mxu0 %v264
        %8160 = vmatprep.subr.mxu0 0.0
        %8161 = vmatpush1.msra.mxu0 %v263
        %8162 = vmatprep.subr.mxu0 0.0
        %8163 = vmatpush1.msra.mxu0 %v262
        %8164 = vmatprep.subr.mxu0 0.0
        %8165 = vmatpush1.msra.mxu0 %v261
        %8166 = vmatprep.subr.mxu0 0.0
        %8167 = vmatpush1.msra.mxu0 %v260
        %8168 = vmatprep.subr.mxu0 0.0
        %8169 = vmatpush1.msra.mxu0 %v259
        %8170 = vmatprep.subr.mxu0 0.0
        %8171 = vmatpush1.msra.mxu0 %v258
        %8172 = vmatprep.subr.mxu0 0.0
        %8173 = vmatpush1.msra.mxu0 %v257
        %8174 = vmatprep.subr.mxu0 0.0
        %8175 = vmatpush1.msra.mxu0 %v256
        %8176 = vmatprep.subr.mxu0 0.0
        %8177 = vmatpush1.msra.mxu0 %v255
        %8178 = vmatprep.subr.mxu0 0.0
        %8179 = vmatpush1.msra.mxu0 %v254
        %8180 = vmatprep.subr.mxu0 0.0
        %8181 = vmatpush1.msra.mxu0 %v253
        %8182 = vmatprep.subr.mxu0 0.0
        %8183 = vmatpush1.msra.mxu0 %v252
        %8184 = vmatprep.subr.mxu0 0.0
        %8185 = vmatpush1.msra.mxu0 %v251
        %8186 = vmatprep.subr.mxu0 0.0
        %8187 = vmatpush1.msra.mxu0 %v250
        %8188 = vmatprep.subr.mxu0 0.0
        %8189 = vmatpush2.msra.mxu0 %v281
        %8190 = vmatprep.subr.mxu0 0.0
        %8191 = vmatpush2.msra.mxu0 %v280
        %8192 = vmatprep.subr.mxu0 0.0
        %8193 = vmatpush2.msra.mxu0 %v279
        %8194 = vmatprep.subr.mxu0 0.0
        %8195 = vmatpush2.msra.mxu0 %v278
        %8196 = vmatprep.subr.mxu0 0.0
        %8197 = vmatpush2.msra.mxu0 %v277
        %8198 = vmatprep.subr.mxu0 0.0
        %8199 = vmatpush2.msra.mxu0 %v276
        %8200 = vmatprep.subr.mxu0 0.0
        %8201 = vmatpush2.msra.mxu0 %v275
        %8202 = vmatprep.subr.mxu0 0.0
        %8203 = vmatpush2.msra.mxu0 %v274
        %8204 = vmatprep.subr.mxu0 0.0
        %8205 = vmatpush2.msra.mxu0 %v273
        %8206 = vmatprep.subr.mxu0 0.0
        %8207 = vmatpush2.msra.mxu0 %v272
        %8208 = vmatprep.subr.mxu0 0.0
        %8209 = vmatpush2.msra.mxu0 %v271
        %8210 = vmatprep.subr.mxu0 0.0
        %8211 = vmatpush2.msra.mxu0 %v270
        %8212 = vmatprep.subr.mxu0 0.0
        %8213 = vmatpush2.msra.mxu0 %v269
        %8214 = vmatprep.subr.mxu0 0.0
        %8215 = vmatpush2.msra.mxu0 %v268
        %8216 = vmatprep.subr.mxu0 0.0
        %8217 = vmatpush2.msra.mxu0 %v267
        %8218 = vmatprep.subr.mxu0 0.0
        %8219 = vmatpush2.msra.mxu0 %v266
        %8220 = vmatprep.mubr.f32.mxu0 %v8141
        %8221 = vmatmul.mubr.f32.gmra.mxu0 %v8140
        %v8222 = vpop.f32.mrf.mxu0
        %v8223 = vadd.f32 0.0, %v8222
        %v8224 = vpop.f32.mrf.mxu0
        %8225 = vmatprep.mubr.f32.mxu0 %v8143
        %8226 = vmatmul.mubr.f32.gmra.mxu0 %v8142
        %v8227 = vpop.f32.mrf.mxu0
        %v8228 = vadd.f32 0.0, %v8227
        %v8229 = vpop.f32.mrf.mxu0
        %8230 = vmatprep.mubr.f32.mxu0 %v8145
        %8231 = vmatmul.mubr.f32.gmra.mxu0 %v8144
        %v8232 = vpop.f32.mrf.mxu0
        %v8233 = vadd.f32 0.0, %v8232
        %v8234 = vpop.f32.mrf.mxu0
        %8235 = vmatprep.mubr.f32.mxu0 %v8147
        %8236 = vmatmul.mubr.f32.gmra.mxu0 %v8146
        %v8237 = vpop.f32.mrf.mxu0
        %v8238 = vadd.f32 0.0, %v8237
        %v8239 = vpop.f32.mrf.mxu0
        %8240 = vmatprep.mubr.f32.mxu0 %v8149
        %8241 = vmatmul.mubr.f32.gmra.mxu0 %v8148
        %v8242 = vpop.f32.mrf.mxu0
        %v8243 = vadd.f32 0.0, %v8242
        %v8244 = vpop.f32.mrf.mxu0
        %8245 = vmatprep.mubr.f32.mxu0 %v8151
        %8246 = vmatmul.mubr.f32.gmra.mxu0 %v8150
        %v8247 = vpop.f32.mrf.mxu0
        %v8248 = vadd.f32 0.0, %v8247
        %v8249 = vpop.f32.mrf.mxu0
        %8250 = vmatprep.mubr.f32.mxu0 %v8153
        %8251 = vmatmul.mubr.f32.gmra.mxu0 %v8152
        %v8252 = vpop.f32.mrf.mxu0
        %v8253 = vadd.f32 0.0, %v8252
        %v8254 = vpop.f32.mrf.mxu0
        %8255 = vmatprep.mubr.f32.mxu0 %v8155
        %8256 = vmatmul.mubr.f32.gmra.mxu0 %v8154
        %v8257 = vpop.f32.mrf.mxu0
        %v8258 = vadd.f32 0.0, %v8257
        %v8259 = vpop.f32.mrf.mxu0
        %8260 = vdwg.mxu0
        %v8261 = vld [vmem:[%s3] sm:$0xff]
        %v8262 = vld [vmem:[%s3 + $0x8] sm:$0xff]
        %v8263 = vld [vmem:[%s3 + $0x10] sm:$0xff]
        %v8264 = vld [vmem:[%s3 + $0x18] sm:$0xff]
        %v8265 = vld [vmem:[%s3 + $0x20] sm:$0xff]
        %v8266 = vld [vmem:[%s3 + $0x28] sm:$0xff]
        %v8267 = vld [vmem:[%s3 + $0x30] sm:$0xff]
        %v8268 = vld [vmem:[%s3 + $0x38] sm:$0xff]
        %v8269 = vld [vmem:[%s4] sm:$0x1]
        %v8271 = vlaneseq
        %v8272 = vshrl.u32 %v8271, 7
        %v8273 = vsub.s32 0, %v8272
        %v8274 = vrot.slane %v8269, %v8273
        %v8277 = vsel %vm282, %v8223, 0
        %v8280 = vsel %vm282, %v8228, 0
        %v8283 = vsel %vm282, %v8233, 0
        %v8286 = vsel %vm282, %v8238, 0
        %v8289 = vsel %vm282, %v8243, 0
        %v8292 = vsel %vm282, %v8248, 0
        %v8295 = vsel %vm282, %v8253, 0
        %v8298 = vsel %vm282, %v8258, 0
        %8300 = vmatprep.subr.mxu0 0.0
        %8301 = vmatpush1.msra.mxu0 0.0
        %8302 = vmatprep.subr.mxu0 0.0
        %8303 = vmatpush1.msra.mxu0 0.0
        %8304 = vmatprep.subr.mxu0 0.0
        %8305 = vmatpush1.msra.mxu0 0.0
        %8306 = vmatprep.subr.mxu0 0.0
        %8307 = vmatpush1.msra.mxu0 0.0
        %8308 = vmatprep.subr.mxu0 0.0
        %8309 = vmatpush1.msra.mxu0 0.0
        %8310 = vmatprep.subr.mxu0 0.0
        %8311 = vmatpush1.msra.mxu0 0.0
        %8312 = vmatprep.subr.mxu0 0.0
        %8313 = vmatpush1.msra.mxu0 0.0
        %8314 = vmatprep.subr.mxu0 0.0
        %8315 = vmatpush1.msra.mxu0 0.0
        %8316 = vmatprep.subr.mxu0 0.0
        %8317 = vmatpush1.msra.mxu0 %v8268
        %8318 = vmatprep.subr.mxu0 0.0
        %8319 = vmatpush1.msra.mxu0 %v8267
        %8320 = vmatprep.subr.mxu0 0.0
        %8321 = vmatpush1.msra.mxu0 %v8266
        %8322 = vmatprep.subr.mxu0 0.0
        %8323 = vmatpush1.msra.mxu0 %v8265
        %8324 = vmatprep.subr.mxu0 0.0
        %8325 = vmatpush1.msra.mxu0 %v8264
        %8326 = vmatprep.subr.mxu0 0.0
        %8327 = vmatpush1.msra.mxu0 %v8263
        %8328 = vmatprep.subr.mxu0 0.0
        %8329 = vmatpush1.msra.mxu0 %v8262
        %8330 = vmatprep.subr.mxu0 0.0
        %8331 = vmatpush1.msra.mxu0 %v8261
        %8332 = vmatprep.subr.mxu0 0.0
        %8333 = vmatpush2.msra.mxu0 0.0
        %8334 = vmatprep.subr.mxu0 0.0
        %8335 = vmatpush2.msra.mxu0 0.0
        %8336 = vmatprep.subr.mxu0 0.0
        %8337 = vmatpush2.msra.mxu0 0.0
        %8338 = vmatprep.subr.mxu0 0.0
        %8339 = vmatpush2.msra.mxu0 0.0
        %8340 = vmatprep.subr.mxu0 0.0
        %8341 = vmatpush2.msra.mxu0 0.0
        %8342 = vmatprep.subr.mxu0 0.0
        %8343 = vmatpush2.msra.mxu0 0.0
        %8344 = vmatprep.subr.mxu0 0.0
        %8345 = vmatpush2.msra.mxu0 0.0
        %8346 = vmatprep.subr.mxu0 0.0
        %8347 = vmatpush2.msra.mxu0 0.0
        %8348 = vmatprep.subr.mxu0 0.0
        %8349 = vmatpush2.msra.mxu0 0.0
        %8350 = vmatprep.subr.mxu0 0.0
        %8351 = vmatpush2.msra.mxu0 0.0
        %8352 = vmatprep.subr.mxu0 0.0
        %8353 = vmatpush2.msra.mxu0 0.0
        %8354 = vmatprep.subr.mxu0 0.0
        %8355 = vmatpush2.msra.mxu0 0.0
        %8356 = vmatprep.subr.mxu0 0.0
        %8357 = vmatpush2.msra.mxu0 0.0
        %8358 = vmatprep.subr.mxu0 0.0
        %8359 = vmatpush2.msra.mxu0 0.0
        %8360 = vmatprep.subr.mxu0 0.0
        %8361 = vmatpush2.msra.mxu0 0.0
        %8362 = vmatprep.subr.mxu0 0.0
        %8363 = vmatpush2.msra.mxu0 0.0
        %8364 = vmatprep.mubr.f32.mxu0 0.0
        %8365 = vmatmul.mubr.f32.gmra.mxu0 %v8277
        %v8366 = vpop.f32.mrf.mxu0
        %v8367 = vadd.f32 %v8274, %v8366
        %v8368 = vpop.f32.mrf.mxu0
        %8369 = vmatprep.mubr.f32.mxu0 0.0
        %8370 = vmatmul.mubr.f32.gmra.mxu0 %v8280
        %v8371 = vpop.f32.mrf.mxu0
        %v8372 = vadd.f32 %v8274, %v8371
        %v8373 = vpop.f32.mrf.mxu0
        %8374 = vmatprep.mubr.f32.mxu0 0.0
        %8375 = vmatmul.mubr.f32.gmra.mxu0 %v8283
        %v8376 = vpop.f32.mrf.mxu0
        %v8377 = vadd.f32 %v8274, %v8376
        %v8378 = vpop.f32.mrf.mxu0
        %8379 = vmatprep.mubr.f32.mxu0 0.0
        %8380 = vmatmul.mubr.f32.gmra.mxu0 %v8286
        %v8381 = vpop.f32.mrf.mxu0
        %v8382 = vadd.f32 %v8274, %v8381
        %v8383 = vpop.f32.mrf.mxu0
        %8384 = vmatprep.mubr.f32.mxu0 0.0
        %8385 = vmatmul.mubr.f32.gmra.mxu0 %v8289
        %v8386 = vpop.f32.mrf.mxu0
        %v8387 = vadd.f32 %v8274, %v8386
        %v8388 = vpop.f32.mrf.mxu0
        %8389 = vmatprep.mubr.f32.mxu0 0.0
        %8390 = vmatmul.mubr.f32.gmra.mxu0 %v8292
        %v8391 = vpop.f32.mrf.mxu0
        %v8392 = vadd.f32 %v8274, %v8391
        %v8393 = vpop.f32.mrf.mxu0
        %8394 = vmatprep.mubr.f32.mxu0 0.0
        %8395 = vmatmul.mubr.f32.gmra.mxu0 %v8295
        %v8396 = vpop.f32.mrf.mxu0
        %v8397 = vadd.f32 %v8274, %v8396
        %v8398 = vpop.f32.mrf.mxu0
        %8399 = vmatprep.mubr.f32.mxu0 0.0
        %8400 = vmatmul.mubr.f32.gmra.mxu0 %v8298
        %v8401 = vpop.f32.mrf.mxu0
        %v8402 = vadd.f32 %v8274, %v8401
        %v8403 = vpop.f32.mrf.mxu0
        %8404 = vdwg.mxu0
        %8405 = vmatprep.subr.mxu0 0.0
        %8406 = vmatpush1.msra.mxu0 %v8123
        %8407 = vmatprep.subr.mxu0 0.0
        %8408 = vmatpush1.msra.mxu0 %v8122
        %8409 = vmatprep.subr.mxu0 0.0
        %8410 = vmatpush1.msra.mxu0 %v8121
        %8411 = vmatprep.subr.mxu0 0.0
        %8412 = vmatpush1.msra.mxu0 %v8120
        %8413 = vmatprep.subr.mxu0 0.0
        %8414 = vmatpush1.msra.mxu0 %v8119
        %8415 = vmatprep.subr.mxu0 0.0
        %8416 = vmatpush1.msra.mxu0 %v8118
        %8417 = vmatprep.subr.mxu0 0.0
        %8418 = vmatpush1.msra.mxu0 %v8117
        %8419 = vmatprep.subr.mxu0 0.0
        %8420 = vmatpush1.msra.mxu0 %v8116
        %8421 = vmatprep.subr.mxu0 0.0
        %8422 = vmatpush1.msra.mxu0 %v8115
        %8423 = vmatprep.subr.mxu0 0.0
        %8424 = vmatpush1.msra.mxu0 %v8114
        %8425 = vmatprep.subr.mxu0 0.0
        %8426 = vmatpush1.msra.mxu0 %v8113
        %8427 = vmatprep.subr.mxu0 0.0
        %8428 = vmatpush1.msra.mxu0 %v8112
        %8429 = vmatprep.subr.mxu0 0.0
        %8430 = vmatpush1.msra.mxu0 %v8111
        %8431 = vmatprep.subr.mxu0 0.0
        %8432 = vmatpush1.msra.mxu0 %v8110
        %8433 = vmatprep.subr.mxu0 0.0
        %8434 = vmatpush1.msra.mxu0 %v8109
        %8435 = vmatprep.subr.mxu0 0.0
        %8436 = vmatpush1.msra.mxu0 %v8108
        %8437 = vmatprep.subr.mxu0 0.0
        %8438 = vmatpush2.msra.mxu0 %v8139
        %8439 = vmatprep.subr.mxu0 0.0
        %8440 = vmatpush2.msra.mxu0 %v8138
        %8441 = vmatprep.subr.mxu0 0.0
        %8442 = vmatpush2.msra.mxu0 %v8137
        %8443 = vmatprep.subr.mxu0 0.0
        %8444 = vmatpush2.msra.mxu0 %v8136
        %8445 = vmatprep.subr.mxu0 0.0
        %8446 = vmatpush2.msra.mxu0 %v8135
        %8447 = vmatprep.subr.mxu0 0.0
        %8448 = vmatpush2.msra.mxu0 %v8134
        %8449 = vmatprep.subr.mxu0 0.0
        %8450 = vmatpush2.msra.mxu0 %v8133
        %8451 = vmatprep.subr.mxu0 0.0
        %8452 = vmatpush2.msra.mxu0 %v8132
        %8453 = vmatprep.subr.mxu0 0.0
        %8454 = vmatpush2.msra.mxu0 %v8131
        %8455 = vmatprep.subr.mxu0 0.0
        %8456 = vmatpush2.msra.mxu0 %v8130
        %8457 = vmatprep.subr.mxu0 0.0
        %8458 = vmatpush2.msra.mxu0 %v8129
        %8459 = vmatprep.subr.mxu0 0.0
        %8460 = vmatpush2.msra.mxu0 %v8128
        %8461 = vmatprep.subr.mxu0 0.0
        %8462 = vmatpush2.msra.mxu0 %v8127
        %8463 = vmatprep.subr.mxu0 0.0
        %8464 = vmatpush2.msra.mxu0 %v8126
        %8465 = vmatprep.subr.mxu0 0.0
        %8466 = vmatpush2.msra.mxu0 %v8125
        %8467 = vmatprep.subr.mxu0 0.0
        %8468 = vmatpush2.msra.mxu0 %v8124
        %8469 = vmatprep.mubr.f32.mxu0 %v8141
        %8470 = vmatmul.mubr.f32.gmra.mxu0 %v8140
        %v8471 = vpop.f32.mrf.mxu0
        %v8472 = vadd.f32 %v8367, %v8471
        %v8473 = vpop.f32.mrf.mxu0
        %8474 = vmatprep.mubr.f32.mxu0 %v8143
        %8475 = vmatmul.mubr.f32.gmra.mxu0 %v8142
        %v8476 = vpop.f32.mrf.mxu0
        %v8477 = vadd.f32 %v8372, %v8476
        %v8478 = vpop.f32.mrf.mxu0
        %8479 = vmatprep.mubr.f32.mxu0 %v8145
        %8480 = vmatmul.mubr.f32.gmra.mxu0 %v8144
        %v8481 = vpop.f32.mrf.mxu0
        %v8482 = vadd.f32 %v8377, %v8481
        %v8483 = vpop.f32.mrf.mxu0
        %8484 = vmatprep.mubr.f32.mxu0 %v8147
        %8485 = vmatmul.mubr.f32.gmra.mxu0 %v8146
        %v8486 = vpop.f32.mrf.mxu0
        %v8487 = vadd.f32 %v8382, %v8486
        %v8488 = vpop.f32.mrf.mxu0
        %8489 = vmatprep.mubr.f32.mxu0 %v8149
        %8490 = vmatmul.mubr.f32.gmra.mxu0 %v8148
        %v8491 = vpop.f32.mrf.mxu0
        %v8492 = vadd.f32 %v8387, %v8491
        %v8493 = vpop.f32.mrf.mxu0
        %8494 = vmatprep.mubr.f32.mxu0 %v8151
        %8495 = vmatmul.mubr.f32.gmra.mxu0 %v8150
        %v8496 = vpop.f32.mrf.mxu0
        %v8497 = vadd.f32 %v8392, %v8496
        %v8498 = vpop.f32.mrf.mxu0
        %8499 = vmatprep.mubr.f32.mxu0 %v8153
        %8500 = vmatmul.mubr.f32.gmra.mxu0 %v8152
        %v8501 = vpop.f32.mrf.mxu0
        %v8502 = vadd.f32 %v8397, %v8501
        %v8503 = vpop.f32.mrf.mxu0
        %8504 = vmatprep.mubr.f32.mxu0 %v8155
        %8505 = vmatmul.mubr.f32.gmra.mxu0 %v8154
        %v8506 = vpop.f32.mrf.mxu0
        %v8507 = vadd.f32 %v8402, %v8506
        %v8508 = vpop.f32.mrf.mxu0
        %8509 = vdwg.mxu0
        %8510 = vst [vmem:[%s244] sm:$0xff] %v8472
        %8511 = vst [vmem:[%s244 + $0x8] sm:$0xff] %v8477
        %8512 = vst [vmem:[%s244 + $0x10] sm:$0xff] %v8482
        %8513 = vst [vmem:[%s244 + $0x18] sm:$0xff] %v8487
        %8514 = vst [vmem:[%s244 + $0x20] sm:$0xff] %v8492
        %8515 = vst [vmem:[%s244 + $0x28] sm:$0xff] %v8497
        %8516 = vst [vmem:[%s244 + $0x30] sm:$0xff] %v8502
        %8517 = vst [vmem:[%s244 + $0x38] sm:$0xff] %v8507
        %s8518 = sand.u32 %s159, 1
        %s8519 = scalar_lea.sflag [#allocation4], %s8518
        %s8520 = sand.u32 %s159, 1
        %s8521 = smul.addr %s8520, 64
        %s8522 = scalar_lea.vmem [#allocation3], %s8521
        // Predicated region
        $region45: #{basic_block_forward.1} parent=43 // pred_check
          %p8523 = pneg %p169
        $region46: #{basic_block_forward.1} parent=43 // pred_check_branch
          %8525 = sbr.rel (%p8523) target = $region48
        $region47: #{basic_block_forward.1} parent=43 // pred_region
          %s8527 = ssub.s32 1024, 1024
          %8528 = vsyncadd %s8519, %s8527
          %s8529 = smul.addr %s20, 8
          %s8530 = smul.addr %s8529, 128
          %s8531 = scalar_lea.hbm %s6, %s8530
          %s8532 = sshll.u32 %s8522, 4
          %s8533 = int_to_ptr.vmem [resolvable:$true] %s8532
          %8538 = dma.vmem_to_hbm [thread:$0]  %s8533, 1024, %s8531, %s8519, 128, 128, 8
        $region48: #{basic_block_forward.1} parent=43 // pred_fallthru
          _
      $region44: #{basic_block_forward.1} parent=5 // pred_fallthru
        _
      %p8539 = scmp.le.s32.totalorder 2, %s15
      // Predicated region
      $region49: #{basic_block_forward.1} parent=5 // pred_check
        %p8540 = pneg %p8539
      $region50: #{basic_block_forward.1} parent=5 // pred_check_branch
        %8542 = sbr.rel (%p8540) target = $region52
      $region51: #{basic_block_forward.1} parent=5 // pred_region
        %s8543 = ssub.s32 %s15, 2
        // Predicated region
        $region53: #{basic_block_forward.1} parent=51 // pred_check
          %p8544 = pneg %p175
        $region54: #{basic_block_forward.1} parent=51 // pred_check_branch
          %8546 = sbr.rel (%p8544) target = $region56
        $region55: #{basic_block_forward.1} parent=51 // pred_region
          %s8547 = sand.u32 %s160, 1
          %s8548 = scalar_lea.sflag [#allocation4], %s8547
          %s8549 = sand.u32 %s160, 1
          %s8550 = smul.addr %s8549, 64
          %s8551 = scalar_lea.vmem [#allocation3], %s8550
          %8552 = dma.done %s8548, 1024
        $region56: #{basic_block_forward.1} parent=51 // pred_fallthru
          _
      $region52: #{basic_block_forward.1} parent=5 // pred_fallthru
        _
    $region6: #{basic_block_forward.1} parent=1 // loop_footer
      %s19 = sadd.s32 1, %s15
    $region7: #{basic_block_forward.1} parent=1 // loop_footer_branch
      %14 = sbr.rel target = $region3
    $region8: #{basic_block_forward.1} parent=1 // loop_exit
      _
    %8553 = vsyncpa [#allocation4], 1
    %s8554 = scalar_lea.sflag [#allocation4], 1
    %8555 = vsyncpa %s8554, 1

</llo_original>
